<compile_context>
chip_gen: v6e
topology: v6e:2x2x1
jax: 0.10.0
libtpu: 0.0.40
codegen_flags: <defaults>
</compile_context>

<pallas_src>
import functools

import numpy as np
import jax
import jax.numpy as jnp
from jax.experimental import pallas as pl
from jax.experimental.pallas import tpu as pltpu

_INNER_MLP_MULT = 2
_BN_EPS = 1e-5
_EPS = 0.1  # edge_eps / cycle_eps / eps Parameters (init value in the module)


# ----------------------------------------------------------------------------------
# Host-side slab packer: many small [r, c<=128] matrices -> one lane-dense
# [sum(r_padded), 128] slab.  One DMA per slab; the kernel reads blocks with
# static, tile-aligned slices (bf16 blocks aligned to 16 sublanes, f32 to 8).
# ----------------------------------------------------------------------------------
class _SlabPacker:
    def __init__(self, dtype, lanes=128):
        self.dtype = dtype
        self.lanes = lanes
        self.align = 16 if np.dtype(dtype).itemsize == 2 else 8
        self.blocks = []
        self.index = {}
        self.rows = 0

    def add(self, name, mat):
        mat = np.asarray(mat, np.float32)
        assert mat.ndim == 2 and mat.shape[1] <= self.lanes, (name, mat.shape)
        r, c = mat.shape
        rp = -(-r // self.align) * self.align
        buf = np.zeros((rp, self.lanes), np.float32)
        buf[:r, :c] = mat
        self.blocks.append(buf)
        self.index[name] = (self.rows, r, c)
        self.rows += rp

    def finalize(self):
        slab = np.concatenate(self.blocks, axis=0)
        return jnp.asarray(slab, self.dtype), dict(self.index)


# ----------------------------------------------------------------------------------
# Single fused Pallas kernel: the entire forward pass, VMEM resident.
# ----------------------------------------------------------------------------------
def _forward_kernel(g_idx, w_idx, b_idx, num_layers, embed_dim, hidden_dim,
                    g_ref, w_ref, b_ref, node_emb_ref, edge_emb_ref, out_ref):
    H = hidden_dim
    ED = embed_dim
    bf16 = jnp.bfloat16

    # --- static slab views (offsets/sizes are compile-time Python ints) ---
    def _view(ref, idx, name):
        off, r, c = idx[name]
        return ref[off:off + r, 0:c]

    gv = lambda name: _view(g_ref, g_idx, name)     # membership matrices (bf16)
    wv = lambda name: _view(w_ref, w_idx, name)     # weights (bf16)
    bv = lambda name: _view(b_ref, b_idx, name)     # biases  (f32, shape [1, c])

    def dot(a, b):
        return jnp.dot(a.astype(bf16), b.astype(bf16),
                       preferred_element_type=jnp.float32)

    def bn(y):
        # BatchNorm1d, training-mode batch stats (fresh module -> identity affine).
        # sum / sum-of-squares form keeps the two cross-sublane reduces independent.
        inv_n = 1.0 / y.shape[0]
        s1 = jnp.sum(y, axis=0, keepdims=True)
        s2 = jnp.sum(y * y, axis=0, keepdims=True)
        mean = s1 * inv_n
        var = s2 * inv_n - mean * mean
        return (y - mean) * jax.lax.rsqrt(var + _BN_EPS)

    def relu(y):
        return jnp.maximum(y, 0.0)

    def mlp2(x, w1, w2):
        # Sequential(Linear(no bias), BN, ReLU, Linear(no bias), BN, ReLU)
        y = relu(bn(dot(x, w1)))
        return relu(bn(dot(y, w2)))

    node_emb = node_emb_ref[...]                     # [N, ED] f32
    edge_emb = edge_emb_ref[...]                     # [E, ED] f32
    cyc = ("c5", "c6")

    # ---------------- stem: edge representation ----------------
    w1 = wv("edge_mlp1_w")                           # [2*ED, H*M]
    x = (dot(dot(gv("n2e"), node_emb), w1[0:ED, :])
         + dot(dot(gv("e02e1"), edge_emb), w1[ED:2 * ED, :])
         + bv("edge_mlp1_b"))
    x = relu(x)
    edge_rep = relu(dot(x, wv("edge_mlp2_w")) + bv("edge_mlp2_b"))   # [R_e, H]

    # ---------------- stem: cycle representations ----------------
    cw1, cb1 = wv("cycle_mlp1_w"), bv("cycle_mlp1_b")
    cw2, cb2 = wv("cycle_mlp2_w"), bv("cycle_mlp2_b")
    cycle_reps = {}
    for k in cyc:
        t = dot(gv("n2" + k), node_emb)              # [R_ck, ED]
        t = relu(dot(t, cw1) + cb1)
        cycle_reps[k] = relu(dot(t, cw2) + cb2)      # [R_ck, H]

    # ---------------- conv-loop invariants (hoisted) ----------------
    EE = [gv("EE%d" % i) for i in range(4)]                          # [R_e, R_e]
    EC = {k: [gv("EC_%s_%d" % (k, i)) for i in range(4)] for k in cyc}
    Me = {k: gv("Me_" + k) for k in cyc}                             # [R_e, R_ck]
    SMe = {k: gv("SMe_" + k) for k in cyc}

    scale = 1.0 + _EPS

    # ---------------- conv layers ----------------
    for l in range(num_layers):
        pre = "conv%d_" % l

        # --- Edge_edge: host-folded double gather11 + lane-dense Wcat linear ---
        Y = dot(edge_rep, wv(pre + "ee_lin_wcat"))                   # [R_e, 4H]
        e2e_lin = bv(pre + "ee_lin_b")
        for i in range(4):
            e2e_lin = e2e_lin + dot(EE[i], Y[:, i * H:(i + 1) * H])
        edge_out1 = mlp2(e2e_lin + scale * edge_rep,
                         wv(pre + "ee_w1"), wv(pre + "ee_w2"))

        # --- Edge_Cycle: edge -> cycle (folded double gather + Wcat linear) ---
        e2cs = {}
        for k in cyc:
            Yk = dot(edge_rep, wv(pre + "ec_cyc_lin_%s_wcat" % k))   # [R_e, 4H]
            acc = bv(pre + "ec_cyc_lin_%s_b" % k)
            for i in range(4):
                acc = acc + dot(EC[k][i], Yk[:, i * H:(i + 1) * H])
            e2cs[k] = acc                                            # [R_ck, H]

        # --- Edge_Cycle: cycle -> edge (cat_channels + gather11 + Linear(4H->H)) ---
        w_el_e = wv(pre + "ec_el_e")       # [H, 2H]  == [W0 | W2] of ec_edge_lin
        w_el_c = wv(pre + "ec_el_c")       # [H, 2H]  == [W1 | W3]
        c2e = bv(pre + "ec_edge_lin_b")                              # bias added once
        for k in cyc:
            T = dot(e2cs[k], w_el_e) + dot(cycle_reps[k], w_el_c)    # [R_ck, 2H]
            c2e = c2e + dot(Me[k], T[:, 0:H]) + dot(SMe[k], T[:, H:2 * H])
        edge_out2 = mlp2(c2e + scale * edge_rep,
                         wv(pre + "ec_edge_w1"), wv(pre + "ec_edge_w2"))

        cwa, cwb = wv(pre + "ec_cycle_w1"), wv(pre + "ec_cycle_w2")
        cycle_outs = {k: mlp2(e2cs[k] + scale * cycle_reps[k], cwa, cwb) for k in cyc}

        # --- ConvLayer combine + residuals ---
        wm = wv(pre + "mlp_w")                                       # [2H, H]
        edge_out = relu(bn(dot(edge_out1, wm[0:H, :])
                           + dot(edge_out2, wm[H:2 * H, :])))
        edge_rep = edge_rep + edge_out
        cycle_reps = {k: cycle_reps[k] + cycle_outs[k] for k in cyc}

    # ------------- readout: gather-to-node + global add pool + final MLP -------------
    r5 = dot(gv("pool_c5"), cycle_reps["c5"])                        # [B, H]
    r6 = dot(gv("pool_c6"), cycle_reps["c6"])                        # [B, H]
    re_ = dot(gv("pool_e"), edge_rep)                                # [B, H]
    wf1 = wv("final1_w")                                             # [3H, D]
    y = relu(bn(dot(r5, wf1[0:H, :]) + dot(r6, wf1[H:2 * H, :])
                + dot(re_, wf1[2 * H:3 * H, :]) + bv("final1_b")))
    y = relu(bn(dot(y, wv("final2_w")) + bv("final2_b")))
    out_ref[...] = dot(y, wv("lin_w")) + bv("lin_b")                 # [B, 1]


# ----------------------------------------------------------------------------------
# Parameter init (deterministic, PyTorch-Linear-like uniform fan-in init)
# ----------------------------------------------------------------------------------
def _linear_params(key, fan_in, fan_out, bias=True):
    kw, kb = jax.random.split(key)
    lim = 1.0 / float(np.sqrt(fan_in))
    W = jax.random.uniform(kw, (fan_in, fan_out), jnp.float32, -lim, lim)
    b = jax.random.uniform(kb, (1, fan_out), jnp.float32, -lim, lim) if bias else None
    return W, b


def init_params(key, embedding_dim, hidden_dim, dense_dim, num_layers):
    ks = iter(jax.random.split(key, 64))
    H = hidden_dim
    M = _INNER_MLP_MULT
    p = {}
    p["node_embedding"] = jax.random.normal(next(ks), (22, embedding_dim), jnp.float32)
    p["edge_embedding"] = jax.random.normal(next(ks), (4, embedding_dim), jnp.float32)
    p["edge_mlp1"] = _linear_params(next(ks), 2 * embedding_dim, H * M)
    p["edge_mlp2"] = _linear_params(next(ks), H * M, H)
    p["cycle_mlp1"] = _linear_params(next(ks), embedding_dim, H * M)
    p["cycle_mlp2"] = _linear_params(next(ks), H * M, H)
    # TODO(synk): path_mlp1/path_mlp2 + get_path_subgraph are created in __init__ but
    # never used in forward(); not instantiated here.
    convs = []
    for _ in range(num_layers):
        c = {}
        # Edge_edge
        c["ee_w1"] = _linear_params(next(ks), H, H * M, bias=False)[0]
        c["ee_w2"] = _linear_params(next(ks), H * M, H, bias=False)[0]
        c["ee_lin"] = _linear_params(next(ks), 4 * H, H)
        # Edge_Cycle
        c["ec_edge_w1"] = _linear_params(next(ks), H, H * M, bias=False)[0]
        c["ec_edge_w2"] = _linear_params(next(ks), H * M, H, bias=False)[0]
        c["ec_cycle_w1"] = _linear_params(next(ks), H, H * M, bias=False)[0]
        c["ec_cycle_w2"] = _linear_params(next(ks), H * M, H, bias=False)[0]
        c["ec_edge_lin"] = _linear_params(next(ks), 4 * H, H)
        c["ec_cycle_lin_c5"] = _linear_params(next(ks), 4 * H, H)
        c["ec_cycle_lin_c6"] = _linear_params(next(ks), 4 * H, H)
        # ConvLayer.mlp (ConvLayer.cycle_mlp is unused in forward -> skipped)
        c["mlp_w"] = _linear_params(next(ks), 2 * H, H, bias=False)[0]
        convs.append(c)
    p["convs"] = convs
    p["final1"] = _linear_params(next(ks), 3 * H, dense_dim)
    p["final2"] = _linear_params(next(ks), dense_dim, dense_dim)
    p["lin"] = _linear_params(next(ks), dense_dim, 1)
    return p


# ----------------------------------------------------------------------------------
# Synthetic batched graph (2 graphs, 6-node rings, one 5-cycle and one 6-cycle each).
# All constant x constant membership products are folded HERE (exact small-integer
# counts, representable exactly in bf16).
# ----------------------------------------------------------------------------------
def build_graph(B=2, nodes_per_graph=6):
    N = B * nodes_per_graph
    node_ids = np.arange(N)
    batch = np.repeat(np.arange(B), nodes_per_graph)
    src, dst = [], []
    for g in range(B):
        for i in range(nodes_per_graph):
            src.append(g * nodes_per_graph + i)
            dst.append(g * nodes_per_graph + (i + 1) % nodes_per_graph)
    E = len(src)
    edge_atom_node = np.array([v for e in range(E) for v in (src[e], dst[e])])
    edge_atom_edge = np.repeat(np.arange(E), 2)
    c5_atom_node = np.array([g * nodes_per_graph + j for g in range(B) for j in range(5)])
    c5_atom_inst = np.repeat(np.arange(B), 5)
    c6_atom_node = np.array([g * nodes_per_graph + j for g in range(B) for j in range(6)])
    c6_atom_inst = np.repeat(np.arange(B), 6)

    def eq(a, b):
        return (np.asarray(a)[:, None] == np.asarray(b)[None, :]).astype(np.float32)

    e2e = eq(edge_atom_node, edge_atom_node)
    S_e = eq(edge_atom_edge, edge_atom_edge)
    SMee = S_e @ e2e
    c5c5 = eq(c5_atom_node, c5_atom_node)
    c6c6 = eq(c6_atom_node, c6_atom_node)
    S_c5 = eq(c5_atom_inst, c5_atom_inst)
    S_c6 = eq(c6_atom_inst, c6_atom_inst)
    e2c5 = eq(c5_atom_node, edge_atom_node)
    e2c6 = eq(c6_atom_node, edge_atom_node)
    SM_e2c5, SM_e2c6 = S_c5 @ e2c5, S_c6 @ e2c6
    SM_c5c5, SM_c6c6 = S_c5 @ c5c5, S_c6 @ c6c6
    c52e = eq(edge_atom_node, c5_atom_node)
    c62e = eq(edge_atom_node, c6_atom_node)
    c52n = eq(node_ids, c5_atom_node)
    c62n = eq(node_ids, c6_atom_node)
    e2n = eq(node_ids, edge_atom_node)
    pool = eq(np.arange(B), batch)   # readout = global add pool over data.batch

    Gm = {
        # stem gathers
        "n2e": eq(edge_atom_node, node_ids),
        "e02e1": eq(edge_atom_edge, np.arange(E)),
        "n2c5": eq(c5_atom_node, node_ids),
        "n2c6": eq(c6_atom_node, node_ids),
        # Edge_edge: double gather11, folded (direct/broadcast x direct/broadcast)
        "EE0": e2e @ e2e, "EE1": e2e @ SMee, "EE2": SMee @ e2e, "EE3": SMee @ SMee,
        # Edge_Cycle edge->cycle: double gather, folded
        "EC_c5_0": c5c5 @ e2c5, "EC_c5_1": c5c5 @ SM_e2c5,
        "EC_c5_2": SM_c5c5 @ e2c5, "EC_c5_3": SM_c5c5 @ SM_e2c5,
        "EC_c6_0": c6c6 @ e2c6, "EC_c6_1": c6c6 @ SM_e2c6,
        "EC_c6_2": SM_c6c6 @ e2c6, "EC_c6_3": SM_c6c6 @ SM_e2c6,
        # cycle->edge gather11 (direct / broadcast halves)
        "Me_c5": c52e, "SMe_c5": S_e @ c52e,
        "Me_c6": c62e, "SMe_c6": S_e @ c62e,
        # readout: gather-to-node then global add pool, folded
        "pool_c5": pool @ c52n, "pool_c6": pool @ c62n, "pool_e": pool @ e2n,
    }
    return Gm, N, E, B


# ----------------------------------------------------------------------------------
# Host-side packing of membership matrices / weights / biases into 3 slabs.
# ----------------------------------------------------------------------------------
def pack_graph(Gm):
    pk = _SlabPacker(jnp.bfloat16)
    for name, mat in Gm.items():
        pk.add(name, mat)
    return pk.finalize()


def pack_params(params, num_layers, hidden_dim):
    H = hidden_dim
    wp = _SlabPacker(jnp.bfloat16)
    bp = _SlabPacker(jnp.float32)

    def add(name, pair):
        W, b = pair
        wp.add(name + "_w", W)
        if b is not None:
            bp.add(name + "_b", b)

    def wcat4(W):  # Linear(4H->H) weight [4H, H] -> lane-dense [H, 4H]
        W = np.asarray(W)
        return np.concatenate([W[i * H:(i + 1) * H, :] for i in range(4)], axis=1)

    add("edge_mlp1", params["edge_mlp1"])
    add("edge_mlp2", params["edge_mlp2"])
    add("cycle_mlp1", params["cycle_mlp1"])
    add("cycle_mlp2", params["cycle_mlp2"])

    for l, c in enumerate(params["convs"]):
        pre = "conv%d_" % l
        Wee, bee = c["ee_lin"]
        wp.add(pre + "ee_lin_wcat", wcat4(Wee))
        bp.add(pre + "ee_lin_b", bee)
        wp.add(pre + "ee_w1", c["ee_w1"])
        wp.add(pre + "ee_w2", c["ee_w2"])
        for k in ("c5", "c6"):
            Wc, bc = c["ec_cycle_lin_" + k]
            wp.add(pre + "ec_cyc_lin_%s_wcat" % k, wcat4(Wc))
            bp.add(pre + "ec_cyc_lin_%s_b" % k, bc)
        We, be = c["ec_edge_lin"]
        We = np.asarray(We)
        wp.add(pre + "ec_el_e", np.concatenate([We[0:H, :], We[2 * H:3 * H, :]], axis=1))
        wp.add(pre + "ec_el_c", np.concatenate([We[H:2 * H, :], We[3 * H:4 * H, :]], axis=1))
        bp.add(pre + "ec_edge_lin_b", be)
        wp.add(pre + "ec_edge_w1", c["ec_edge_w1"])
        wp.add(pre + "ec_edge_w2", c["ec_edge_w2"])
        wp.add(pre + "ec_cycle_w1", c["ec_cycle_w1"])
        wp.add(pre + "ec_cycle_w2", c["ec_cycle_w2"])
        wp.add(pre + "mlp_w", c["mlp_w"])

    add("final1", params["final1"])
    add("final2", params["final2"])
    add("lin", params["lin"])

    w_slab, w_idx = wp.finalize()
    b_slab, b_idx = bp.finalize()
    return w_slab, w_idx, b_slab, b_idx


# ----------------------------------------------------------------------------------
# Forward pass: 2 XLA embedding gathers + ONE fused Pallas kernel (5 input DMAs).
# ----------------------------------------------------------------------------------
def make_forward(g_idx, w_idx, b_idx, *, B, num_layers, embedding_dim, hidden_dim):
    kernel = functools.partial(_forward_kernel, g_idx, w_idx, b_idx,
                               num_layers, embedding_dim, hidden_dim)
    vmem = pl.BlockSpec(memory_space=pltpu.MemorySpace.VMEM)

    def forward(g_slab, w_slab, b_slab, node_table, edge_table, x_nodes, edge_attr):
        node_emb = node_table[x_nodes].astype(jnp.float32)   # [N, ED]
        edge_emb = edge_table[edge_attr].astype(jnp.float32)  # [E, ED]
        ins = (g_slab, w_slab, b_slab, node_emb, edge_emb)
        bytes_accessed = sum(int(np.prod(a.shape)) * a.dtype.itemsize for a in ins) + B * 4
        cost = pl.CostEstimate(flops=6_000_000,          # coarse 2x MAC count, advisory
                               transcendentals=2_048,    # ~BN rsqrt count, advisory
                               bytes_accessed=int(bytes_accessed))
        out = pl.pallas_call(
            kernel,
            out_shape=jax.ShapeDtypeStruct((B, 1), jnp.float32),
            in_specs=[vmem] * len(ins),
            out_specs=vmem,
            cost_estimate=cost,
        )(*ins)
        return out.reshape(-1)   # flatten -> [B]

    return forward


if __name__ == "__main__":
    embedding_dim, hidden_dim, dense_dim, num_layers = 16, 32, 32, 2

    key = jax.random.PRNGKey(0)
    k_param, k_x, k_e = jax.random.split(key, 3)

    params = init_params(k_param, embedding_dim, hidden_dim, dense_dim, num_layers)
    Gm, N, E, B = build_graph()

    g_slab, g_idx = pack_graph(Gm)
    w_slab, w_idx, b_slab, b_idx = pack_params(params, num_layers, hidden_dim)

    forward = make_forward(g_idx, w_idx, b_idx, B=B, num_layers=num_layers,
                           embedding_dim=embedding_dim, hidden_dim=hidden_dim)
    fwd = jax.jit(forward)

    x_nodes = jax.random.randint(k_x, (N,), 0, 22)    # data.x (node atom types)
    edge_attr = jax.random.randint(k_e, (E,), 0, 4)   # data.edge_attr (bond types)

    out = fwd(g_slab, w_slab, b_slab,
              params["node_embedding"], params["edge_embedding"],
              x_nodes, edge_attr)
    out = jax.block_until_ready(out)
    assert out.shape == (B,) and bool(jnp.all(jnp.isfinite(out)))
    print("KERNEL_OK")
</pallas_src>

<mosaic_0001>
module attributes {stable_mosaic.version = 11 : i64} {
  func.func @_forward_kernel(%arg0: memref<528x128xbf16, #tpu.memory_space<vmem>>, %arg1: memref<1360x128xbf16, #tpu.memory_space<vmem>>, %arg2: memref<120x128xf32, #tpu.memory_space<vmem>>, %arg3: memref<12x16xf32, #tpu.memory_space<vmem>>, %arg4: memref<12x16xf32, #tpu.memory_space<vmem>>, %arg5: memref<2x1xf32, #tpu.memory_space<vmem>>) attributes {dimension_semantics = [], scalar_prefetch = 0 : i64, scratch_operands = 0 : i64, tpu.core_type = #tpu.core_type<tc>} {
    %c0 = arith.constant 0 : index
    %c0_0 = arith.constant 0 : index
    %0 = vector.load %arg3[%c0, %c0_0] : memref<12x16xf32, #tpu.memory_space<vmem>>, vector<12x16xf32>
    %c0_1 = arith.constant 0 : index
    %c0_2 = arith.constant 0 : index
    %1 = vector.load %arg4[%c0_1, %c0_2] : memref<12x16xf32, #tpu.memory_space<vmem>>, vector<12x16xf32>
    %c0_3 = arith.constant 0 : index
    %c0_4 = arith.constant 0 : index
    %2 = vector.load %arg1[%c0_3, %c0_4] : memref<1360x128xbf16, #tpu.memory_space<vmem>>, vector<32x64xbf16>
    %c0_5 = arith.constant 0 : index
    %c0_6 = arith.constant 0 : index
    %3 = vector.load %arg0[%c0_5, %c0_6] : memref<528x128xbf16, #tpu.memory_space<vmem>>, vector<24x12xbf16>
    %4 = arith.truncf %0 : vector<12x16xf32> to vector<12x16xbf16>
    %cst = arith.constant dense<0.000000e+00> : vector<24x16xf32>
    %5 = tpu.matmul %3, %4, %cst {dimension_numbers = #tpu.dot_dimension_numbers<[1], [0], [0], [1], [0, 0, 1, 1], [], []>} : vector<24x12xbf16>, vector<12x16xbf16>, vector<24x16xf32> -> vector<24x16xf32>
    %6 = vector.extract_strided_slice %2 {offsets = [0, 0], sizes = [16, 64], strides = [1, 1]} : vector<32x64xbf16> to vector<16x64xbf16>
    %7 = arith.truncf %5 : vector<24x16xf32> to vector<24x16xbf16>
    %cst_7 = arith.constant dense<0.000000e+00> : vector<24x64xf32>
    %8 = tpu.matmul %7, %6, %cst_7 {dimension_numbers = #tpu.dot_dimension_numbers<[1], [0], [0], [1], [0, 0, 1, 1], [], []>} : vector<24x16xbf16>, vector<16x64xbf16>, vector<24x64xf32> -> vector<24x64xf32>
    %c32 = arith.constant 32 : index
    %c0_8 = arith.constant 0 : index
    %9 = vector.load %arg0[%c32, %c0_8] : memref<528x128xbf16, #tpu.memory_space<vmem>>, vector<24x12xbf16>
    %10 = arith.truncf %1 : vector<12x16xf32> to vector<12x16xbf16>
    %cst_9 = arith.constant dense<0.000000e+00> : vector<24x16xf32>
    %11 = tpu.matmul %9, %10, %cst_9 {dimension_numbers = #tpu.dot_dimension_numbers<[1], [0], [0], [1], [0, 0, 1, 1], [], []>} : vector<24x12xbf16>, vector<12x16xbf16>, vector<24x16xf32> -> vector<24x16xf32>
    %12 = vector.extract_strided_slice %2 {offsets = [16, 0], sizes = [16, 64], strides = [1, 1]} : vector<32x64xbf16> to vector<16x64xbf16>
    %13 = arith.truncf %11 : vector<24x16xf32> to vector<24x16xbf16>
    %cst_10 = arith.constant dense<0.000000e+00> : vector<24x64xf32>
    %14 = tpu.matmul %13, %12, %cst_10 {dimension_numbers = #tpu.dot_dimension_numbers<[1], [0], [0], [1], [0, 0, 1, 1], [], []>} : vector<24x16xbf16>, vector<16x64xbf16>, vector<24x64xf32> -> vector<24x64xf32>
    %15 = arith.addf %8, %14 : vector<24x64xf32>
    %c0_11 = arith.constant 0 : index
    %c0_12 = arith.constant 0 : index
    %16 = vector.load %arg2[%c0_11, %c0_12] : memref<120x128xf32, #tpu.memory_space<vmem>>, vector<1x64xf32>
    %17 = vector.broadcast %16 : vector<1x64xf32> to vector<24x64xf32>
    %18 = arith.addf %15, %17 : vector<24x64xf32>
    %cst_13 = arith.constant 0.000000e+00 : f32
    %19 = vector.broadcast %cst_13 : f32 to vector<24x64xf32>
    %20 = arith.maximumf %18, %19 : vector<24x64xf32>
    %c32_14 = arith.constant 32 : index
    %c0_15 = arith.constant 0 : index
    %21 = vector.load %arg1[%c32_14, %c0_15] : memref<1360x128xbf16, #tpu.memory_space<vmem>>, vector<64x32xbf16>
    %22 = arith.truncf %20 : vector<24x64xf32> to vector<24x64xbf16>
    %cst_16 = arith.constant dense<0.000000e+00> : vector<24x32xf32>
    %23 = tpu.matmul %22, %21, %cst_16 {dimension_numbers = #tpu.dot_dimension_numbers<[1], [0], [0], [1], [0, 0, 1, 1], [], []>} : vector<24x64xbf16>, vector<64x32xbf16>, vector<24x32xf32> -> vector<24x32xf32>
    %c8 = arith.constant 8 : index
    %c0_17 = arith.constant 0 : index
    %24 = vector.load %arg2[%c8, %c0_17] : memref<120x128xf32, #tpu.memory_space<vmem>>, vector<1x32xf32>
    %25 = vector.broadcast %24 : vector<1x32xf32> to vector<24x32xf32>
    %26 = arith.addf %23, %25 : vector<24x32xf32>
    %cst_18 = arith.constant 0.000000e+00 : f32
    %27 = vector.broadcast %cst_18 : f32 to vector<24x32xf32>
    %28 = arith.maximumf %26, %27 : vector<24x32xf32>
    %c96 = arith.constant 96 : index
    %c0_19 = arith.constant 0 : index
    %29 = vector.load %arg1[%c96, %c0_19] : memref<1360x128xbf16, #tpu.memory_space<vmem>>, vector<16x64xbf16>
    %c16 = arith.constant 16 : index
    %c0_20 = arith.constant 0 : index
    %30 = vector.load %arg2[%c16, %c0_20] : memref<120x128xf32, #tpu.memory_space<vmem>>, vector<1x64xf32>
    %c112 = arith.constant 112 : index
    %c0_21 = arith.constant 0 : index
    %31 = vector.load %arg1[%c112, %c0_21] : memref<1360x128xbf16, #tpu.memory_space<vmem>>, vector<64x32xbf16>
    %c24 = arith.constant 24 : index
    %c0_22 = arith.constant 0 : index
    %32 = vector.load %arg2[%c24, %c0_22] : memref<120x128xf32, #tpu.memory_space<vmem>>, vector<1x32xf32>
    %c64 = arith.constant 64 : index
    %c0_23 = arith.constant 0 : index
    %33 = vector.load %arg0[%c64, %c0_23] : memref<528x128xbf16, #tpu.memory_space<vmem>>, vector<10x12xbf16>
    %34 = arith.truncf %0 : vector<12x16xf32> to vector<12x16xbf16>
    %cst_24 = arith.constant dense<0.000000e+00> : vector<10x16xf32>
    %35 = tpu.matmul %33, %34, %cst_24 {dimension_numbers = #tpu.dot_dimension_numbers<[1], [0], [0], [1], [0, 0, 1, 1], [], []>} : vector<10x12xbf16>, vector<12x16xbf16>, vector<10x16xf32> -> vector<10x16xf32>
    %36 = arith.truncf %35 : vector<10x16xf32> to vector<10x16xbf16>
    %cst_25 = arith.constant dense<0.000000e+00> : vector<10x64xf32>
    %37 = tpu.matmul %36, %29, %cst_25 {dimension_numbers = #tpu.dot_dimension_numbers<[1], [0], [0], [1], [0, 0, 1, 1], [], []>} : vector<10x16xbf16>, vector<16x64xbf16>, vector<10x64xf32> -> vector<10x64xf32>
    %38 = vector.broadcast %30 : vector<1x64xf32> to vector<10x64xf32>
    %39 = arith.addf %37, %38 : vector<10x64xf32>
    %cst_26 = arith.constant 0.000000e+00 : f32
    %40 = vector.broadcast %cst_26 : f32 to vector<10x64xf32>
    %41 = arith.maximumf %39, %40 : vector<10x64xf32>
    %42 = arith.truncf %41 : vector<10x64xf32> to vector<10x64xbf16>
    %cst_27 = arith.constant dense<0.000000e+00> : vector<10x32xf32>
    %43 = tpu.matmul %42, %31, %cst_27 {dimension_numbers = #tpu.dot_dimension_numbers<[1], [0], [0], [1], [0, 0, 1, 1], [], []>} : vector<10x64xbf16>, vector<64x32xbf16>, vector<10x32xf32> -> vector<10x32xf32>
    %44 = vector.broadcast %32 : vector<1x32xf32> to vector<10x32xf32>
    %45 = arith.addf %43, %44 : vector<10x32xf32>
    %cst_28 = arith.constant 0.000000e+00 : f32
    %46 = vector.broadcast %cst_28 : f32 to vector<10x32xf32>
    %47 = arith.maximumf %45, %46 : vector<10x32xf32>
    %c80 = arith.constant 80 : index
    %c0_29 = arith.constant 0 : index
    %48 = vector.load %arg0[%c80, %c0_29] : memref<528x128xbf16, #tpu.memory_space<vmem>>, vector<12x12xbf16>
    %49 = arith.truncf %0 : vector<12x16xf32> to vector<12x16xbf16>
    %cst_30 = arith.constant dense<0.000000e+00> : vector<12x16xf32>
    %50 = tpu.matmul %48, %49, %cst_30 {dimension_numbers = #tpu.dot_dimension_numbers<[1], [0], [0], [1], [0, 0, 1, 1], [], []>} : vector<12x12xbf16>, vector<12x16xbf16>, vector<12x16xf32> -> vector<12x16xf32>
    %51 = arith.truncf %50 : vector<12x16xf32> to vector<12x16xbf16>
    %cst_31 = arith.constant dense<0.000000e+00> : vector<12x64xf32>
    %52 = tpu.matmul %51, %29, %cst_31 {dimension_numbers = #tpu.dot_dimension_numbers<[1], [0], [0], [1], [0, 0, 1, 1], [], []>} : vector<12x16xbf16>, vector<16x64xbf16>, vector<12x64xf32> -> vector<12x64xf32>
    %53 = vector.broadcast %30 : vector<1x64xf32> to vector<12x64xf32>
    %54 = arith.addf %52, %53 : vector<12x64xf32>
    %cst_32 = arith.constant 0.000000e+00 : f32
    %55 = vector.broadcast %cst_32 : f32 to vector<12x64xf32>
    %56 = arith.maximumf %54, %55 : vector<12x64xf32>
    %57 = arith.truncf %56 : vector<12x64xf32> to vector<12x64xbf16>
    %cst_33 = arith.constant dense<0.000000e+00> : vector<12x32xf32>
    %58 = tpu.matmul %57, %31, %cst_33 {dimension_numbers = #tpu.dot_dimension_numbers<[1], [0], [0], [1], [0, 0, 1, 1], [], []>} : vector<12x64xbf16>, vector<64x32xbf16>, vector<12x32xf32> -> vector<12x32xf32>
    %59 = vector.broadcast %32 : vector<1x32xf32> to vector<12x32xf32>
    %60 = arith.addf %58, %59 : vector<12x32xf32>
    %cst_34 = arith.constant 0.000000e+00 : f32
    %61 = vector.broadcast %cst_34 : f32 to vector<12x32xf32>
    %62 = arith.maximumf %60, %61 : vector<12x32xf32>
    %c96_35 = arith.constant 96 : index
    %c0_36 = arith.constant 0 : index
    %63 = vector.load %arg0[%c96_35, %c0_36] : memref<528x128xbf16, #tpu.memory_space<vmem>>, vector<24x24xbf16>
    %c128 = arith.constant 128 : index
    %c0_37 = arith.constant 0 : index
    %64 = vector.load %arg0[%c128, %c0_37] : memref<528x128xbf16, #tpu.memory_space<vmem>>, vector<24x24xbf16>
    %c160 = arith.constant 160 : index
    %c0_38 = arith.constant 0 : index
    %65 = vector.load %arg0[%c160, %c0_38] : memref<528x128xbf16, #tpu.memory_space<vmem>>, vector<24x24xbf16>
    %c192 = arith.constant 192 : index
    %c0_39 = arith.constant 0 : index
    %66 = vector.load %arg0[%c192, %c0_39] : memref<528x128xbf16, #tpu.memory_space<vmem>>, vector<24x24xbf16>
    %c224 = arith.constant 224 : index
    %c0_40 = arith.constant 0 : index
    %67 = vector.load %arg0[%c224, %c0_40] : memref<528x128xbf16, #tpu.memory_space<vmem>>, vector<10x24xbf16>
    %c240 = arith.constant 240 : index
    %c0_41 = arith.constant 0 : index
    %68 = vector.load %arg0[%c240, %c0_41] : memref<528x128xbf16, #tpu.memory_space<vmem>>, vector<10x24xbf16>
    %c256 = arith.constant 256 : index
    %c0_42 = arith.constant 0 : index
    %69 = vector.load %arg0[%c256, %c0_42] : memref<528x128xbf16, #tpu.memory_space<vmem>>, vector<10x24xbf16>
    %c272 = arith.constant 272 : index
    %c0_43 = arith.constant 0 : index
    %70 = vector.load %arg0[%c272, %c0_43] : memref<528x128xbf16, #tpu.memory_space<vmem>>, vector<10x24xbf16>
    %c288 = arith.constant 288 : index
    %c0_44 = arith.constant 0 : index
    %71 = vector.load %arg0[%c288, %c0_44] : memref<528x128xbf16, #tpu.memory_space<vmem>>, vector<12x24xbf16>
    %c304 = arith.constant 304 : index
    %c0_45 = arith.constant 0 : index
    %72 = vector.load %arg0[%c304, %c0_45] : memref<528x128xbf16, #tpu.memory_space<vmem>>, vector<12x24xbf16>
    %c320 = arith.constant 320 : index
    %c0_46 = arith.constant 0 : index
    %73 = vector.load %arg0[%c320, %c0_46] : memref<528x128xbf16, #tpu.memory_space<vmem>>, vector<12x24xbf16>
    %c336 = arith.constant 336 : index
    %c0_47 = arith.constant 0 : index
    %74 = vector.load %arg0[%c336, %c0_47] : memref<528x128xbf16, #tpu.memory_space<vmem>>, vector<12x24xbf16>
    %c352 = arith.constant 352 : index
    %c0_48 = arith.constant 0 : index
    %75 = vector.load %arg0[%c352, %c0_48] : memref<528x128xbf16, #tpu.memory_space<vmem>>, vector<24x10xbf16>
    %c416 = arith.constant 416 : index
    %c0_49 = arith.constant 0 : index
    %76 = vector.load %arg0[%c416, %c0_49] : memref<528x128xbf16, #tpu.memory_space<vmem>>, vector<24x12xbf16>
    %c384 = arith.constant 384 : index
    %c0_50 = arith.constant 0 : index
    %77 = vector.load %arg0[%c384, %c0_50] : memref<528x128xbf16, #tpu.memory_space<vmem>>, vector<24x10xbf16>
    %c448 = arith.constant 448 : index
    %c0_51 = arith.constant 0 : index
    %78 = vector.load %arg0[%c448, %c0_51] : memref<528x128xbf16, #tpu.memory_space<vmem>>, vector<24x12xbf16>
    %c176 = arith.constant 176 : index
    %c0_52 = arith.constant 0 : index
    %79 = vector.load %arg1[%c176, %c0_52] : memref<1360x128xbf16, #tpu.memory_space<vmem>>, vector<32x128xbf16>
    %80 = arith.truncf %28 : vector<24x32xf32> to vector<24x32xbf16>
    %cst_53 = arith.constant dense<0.000000e+00> : vector<24x128xf32>
    %81 = tpu.matmul %80, %79, %cst_53 {dimension_numbers = #tpu.dot_dimension_numbers<[1], [0], [0], [1], [0, 0, 1, 1], [], []>} : vector<24x32xbf16>, vector<32x128xbf16>, vector<24x128xf32> -> vector<24x128xf32>
    %c32_54 = arith.constant 32 : index
    %c0_55 = arith.constant 0 : index
    %82 = vector.load %arg2[%c32_54, %c0_55] : memref<120x128xf32, #tpu.memory_space<vmem>>, vector<1x32xf32>
    %83 = vector.extract_strided_slice %81 {offsets = [0, 0], sizes = [24, 32], strides = [1, 1]} : vector<24x128xf32> to vector<24x32xf32>
    %84 = arith.truncf %83 : vector<24x32xf32> to vector<24x32xbf16>
    %cst_56 = arith.constant dense<0.000000e+00> : vector<24x32xf32>
    %85 = tpu.matmul %63, %84, %cst_56 {dimension_numbers = #tpu.dot_dimension_numbers<[1], [0], [0], [1], [0, 0, 1, 1], [], []>} : vector<24x24xbf16>, vector<24x32xbf16>, vector<24x32xf32> -> vector<24x32xf32>
    %86 = vector.broadcast %82 : vector<1x32xf32> to vector<24x32xf32>
    %87 = arith.addf %86, %85 : vector<24x32xf32>
    %88 = vector.extract_strided_slice %81 {offsets = [0, 32], sizes = [24, 32], strides = [1, 1]} : vector<24x128xf32> to vector<24x32xf32>
    %89 = arith.truncf %88 : vector<24x32xf32> to vector<24x32xbf16>
    %cst_57 = arith.constant dense<0.000000e+00> : vector<24x32xf32>
    %90 = tpu.matmul %64, %89, %cst_57 {dimension_numbers = #tpu.dot_dimension_numbers<[1], [0], [0], [1], [0, 0, 1, 1], [], []>} : vector<24x24xbf16>, vector<24x32xbf16>, vector<24x32xf32> -> vector<24x32xf32>
    %91 = arith.addf %87, %90 : vector<24x32xf32>
    %92 = vector.extract_strided_slice %81 {offsets = [0, 64], sizes = [24, 32], strides = [1, 1]} : vector<24x128xf32> to vector<24x32xf32>
    %93 = arith.truncf %92 : vector<24x32xf32> to vector<24x32xbf16>
    %cst_58 = arith.constant dense<0.000000e+00> : vector<24x32xf32>
    %94 = tpu.matmul %65, %93, %cst_58 {dimension_numbers = #tpu.dot_dimension_numbers<[1], [0], [0], [1], [0, 0, 1, 1], [], []>} : vector<24x24xbf16>, vector<24x32xbf16>, vector<24x32xf32> -> vector<24x32xf32>
    %95 = arith.addf %91, %94 : vector<24x32xf32>
    %96 = vector.extract_strided_slice %81 {offsets = [0, 96], sizes = [24, 32], strides = [1, 1]} : vector<24x128xf32> to vector<24x32xf32>
    %97 = arith.truncf %96 : vector<24x32xf32> to vector<24x32xbf16>
    %cst_59 = arith.constant dense<0.000000e+00> : vector<24x32xf32>
    %98 = tpu.matmul %66, %97, %cst_59 {dimension_numbers = #tpu.dot_dimension_numbers<[1], [0], [0], [1], [0, 0, 1, 1], [], []>} : vector<24x24xbf16>, vector<24x32xbf16>, vector<24x32xf32> -> vector<24x32xf32>
    %99 = arith.addf %95, %98 : vector<24x32xf32>
    %cst_60 = arith.constant 1.100000e+00 : f32
    %100 = vector.broadcast %cst_60 : f32 to vector<24x32xf32>
    %101 = arith.mulf %100, %28 : vector<24x32xf32>
    %102 = arith.addf %99, %101 : vector<24x32xf32>
    %c208 = arith.constant 208 : index
    %c0_61 = arith.constant 0 : index
    %103 = vector.load %arg1[%c208, %c0_61] : memref<1360x128xbf16, #tpu.memory_space<vmem>>, vector<32x64xbf16>
    %c240_62 = arith.constant 240 : index
    %c0_63 = arith.constant 0 : index
    %104 = vector.load %arg1[%c240_62, %c0_63] : memref<1360x128xbf16, #tpu.memory_space<vmem>>, vector<64x32xbf16>
    %105 = arith.truncf %102 : vector<24x32xf32> to vector<24x32xbf16>
    %cst_64 = arith.constant dense<0.000000e+00> : vector<24x64xf32>
    %106 = tpu.matmul %105, %103, %cst_64 {dimension_numbers = #tpu.dot_dimension_numbers<[1], [0], [0], [1], [0, 0, 1, 1], [], []>} : vector<24x32xbf16>, vector<32x64xbf16>, vector<24x64xf32> -> vector<24x64xf32>
    %cst_65 = arith.constant dense<0.000000e+00> : vector<64xf32>
    %107 = vector.multi_reduction <add>, %106, %cst_65 [0] : vector<24x64xf32> to vector<64xf32>
    %108 = vector.shape_cast %107 : vector<64xf32> to vector<1x64xf32>
    %109 = arith.mulf %106, %106 : vector<24x64xf32>
    %cst_66 = arith.constant dense<0.000000e+00> : vector<64xf32>
    %110 = vector.multi_reduction <add>, %109, %cst_66 [0] : vector<24x64xf32> to vector<64xf32>
    %111 = vector.shape_cast %110 : vector<64xf32> to vector<1x64xf32>
    %cst_67 = arith.constant 0.0416666679 : f32
    %112 = vector.broadcast %cst_67 : f32 to vector<1x64xf32>
    %113 = arith.mulf %108, %112 : vector<1x64xf32>
    %cst_68 = arith.constant 0.0416666679 : f32
    %114 = vector.broadcast %cst_68 : f32 to vector<1x64xf32>
    %115 = arith.mulf %111, %114 : vector<1x64xf32>
    %116 = arith.mulf %113, %113 : vector<1x64xf32>
    %117 = arith.subf %115, %116 : vector<1x64xf32>
    %118 = vector.broadcast %113 : vector<1x64xf32> to vector<24x64xf32>
    %119 = arith.subf %106, %118 : vector<24x64xf32>
    %cst_69 = arith.constant 9.99999974E-6 : f32
    %120 = vector.broadcast %cst_69 : f32 to vector<1x64xf32>
    %121 = arith.addf %117, %120 : vector<1x64xf32>
    %122 = math.rsqrt %121 : vector<1x64xf32>
    %123 = vector.broadcast %122 : vector<1x64xf32> to vector<24x64xf32>
    %124 = arith.mulf %119, %123 : vector<24x64xf32>
    %cst_70 = arith.constant 0.000000e+00 : f32
    %125 = vector.broadcast %cst_70 : f32 to vector<24x64xf32>
    %126 = arith.maximumf %124, %125 : vector<24x64xf32>
    %127 = arith.truncf %126 : vector<24x64xf32> to vector<24x64xbf16>
    %cst_71 = arith.constant dense<0.000000e+00> : vector<24x32xf32>
    %128 = tpu.matmul %127, %104, %cst_71 {dimension_numbers = #tpu.dot_dimension_numbers<[1], [0], [0], [1], [0, 0, 1, 1], [], []>} : vector<24x64xbf16>, vector<64x32xbf16>, vector<24x32xf32> -> vector<24x32xf32>
    %cst_72 = arith.constant dense<0.000000e+00> : vector<32xf32>
    %129 = vector.multi_reduction <add>, %128, %cst_72 [0] : vector<24x32xf32> to vector<32xf32>
    %130 = vector.shape_cast %129 : vector<32xf32> to vector<1x32xf32>
    %131 = arith.mulf %128, %128 : vector<24x32xf32>
    %cst_73 = arith.constant dense<0.000000e+00> : vector<32xf32>
    %132 = vector.multi_reduction <add>, %131, %cst_73 [0] : vector<24x32xf32> to vector<32xf32>
    %133 = vector.shape_cast %132 : vector<32xf32> to vector<1x32xf32>
    %cst_74 = arith.constant 0.0416666679 : f32
    %134 = vector.broadcast %cst_74 : f32 to vector<1x32xf32>
    %135 = arith.mulf %130, %134 : vector<1x32xf32>
    %cst_75 = arith.constant 0.0416666679 : f32
    %136 = vector.broadcast %cst_75 : f32 to vector<1x32xf32>
    %137 = arith.mulf %133, %136 : vector<1x32xf32>
    %138 = arith.mulf %135, %135 : vector<1x32xf32>
    %139 = arith.subf %137, %138 : vector<1x32xf32>
    %140 = vector.broadcast %135 : vector<1x32xf32> to vector<24x32xf32>
    %141 = arith.subf %128, %140 : vector<24x32xf32>
    %cst_76 = arith.constant 9.99999974E-6 : f32
    %142 = vector.broadcast %cst_76 : f32 to vector<1x32xf32>
    %143 = arith.addf %139, %142 : vector<1x32xf32>
    %144 = math.rsqrt %143 : vector<1x32xf32>
    %145 = vector.broadcast %144 : vector<1x32xf32> to vector<24x32xf32>
    %146 = arith.mulf %141, %145 : vector<24x32xf32>
    %cst_77 = arith.constant 0.000000e+00 : f32
    %147 = vector.broadcast %cst_77 : f32 to vector<24x32xf32>
    %148 = arith.maximumf %146, %147 : vector<24x32xf32>
    %c304_78 = arith.constant 304 : index
    %c0_79 = arith.constant 0 : index
    %149 = vector.load %arg1[%c304_78, %c0_79] : memref<1360x128xbf16, #tpu.memory_space<vmem>>, vector<32x128xbf16>
    %150 = arith.truncf %28 : vector<24x32xf32> to vector<24x32xbf16>
    %cst_80 = arith.constant dense<0.000000e+00> : vector<24x128xf32>
    %151 = tpu.matmul %150, %149, %cst_80 {dimension_numbers = #tpu.dot_dimension_numbers<[1], [0], [0], [1], [0, 0, 1, 1], [], []>} : vector<24x32xbf16>, vector<32x128xbf16>, vector<24x128xf32> -> vector<24x128xf32>
    %c40 = arith.constant 40 : index
    %c0_81 = arith.constant 0 : index
    %152 = vector.load %arg2[%c40, %c0_81] : memref<120x128xf32, #tpu.memory_space<vmem>>, vector<1x32xf32>
    %153 = vector.extract_strided_slice %151 {offsets = [0, 0], sizes = [24, 32], strides = [1, 1]} : vector<24x128xf32> to vector<24x32xf32>
    %154 = arith.truncf %153 : vector<24x32xf32> to vector<24x32xbf16>
    %cst_82 = arith.constant dense<0.000000e+00> : vector<10x32xf32>
    %155 = tpu.matmul %67, %154, %cst_82 {dimension_numbers = #tpu.dot_dimension_numbers<[1], [0], [0], [1], [0, 0, 1, 1], [], []>} : vector<10x24xbf16>, vector<24x32xbf16>, vector<10x32xf32> -> vector<10x32xf32>
    %156 = vector.broadcast %152 : vector<1x32xf32> to vector<10x32xf32>
    %157 = arith.addf %156, %155 : vector<10x32xf32>
    %158 = vector.extract_strided_slice %151 {offsets = [0, 32], sizes = [24, 32], strides = [1, 1]} : vector<24x128xf32> to vector<24x32xf32>
    %159 = arith.truncf %158 : vector<24x32xf32> to vector<24x32xbf16>
    %cst_83 = arith.constant dense<0.000000e+00> : vector<10x32xf32>
    %160 = tpu.matmul %68, %159, %cst_83 {dimension_numbers = #tpu.dot_dimension_numbers<[1], [0], [0], [1], [0, 0, 1, 1], [], []>} : vector<10x24xbf16>, vector<24x32xbf16>, vector<10x32xf32> -> vector<10x32xf32>
    %161 = arith.addf %157, %160 : vector<10x32xf32>
    %162 = vector.extract_strided_slice %151 {offsets = [0, 64], sizes = [24, 32], strides = [1, 1]} : vector<24x128xf32> to vector<24x32xf32>
    %163 = arith.truncf %162 : vector<24x32xf32> to vector<24x32xbf16>
    %cst_84 = arith.constant dense<0.000000e+00> : vector<10x32xf32>
    %164 = tpu.matmul %69, %163, %cst_84 {dimension_numbers = #tpu.dot_dimension_numbers<[1], [0], [0], [1], [0, 0, 1, 1], [], []>} : vector<10x24xbf16>, vector<24x32xbf16>, vector<10x32xf32> -> vector<10x32xf32>
    %165 = arith.addf %161, %164 : vector<10x32xf32>
    %166 = vector.extract_strided_slice %151 {offsets = [0, 96], sizes = [24, 32], strides = [1, 1]} : vector<24x128xf32> to vector<24x32xf32>
    %167 = arith.truncf %166 : vector<24x32xf32> to vector<24x32xbf16>
    %cst_85 = arith.constant dense<0.000000e+00> : vector<10x32xf32>
    %168 = tpu.matmul %70, %167, %cst_85 {dimension_numbers = #tpu.dot_dimension_numbers<[1], [0], [0], [1], [0, 0, 1, 1], [], []>} : vector<10x24xbf16>, vector<24x32xbf16>, vector<10x32xf32> -> vector<10x32xf32>
    %169 = arith.addf %165, %168 : vector<10x32xf32>
    %c336_86 = arith.constant 336 : index
    %c0_87 = arith.constant 0 : index
    %170 = vector.load %arg1[%c336_86, %c0_87] : memref<1360x128xbf16, #tpu.memory_space<vmem>>, vector<32x128xbf16>
    %171 = arith.truncf %28 : vector<24x32xf32> to vector<24x32xbf16>
    %cst_88 = arith.constant dense<0.000000e+00> : vector<24x128xf32>
    %172 = tpu.matmul %171, %170, %cst_88 {dimension_numbers = #tpu.dot_dimension_numbers<[1], [0], [0], [1], [0, 0, 1, 1], [], []>} : vector<24x32xbf16>, vector<32x128xbf16>, vector<24x128xf32> -> vector<24x128xf32>
    %c48 = arith.constant 48 : index
    %c0_89 = arith.constant 0 : index
    %173 = vector.load %arg2[%c48, %c0_89] : memref<120x128xf32, #tpu.memory_space<vmem>>, vector<1x32xf32>
    %174 = vector.extract_strided_slice %172 {offsets = [0, 0], sizes = [24, 32], strides = [1, 1]} : vector<24x128xf32> to vector<24x32xf32>
    %175 = arith.truncf %174 : vector<24x32xf32> to vector<24x32xbf16>
    %cst_90 = arith.constant dense<0.000000e+00> : vector<12x32xf32>
    %176 = tpu.matmul %71, %175, %cst_90 {dimension_numbers = #tpu.dot_dimension_numbers<[1], [0], [0], [1], [0, 0, 1, 1], [], []>} : vector<12x24xbf16>, vector<24x32xbf16>, vector<12x32xf32> -> vector<12x32xf32>
    %177 = vector.broadcast %173 : vector<1x32xf32> to vector<12x32xf32>
    %178 = arith.addf %177, %176 : vector<12x32xf32>
    %179 = vector.extract_strided_slice %172 {offsets = [0, 32], sizes = [24, 32], strides = [1, 1]} : vector<24x128xf32> to vector<24x32xf32>
    %180 = arith.truncf %179 : vector<24x32xf32> to vector<24x32xbf16>
    %cst_91 = arith.constant dense<0.000000e+00> : vector<12x32xf32>
    %181 = tpu.matmul %72, %180, %cst_91 {dimension_numbers = #tpu.dot_dimension_numbers<[1], [0], [0], [1], [0, 0, 1, 1], [], []>} : vector<12x24xbf16>, vector<24x32xbf16>, vector<12x32xf32> -> vector<12x32xf32>
    %182 = arith.addf %178, %181 : vector<12x32xf32>
    %183 = vector.extract_strided_slice %172 {offsets = [0, 64], sizes = [24, 32], strides = [1, 1]} : vector<24x128xf32> to vector<24x32xf32>
    %184 = arith.truncf %183 : vector<24x32xf32> to vector<24x32xbf16>
    %cst_92 = arith.constant dense<0.000000e+00> : vector<12x32xf32>
    %185 = tpu.matmul %73, %184, %cst_92 {dimension_numbers = #tpu.dot_dimension_numbers<[1], [0], [0], [1], [0, 0, 1, 1], [], []>} : vector<12x24xbf16>, vector<24x32xbf16>, vector<12x32xf32> -> vector<12x32xf32>
    %186 = arith.addf %182, %185 : vector<12x32xf32>
    %187 = vector.extract_strided_slice %172 {offsets = [0, 96], sizes = [24, 32], strides = [1, 1]} : vector<24x128xf32> to vector<24x32xf32>
    %188 = arith.truncf %187 : vector<24x32xf32> to vector<24x32xbf16>
    %cst_93 = arith.constant dense<0.000000e+00> : vector<12x32xf32>
    %189 = tpu.matmul %74, %188, %cst_93 {dimension_numbers = #tpu.dot_dimension_numbers<[1], [0], [0], [1], [0, 0, 1, 1], [], []>} : vector<12x24xbf16>, vector<24x32xbf16>, vector<12x32xf32> -> vector<12x32xf32>
    %190 = arith.addf %186, %189 : vector<12x32xf32>
    %c368 = arith.constant 368 : index
    %c0_94 = arith.constant 0 : index
    %191 = vector.load %arg1[%c368, %c0_94] : memref<1360x128xbf16, #tpu.memory_space<vmem>>, vector<32x64xbf16>
    %c400 = arith.constant 400 : index
    %c0_95 = arith.constant 0 : index
    %192 = vector.load %arg1[%c400, %c0_95] : memref<1360x128xbf16, #tpu.memory_space<vmem>>, vector<32x64xbf16>
    %c56 = arith.constant 56 : index
    %c0_96 = arith.constant 0 : index
    %193 = vector.load %arg2[%c56, %c0_96] : memref<120x128xf32, #tpu.memory_space<vmem>>, vector<1x32xf32>
    %194 = arith.truncf %169 : vector<10x32xf32> to vector<10x32xbf16>
    %cst_97 = arith.constant dense<0.000000e+00> : vector<10x64xf32>
    %195 = tpu.matmul %194, %191, %cst_97 {dimension_numbers = #tpu.dot_dimension_numbers<[1], [0], [0], [1], [0, 0, 1, 1], [], []>} : vector<10x32xbf16>, vector<32x64xbf16>, vector<10x64xf32> -> vector<10x64xf32>
    %196 = arith.truncf %47 : vector<10x32xf32> to vector<10x32xbf16>
    %cst_98 = arith.constant dense<0.000000e+00> : vector<10x64xf32>
    %197 = tpu.matmul %196, %192, %cst_98 {dimension_numbers = #tpu.dot_dimension_numbers<[1], [0], [0], [1], [0, 0, 1, 1], [], []>} : vector<10x32xbf16>, vector<32x64xbf16>, vector<10x64xf32> -> vector<10x64xf32>
    %198 = arith.addf %195, %197 : vector<10x64xf32>
    %199 = vector.extract_strided_slice %198 {offsets = [0, 0], sizes = [10, 32], strides = [1, 1]} : vector<10x64xf32> to vector<10x32xf32>
    %200 = arith.truncf %199 : vector<10x32xf32> to vector<10x32xbf16>
    %cst_99 = arith.constant dense<0.000000e+00> : vector<24x32xf32>
    %201 = tpu.matmul %75, %200, %cst_99 {dimension_numbers = #tpu.dot_dimension_numbers<[1], [0], [0], [1], [0, 0, 1, 1], [], []>} : vector<24x10xbf16>, vector<10x32xbf16>, vector<24x32xf32> -> vector<24x32xf32>
    %202 = vector.broadcast %193 : vector<1x32xf32> to vector<24x32xf32>
    %203 = arith.addf %202, %201 : vector<24x32xf32>
    %204 = vector.extract_strided_slice %198 {offsets = [0, 32], sizes = [10, 32], strides = [1, 1]} : vector<10x64xf32> to vector<10x32xf32>
    %205 = arith.truncf %204 : vector<10x32xf32> to vector<10x32xbf16>
    %cst_100 = arith.constant dense<0.000000e+00> : vector<24x32xf32>
    %206 = tpu.matmul %77, %205, %cst_100 {dimension_numbers = #tpu.dot_dimension_numbers<[1], [0], [0], [1], [0, 0, 1, 1], [], []>} : vector<24x10xbf16>, vector<10x32xbf16>, vector<24x32xf32> -> vector<24x32xf32>
    %207 = arith.addf %203, %206 : vector<24x32xf32>
    %208 = arith.truncf %190 : vector<12x32xf32> to vector<12x32xbf16>
    %cst_101 = arith.constant dense<0.000000e+00> : vector<12x64xf32>
    %209 = tpu.matmul %208, %191, %cst_101 {dimension_numbers = #tpu.dot_dimension_numbers<[1], [0], [0], [1], [0, 0, 1, 1], [], []>} : vector<12x32xbf16>, vector<32x64xbf16>, vector<12x64xf32> -> vector<12x64xf32>
    %210 = arith.truncf %62 : vector<12x32xf32> to vector<12x32xbf16>
    %cst_102 = arith.constant dense<0.000000e+00> : vector<12x64xf32>
    %211 = tpu.matmul %210, %192, %cst_102 {dimension_numbers = #tpu.dot_dimension_numbers<[1], [0], [0], [1], [0, 0, 1, 1], [], []>} : vector<12x32xbf16>, vector<32x64xbf16>, vector<12x64xf32> -> vector<12x64xf32>
    %212 = arith.addf %209, %211 : vector<12x64xf32>
    %213 = vector.extract_strided_slice %212 {offsets = [0, 0], sizes = [12, 32], strides = [1, 1]} : vector<12x64xf32> to vector<12x32xf32>
    %214 = arith.truncf %213 : vector<12x32xf32> to vector<12x32xbf16>
    %cst_103 = arith.constant dense<0.000000e+00> : vector<24x32xf32>
    %215 = tpu.matmul %76, %214, %cst_103 {dimension_numbers = #tpu.dot_dimension_numbers<[1], [0], [0], [1], [0, 0, 1, 1], [], []>} : vector<24x12xbf16>, vector<12x32xbf16>, vector<24x32xf32> -> vector<24x32xf32>
    %216 = arith.addf %207, %215 : vector<24x32xf32>
    %217 = vector.extract_strided_slice %212 {offsets = [0, 32], sizes = [12, 32], strides = [1, 1]} : vector<12x64xf32> to vector<12x32xf32>
    %218 = arith.truncf %217 : vector<12x32xf32> to vector<12x32xbf16>
    %cst_104 = arith.constant dense<0.000000e+00> : vector<24x32xf32>
    %219 = tpu.matmul %78, %218, %cst_104 {dimension_numbers = #tpu.dot_dimension_numbers<[1], [0], [0], [1], [0, 0, 1, 1], [], []>} : vector<24x12xbf16>, vector<12x32xbf16>, vector<24x32xf32> -> vector<24x32xf32>
    %220 = arith.addf %216, %219 : vector<24x32xf32>
    %cst_105 = arith.constant 1.100000e+00 : f32
    %221 = vector.broadcast %cst_105 : f32 to vector<24x32xf32>
    %222 = arith.mulf %221, %28 : vector<24x32xf32>
    %223 = arith.addf %220, %222 : vector<24x32xf32>
    %c432 = arith.constant 432 : index
    %c0_106 = arith.constant 0 : index
    %224 = vector.load %arg1[%c432, %c0_106] : memref<1360x128xbf16, #tpu.memory_space<vmem>>, vector<32x64xbf16>
    %c464 = arith.constant 464 : index
    %c0_107 = arith.constant 0 : index
    %225 = vector.load %arg1[%c464, %c0_107] : memref<1360x128xbf16, #tpu.memory_space<vmem>>, vector<64x32xbf16>
    %226 = arith.truncf %223 : vector<24x32xf32> to vector<24x32xbf16>
    %cst_108 = arith.constant dense<0.000000e+00> : vector<24x64xf32>
    %227 = tpu.matmul %226, %224, %cst_108 {dimension_numbers = #tpu.dot_dimension_numbers<[1], [0], [0], [1], [0, 0, 1, 1], [], []>} : vector<24x32xbf16>, vector<32x64xbf16>, vector<24x64xf32> -> vector<24x64xf32>
    %cst_109 = arith.constant dense<0.000000e+00> : vector<64xf32>
    %228 = vector.multi_reduction <add>, %227, %cst_109 [0] : vector<24x64xf32> to vector<64xf32>
    %229 = vector.shape_cast %228 : vector<64xf32> to vector<1x64xf32>
    %230 = arith.mulf %227, %227 : vector<24x64xf32>
    %cst_110 = arith.constant dense<0.000000e+00> : vector<64xf32>
    %231 = vector.multi_reduction <add>, %230, %cst_110 [0] : vector<24x64xf32> to vector<64xf32>
    %232 = vector.shape_cast %231 : vector<64xf32> to vector<1x64xf32>
    %cst_111 = arith.constant 0.0416666679 : f32
    %233 = vector.broadcast %cst_111 : f32 to vector<1x64xf32>
    %234 = arith.mulf %229, %233 : vector<1x64xf32>
    %cst_112 = arith.constant 0.0416666679 : f32
    %235 = vector.broadcast %cst_112 : f32 to vector<1x64xf32>
    %236 = arith.mulf %232, %235 : vector<1x64xf32>
    %237 = arith.mulf %234, %234 : vector<1x64xf32>
    %238 = arith.subf %236, %237 : vector<1x64xf32>
    %239 = vector.broadcast %234 : vector<1x64xf32> to vector<24x64xf32>
    %240 = arith.subf %227, %239 : vector<24x64xf32>
    %cst_113 = arith.constant 9.99999974E-6 : f32
    %241 = vector.broadcast %cst_113 : f32 to vector<1x64xf32>
    %242 = arith.addf %238, %241 : vector<1x64xf32>
    %243 = math.rsqrt %242 : vector<1x64xf32>
    %244 = vector.broadcast %243 : vector<1x64xf32> to vector<24x64xf32>
    %245 = arith.mulf %240, %244 : vector<24x64xf32>
    %cst_114 = arith.constant 0.000000e+00 : f32
    %246 = vector.broadcast %cst_114 : f32 to vector<24x64xf32>
    %247 = arith.maximumf %245, %246 : vector<24x64xf32>
    %248 = arith.truncf %247 : vector<24x64xf32> to vector<24x64xbf16>
    %cst_115 = arith.constant dense<0.000000e+00> : vector<24x32xf32>
    %249 = tpu.matmul %248, %225, %cst_115 {dimension_numbers = #tpu.dot_dimension_numbers<[1], [0], [0], [1], [0, 0, 1, 1], [], []>} : vector<24x64xbf16>, vector<64x32xbf16>, vector<24x32xf32> -> vector<24x32xf32>
    %cst_116 = arith.constant dense<0.000000e+00> : vector<32xf32>
    %250 = vector.multi_reduction <add>, %249, %cst_116 [0] : vector<24x32xf32> to vector<32xf32>
    %251 = vector.shape_cast %250 : vector<32xf32> to vector<1x32xf32>
    %252 = arith.mulf %249, %249 : vector<24x32xf32>
    %cst_117 = arith.constant dense<0.000000e+00> : vector<32xf32>
    %253 = vector.multi_reduction <add>, %252, %cst_117 [0] : vector<24x32xf32> to vector<32xf32>
    %254 = vector.shape_cast %253 : vector<32xf32> to vector<1x32xf32>
    %cst_118 = arith.constant 0.0416666679 : f32
    %255 = vector.broadcast %cst_118 : f32 to vector<1x32xf32>
    %256 = arith.mulf %251, %255 : vector<1x32xf32>
    %cst_119 = arith.constant 0.0416666679 : f32
    %257 = vector.broadcast %cst_119 : f32 to vector<1x32xf32>
    %258 = arith.mulf %254, %257 : vector<1x32xf32>
    %259 = arith.mulf %256, %256 : vector<1x32xf32>
    %260 = arith.subf %258, %259 : vector<1x32xf32>
    %261 = vector.broadcast %256 : vector<1x32xf32> to vector<24x32xf32>
    %262 = arith.subf %249, %261 : vector<24x32xf32>
    %cst_120 = arith.constant 9.99999974E-6 : f32
    %263 = vector.broadcast %cst_120 : f32 to vector<1x32xf32>
    %264 = arith.addf %260, %263 : vector<1x32xf32>
    %265 = math.rsqrt %264 : vector<1x32xf32>
    %266 = vector.broadcast %265 : vector<1x32xf32> to vector<24x32xf32>
    %267 = arith.mulf %262, %266 : vector<24x32xf32>
    %cst_121 = arith.constant 0.000000e+00 : f32
    %268 = vector.broadcast %cst_121 : f32 to vector<24x32xf32>
    %269 = arith.maximumf %267, %268 : vector<24x32xf32>
    %c528 = arith.constant 528 : index
    %c0_122 = arith.constant 0 : index
    %270 = vector.load %arg1[%c528, %c0_122] : memref<1360x128xbf16, #tpu.memory_space<vmem>>, vector<32x64xbf16>
    %c560 = arith.constant 560 : index
    %c0_123 = arith.constant 0 : index
    %271 = vector.load %arg1[%c560, %c0_123] : memref<1360x128xbf16, #tpu.memory_space<vmem>>, vector<64x32xbf16>
    %cst_124 = arith.constant 1.100000e+00 : f32
    %272 = vector.broadcast %cst_124 : f32 to vector<10x32xf32>
    %273 = arith.mulf %272, %47 : vector<10x32xf32>
    %274 = arith.addf %169, %273 : vector<10x32xf32>
    %275 = arith.truncf %274 : vector<10x32xf32> to vector<10x32xbf16>
    %cst_125 = arith.constant dense<0.000000e+00> : vector<10x64xf32>
    %276 = tpu.matmul %275, %270, %cst_125 {dimension_numbers = #tpu.dot_dimension_numbers<[1], [0], [0], [1], [0, 0, 1, 1], [], []>} : vector<10x32xbf16>, vector<32x64xbf16>, vector<10x64xf32> -> vector<10x64xf32>
    %cst_126 = arith.constant dense<0.000000e+00> : vector<64xf32>
    %277 = vector.multi_reduction <add>, %276, %cst_126 [0] : vector<10x64xf32> to vector<64xf32>
    %278 = vector.shape_cast %277 : vector<64xf32> to vector<1x64xf32>
    %279 = arith.mulf %276, %276 : vector<10x64xf32>
    %cst_127 = arith.constant dense<0.000000e+00> : vector<64xf32>
    %280 = vector.multi_reduction <add>, %279, %cst_127 [0] : vector<10x64xf32> to vector<64xf32>
    %281 = vector.shape_cast %280 : vector<64xf32> to vector<1x64xf32>
    %cst_128 = arith.constant 1.000000e-01 : f32
    %282 = vector.broadcast %cst_128 : f32 to vector<1x64xf32>
    %283 = arith.mulf %278, %282 : vector<1x64xf32>
    %cst_129 = arith.constant 1.000000e-01 : f32
    %284 = vector.broadcast %cst_129 : f32 to vector<1x64xf32>
    %285 = arith.mulf %281, %284 : vector<1x64xf32>
    %286 = arith.mulf %283, %283 : vector<1x64xf32>
    %287 = arith.subf %285, %286 : vector<1x64xf32>
    %288 = vector.broadcast %283 : vector<1x64xf32> to vector<10x64xf32>
    %289 = arith.subf %276, %288 : vector<10x64xf32>
    %cst_130 = arith.constant 9.99999974E-6 : f32
    %290 = vector.broadcast %cst_130 : f32 to vector<1x64xf32>
    %291 = arith.addf %287, %290 : vector<1x64xf32>
    %292 = math.rsqrt %291 : vector<1x64xf32>
    %293 = vector.broadcast %292 : vector<1x64xf32> to vector<10x64xf32>
    %294 = arith.mulf %289, %293 : vector<10x64xf32>
    %cst_131 = arith.constant 0.000000e+00 : f32
    %295 = vector.broadcast %cst_131 : f32 to vector<10x64xf32>
    %296 = arith.maximumf %294, %295 : vector<10x64xf32>
    %297 = arith.truncf %296 : vector<10x64xf32> to vector<10x64xbf16>
    %cst_132 = arith.constant dense<0.000000e+00> : vector<10x32xf32>
    %298 = tpu.matmul %297, %271, %cst_132 {dimension_numbers = #tpu.dot_dimension_numbers<[1], [0], [0], [1], [0, 0, 1, 1], [], []>} : vector<10x64xbf16>, vector<64x32xbf16>, vector<10x32xf32> -> vector<10x32xf32>
    %cst_133 = arith.constant dense<0.000000e+00> : vector<32xf32>
    %299 = vector.multi_reduction <add>, %298, %cst_133 [0] : vector<10x32xf32> to vector<32xf32>
    %300 = vector.shape_cast %299 : vector<32xf32> to vector<1x32xf32>
    %301 = arith.mulf %298, %298 : vector<10x32xf32>
    %cst_134 = arith.constant dense<0.000000e+00> : vector<32xf32>
    %302 = vector.multi_reduction <add>, %301, %cst_134 [0] : vector<10x32xf32> to vector<32xf32>
    %303 = vector.shape_cast %302 : vector<32xf32> to vector<1x32xf32>
    %cst_135 = arith.constant 1.000000e-01 : f32
    %304 = vector.broadcast %cst_135 : f32 to vector<1x32xf32>
    %305 = arith.mulf %300, %304 : vector<1x32xf32>
    %cst_136 = arith.constant 1.000000e-01 : f32
    %306 = vector.broadcast %cst_136 : f32 to vector<1x32xf32>
    %307 = arith.mulf %303, %306 : vector<1x32xf32>
    %308 = arith.mulf %305, %305 : vector<1x32xf32>
    %309 = arith.subf %307, %308 : vector<1x32xf32>
    %310 = vector.broadcast %305 : vector<1x32xf32> to vector<10x32xf32>
    %311 = arith.subf %298, %310 : vector<10x32xf32>
    %cst_137 = arith.constant 9.99999974E-6 : f32
    %312 = vector.broadcast %cst_137 : f32 to vector<1x32xf32>
    %313 = arith.addf %309, %312 : vector<1x32xf32>
    %314 = math.rsqrt %313 : vector<1x32xf32>
    %315 = vector.broadcast %314 : vector<1x32xf32> to vector<10x32xf32>
    %316 = arith.mulf %311, %315 : vector<10x32xf32>
    %cst_138 = arith.constant 0.000000e+00 : f32
    %317 = vector.broadcast %cst_138 : f32 to vector<10x32xf32>
    %318 = arith.maximumf %316, %317 : vector<10x32xf32>
    %cst_139 = arith.constant 1.100000e+00 : f32
    %319 = vector.broadcast %cst_139 : f32 to vector<12x32xf32>
    %320 = arith.mulf %319, %62 : vector<12x32xf32>
    %321 = arith.addf %190, %320 : vector<12x32xf32>
    %322 = arith.truncf %321 : vector<12x32xf32> to vector<12x32xbf16>
    %cst_140 = arith.constant dense<0.000000e+00> : vector<12x64xf32>
    %323 = tpu.matmul %322, %270, %cst_140 {dimension_numbers = #tpu.dot_dimension_numbers<[1], [0], [0], [1], [0, 0, 1, 1], [], []>} : vector<12x32xbf16>, vector<32x64xbf16>, vector<12x64xf32> -> vector<12x64xf32>
    %cst_141 = arith.constant dense<0.000000e+00> : vector<64xf32>
    %324 = vector.multi_reduction <add>, %323, %cst_141 [0] : vector<12x64xf32> to vector<64xf32>
    %325 = vector.shape_cast %324 : vector<64xf32> to vector<1x64xf32>
    %326 = arith.mulf %323, %323 : vector<12x64xf32>
    %cst_142 = arith.constant dense<0.000000e+00> : vector<64xf32>
    %327 = vector.multi_reduction <add>, %326, %cst_142 [0] : vector<12x64xf32> to vector<64xf32>
    %328 = vector.shape_cast %327 : vector<64xf32> to vector<1x64xf32>
    %cst_143 = arith.constant 0.0833333358 : f32
    %329 = vector.broadcast %cst_143 : f32 to vector<1x64xf32>
    %330 = arith.mulf %325, %329 : vector<1x64xf32>
    %cst_144 = arith.constant 0.0833333358 : f32
    %331 = vector.broadcast %cst_144 : f32 to vector<1x64xf32>
    %332 = arith.mulf %328, %331 : vector<1x64xf32>
    %333 = arith.mulf %330, %330 : vector<1x64xf32>
    %334 = arith.subf %332, %333 : vector<1x64xf32>
    %335 = vector.broadcast %330 : vector<1x64xf32> to vector<12x64xf32>
    %336 = arith.subf %323, %335 : vector<12x64xf32>
    %cst_145 = arith.constant 9.99999974E-6 : f32
    %337 = vector.broadcast %cst_145 : f32 to vector<1x64xf32>
    %338 = arith.addf %334, %337 : vector<1x64xf32>
    %339 = math.rsqrt %338 : vector<1x64xf32>
    %340 = vector.broadcast %339 : vector<1x64xf32> to vector<12x64xf32>
    %341 = arith.mulf %336, %340 : vector<12x64xf32>
    %cst_146 = arith.constant 0.000000e+00 : f32
    %342 = vector.broadcast %cst_146 : f32 to vector<12x64xf32>
    %343 = arith.maximumf %341, %342 : vector<12x64xf32>
    %344 = arith.truncf %343 : vector<12x64xf32> to vector<12x64xbf16>
    %cst_147 = arith.constant dense<0.000000e+00> : vector<12x32xf32>
    %345 = tpu.matmul %344, %271, %cst_147 {dimension_numbers = #tpu.dot_dimension_numbers<[1], [0], [0], [1], [0, 0, 1, 1], [], []>} : vector<12x64xbf16>, vector<64x32xbf16>, vector<12x32xf32> -> vector<12x32xf32>
    %cst_148 = arith.constant dense<0.000000e+00> : vector<32xf32>
    %346 = vector.multi_reduction <add>, %345, %cst_148 [0] : vector<12x32xf32> to vector<32xf32>
    %347 = vector.shape_cast %346 : vector<32xf32> to vector<1x32xf32>
    %348 = arith.mulf %345, %345 : vector<12x32xf32>
    %cst_149 = arith.constant dense<0.000000e+00> : vector<32xf32>
    %349 = vector.multi_reduction <add>, %348, %cst_149 [0] : vector<12x32xf32> to vector<32xf32>
    %350 = vector.shape_cast %349 : vector<32xf32> to vector<1x32xf32>
    %cst_150 = arith.constant 0.0833333358 : f32
    %351 = vector.broadcast %cst_150 : f32 to vector<1x32xf32>
    %352 = arith.mulf %347, %351 : vector<1x32xf32>
    %cst_151 = arith.constant 0.0833333358 : f32
    %353 = vector.broadcast %cst_151 : f32 to vector<1x32xf32>
    %354 = arith.mulf %350, %353 : vector<1x32xf32>
    %355 = arith.mulf %352, %352 : vector<1x32xf32>
    %356 = arith.subf %354, %355 : vector<1x32xf32>
    %357 = vector.broadcast %352 : vector<1x32xf32> to vector<12x32xf32>
    %358 = arith.subf %345, %357 : vector<12x32xf32>
    %cst_152 = arith.constant 9.99999974E-6 : f32
    %359 = vector.broadcast %cst_152 : f32 to vector<1x32xf32>
    %360 = arith.addf %356, %359 : vector<1x32xf32>
    %361 = math.rsqrt %360 : vector<1x32xf32>
    %362 = vector.broadcast %361 : vector<1x32xf32> to vector<12x32xf32>
    %363 = arith.mulf %358, %362 : vector<12x32xf32>
    %cst_153 = arith.constant 0.000000e+00 : f32
    %364 = vector.broadcast %cst_153 : f32 to vector<12x32xf32>
    %365 = arith.maximumf %363, %364 : vector<12x32xf32>
    %c624 = arith.constant 624 : index
    %c0_154 = arith.constant 0 : index
    %366 = vector.load %arg1[%c624, %c0_154] : memref<1360x128xbf16, #tpu.memory_space<vmem>>, vector<64x32xbf16>
    %367 = vector.extract_strided_slice %366 {offsets = [0, 0], sizes = [32, 32], strides = [1, 1]} : vector<64x32xbf16> to vector<32x32xbf16>
    %368 = arith.truncf %148 : vector<24x32xf32> to vector<24x32xbf16>
    %cst_155 = arith.constant dense<0.000000e+00> : vector<24x32xf32>
    %369 = tpu.matmul %368, %367, %cst_155 {dimension_numbers = #tpu.dot_dimension_numbers<[1], [0], [0], [1], [0, 0, 1, 1], [], []>} : vector<24x32xbf16>, vector<32x32xbf16>, vector<24x32xf32> -> vector<24x32xf32>
    %370 = vector.extract_strided_slice %366 {offsets = [32, 0], sizes = [32, 32], strides = [1, 1]} : vector<64x32xbf16> to vector<32x32xbf16>
    %371 = arith.truncf %269 : vector<24x32xf32> to vector<24x32xbf16>
    %cst_156 = arith.constant dense<0.000000e+00> : vector<24x32xf32>
    %372 = tpu.matmul %371, %370, %cst_156 {dimension_numbers = #tpu.dot_dimension_numbers<[1], [0], [0], [1], [0, 0, 1, 1], [], []>} : vector<24x32xbf16>, vector<32x32xbf16>, vector<24x32xf32> -> vector<24x32xf32>
    %373 = arith.addf %369, %372 : vector<24x32xf32>
    %cst_157 = arith.constant dense<0.000000e+00> : vector<32xf32>
    %374 = vector.multi_reduction <add>, %373, %cst_157 [0] : vector<24x32xf32> to vector<32xf32>
    %375 = vector.shape_cast %374 : vector<32xf32> to vector<1x32xf32>
    %376 = arith.mulf %373, %373 : vector<24x32xf32>
    %cst_158 = arith.constant dense<0.000000e+00> : vector<32xf32>
    %377 = vector.multi_reduction <add>, %376, %cst_158 [0] : vector<24x32xf32> to vector<32xf32>
    %378 = vector.shape_cast %377 : vector<32xf32> to vector<1x32xf32>
    %cst_159 = arith.constant 0.0416666679 : f32
    %379 = vector.broadcast %cst_159 : f32 to vector<1x32xf32>
    %380 = arith.mulf %375, %379 : vector<1x32xf32>
    %cst_160 = arith.constant 0.0416666679 : f32
    %381 = vector.broadcast %cst_160 : f32 to vector<1x32xf32>
    %382 = arith.mulf %378, %381 : vector<1x32xf32>
    %383 = arith.mulf %380, %380 : vector<1x32xf32>
    %384 = arith.subf %382, %383 : vector<1x32xf32>
    %385 = vector.broadcast %380 : vector<1x32xf32> to vector<24x32xf32>
    %386 = arith.subf %373, %385 : vector<24x32xf32>
    %cst_161 = arith.constant 9.99999974E-6 : f32
    %387 = vector.broadcast %cst_161 : f32 to vector<1x32xf32>
    %388 = arith.addf %384, %387 : vector<1x32xf32>
    %389 = math.rsqrt %388 : vector<1x32xf32>
    %390 = vector.broadcast %389 : vector<1x32xf32> to vector<24x32xf32>
    %391 = arith.mulf %386, %390 : vector<24x32xf32>
    %cst_162 = arith.constant 0.000000e+00 : f32
    %392 = vector.broadcast %cst_162 : f32 to vector<24x32xf32>
    %393 = arith.maximumf %391, %392 : vector<24x32xf32>
    %394 = arith.addf %28, %393 : vector<24x32xf32>
    %395 = arith.addf %47, %318 : vector<10x32xf32>
    %396 = arith.addf %62, %365 : vector<12x32xf32>
    %c688 = arith.constant 688 : index
    %c0_163 = arith.constant 0 : index
    %397 = vector.load %arg1[%c688, %c0_163] : memref<1360x128xbf16, #tpu.memory_space<vmem>>, vector<32x128xbf16>
    %398 = arith.truncf %394 : vector<24x32xf32> to vector<24x32xbf16>
    %cst_164 = arith.constant dense<0.000000e+00> : vector<24x128xf32>
    %399 = tpu.matmul %398, %397, %cst_164 {dimension_numbers = #tpu.dot_dimension_numbers<[1], [0], [0], [1], [0, 0, 1, 1], [], []>} : vector<24x32xbf16>, vector<32x128xbf16>, vector<24x128xf32> -> vector<24x128xf32>
    %c64_165 = arith.constant 64 : index
    %c0_166 = arith.constant 0 : index
    %400 = vector.load %arg2[%c64_165, %c0_166] : memref<120x128xf32, #tpu.memory_space<vmem>>, vector<1x32xf32>
    %401 = vector.extract_strided_slice %399 {offsets = [0, 0], sizes = [24, 32], strides = [1, 1]} : vector<24x128xf32> to vector<24x32xf32>
    %402 = arith.truncf %401 : vector<24x32xf32> to vector<24x32xbf16>
    %cst_167 = arith.constant dense<0.000000e+00> : vector<24x32xf32>
    %403 = tpu.matmul %63, %402, %cst_167 {dimension_numbers = #tpu.dot_dimension_numbers<[1], [0], [0], [1], [0, 0, 1, 1], [], []>} : vector<24x24xbf16>, vector<24x32xbf16>, vector<24x32xf32> -> vector<24x32xf32>
    %404 = vector.broadcast %400 : vector<1x32xf32> to vector<24x32xf32>
    %405 = arith.addf %404, %403 : vector<24x32xf32>
    %406 = vector.extract_strided_slice %399 {offsets = [0, 32], sizes = [24, 32], strides = [1, 1]} : vector<24x128xf32> to vector<24x32xf32>
    %407 = arith.truncf %406 : vector<24x32xf32> to vector<24x32xbf16>
    %cst_168 = arith.constant dense<0.000000e+00> : vector<24x32xf32>
    %408 = tpu.matmul %64, %407, %cst_168 {dimension_numbers = #tpu.dot_dimension_numbers<[1], [0], [0], [1], [0, 0, 1, 1], [], []>} : vector<24x24xbf16>, vector<24x32xbf16>, vector<24x32xf32> -> vector<24x32xf32>
    %409 = arith.addf %405, %408 : vector<24x32xf32>
    %410 = vector.extract_strided_slice %399 {offsets = [0, 64], sizes = [24, 32], strides = [1, 1]} : vector<24x128xf32> to vector<24x32xf32>
    %411 = arith.truncf %410 : vector<24x32xf32> to vector<24x32xbf16>
    %cst_169 = arith.constant dense<0.000000e+00> : vector<24x32xf32>
    %412 = tpu.matmul %65, %411, %cst_169 {dimension_numbers = #tpu.dot_dimension_numbers<[1], [0], [0], [1], [0, 0, 1, 1], [], []>} : vector<24x24xbf16>, vector<24x32xbf16>, vector<24x32xf32> -> vector<24x32xf32>
    %413 = arith.addf %409, %412 : vector<24x32xf32>
    %414 = vector.extract_strided_slice %399 {offsets = [0, 96], sizes = [24, 32], strides = [1, 1]} : vector<24x128xf32> to vector<24x32xf32>
    %415 = arith.truncf %414 : vector<24x32xf32> to vector<24x32xbf16>
    %cst_170 = arith.constant dense<0.000000e+00> : vector<24x32xf32>
    %416 = tpu.matmul %66, %415, %cst_170 {dimension_numbers = #tpu.dot_dimension_numbers<[1], [0], [0], [1], [0, 0, 1, 1], [], []>} : vector<24x24xbf16>, vector<24x32xbf16>, vector<24x32xf32> -> vector<24x32xf32>
    %417 = arith.addf %413, %416 : vector<24x32xf32>
    %cst_171 = arith.constant 1.100000e+00 : f32
    %418 = vector.broadcast %cst_171 : f32 to vector<24x32xf32>
    %419 = arith.mulf %418, %394 : vector<24x32xf32>
    %420 = arith.addf %417, %419 : vector<24x32xf32>
    %c720 = arith.constant 720 : index
    %c0_172 = arith.constant 0 : index
    %421 = vector.load %arg1[%c720, %c0_172] : memref<1360x128xbf16, #tpu.memory_space<vmem>>, vector<32x64xbf16>
    %c752 = arith.constant 752 : index
    %c0_173 = arith.constant 0 : index
    %422 = vector.load %arg1[%c752, %c0_173] : memref<1360x128xbf16, #tpu.memory_space<vmem>>, vector<64x32xbf16>
    %423 = arith.truncf %420 : vector<24x32xf32> to vector<24x32xbf16>
    %cst_174 = arith.constant dense<0.000000e+00> : vector<24x64xf32>
    %424 = tpu.matmul %423, %421, %cst_174 {dimension_numbers = #tpu.dot_dimension_numbers<[1], [0], [0], [1], [0, 0, 1, 1], [], []>} : vector<24x32xbf16>, vector<32x64xbf16>, vector<24x64xf32> -> vector<24x64xf32>
    %cst_175 = arith.constant dense<0.000000e+00> : vector<64xf32>
    %425 = vector.multi_reduction <add>, %424, %cst_175 [0] : vector<24x64xf32> to vector<64xf32>
    %426 = vector.shape_cast %425 : vector<64xf32> to vector<1x64xf32>
    %427 = arith.mulf %424, %424 : vector<24x64xf32>
    %cst_176 = arith.constant dense<0.000000e+00> : vector<64xf32>
    %428 = vector.multi_reduction <add>, %427, %cst_176 [0] : vector<24x64xf32> to vector<64xf32>
    %429 = vector.shape_cast %428 : vector<64xf32> to vector<1x64xf32>
    %cst_177 = arith.constant 0.0416666679 : f32
    %430 = vector.broadcast %cst_177 : f32 to vector<1x64xf32>
    %431 = arith.mulf %426, %430 : vector<1x64xf32>
    %cst_178 = arith.constant 0.0416666679 : f32
    %432 = vector.broadcast %cst_178 : f32 to vector<1x64xf32>
    %433 = arith.mulf %429, %432 : vector<1x64xf32>
    %434 = arith.mulf %431, %431 : vector<1x64xf32>
    %435 = arith.subf %433, %434 : vector<1x64xf32>
    %436 = vector.broadcast %431 : vector<1x64xf32> to vector<24x64xf32>
    %437 = arith.subf %424, %436 : vector<24x64xf32>
    %cst_179 = arith.constant 9.99999974E-6 : f32
    %438 = vector.broadcast %cst_179 : f32 to vector<1x64xf32>
    %439 = arith.addf %435, %438 : vector<1x64xf32>
    %440 = math.rsqrt %439 : vector<1x64xf32>
    %441 = vector.broadcast %440 : vector<1x64xf32> to vector<24x64xf32>
    %442 = arith.mulf %437, %441 : vector<24x64xf32>
    %cst_180 = arith.constant 0.000000e+00 : f32
    %443 = vector.broadcast %cst_180 : f32 to vector<24x64xf32>
    %444 = arith.maximumf %442, %443 : vector<24x64xf32>
    %445 = arith.truncf %444 : vector<24x64xf32> to vector<24x64xbf16>
    %cst_181 = arith.constant dense<0.000000e+00> : vector<24x32xf32>
    %446 = tpu.matmul %445, %422, %cst_181 {dimension_numbers = #tpu.dot_dimension_numbers<[1], [0], [0], [1], [0, 0, 1, 1], [], []>} : vector<24x64xbf16>, vector<64x32xbf16>, vector<24x32xf32> -> vector<24x32xf32>
    %cst_182 = arith.constant dense<0.000000e+00> : vector<32xf32>
    %447 = vector.multi_reduction <add>, %446, %cst_182 [0] : vector<24x32xf32> to vector<32xf32>
    %448 = vector.shape_cast %447 : vector<32xf32> to vector<1x32xf32>
    %449 = arith.mulf %446, %446 : vector<24x32xf32>
    %cst_183 = arith.constant dense<0.000000e+00> : vector<32xf32>
    %450 = vector.multi_reduction <add>, %449, %cst_183 [0] : vector<24x32xf32> to vector<32xf32>
    %451 = vector.shape_cast %450 : vector<32xf32> to vector<1x32xf32>
    %cst_184 = arith.constant 0.0416666679 : f32
    %452 = vector.broadcast %cst_184 : f32 to vector<1x32xf32>
    %453 = arith.mulf %448, %452 : vector<1x32xf32>
    %cst_185 = arith.constant 0.0416666679 : f32
    %454 = vector.broadcast %cst_185 : f32 to vector<1x32xf32>
    %455 = arith.mulf %451, %454 : vector<1x32xf32>
    %456 = arith.mulf %453, %453 : vector<1x32xf32>
    %457 = arith.subf %455, %456 : vector<1x32xf32>
    %458 = vector.broadcast %453 : vector<1x32xf32> to vector<24x32xf32>
    %459 = arith.subf %446, %458 : vector<24x32xf32>
    %cst_186 = arith.constant 9.99999974E-6 : f32
    %460 = vector.broadcast %cst_186 : f32 to vector<1x32xf32>
    %461 = arith.addf %457, %460 : vector<1x32xf32>
    %462 = math.rsqrt %461 : vector<1x32xf32>
    %463 = vector.broadcast %462 : vector<1x32xf32> to vector<24x32xf32>
    %464 = arith.mulf %459, %463 : vector<24x32xf32>
    %cst_187 = arith.constant 0.000000e+00 : f32
    %465 = vector.broadcast %cst_187 : f32 to vector<24x32xf32>
    %466 = arith.maximumf %464, %465 : vector<24x32xf32>
    %c816 = arith.constant 816 : index
    %c0_188 = arith.constant 0 : index
    %467 = vector.load %arg1[%c816, %c0_188] : memref<1360x128xbf16, #tpu.memory_space<vmem>>, vector<32x128xbf16>
    %468 = arith.truncf %394 : vector<24x32xf32> to vector<24x32xbf16>
    %cst_189 = arith.constant dense<0.000000e+00> : vector<24x128xf32>
    %469 = tpu.matmul %468, %467, %cst_189 {dimension_numbers = #tpu.dot_dimension_numbers<[1], [0], [0], [1], [0, 0, 1, 1], [], []>} : vector<24x32xbf16>, vector<32x128xbf16>, vector<24x128xf32> -> vector<24x128xf32>
    %c72 = arith.constant 72 : index
    %c0_190 = arith.constant 0 : index
    %470 = vector.load %arg2[%c72, %c0_190] : memref<120x128xf32, #tpu.memory_space<vmem>>, vector<1x32xf32>
    %471 = vector.extract_strided_slice %469 {offsets = [0, 0], sizes = [24, 32], strides = [1, 1]} : vector<24x128xf32> to vector<24x32xf32>
    %472 = arith.truncf %471 : vector<24x32xf32> to vector<24x32xbf16>
    %cst_191 = arith.constant dense<0.000000e+00> : vector<10x32xf32>
    %473 = tpu.matmul %67, %472, %cst_191 {dimension_numbers = #tpu.dot_dimension_numbers<[1], [0], [0], [1], [0, 0, 1, 1], [], []>} : vector<10x24xbf16>, vector<24x32xbf16>, vector<10x32xf32> -> vector<10x32xf32>
    %474 = vector.broadcast %470 : vector<1x32xf32> to vector<10x32xf32>
    %475 = arith.addf %474, %473 : vector<10x32xf32>
    %476 = vector.extract_strided_slice %469 {offsets = [0, 32], sizes = [24, 32], strides = [1, 1]} : vector<24x128xf32> to vector<24x32xf32>
    %477 = arith.truncf %476 : vector<24x32xf32> to vector<24x32xbf16>
    %cst_192 = arith.constant dense<0.000000e+00> : vector<10x32xf32>
    %478 = tpu.matmul %68, %477, %cst_192 {dimension_numbers = #tpu.dot_dimension_numbers<[1], [0], [0], [1], [0, 0, 1, 1], [], []>} : vector<10x24xbf16>, vector<24x32xbf16>, vector<10x32xf32> -> vector<10x32xf32>
    %479 = arith.addf %475, %478 : vector<10x32xf32>
    %480 = vector.extract_strided_slice %469 {offsets = [0, 64], sizes = [24, 32], strides = [1, 1]} : vector<24x128xf32> to vector<24x32xf32>
    %481 = arith.truncf %480 : vector<24x32xf32> to vector<24x32xbf16>
    %cst_193 = arith.constant dense<0.000000e+00> : vector<10x32xf32>
    %482 = tpu.matmul %69, %481, %cst_193 {dimension_numbers = #tpu.dot_dimension_numbers<[1], [0], [0], [1], [0, 0, 1, 1], [], []>} : vector<10x24xbf16>, vector<24x32xbf16>, vector<10x32xf32> -> vector<10x32xf32>
    %483 = arith.addf %479, %482 : vector<10x32xf32>
    %484 = vector.extract_strided_slice %469 {offsets = [0, 96], sizes = [24, 32], strides = [1, 1]} : vector<24x128xf32> to vector<24x32xf32>
    %485 = arith.truncf %484 : vector<24x32xf32> to vector<24x32xbf16>
    %cst_194 = arith.constant dense<0.000000e+00> : vector<10x32xf32>
    %486 = tpu.matmul %70, %485, %cst_194 {dimension_numbers = #tpu.dot_dimension_numbers<[1], [0], [0], [1], [0, 0, 1, 1], [], []>} : vector<10x24xbf16>, vector<24x32xbf16>, vector<10x32xf32> -> vector<10x32xf32>
    %487 = arith.addf %483, %486 : vector<10x32xf32>
    %c848 = arith.constant 848 : index
    %c0_195 = arith.constant 0 : index
    %488 = vector.load %arg1[%c848, %c0_195] : memref<1360x128xbf16, #tpu.memory_space<vmem>>, vector<32x128xbf16>
    %489 = arith.truncf %394 : vector<24x32xf32> to vector<24x32xbf16>
    %cst_196 = arith.constant dense<0.000000e+00> : vector<24x128xf32>
    %490 = tpu.matmul %489, %488, %cst_196 {dimension_numbers = #tpu.dot_dimension_numbers<[1], [0], [0], [1], [0, 0, 1, 1], [], []>} : vector<24x32xbf16>, vector<32x128xbf16>, vector<24x128xf32> -> vector<24x128xf32>
    %c80_197 = arith.constant 80 : index
    %c0_198 = arith.constant 0 : index
    %491 = vector.load %arg2[%c80_197, %c0_198] : memref<120x128xf32, #tpu.memory_space<vmem>>, vector<1x32xf32>
    %492 = vector.extract_strided_slice %490 {offsets = [0, 0], sizes = [24, 32], strides = [1, 1]} : vector<24x128xf32> to vector<24x32xf32>
    %493 = arith.truncf %492 : vector<24x32xf32> to vector<24x32xbf16>
    %cst_199 = arith.constant dense<0.000000e+00> : vector<12x32xf32>
    %494 = tpu.matmul %71, %493, %cst_199 {dimension_numbers = #tpu.dot_dimension_numbers<[1], [0], [0], [1], [0, 0, 1, 1], [], []>} : vector<12x24xbf16>, vector<24x32xbf16>, vector<12x32xf32> -> vector<12x32xf32>
    %495 = vector.broadcast %491 : vector<1x32xf32> to vector<12x32xf32>
    %496 = arith.addf %495, %494 : vector<12x32xf32>
    %497 = vector.extract_strided_slice %490 {offsets = [0, 32], sizes = [24, 32], strides = [1, 1]} : vector<24x128xf32> to vector<24x32xf32>
    %498 = arith.truncf %497 : vector<24x32xf32> to vector<24x32xbf16>
    %cst_200 = arith.constant dense<0.000000e+00> : vector<12x32xf32>
    %499 = tpu.matmul %72, %498, %cst_200 {dimension_numbers = #tpu.dot_dimension_numbers<[1], [0], [0], [1], [0, 0, 1, 1], [], []>} : vector<12x24xbf16>, vector<24x32xbf16>, vector<12x32xf32> -> vector<12x32xf32>
    %500 = arith.addf %496, %499 : vector<12x32xf32>
    %501 = vector.extract_strided_slice %490 {offsets = [0, 64], sizes = [24, 32], strides = [1, 1]} : vector<24x128xf32> to vector<24x32xf32>
    %502 = arith.truncf %501 : vector<24x32xf32> to vector<24x32xbf16>
    %cst_201 = arith.constant dense<0.000000e+00> : vector<12x32xf32>
    %503 = tpu.matmul %73, %502, %cst_201 {dimension_numbers = #tpu.dot_dimension_numbers<[1], [0], [0], [1], [0, 0, 1, 1], [], []>} : vector<12x24xbf16>, vector<24x32xbf16>, vector<12x32xf32> -> vector<12x32xf32>
    %504 = arith.addf %500, %503 : vector<12x32xf32>
    %505 = vector.extract_strided_slice %490 {offsets = [0, 96], sizes = [24, 32], strides = [1, 1]} : vector<24x128xf32> to vector<24x32xf32>
    %506 = arith.truncf %505 : vector<24x32xf32> to vector<24x32xbf16>
    %cst_202 = arith.constant dense<0.000000e+00> : vector<12x32xf32>
    %507 = tpu.matmul %74, %506, %cst_202 {dimension_numbers = #tpu.dot_dimension_numbers<[1], [0], [0], [1], [0, 0, 1, 1], [], []>} : vector<12x24xbf16>, vector<24x32xbf16>, vector<12x32xf32> -> vector<12x32xf32>
    %508 = arith.addf %504, %507 : vector<12x32xf32>
    %c880 = arith.constant 880 : index
    %c0_203 = arith.constant 0 : index
    %509 = vector.load %arg1[%c880, %c0_203] : memref<1360x128xbf16, #tpu.memory_space<vmem>>, vector<32x64xbf16>
    %c912 = arith.constant 912 : index
    %c0_204 = arith.constant 0 : index
    %510 = vector.load %arg1[%c912, %c0_204] : memref<1360x128xbf16, #tpu.memory_space<vmem>>, vector<32x64xbf16>
    %c88 = arith.constant 88 : index
    %c0_205 = arith.constant 0 : index
    %511 = vector.load %arg2[%c88, %c0_205] : memref<120x128xf32, #tpu.memory_space<vmem>>, vector<1x32xf32>
    %512 = arith.truncf %487 : vector<10x32xf32> to vector<10x32xbf16>
    %cst_206 = arith.constant dense<0.000000e+00> : vector<10x64xf32>
    %513 = tpu.matmul %512, %509, %cst_206 {dimension_numbers = #tpu.dot_dimension_numbers<[1], [0], [0], [1], [0, 0, 1, 1], [], []>} : vector<10x32xbf16>, vector<32x64xbf16>, vector<10x64xf32> -> vector<10x64xf32>
    %514 = arith.truncf %395 : vector<10x32xf32> to vector<10x32xbf16>
    %cst_207 = arith.constant dense<0.000000e+00> : vector<10x64xf32>
    %515 = tpu.matmul %514, %510, %cst_207 {dimension_numbers = #tpu.dot_dimension_numbers<[1], [0], [0], [1], [0, 0, 1, 1], [], []>} : vector<10x32xbf16>, vector<32x64xbf16>, vector<10x64xf32> -> vector<10x64xf32>
    %516 = arith.addf %513, %515 : vector<10x64xf32>
    %517 = vector.extract_strided_slice %516 {offsets = [0, 0], sizes = [10, 32], strides = [1, 1]} : vector<10x64xf32> to vector<10x32xf32>
    %518 = arith.truncf %517 : vector<10x32xf32> to vector<10x32xbf16>
    %cst_208 = arith.constant dense<0.000000e+00> : vector<24x32xf32>
    %519 = tpu.matmul %75, %518, %cst_208 {dimension_numbers = #tpu.dot_dimension_numbers<[1], [0], [0], [1], [0, 0, 1, 1], [], []>} : vector<24x10xbf16>, vector<10x32xbf16>, vector<24x32xf32> -> vector<24x32xf32>
    %520 = vector.broadcast %511 : vector<1x32xf32> to vector<24x32xf32>
    %521 = arith.addf %520, %519 : vector<24x32xf32>
    %522 = vector.extract_strided_slice %516 {offsets = [0, 32], sizes = [10, 32], strides = [1, 1]} : vector<10x64xf32> to vector<10x32xf32>
    %523 = arith.truncf %522 : vector<10x32xf32> to vector<10x32xbf16>
    %cst_209 = arith.constant dense<0.000000e+00> : vector<24x32xf32>
    %524 = tpu.matmul %77, %523, %cst_209 {dimension_numbers = #tpu.dot_dimension_numbers<[1], [0], [0], [1], [0, 0, 1, 1], [], []>} : vector<24x10xbf16>, vector<10x32xbf16>, vector<24x32xf32> -> vector<24x32xf32>
    %525 = arith.addf %521, %524 : vector<24x32xf32>
    %526 = arith.truncf %508 : vector<12x32xf32> to vector<12x32xbf16>
    %cst_210 = arith.constant dense<0.000000e+00> : vector<12x64xf32>
    %527 = tpu.matmul %526, %509, %cst_210 {dimension_numbers = #tpu.dot_dimension_numbers<[1], [0], [0], [1], [0, 0, 1, 1], [], []>} : vector<12x32xbf16>, vector<32x64xbf16>, vector<12x64xf32> -> vector<12x64xf32>
    %528 = arith.truncf %396 : vector<12x32xf32> to vector<12x32xbf16>
    %cst_211 = arith.constant dense<0.000000e+00> : vector<12x64xf32>
    %529 = tpu.matmul %528, %510, %cst_211 {dimension_numbers = #tpu.dot_dimension_numbers<[1], [0], [0], [1], [0, 0, 1, 1], [], []>} : vector<12x32xbf16>, vector<32x64xbf16>, vector<12x64xf32> -> vector<12x64xf32>
    %530 = arith.addf %527, %529 : vector<12x64xf32>
    %531 = vector.extract_strided_slice %530 {offsets = [0, 0], sizes = [12, 32], strides = [1, 1]} : vector<12x64xf32> to vector<12x32xf32>
    %532 = arith.truncf %531 : vector<12x32xf32> to vector<12x32xbf16>
    %cst_212 = arith.constant dense<0.000000e+00> : vector<24x32xf32>
    %533 = tpu.matmul %76, %532, %cst_212 {dimension_numbers = #tpu.dot_dimension_numbers<[1], [0], [0], [1], [0, 0, 1, 1], [], []>} : vector<24x12xbf16>, vector<12x32xbf16>, vector<24x32xf32> -> vector<24x32xf32>
    %534 = arith.addf %525, %533 : vector<24x32xf32>
    %535 = vector.extract_strided_slice %530 {offsets = [0, 32], sizes = [12, 32], strides = [1, 1]} : vector<12x64xf32> to vector<12x32xf32>
    %536 = arith.truncf %535 : vector<12x32xf32> to vector<12x32xbf16>
    %cst_213 = arith.constant dense<0.000000e+00> : vector<24x32xf32>
    %537 = tpu.matmul %78, %536, %cst_213 {dimension_numbers = #tpu.dot_dimension_numbers<[1], [0], [0], [1], [0, 0, 1, 1], [], []>} : vector<24x12xbf16>, vector<12x32xbf16>, vector<24x32xf32> -> vector<24x32xf32>
    %538 = arith.addf %534, %537 : vector<24x32xf32>
    %cst_214 = arith.constant 1.100000e+00 : f32
    %539 = vector.broadcast %cst_214 : f32 to vector<24x32xf32>
    %540 = arith.mulf %539, %394 : vector<24x32xf32>
    %541 = arith.addf %538, %540 : vector<24x32xf32>
    %c944 = arith.constant 944 : index
    %c0_215 = arith.constant 0 : index
    %542 = vector.load %arg1[%c944, %c0_215] : memref<1360x128xbf16, #tpu.memory_space<vmem>>, vector<32x64xbf16>
    %c976 = arith.constant 976 : index
    %c0_216 = arith.constant 0 : index
    %543 = vector.load %arg1[%c976, %c0_216] : memref<1360x128xbf16, #tpu.memory_space<vmem>>, vector<64x32xbf16>
    %544 = arith.truncf %541 : vector<24x32xf32> to vector<24x32xbf16>
    %cst_217 = arith.constant dense<0.000000e+00> : vector<24x64xf32>
    %545 = tpu.matmul %544, %542, %cst_217 {dimension_numbers = #tpu.dot_dimension_numbers<[1], [0], [0], [1], [0, 0, 1, 1], [], []>} : vector<24x32xbf16>, vector<32x64xbf16>, vector<24x64xf32> -> vector<24x64xf32>
    %cst_218 = arith.constant dense<0.000000e+00> : vector<64xf32>
    %546 = vector.multi_reduction <add>, %545, %cst_218 [0] : vector<24x64xf32> to vector<64xf32>
    %547 = vector.shape_cast %546 : vector<64xf32> to vector<1x64xf32>
    %548 = arith.mulf %545, %545 : vector<24x64xf32>
    %cst_219 = arith.constant dense<0.000000e+00> : vector<64xf32>
    %549 = vector.multi_reduction <add>, %548, %cst_219 [0] : vector<24x64xf32> to vector<64xf32>
    %550 = vector.shape_cast %549 : vector<64xf32> to vector<1x64xf32>
    %cst_220 = arith.constant 0.0416666679 : f32
    %551 = vector.broadcast %cst_220 : f32 to vector<1x64xf32>
    %552 = arith.mulf %547, %551 : vector<1x64xf32>
    %cst_221 = arith.constant 0.0416666679 : f32
    %553 = vector.broadcast %cst_221 : f32 to vector<1x64xf32>
    %554 = arith.mulf %550, %553 : vector<1x64xf32>
    %555 = arith.mulf %552, %552 : vector<1x64xf32>
    %556 = arith.subf %554, %555 : vector<1x64xf32>
    %557 = vector.broadcast %552 : vector<1x64xf32> to vector<24x64xf32>
    %558 = arith.subf %545, %557 : vector<24x64xf32>
    %cst_222 = arith.constant 9.99999974E-6 : f32
    %559 = vector.broadcast %cst_222 : f32 to vector<1x64xf32>
    %560 = arith.addf %556, %559 : vector<1x64xf32>
    %561 = math.rsqrt %560 : vector<1x64xf32>
    %562 = vector.broadcast %561 : vector<1x64xf32> to vector<24x64xf32>
    %563 = arith.mulf %558, %562 : vector<24x64xf32>
    %cst_223 = arith.constant 0.000000e+00 : f32
    %564 = vector.broadcast %cst_223 : f32 to vector<24x64xf32>
    %565 = arith.maximumf %563, %564 : vector<24x64xf32>
    %566 = arith.truncf %565 : vector<24x64xf32> to vector<24x64xbf16>
    %cst_224 = arith.constant dense<0.000000e+00> : vector<24x32xf32>
    %567 = tpu.matmul %566, %543, %cst_224 {dimension_numbers = #tpu.dot_dimension_numbers<[1], [0], [0], [1], [0, 0, 1, 1], [], []>} : vector<24x64xbf16>, vector<64x32xbf16>, vector<24x32xf32> -> vector<24x32xf32>
    %cst_225 = arith.constant dense<0.000000e+00> : vector<32xf32>
    %568 = vector.multi_reduction <add>, %567, %cst_225 [0] : vector<24x32xf32> to vector<32xf32>
    %569 = vector.shape_cast %568 : vector<32xf32> to vector<1x32xf32>
    %570 = arith.mulf %567, %567 : vector<24x32xf32>
    %cst_226 = arith.constant dense<0.000000e+00> : vector<32xf32>
    %571 = vector.multi_reduction <add>, %570, %cst_226 [0] : vector<24x32xf32> to vector<32xf32>
    %572 = vector.shape_cast %571 : vector<32xf32> to vector<1x32xf32>
    %cst_227 = arith.constant 0.0416666679 : f32
    %573 = vector.broadcast %cst_227 : f32 to vector<1x32xf32>
    %574 = arith.mulf %569, %573 : vector<1x32xf32>
    %cst_228 = arith.constant 0.0416666679 : f32
    %575 = vector.broadcast %cst_228 : f32 to vector<1x32xf32>
    %576 = arith.mulf %572, %575 : vector<1x32xf32>
    %577 = arith.mulf %574, %574 : vector<1x32xf32>
    %578 = arith.subf %576, %577 : vector<1x32xf32>
    %579 = vector.broadcast %574 : vector<1x32xf32> to vector<24x32xf32>
    %580 = arith.subf %567, %579 : vector<24x32xf32>
    %cst_229 = arith.constant 9.99999974E-6 : f32
    %581 = vector.broadcast %cst_229 : f32 to vector<1x32xf32>
    %582 = arith.addf %578, %581 : vector<1x32xf32>
    %583 = math.rsqrt %582 : vector<1x32xf32>
    %584 = vector.broadcast %583 : vector<1x32xf32> to vector<24x32xf32>
    %585 = arith.mulf %580, %584 : vector<24x32xf32>
    %cst_230 = arith.constant 0.000000e+00 : f32
    %586 = vector.broadcast %cst_230 : f32 to vector<24x32xf32>
    %587 = arith.maximumf %585, %586 : vector<24x32xf32>
    %c1040 = arith.constant 1040 : index
    %c0_231 = arith.constant 0 : index
    %588 = vector.load %arg1[%c1040, %c0_231] : memref<1360x128xbf16, #tpu.memory_space<vmem>>, vector<32x64xbf16>
    %c1072 = arith.constant 1072 : index
    %c0_232 = arith.constant 0 : index
    %589 = vector.load %arg1[%c1072, %c0_232] : memref<1360x128xbf16, #tpu.memory_space<vmem>>, vector<64x32xbf16>
    %cst_233 = arith.constant 1.100000e+00 : f32
    %590 = vector.broadcast %cst_233 : f32 to vector<10x32xf32>
    %591 = arith.mulf %590, %395 : vector<10x32xf32>
    %592 = arith.addf %487, %591 : vector<10x32xf32>
    %593 = arith.truncf %592 : vector<10x32xf32> to vector<10x32xbf16>
    %cst_234 = arith.constant dense<0.000000e+00> : vector<10x64xf32>
    %594 = tpu.matmul %593, %588, %cst_234 {dimension_numbers = #tpu.dot_dimension_numbers<[1], [0], [0], [1], [0, 0, 1, 1], [], []>} : vector<10x32xbf16>, vector<32x64xbf16>, vector<10x64xf32> -> vector<10x64xf32>
    %cst_235 = arith.constant dense<0.000000e+00> : vector<64xf32>
    %595 = vector.multi_reduction <add>, %594, %cst_235 [0] : vector<10x64xf32> to vector<64xf32>
    %596 = vector.shape_cast %595 : vector<64xf32> to vector<1x64xf32>
    %597 = arith.mulf %594, %594 : vector<10x64xf32>
    %cst_236 = arith.constant dense<0.000000e+00> : vector<64xf32>
    %598 = vector.multi_reduction <add>, %597, %cst_236 [0] : vector<10x64xf32> to vector<64xf32>
    %599 = vector.shape_cast %598 : vector<64xf32> to vector<1x64xf32>
    %cst_237 = arith.constant 1.000000e-01 : f32
    %600 = vector.broadcast %cst_237 : f32 to vector<1x64xf32>
    %601 = arith.mulf %596, %600 : vector<1x64xf32>
    %cst_238 = arith.constant 1.000000e-01 : f32
    %602 = vector.broadcast %cst_238 : f32 to vector<1x64xf32>
    %603 = arith.mulf %599, %602 : vector<1x64xf32>
    %604 = arith.mulf %601, %601 : vector<1x64xf32>
    %605 = arith.subf %603, %604 : vector<1x64xf32>
    %606 = vector.broadcast %601 : vector<1x64xf32> to vector<10x64xf32>
    %607 = arith.subf %594, %606 : vector<10x64xf32>
    %cst_239 = arith.constant 9.99999974E-6 : f32
    %608 = vector.broadcast %cst_239 : f32 to vector<1x64xf32>
    %609 = arith.addf %605, %608 : vector<1x64xf32>
    %610 = math.rsqrt %609 : vector<1x64xf32>
    %611 = vector.broadcast %610 : vector<1x64xf32> to vector<10x64xf32>
    %612 = arith.mulf %607, %611 : vector<10x64xf32>
    %cst_240 = arith.constant 0.000000e+00 : f32
    %613 = vector.broadcast %cst_240 : f32 to vector<10x64xf32>
    %614 = arith.maximumf %612, %613 : vector<10x64xf32>
    %615 = arith.truncf %614 : vector<10x64xf32> to vector<10x64xbf16>
    %cst_241 = arith.constant dense<0.000000e+00> : vector<10x32xf32>
    %616 = tpu.matmul %615, %589, %cst_241 {dimension_numbers = #tpu.dot_dimension_numbers<[1], [0], [0], [1], [0, 0, 1, 1], [], []>} : vector<10x64xbf16>, vector<64x32xbf16>, vector<10x32xf32> -> vector<10x32xf32>
    %cst_242 = arith.constant dense<0.000000e+00> : vector<32xf32>
    %617 = vector.multi_reduction <add>, %616, %cst_242 [0] : vector<10x32xf32> to vector<32xf32>
    %618 = vector.shape_cast %617 : vector<32xf32> to vector<1x32xf32>
    %619 = arith.mulf %616, %616 : vector<10x32xf32>
    %cst_243 = arith.constant dense<0.000000e+00> : vector<32xf32>
    %620 = vector.multi_reduction <add>, %619, %cst_243 [0] : vector<10x32xf32> to vector<32xf32>
    %621 = vector.shape_cast %620 : vector<32xf32> to vector<1x32xf32>
    %cst_244 = arith.constant 1.000000e-01 : f32
    %622 = vector.broadcast %cst_244 : f32 to vector<1x32xf32>
    %623 = arith.mulf %618, %622 : vector<1x32xf32>
    %cst_245 = arith.constant 1.000000e-01 : f32
    %624 = vector.broadcast %cst_245 : f32 to vector<1x32xf32>
    %625 = arith.mulf %621, %624 : vector<1x32xf32>
    %626 = arith.mulf %623, %623 : vector<1x32xf32>
    %627 = arith.subf %625, %626 : vector<1x32xf32>
    %628 = vector.broadcast %623 : vector<1x32xf32> to vector<10x32xf32>
    %629 = arith.subf %616, %628 : vector<10x32xf32>
    %cst_246 = arith.constant 9.99999974E-6 : f32
    %630 = vector.broadcast %cst_246 : f32 to vector<1x32xf32>
    %631 = arith.addf %627, %630 : vector<1x32xf32>
    %632 = math.rsqrt %631 : vector<1x32xf32>
    %633 = vector.broadcast %632 : vector<1x32xf32> to vector<10x32xf32>
    %634 = arith.mulf %629, %633 : vector<10x32xf32>
    %cst_247 = arith.constant 0.000000e+00 : f32
    %635 = vector.broadcast %cst_247 : f32 to vector<10x32xf32>
    %636 = arith.maximumf %634, %635 : vector<10x32xf32>
    %cst_248 = arith.constant 1.100000e+00 : f32
    %637 = vector.broadcast %cst_248 : f32 to vector<12x32xf32>
    %638 = arith.mulf %637, %396 : vector<12x32xf32>
    %639 = arith.addf %508, %638 : vector<12x32xf32>
    %640 = arith.truncf %639 : vector<12x32xf32> to vector<12x32xbf16>
    %cst_249 = arith.constant dense<0.000000e+00> : vector<12x64xf32>
    %641 = tpu.matmul %640, %588, %cst_249 {dimension_numbers = #tpu.dot_dimension_numbers<[1], [0], [0], [1], [0, 0, 1, 1], [], []>} : vector<12x32xbf16>, vector<32x64xbf16>, vector<12x64xf32> -> vector<12x64xf32>
    %cst_250 = arith.constant dense<0.000000e+00> : vector<64xf32>
    %642 = vector.multi_reduction <add>, %641, %cst_250 [0] : vector<12x64xf32> to vector<64xf32>
    %643 = vector.shape_cast %642 : vector<64xf32> to vector<1x64xf32>
    %644 = arith.mulf %641, %641 : vector<12x64xf32>
    %cst_251 = arith.constant dense<0.000000e+00> : vector<64xf32>
    %645 = vector.multi_reduction <add>, %644, %cst_251 [0] : vector<12x64xf32> to vector<64xf32>
    %646 = vector.shape_cast %645 : vector<64xf32> to vector<1x64xf32>
    %cst_252 = arith.constant 0.0833333358 : f32
    %647 = vector.broadcast %cst_252 : f32 to vector<1x64xf32>
    %648 = arith.mulf %643, %647 : vector<1x64xf32>
    %cst_253 = arith.constant 0.0833333358 : f32
    %649 = vector.broadcast %cst_253 : f32 to vector<1x64xf32>
    %650 = arith.mulf %646, %649 : vector<1x64xf32>
    %651 = arith.mulf %648, %648 : vector<1x64xf32>
    %652 = arith.subf %650, %651 : vector<1x64xf32>
    %653 = vector.broadcast %648 : vector<1x64xf32> to vector<12x64xf32>
    %654 = arith.subf %641, %653 : vector<12x64xf32>
    %cst_254 = arith.constant 9.99999974E-6 : f32
    %655 = vector.broadcast %cst_254 : f32 to vector<1x64xf32>
    %656 = arith.addf %652, %655 : vector<1x64xf32>
    %657 = math.rsqrt %656 : vector<1x64xf32>
    %658 = vector.broadcast %657 : vector<1x64xf32> to vector<12x64xf32>
    %659 = arith.mulf %654, %658 : vector<12x64xf32>
    %cst_255 = arith.constant 0.000000e+00 : f32
    %660 = vector.broadcast %cst_255 : f32 to vector<12x64xf32>
    %661 = arith.maximumf %659, %660 : vector<12x64xf32>
    %662 = arith.truncf %661 : vector<12x64xf32> to vector<12x64xbf16>
    %cst_256 = arith.constant dense<0.000000e+00> : vector<12x32xf32>
    %663 = tpu.matmul %662, %589, %cst_256 {dimension_numbers = #tpu.dot_dimension_numbers<[1], [0], [0], [1], [0, 0, 1, 1], [], []>} : vector<12x64xbf16>, vector<64x32xbf16>, vector<12x32xf32> -> vector<12x32xf32>
    %cst_257 = arith.constant dense<0.000000e+00> : vector<32xf32>
    %664 = vector.multi_reduction <add>, %663, %cst_257 [0] : vector<12x32xf32> to vector<32xf32>
    %665 = vector.shape_cast %664 : vector<32xf32> to vector<1x32xf32>
    %666 = arith.mulf %663, %663 : vector<12x32xf32>
    %cst_258 = arith.constant dense<0.000000e+00> : vector<32xf32>
    %667 = vector.multi_reduction <add>, %666, %cst_258 [0] : vector<12x32xf32> to vector<32xf32>
    %668 = vector.shape_cast %667 : vector<32xf32> to vector<1x32xf32>
    %cst_259 = arith.constant 0.0833333358 : f32
    %669 = vector.broadcast %cst_259 : f32 to vector<1x32xf32>
    %670 = arith.mulf %665, %669 : vector<1x32xf32>
    %cst_260 = arith.constant 0.0833333358 : f32
    %671 = vector.broadcast %cst_260 : f32 to vector<1x32xf32>
    %672 = arith.mulf %668, %671 : vector<1x32xf32>
    %673 = arith.mulf %670, %670 : vector<1x32xf32>
    %674 = arith.subf %672, %673 : vector<1x32xf32>
    %675 = vector.broadcast %670 : vector<1x32xf32> to vector<12x32xf32>
    %676 = arith.subf %663, %675 : vector<12x32xf32>
    %cst_261 = arith.constant 9.99999974E-6 : f32
    %677 = vector.broadcast %cst_261 : f32 to vector<1x32xf32>
    %678 = arith.addf %674, %677 : vector<1x32xf32>
    %679 = math.rsqrt %678 : vector<1x32xf32>
    %680 = vector.broadcast %679 : vector<1x32xf32> to vector<12x32xf32>
    %681 = arith.mulf %676, %680 : vector<12x32xf32>
    %cst_262 = arith.constant 0.000000e+00 : f32
    %682 = vector.broadcast %cst_262 : f32 to vector<12x32xf32>
    %683 = arith.maximumf %681, %682 : vector<12x32xf32>
    %c1136 = arith.constant 1136 : index
    %c0_263 = arith.constant 0 : index
    %684 = vector.load %arg1[%c1136, %c0_263] : memref<1360x128xbf16, #tpu.memory_space<vmem>>, vector<64x32xbf16>
    %685 = vector.extract_strided_slice %684 {offsets = [0, 0], sizes = [32, 32], strides = [1, 1]} : vector<64x32xbf16> to vector<32x32xbf16>
    %686 = arith.truncf %466 : vector<24x32xf32> to vector<24x32xbf16>
    %cst_264 = arith.constant dense<0.000000e+00> : vector<24x32xf32>
    %687 = tpu.matmul %686, %685, %cst_264 {dimension_numbers = #tpu.dot_dimension_numbers<[1], [0], [0], [1], [0, 0, 1, 1], [], []>} : vector<24x32xbf16>, vector<32x32xbf16>, vector<24x32xf32> -> vector<24x32xf32>
    %688 = vector.extract_strided_slice %684 {offsets = [32, 0], sizes = [32, 32], strides = [1, 1]} : vector<64x32xbf16> to vector<32x32xbf16>
    %689 = arith.truncf %587 : vector<24x32xf32> to vector<24x32xbf16>
    %cst_265 = arith.constant dense<0.000000e+00> : vector<24x32xf32>
    %690 = tpu.matmul %689, %688, %cst_265 {dimension_numbers = #tpu.dot_dimension_numbers<[1], [0], [0], [1], [0, 0, 1, 1], [], []>} : vector<24x32xbf16>, vector<32x32xbf16>, vector<24x32xf32> -> vector<24x32xf32>
    %691 = arith.addf %687, %690 : vector<24x32xf32>
    %cst_266 = arith.constant dense<0.000000e+00> : vector<32xf32>
    %692 = vector.multi_reduction <add>, %691, %cst_266 [0] : vector<24x32xf32> to vector<32xf32>
    %693 = vector.shape_cast %692 : vector<32xf32> to vector<1x32xf32>
    %694 = arith.mulf %691, %691 : vector<24x32xf32>
    %cst_267 = arith.constant dense<0.000000e+00> : vector<32xf32>
    %695 = vector.multi_reduction <add>, %694, %cst_267 [0] : vector<24x32xf32> to vector<32xf32>
    %696 = vector.shape_cast %695 : vector<32xf32> to vector<1x32xf32>
    %cst_268 = arith.constant 0.0416666679 : f32
    %697 = vector.broadcast %cst_268 : f32 to vector<1x32xf32>
    %698 = arith.mulf %693, %697 : vector<1x32xf32>
    %cst_269 = arith.constant 0.0416666679 : f32
    %699 = vector.broadcast %cst_269 : f32 to vector<1x32xf32>
    %700 = arith.mulf %696, %699 : vector<1x32xf32>
    %701 = arith.mulf %698, %698 : vector<1x32xf32>
    %702 = arith.subf %700, %701 : vector<1x32xf32>
    %703 = vector.broadcast %698 : vector<1x32xf32> to vector<24x32xf32>
    %704 = arith.subf %691, %703 : vector<24x32xf32>
    %cst_270 = arith.constant 9.99999974E-6 : f32
    %705 = vector.broadcast %cst_270 : f32 to vector<1x32xf32>
    %706 = arith.addf %702, %705 : vector<1x32xf32>
    %707 = math.rsqrt %706 : vector<1x32xf32>
    %708 = vector.broadcast %707 : vector<1x32xf32> to vector<24x32xf32>
    %709 = arith.mulf %704, %708 : vector<24x32xf32>
    %cst_271 = arith.constant 0.000000e+00 : f32
    %710 = vector.broadcast %cst_271 : f32 to vector<24x32xf32>
    %711 = arith.maximumf %709, %710 : vector<24x32xf32>
    %712 = arith.addf %394, %711 : vector<24x32xf32>
    %713 = arith.addf %395, %636 : vector<10x32xf32>
    %714 = arith.addf %396, %683 : vector<12x32xf32>
    %c480 = arith.constant 480 : index
    %c0_272 = arith.constant 0 : index
    %715 = vector.load %arg0[%c480, %c0_272] : memref<528x128xbf16, #tpu.memory_space<vmem>>, vector<2x10xbf16>
    %716 = arith.truncf %713 : vector<10x32xf32> to vector<10x32xbf16>
    %cst_273 = arith.constant dense<0.000000e+00> : vector<2x32xf32>
    %717 = tpu.matmul %715, %716, %cst_273 {dimension_numbers = #tpu.dot_dimension_numbers<[1], [0], [0], [1], [0, 0, 1, 1], [], []>} : vector<2x10xbf16>, vector<10x32xbf16>, vector<2x32xf32> -> vector<2x32xf32>
    %c496 = arith.constant 496 : index
    %c0_274 = arith.constant 0 : index
    %718 = vector.load %arg0[%c496, %c0_274] : memref<528x128xbf16, #tpu.memory_space<vmem>>, vector<2x12xbf16>
    %719 = arith.truncf %714 : vector<12x32xf32> to vector<12x32xbf16>
    %cst_275 = arith.constant dense<0.000000e+00> : vector<2x32xf32>
    %720 = tpu.matmul %718, %719, %cst_275 {dimension_numbers = #tpu.dot_dimension_numbers<[1], [0], [0], [1], [0, 0, 1, 1], [], []>} : vector<2x12xbf16>, vector<12x32xbf16>, vector<2x32xf32> -> vector<2x32xf32>
    %c512 = arith.constant 512 : index
    %c0_276 = arith.constant 0 : index
    %721 = vector.load %arg0[%c512, %c0_276] : memref<528x128xbf16, #tpu.memory_space<vmem>>, vector<2x24xbf16>
    %722 = arith.truncf %712 : vector<24x32xf32> to vector<24x32xbf16>
    %cst_277 = arith.constant dense<0.000000e+00> : vector<2x32xf32>
    %723 = tpu.matmul %721, %722, %cst_277 {dimension_numbers = #tpu.dot_dimension_numbers<[1], [0], [0], [1], [0, 0, 1, 1], [], []>} : vector<2x24xbf16>, vector<24x32xbf16>, vector<2x32xf32> -> vector<2x32xf32>
    %c1200 = arith.constant 1200 : index
    %c0_278 = arith.constant 0 : index
    %724 = vector.load %arg1[%c1200, %c0_278] : memref<1360x128xbf16, #tpu.memory_space<vmem>>, vector<96x32xbf16>
    %725 = vector.extract_strided_slice %724 {offsets = [0, 0], sizes = [32, 32], strides = [1, 1]} : vector<96x32xbf16> to vector<32x32xbf16>
    %726 = arith.truncf %717 : vector<2x32xf32> to vector<2x32xbf16>
    %cst_279 = arith.constant dense<0.000000e+00> : vector<2x32xf32>
    %727 = tpu.matmul %726, %725, %cst_279 {dimension_numbers = #tpu.dot_dimension_numbers<[1], [0], [0], [1], [0, 0, 1, 1], [], []>} : vector<2x32xbf16>, vector<32x32xbf16>, vector<2x32xf32> -> vector<2x32xf32>
    %728 = vector.extract_strided_slice %724 {offsets = [32, 0], sizes = [32, 32], strides = [1, 1]} : vector<96x32xbf16> to vector<32x32xbf16>
    %729 = arith.truncf %720 : vector<2x32xf32> to vector<2x32xbf16>
    %cst_280 = arith.constant dense<0.000000e+00> : vector<2x32xf32>
    %730 = tpu.matmul %729, %728, %cst_280 {dimension_numbers = #tpu.dot_dimension_numbers<[1], [0], [0], [1], [0, 0, 1, 1], [], []>} : vector<2x32xbf16>, vector<32x32xbf16>, vector<2x32xf32> -> vector<2x32xf32>
    %731 = arith.addf %727, %730 : vector<2x32xf32>
    %732 = vector.extract_strided_slice %724 {offsets = [64, 0], sizes = [32, 32], strides = [1, 1]} : vector<96x32xbf16> to vector<32x32xbf16>
    %733 = arith.truncf %723 : vector<2x32xf32> to vector<2x32xbf16>
    %cst_281 = arith.constant dense<0.000000e+00> : vector<2x32xf32>
    %734 = tpu.matmul %733, %732, %cst_281 {dimension_numbers = #tpu.dot_dimension_numbers<[1], [0], [0], [1], [0, 0, 1, 1], [], []>} : vector<2x32xbf16>, vector<32x32xbf16>, vector<2x32xf32> -> vector<2x32xf32>
    %735 = arith.addf %731, %734 : vector<2x32xf32>
    %c96_282 = arith.constant 96 : index
    %c0_283 = arith.constant 0 : index
    %736 = vector.load %arg2[%c96_282, %c0_283] : memref<120x128xf32, #tpu.memory_space<vmem>>, vector<1x32xf32>
    %737 = vector.broadcast %736 : vector<1x32xf32> to vector<2x32xf32>
    %738 = arith.addf %735, %737 : vector<2x32xf32>
    %cst_284 = arith.constant dense<0.000000e+00> : vector<32xf32>
    %739 = vector.multi_reduction <add>, %738, %cst_284 [0] : vector<2x32xf32> to vector<32xf32>
    %740 = vector.shape_cast %739 : vector<32xf32> to vector<1x32xf32>
    %741 = arith.mulf %738, %738 : vector<2x32xf32>
    %cst_285 = arith.constant dense<0.000000e+00> : vector<32xf32>
    %742 = vector.multi_reduction <add>, %741, %cst_285 [0] : vector<2x32xf32> to vector<32xf32>
    %743 = vector.shape_cast %742 : vector<32xf32> to vector<1x32xf32>
    %cst_286 = arith.constant 5.000000e-01 : f32
    %744 = vector.broadcast %cst_286 : f32 to vector<1x32xf32>
    %745 = arith.mulf %740, %744 : vector<1x32xf32>
    %cst_287 = arith.constant 5.000000e-01 : f32
    %746 = vector.broadcast %cst_287 : f32 to vector<1x32xf32>
    %747 = arith.mulf %743, %746 : vector<1x32xf32>
    %748 = arith.mulf %745, %745 : vector<1x32xf32>
    %749 = arith.subf %747, %748 : vector<1x32xf32>
    %750 = vector.broadcast %745 : vector<1x32xf32> to vector<2x32xf32>
    %751 = arith.subf %738, %750 : vector<2x32xf32>
    %cst_288 = arith.constant 9.99999974E-6 : f32
    %752 = vector.broadcast %cst_288 : f32 to vector<1x32xf32>
    %753 = arith.addf %749, %752 : vector<1x32xf32>
    %754 = math.rsqrt %753 : vector<1x32xf32>
    %755 = vector.broadcast %754 : vector<1x32xf32> to vector<2x32xf32>
    %756 = arith.mulf %751, %755 : vector<2x32xf32>
    %cst_289 = arith.constant 0.000000e+00 : f32
    %757 = vector.broadcast %cst_289 : f32 to vector<2x32xf32>
    %758 = arith.maximumf %756, %757 : vector<2x32xf32>
    %c1296 = arith.constant 1296 : index
    %c0_290 = arith.constant 0 : index
    %759 = vector.load %arg1[%c1296, %c0_290] : memref<1360x128xbf16, #tpu.memory_space<vmem>>, vector<32x32xbf16>
    %760 = arith.truncf %758 : vector<2x32xf32> to vector<2x32xbf16>
    %cst_291 = arith.constant dense<0.000000e+00> : vector<2x32xf32>
    %761 = tpu.matmul %760, %759, %cst_291 {dimension_numbers = #tpu.dot_dimension_numbers<[1], [0], [0], [1], [0, 0, 1, 1], [], []>} : vector<2x32xbf16>, vector<32x32xbf16>, vector<2x32xf32> -> vector<2x32xf32>
    %c104 = arith.constant 104 : index
    %c0_292 = arith.constant 0 : index
    %762 = vector.load %arg2[%c104, %c0_292] : memref<120x128xf32, #tpu.memory_space<vmem>>, vector<1x32xf32>
    %763 = vector.broadcast %762 : vector<1x32xf32> to vector<2x32xf32>
    %764 = arith.addf %761, %763 : vector<2x32xf32>
    %cst_293 = arith.constant dense<0.000000e+00> : vector<32xf32>
    %765 = vector.multi_reduction <add>, %764, %cst_293 [0] : vector<2x32xf32> to vector<32xf32>
    %766 = vector.shape_cast %765 : vector<32xf32> to vector<1x32xf32>
    %767 = arith.mulf %764, %764 : vector<2x32xf32>
    %cst_294 = arith.constant dense<0.000000e+00> : vector<32xf32>
    %768 = vector.multi_reduction <add>, %767, %cst_294 [0] : vector<2x32xf32> to vector<32xf32>
    %769 = vector.shape_cast %768 : vector<32xf32> to vector<1x32xf32>
    %cst_295 = arith.constant 5.000000e-01 : f32
    %770 = vector.broadcast %cst_295 : f32 to vector<1x32xf32>
    %771 = arith.mulf %766, %770 : vector<1x32xf32>
    %cst_296 = arith.constant 5.000000e-01 : f32
    %772 = vector.broadcast %cst_296 : f32 to vector<1x32xf32>
    %773 = arith.mulf %769, %772 : vector<1x32xf32>
    %774 = arith.mulf %771, %771 : vector<1x32xf32>
    %775 = arith.subf %773, %774 : vector<1x32xf32>
    %776 = vector.broadcast %771 : vector<1x32xf32> to vector<2x32xf32>
    %777 = arith.subf %764, %776 : vector<2x32xf32>
    %cst_297 = arith.constant 9.99999974E-6 : f32
    %778 = vector.broadcast %cst_297 : f32 to vector<1x32xf32>
    %779 = arith.addf %775, %778 : vector<1x32xf32>
    %780 = math.rsqrt %779 : vector<1x32xf32>
    %781 = vector.broadcast %780 : vector<1x32xf32> to vector<2x32xf32>
    %782 = arith.mulf %777, %781 : vector<2x32xf32>
    %cst_298 = arith.constant 0.000000e+00 : f32
    %783 = vector.broadcast %cst_298 : f32 to vector<2x32xf32>
    %784 = arith.maximumf %782, %783 : vector<2x32xf32>
    %c1328 = arith.constant 1328 : index
    %c0_299 = arith.constant 0 : index
    %785 = vector.load %arg1[%c1328, %c0_299] : memref<1360x128xbf16, #tpu.memory_space<vmem>>, vector<32x1xbf16>
    %786 = arith.truncf %784 : vector<2x32xf32> to vector<2x32xbf16>
    %cst_300 = arith.constant dense<0.000000e+00> : vector<2x1xf32>
    %787 = tpu.matmul %786, %785, %cst_300 {dimension_numbers = #tpu.dot_dimension_numbers<[1], [0], [0], [1], [0, 0, 1, 1], [], []>} : vector<2x32xbf16>, vector<32x1xbf16>, vector<2x1xf32> -> vector<2x1xf32>
    %c112_301 = arith.constant 112 : index
    %c0_302 = arith.constant 0 : index
    %788 = vector.load %arg2[%c112_301, %c0_302] : memref<120x128xf32, #tpu.memory_space<vmem>>, vector<1x1xf32>
    %789 = vector.broadcast %788 : vector<1x1xf32> to vector<2x1xf32>
    %790 = arith.addf %787, %789 : vector<2x1xf32>
    %c0_303 = arith.constant 0 : index
    %c0_304 = arith.constant 0 : index
    %791 = vector.load %arg5[%c0_303, %c0_304] : memref<2x1xf32, #tpu.memory_space<vmem>>, vector<2x1xf32>
    tpu.vector_store %arg5[%c0_303, %c0_304], %790 {strides = array<i32>} : memref<2x1xf32, #tpu.memory_space<vmem>>, vector<2x1xf32>,
    return
  }
}

</mosaic_0001>

<llo_original>
// kernel: forward.1
$region0: #{forward.1}
  #allocation0 [shape = 'u32[]', space=smem, size = 0x4, offset = 0x4, fixed_abs, tag = 'smem constant byte address 0x4 - core index']
  #allocation1 [shape = 'u32[144,128]{1,0:T(1,128)}', space=vmem, size = 0x12000, scoped, tag = 'internal scratch']
  %s0 = inlined_call_operand.vmem [shape: bf16[528,128], index: 0, kind: input, shape index: {}]
  %s1 = inlined_call_operand.hbm [shape: bf16[1360,128], index: 1, kind: input, shape index: {}]
  %s2 = inlined_call_operand.hbm [shape: f32[120,128], index: 2, kind: input, shape index: {}]
  %s3 = inlined_call_operand.vmem [shape: f32[12,16], index: 3, kind: input, shape index: {}]
  %s4 = inlined_call_operand.vmem [shape: f32[12,16], index: 4, kind: input, shape index: {}]
  %s5 = inlined_call_operand.vmem [shape: f32[2,1], index: 5, kind: output, shape index: {}]
  %s6 = sld [smem:[#allocation0]]
  $region38: #{forward.1} parent=0
    _
  %s8 = ssub.s32 1, %s6
  %s9 = scalar_select 0, %s8, %s6
  $region1: #{forward.1} parent=0
    #allocation2 [shape = 'u8[348160]{0}', space=vmem, size = 0x55000, scoped, tag = 'input window, operand 1, single buffered']
    #allocation3 [shape = 's32[1]{0}', space=sflag, size = 0x4, scoped, tag = 'scoped memory for forward.1']
    #allocation4 [shape = 'u8[61440]{0}', space=vmem, size = 0xf000, scoped, tag = 'input window, operand 2, single buffered']
    #allocation5 [shape = 's32[1]{0}', space=sflag, size = 0x4, scoped, tag = 'scoped memory for forward.1']
    %10 = vsyncpa [#allocation3], 0
    %11 = vsyncpa [#allocation5], 0
    // Predicated region
    $region2: #{forward.1} parent=1 // pred_check
      _
    $region3: #{forward.1} parent=1 // pred_check_branch
      %13 = sbr.rel (0) target = $region5
    $region4: #{forward.1} parent=1 // pred_region
      _
    $region5: #{forward.1} parent=1 // pred_fallthru
      _
    // Predicated region
    $region6: #{forward.1} parent=1 // pred_check
      _
    $region7: #{forward.1} parent=1 // pred_check_branch
      %15 = sbr.rel (0) target = $region9
    $region8: #{forward.1} parent=1 // pred_region
      %s17 = ssub.s32 10880, 10880
      %18 = vsyncadd [#allocation3], %s17
      %s19 = sshll.u32 [#allocation2], 4
      %s20 = int_to_ptr.vmem [resolvable:$true] %s19
      %25 = dma.hbm_to_vmem [thread:$0]  %s1, 10880, %s20, [#allocation3], 64, 64, 4
    $region9: #{forward.1} parent=1 // pred_fallthru
      _
    // Predicated region
    $region10: #{forward.1} parent=1 // pred_check
      _
    $region11: #{forward.1} parent=1 // pred_check_branch
      %27 = sbr.rel (0) target = $region13
    $region12: #{forward.1} parent=1 // pred_region
      %s29 = ssub.s32 1920, 1920
      %30 = vsyncadd [#allocation5], %s29
      %s31 = sshll.u32 [#allocation4], 4
      %s32 = int_to_ptr.vmem [resolvable:$true] %s31
      %37 = dma.hbm_to_vmem [thread:$0]  %s2, 1920, %s32, [#allocation5], 128, 128, 8
    $region13: #{forward.1} parent=1 // pred_fallthru
      _
    // Predicated region
    $region14: #{forward.1} parent=1 // pred_check
      _
    $region15: #{forward.1} parent=1 // pred_check_branch
      %39 = sbr.rel (0) target = $region17
    $region16: #{forward.1} parent=1 // pred_region
      _
    $region17: #{forward.1} parent=1 // pred_fallthru
      _
    // Predicated region
    $region18: #{forward.1} parent=1 // pred_check
      _
    $region19: #{forward.1} parent=1 // pred_check_branch
      %41 = sbr.rel (0) target = $region21
    $region20: #{forward.1} parent=1 // pred_region
      _
    $region21: #{forward.1} parent=1 // pred_fallthru
      _
    // Predicated region
    $region22: #{forward.1} parent=1 // pred_check
      _
    $region23: #{forward.1} parent=1 // pred_check_branch
      %43 = sbr.rel (0) target = $region25
    $region24: #{forward.1} parent=1 // pred_region
      %44 = dma.done [#allocation3], 10880
    $region25: #{forward.1} parent=1 // pred_fallthru
      _
    // Predicated region
    $region26: #{forward.1} parent=1 // pred_check
      _
    $region27: #{forward.1} parent=1 // pred_check_branch
      %46 = sbr.rel (0) target = $region29
    $region28: #{forward.1} parent=1 // pred_region
      %47 = dma.done [#allocation5], 1920
    $region29: #{forward.1} parent=1 // pred_fallthru
      _
    %v49 = vld [vmem:[%s3] sm:$0xff]
    %v50 = vld [vmem:[%s3 + $0x8] sm:$0xf]
    %v51 = vld [vmem:[%s4] sm:$0xff]
    %v52 = vld [vmem:[%s4 + $0x8] sm:$0xf]
    %v53 = vld [vmem:[#allocation2] sm:$0xf]
    %v54 = vld [vmem:[#allocation2 + $0x4] sm:$0xf]
    %v55 = vld [vmem:[#allocation2 + $0x8] sm:$0xf]
    %v56 = vld [vmem:[#allocation2 + $0xc] sm:$0xf]
    %v57 = vld [vmem:[%s0] sm:$0xf]
    %v58 = vld [vmem:[%s0 + $0x4] sm:$0xf]
    %v59 = vld [vmem:[%s0 + $0x8] sm:$0xf]
    %v60 = vpack.c.bf16 %v50, %v49
    %v64 = vunpack.c.l.b16 %v57
    %v65 = vunpack.c.l.b16 %v58
    %v66 = vunpack.c.l.b16 %v59
    %v67 = vpack.c.b16 %v65, %v64
    %v68 = vpack.c.b16 %v66, %v66
    %vm69 = vcmask 97280
    %v71 = vsel %vm69, %v67, 0
    %v74 = vsel %vm69, %v68, 0
    %vm76 = vcmask 1045504
    %v78 = vsel %vm76, %v60, 0
    %80 = vmatprep.subr.bf16.mxu0 0
    %81 = vmatpush1.bf16.msra.mxu0 0
    %82 = vmatprep.subr.bf16.mxu0 0
    %83 = vmatpush1.bf16.msra.mxu0 0
    %84 = vmatprep.subr.bf16.mxu0 0
    %85 = vmatpush1.bf16.msra.mxu0 0
    %86 = vmatprep.subr.bf16.mxu0 0
    %87 = vmatpush1.bf16.msra.mxu0 0
    %88 = vmatprep.subr.bf16.mxu0 0
    %89 = vmatpush1.bf16.msra.mxu0 0
    %90 = vmatprep.subr.bf16.mxu0 0
    %91 = vmatpush1.bf16.msra.mxu0 0
    %92 = vmatprep.subr.bf16.mxu0 0
    %93 = vmatpush1.bf16.msra.mxu0 0
    %94 = vmatprep.subr.bf16.mxu0 0
    %95 = vmatpush1.bf16.msra.mxu0 %v78
    %96 = vmatprep.subr.bf16.mxu0 0
    %97 = vmatpush2.bf16.msra.mxu0 0
    %98 = vmatprep.subr.bf16.mxu0 0
    %99 = vmatpush2.bf16.msra.mxu0 0
    %100 = vmatprep.subr.bf16.mxu0 0
    %101 = vmatpush2.bf16.msra.mxu0 0
    %102 = vmatprep.subr.bf16.mxu0 0
    %103 = vmatpush2.bf16.msra.mxu0 0
    %104 = vmatprep.subr.bf16.mxu0 0
    %105 = vmatpush2.bf16.msra.mxu0 0
    %106 = vmatprep.subr.bf16.mxu0 0
    %107 = vmatpush2.bf16.msra.mxu0 0
    %108 = vmatprep.subr.bf16.mxu0 0
    %109 = vmatpush2.bf16.msra.mxu0 0
    %110 = vmatprep.subr.bf16.mxu0 0
    %111 = vmatpush2.bf16.msra.mxu0 0
    %112 = vmatprep.mubr.bf16.mxu0 0
    %113 = vmatmul.mubr.bf16.gmra.mxu0 %v71
    %v114 = vpop.f32.mrf.mxu0
    %v115 = vadd.f32 0.0, %v114
    %v116 = vpop.f32.mrf.mxu0
    %v117 = vpop.f32.mrf.mxu0
    %v118 = vadd.f32 0.0, %v117
    %v119 = vpop.f32.mrf.mxu0
    %120 = vmatprep.mubr.bf16.mxu0 0
    %121 = vmatmul.mubr.bf16.gmra.mxu0 %v74
    %v122 = vpop.f32.mrf.mxu0
    %v123 = vadd.f32 0.0, %v122
    %v124 = vpop.f32.mrf.mxu0
    %v125 = vpop.f32.mrf.mxu0
    %v126 = vpop.f32.mrf.mxu0
    %127 = vdwg.mxu0
    %v128 = vpack.c.bf16 %v118, %v115
    %v129 = vpack.c.bf16 %v123, %v123
    %v130 = vld [vmem:[%s0 + $0x10] sm:$0xf]
    %v131 = vld [vmem:[%s0 + $0x14] sm:$0xf]
    %v132 = vld [vmem:[%s0 + $0x18] sm:$0xf]
    %v133 = vpack.c.bf16 %v52, %v51
    %v137 = vunpack.c.l.b16 %v130
    %v138 = vunpack.c.l.b16 %v131
    %v139 = vunpack.c.l.b16 %v132
    %v140 = vpack.c.b16 %v138, %v137
    %v141 = vpack.c.b16 %v139, %v139
    %v143 = vsel %vm69, %v140, 0
    %v146 = vsel %vm69, %v141, 0
    %v149 = vsel %vm76, %v133, 0
    %151 = vmatprep.subr.bf16.mxu0 0
    %152 = vmatpush1.bf16.msra.mxu0 0
    %153 = vmatprep.subr.bf16.mxu0 0
    %154 = vmatpush1.bf16.msra.mxu0 0
    %155 = vmatprep.subr.bf16.mxu0 0
    %156 = vmatpush1.bf16.msra.mxu0 0
    %157 = vmatprep.subr.bf16.mxu0 0
    %158 = vmatpush1.bf16.msra.mxu0 0
    %159 = vmatprep.subr.bf16.mxu0 0
    %160 = vmatpush1.bf16.msra.mxu0 0
    %161 = vmatprep.subr.bf16.mxu0 0
    %162 = vmatpush1.bf16.msra.mxu0 0
    %163 = vmatprep.subr.bf16.mxu0 0
    %164 = vmatpush1.bf16.msra.mxu0 0
    %165 = vmatprep.subr.bf16.mxu0 0
    %166 = vmatpush1.bf16.msra.mxu0 %v149
    %167 = vmatprep.subr.bf16.mxu0 0
    %168 = vmatpush2.bf16.msra.mxu0 0
    %169 = vmatprep.subr.bf16.mxu0 0
    %170 = vmatpush2.bf16.msra.mxu0 0
    %171 = vmatprep.subr.bf16.mxu0 0
    %172 = vmatpush2.bf16.msra.mxu0 0
    %173 = vmatprep.subr.bf16.mxu0 0
    %174 = vmatpush2.bf16.msra.mxu0 0
    %175 = vmatprep.subr.bf16.mxu0 0
    %176 = vmatpush2.bf16.msra.mxu0 0
    %177 = vmatprep.subr.bf16.mxu0 0
    %178 = vmatpush2.bf16.msra.mxu0 0
    %179 = vmatprep.subr.bf16.mxu0 0
    %180 = vmatpush2.bf16.msra.mxu0 0
    %181 = vmatprep.subr.bf16.mxu0 0
    %182 = vmatpush2.bf16.msra.mxu0 0
    %183 = vmatprep.mubr.bf16.mxu0 0
    %184 = vmatmul.mubr.bf16.gmra.mxu0 %v143
    %v185 = vpop.f32.mrf.mxu0
    %v186 = vadd.f32 0.0, %v185
    %v187 = vpop.f32.mrf.mxu0
    %v188 = vpop.f32.mrf.mxu0
    %v189 = vadd.f32 0.0, %v188
    %v190 = vpop.f32.mrf.mxu0
    %191 = vmatprep.mubr.bf16.mxu0 0
    %192 = vmatmul.mubr.bf16.gmra.mxu0 %v146
    %v193 = vpop.f32.mrf.mxu0
    %v194 = vadd.f32 0.0, %v193
    %v195 = vpop.f32.mrf.mxu0
    %v196 = vpop.f32.mrf.mxu0
    %v197 = vpop.f32.mrf.mxu0
    %198 = vdwg.mxu0
    %v199 = vpack.c.bf16 %v189, %v186
    %v200 = vpack.c.bf16 %v194, %v194
    %v203 = vunpack.c.l.b16 %v55
    %v204 = vunpack.c.l.b16 %v56
    %v205 = vpack.c.b16 %v204, %v203
    %vm207 = vcmask 130048
    %v209 = vsel %vm207, %v199, 0
    %v212 = vsel %vm207, %v200, 0
    %214 = vmatprep.subr.bf16.mxu0 0
    %215 = vmatpush1.bf16.msra.mxu0 0
    %216 = vmatprep.subr.bf16.mxu0 0
    %217 = vmatpush1.bf16.msra.mxu0 0
    %218 = vmatprep.subr.bf16.mxu0 0
    %219 = vmatpush1.bf16.msra.mxu0 0
    %220 = vmatprep.subr.bf16.mxu0 0
    %221 = vmatpush1.bf16.msra.mxu0 0
    %222 = vmatprep.subr.bf16.mxu0 0
    %223 = vmatpush1.bf16.msra.mxu0 0
    %224 = vmatprep.subr.bf16.mxu0 0
    %225 = vmatpush1.bf16.msra.mxu0 0
    %226 = vmatprep.subr.bf16.mxu0 0
    %227 = vmatpush1.bf16.msra.mxu0 0
    %228 = vmatprep.subr.bf16.mxu0 0
    %229 = vmatpush1.bf16.msra.mxu0 %v205
    %230 = vmatprep.subr.bf16.mxu0 0
    %231 = vmatpush2.bf16.msra.mxu0 0
    %232 = vmatprep.subr.bf16.mxu0 0
    %233 = vmatpush2.bf16.msra.mxu0 0
    %234 = vmatprep.subr.bf16.mxu0 0
    %235 = vmatpush2.bf16.msra.mxu0 0
    %236 = vmatprep.subr.bf16.mxu0 0
    %237 = vmatpush2.bf16.msra.mxu0 0
    %238 = vmatprep.subr.bf16.mxu0 0
    %239 = vmatpush2.bf16.msra.mxu0 0
    %240 = vmatprep.subr.bf16.mxu0 0
    %241 = vmatpush2.bf16.msra.mxu0 0
    %242 = vmatprep.subr.bf16.mxu0 0
    %243 = vmatpush2.bf16.msra.mxu0 0
    %244 = vmatprep.subr.bf16.mxu0 0
    %245 = vmatpush2.bf16.msra.mxu0 0
    %246 = vmatprep.mubr.bf16.mxu0 0
    %247 = vmatmul.mubr.bf16.gmra.mxu0 %v209
    %v248 = vpop.f32.mrf.mxu0
    %v249 = vadd.f32 0.0, %v248
    %v250 = vpop.f32.mrf.mxu0
    %v251 = vpop.f32.mrf.mxu0
    %v252 = vadd.f32 0.0, %v251
    %v253 = vpop.f32.mrf.mxu0
    %254 = vmatprep.mubr.bf16.mxu0 0
    %255 = vmatmul.mubr.bf16.gmra.mxu0 %v212
    %v256 = vpop.f32.mrf.mxu0
    %v257 = vadd.f32 0.0, %v256
    %v258 = vpop.f32.mrf.mxu0
    %v259 = vpop.f32.mrf.mxu0
    %v260 = vpop.f32.mrf.mxu0
    %261 = vdwg.mxu0
    %v264 = vunpack.c.l.b16 %v53
    %v265 = vunpack.c.l.b16 %v54
    %v266 = vpack.c.b16 %v265, %v264
    %v269 = vsel %vm207, %v128, 0
    %v272 = vsel %vm207, %v129, 0
    %274 = vmatprep.subr.bf16.mxu0 0
    %275 = vmatpush1.bf16.msra.mxu0 0
    %276 = vmatprep.subr.bf16.mxu0 0
    %277 = vmatpush1.bf16.msra.mxu0 0
    %278 = vmatprep.subr.bf16.mxu0 0
    %279 = vmatpush1.bf16.msra.mxu0 0
    %280 = vmatprep.subr.bf16.mxu0 0
    %281 = vmatpush1.bf16.msra.mxu0 0
    %282 = vmatprep.subr.bf16.mxu0 0
    %283 = vmatpush1.bf16.msra.mxu0 0
    %284 = vmatprep.subr.bf16.mxu0 0
    %285 = vmatpush1.bf16.msra.mxu0 0
    %286 = vmatprep.subr.bf16.mxu0 0
    %287 = vmatpush1.bf16.msra.mxu0 0
    %288 = vmatprep.subr.bf16.mxu0 0
    %289 = vmatpush1.bf16.msra.mxu0 %v266
    %290 = vmatprep.subr.bf16.mxu0 0
    %291 = vmatpush2.bf16.msra.mxu0 0
    %292 = vmatprep.subr.bf16.mxu0 0
    %293 = vmatpush2.bf16.msra.mxu0 0
    %294 = vmatprep.subr.bf16.mxu0 0
    %295 = vmatpush2.bf16.msra.mxu0 0
    %296 = vmatprep.subr.bf16.mxu0 0
    %297 = vmatpush2.bf16.msra.mxu0 0
    %298 = vmatprep.subr.bf16.mxu0 0
    %299 = vmatpush2.bf16.msra.mxu0 0
    %300 = vmatprep.subr.bf16.mxu0 0
    %301 = vmatpush2.bf16.msra.mxu0 0
    %302 = vmatprep.subr.bf16.mxu0 0
    %303 = vmatpush2.bf16.msra.mxu0 0
    %304 = vmatprep.subr.bf16.mxu0 0
    %305 = vmatpush2.bf16.msra.mxu0 0
    %306 = vmatprep.mubr.bf16.mxu0 0
    %307 = vmatmul.mubr.bf16.gmra.mxu0 %v269
    %v308 = vpop.f32.mrf.mxu0
    %v309 = vadd.f32 %v249, %v308
    %v310 = vpop.f32.mrf.mxu0
    %v311 = vpop.f32.mrf.mxu0
    %v312 = vadd.f32 %v252, %v311
    %v313 = vpop.f32.mrf.mxu0
    %314 = vmatprep.mubr.bf16.mxu0 0
    %315 = vmatmul.mubr.bf16.gmra.mxu0 %v272
    %v316 = vpop.f32.mrf.mxu0
    %v317 = vadd.f32 %v257, %v316
    %v318 = vpop.f32.mrf.mxu0
    %v319 = vpop.f32.mrf.mxu0
    %v320 = vpop.f32.mrf.mxu0
    %321 = vdwg.mxu0
    %v322 = vld [vmem:[#allocation4] sm:$0x1]
    %v323 = vlaneseq
    %v324 = vshrl.u32 %v323, 7
    %v325 = vsub.s32 0, %v324
    %v326 = vrot.slane %v322, %v325
    %v327 = vadd.f32 %v309, %v326
    %v328 = vadd.f32 %v312, %v326
    %v329 = vadd.f32 %v317, %v326
    %v330 = vmax.f32 %v327, 0.0
    %v331 = vmax.f32 %v328, 0.0
    %v332 = vmax.f32 %v329, 0.0
    %v333 = vld [vmem:[#allocation2 + $0x10] sm:$0xf]
    %v334 = vld [vmem:[#allocation2 + $0x14] sm:$0xf]
    %v335 = vld [vmem:[#allocation2 + $0x18] sm:$0xf]
    %v336 = vld [vmem:[#allocation2 + $0x1c] sm:$0xf]
    %v337 = vld [vmem:[#allocation2 + $0x20] sm:$0xf]
    %v338 = vld [vmem:[#allocation2 + $0x24] sm:$0xf]
    %v339 = vld [vmem:[#allocation2 + $0x28] sm:$0xf]
    %v340 = vld [vmem:[#allocation2 + $0x2c] sm:$0xf]
    %v341 = vpack.c.bf16 %v331, %v330
    %v342 = vpack.c.bf16 %v332, %v332
    %v343 = vld [vmem:[#allocation4 + $0x8] sm:$0x1]
    %v344 = vlaneseq
    %v345 = vshrl.u32 %v344, 7
    %v346 = vsub.s32 0, %v345
    %v347 = vrot.slane %v343, %v346
    %v356 = vunpack.c.l.b16 %v333
    %v357 = vunpack.c.l.b16 %v334
    %v358 = vunpack.c.l.b16 %v335
    %v359 = vunpack.c.l.b16 %v336
    %v360 = vunpack.c.l.b16 %v337
    %v361 = vunpack.c.l.b16 %v338
    %v362 = vunpack.c.l.b16 %v339
    %v363 = vunpack.c.l.b16 %v340
    %v364 = vpack.c.b16 %v357, %v356
    %v365 = vpack.c.b16 %v359, %v358
    %v366 = vpack.c.b16 %v361, %v360
    %v367 = vpack.c.b16 %v363, %v362
    %vm372 = vcmask 523264
    %v374 = vsel %vm372, %v341, 0
    %v377 = vsel %vm372, %v342, 0
    %379 = vmatprep.subr.bf16.mxu0 0
    %380 = vmatpush1.bf16.msra.mxu0 0
    %381 = vmatprep.subr.bf16.mxu0 0
    %382 = vmatpush1.bf16.msra.mxu0 0
    %383 = vmatprep.subr.bf16.mxu0 0
    %384 = vmatpush1.bf16.msra.mxu0 0
    %385 = vmatprep.subr.bf16.mxu0 0
    %386 = vmatpush1.bf16.msra.mxu0 0
    %387 = vmatprep.subr.bf16.mxu0 0
    %388 = vmatpush1.bf16.msra.mxu0 %v367
    %389 = vmatprep.subr.bf16.mxu0 0
    %390 = vmatpush1.bf16.msra.mxu0 %v366
    %391 = vmatprep.subr.bf16.mxu0 0
    %392 = vmatpush1.bf16.msra.mxu0 %v365
    %393 = vmatprep.subr.bf16.mxu0 0
    %394 = vmatpush1.bf16.msra.mxu0 %v364
    %395 = vmatprep.subr.bf16.mxu0 0
    %396 = vmatpush2.bf16.msra.mxu0 0
    %397 = vmatprep.subr.bf16.mxu0 0
    %398 = vmatpush2.bf16.msra.mxu0 0
    %399 = vmatprep.subr.bf16.mxu0 0
    %400 = vmatpush2.bf16.msra.mxu0 0
    %401 = vmatprep.subr.bf16.mxu0 0
    %402 = vmatpush2.bf16.msra.mxu0 0
    %403 = vmatprep.subr.bf16.mxu0 0
    %404 = vmatpush2.bf16.msra.mxu0 0
    %405 = vmatprep.subr.bf16.mxu0 0
    %406 = vmatpush2.bf16.msra.mxu0 0
    %407 = vmatprep.subr.bf16.mxu0 0
    %408 = vmatpush2.bf16.msra.mxu0 0
    %409 = vmatprep.subr.bf16.mxu0 0
    %410 = vmatpush2.bf16.msra.mxu0 0
    %411 = vmatprep.mubr.bf16.mxu0 0
    %412 = vmatmul.mubr.bf16.gmra.mxu0 %v374
    %v413 = vpop.f32.mrf.mxu0
    %v414 = vadd.f32 %v347, %v413
    %v415 = vpop.f32.mrf.mxu0
    %v416 = vpop.f32.mrf.mxu0
    %v417 = vadd.f32 %v347, %v416
    %v418 = vpop.f32.mrf.mxu0
    %419 = vmatprep.mubr.bf16.mxu0 0
    %420 = vmatmul.mubr.bf16.gmra.mxu0 %v377
    %v421 = vpop.f32.mrf.mxu0
    %v422 = vadd.f32 %v347, %v421
    %v423 = vpop.f32.mrf.mxu0
    %v424 = vpop.f32.mrf.mxu0
    %v425 = vpop.f32.mrf.mxu0
    %426 = vdwg.mxu0
    %v427 = vmax.f32 %v414, 0.0
    %v428 = vmax.f32 %v417, 0.0
    %v429 = vmax.f32 %v422, 0.0
    %v430 = vld [vmem:[#allocation2 + $0x30] sm:$0xf]
    %v431 = vld [vmem:[#allocation2 + $0x34] sm:$0xf]
    %v432 = vld [vmem:[#allocation4 + $0x10] sm:$0x1]
    %v433 = vld [vmem:[#allocation2 + $0x38] sm:$0xf]
    %v434 = vld [vmem:[#allocation2 + $0x3c] sm:$0xf]
    %v435 = vld [vmem:[#allocation2 + $0x40] sm:$0xf]
    %v436 = vld [vmem:[#allocation2 + $0x44] sm:$0xf]
    %v437 = vld [vmem:[#allocation2 + $0x48] sm:$0xf]
    %v438 = vld [vmem:[#allocation2 + $0x4c] sm:$0xf]
    %v439 = vld [vmem:[#allocation2 + $0x50] sm:$0xf]
    %v440 = vld [vmem:[#allocation2 + $0x54] sm:$0xf]
    %v441 = vld [vmem:[#allocation4 + $0x18] sm:$0x1]
    %v442 = vld [vmem:[%s0 + $0x20] sm:$0xf]
    %v443 = vld [vmem:[%s0 + $0x24] sm:$0x1]
    %v446 = vunpack.c.l.b16 %v442
    %v447 = vunpack.c.l.b16 %v443
    %v448 = vpack.c.b16 %v447, %v446
    %v450 = vsel %vm69, %v448, 0
    %452 = vmatprep.subr.bf16.mxu0 0
    %453 = vmatpush1.bf16.msra.mxu0 0
    %454 = vmatprep.subr.bf16.mxu0 0
    %455 = vmatpush1.bf16.msra.mxu0 0
    %456 = vmatprep.subr.bf16.mxu0 0
    %457 = vmatpush1.bf16.msra.mxu0 0
    %458 = vmatprep.subr.bf16.mxu0 0
    %459 = vmatpush1.bf16.msra.mxu0 0
    %460 = vmatprep.subr.bf16.mxu0 0
    %461 = vmatpush1.bf16.msra.mxu0 0
    %462 = vmatprep.subr.bf16.mxu0 0
    %463 = vmatpush1.bf16.msra.mxu0 0
    %464 = vmatprep.subr.bf16.mxu0 0
    %465 = vmatpush1.bf16.msra.mxu0 0
    %466 = vmatprep.subr.bf16.mxu0 0
    %467 = vmatpush1.bf16.msra.mxu0 %v78
    %468 = vmatprep.subr.bf16.mxu0 0
    %469 = vmatpush2.bf16.msra.mxu0 0
    %470 = vmatprep.subr.bf16.mxu0 0
    %471 = vmatpush2.bf16.msra.mxu0 0
    %472 = vmatprep.subr.bf16.mxu0 0
    %473 = vmatpush2.bf16.msra.mxu0 0
    %474 = vmatprep.subr.bf16.mxu0 0
    %475 = vmatpush2.bf16.msra.mxu0 0
    %476 = vmatprep.subr.bf16.mxu0 0
    %477 = vmatpush2.bf16.msra.mxu0 0
    %478 = vmatprep.subr.bf16.mxu0 0
    %479 = vmatpush2.bf16.msra.mxu0 0
    %480 = vmatprep.subr.bf16.mxu0 0
    %481 = vmatpush2.bf16.msra.mxu0 0
    %482 = vmatprep.subr.bf16.mxu0 0
    %483 = vmatpush2.bf16.msra.mxu0 0
    %484 = vmatprep.mubr.bf16.mxu0 0
    %485 = vmatmul.mubr.bf16.gmra.mxu0 %v450
    %v486 = vpop.f32.mrf.mxu0
    %v487 = vadd.f32 0.0, %v486
    %v488 = vpop.f32.mrf.mxu0
    %v489 = vpop.f32.mrf.mxu0
    %v490 = vadd.f32 0.0, %v489
    %v491 = vpop.f32.mrf.mxu0
    %492 = vdwg.mxu0
    %v493 = vpack.c.bf16 %v490, %v487
    %v494 = vlaneseq
    %v495 = vshrl.u32 %v494, 7
    %v496 = vsub.s32 0, %v495
    %v497 = vrot.slane %v432, %v496
    %v500 = vunpack.c.l.b16 %v430
    %v501 = vunpack.c.l.b16 %v431
    %v502 = vpack.c.b16 %v501, %v500
    %v505 = vsel %vm207, %v493, 0
    %507 = vmatprep.subr.bf16.mxu0 0
    %508 = vmatpush1.bf16.msra.mxu0 0
    %509 = vmatprep.subr.bf16.mxu0 0
    %510 = vmatpush1.bf16.msra.mxu0 0
    %511 = vmatprep.subr.bf16.mxu0 0
    %512 = vmatpush1.bf16.msra.mxu0 0
    %513 = vmatprep.subr.bf16.mxu0 0
    %514 = vmatpush1.bf16.msra.mxu0 0
    %515 = vmatprep.subr.bf16.mxu0 0
    %516 = vmatpush1.bf16.msra.mxu0 0
    %517 = vmatprep.subr.bf16.mxu0 0
    %518 = vmatpush1.bf16.msra.mxu0 0
    %519 = vmatprep.subr.bf16.mxu0 0
    %520 = vmatpush1.bf16.msra.mxu0 0
    %521 = vmatprep.subr.bf16.mxu0 0
    %522 = vmatpush1.bf16.msra.mxu0 %v502
    %523 = vmatprep.subr.bf16.mxu0 0
    %524 = vmatpush2.bf16.msra.mxu0 0
    %525 = vmatprep.subr.bf16.mxu0 0
    %526 = vmatpush2.bf16.msra.mxu0 0
    %527 = vmatprep.subr.bf16.mxu0 0
    %528 = vmatpush2.bf16.msra.mxu0 0
    %529 = vmatprep.subr.bf16.mxu0 0
    %530 = vmatpush2.bf16.msra.mxu0 0
    %531 = vmatprep.subr.bf16.mxu0 0
    %532 = vmatpush2.bf16.msra.mxu0 0
    %533 = vmatprep.subr.bf16.mxu0 0
    %534 = vmatpush2.bf16.msra.mxu0 0
    %535 = vmatprep.subr.bf16.mxu0 0
    %536 = vmatpush2.bf16.msra.mxu0 0
    %537 = vmatprep.subr.bf16.mxu0 0
    %538 = vmatpush2.bf16.msra.mxu0 0
    %539 = vmatprep.mubr.bf16.mxu0 0
    %540 = vmatmul.mubr.bf16.gmra.mxu0 %v505
    %v541 = vpop.f32.mrf.mxu0
    %v542 = vadd.f32 %v497, %v541
    %v543 = vpop.f32.mrf.mxu0
    %v544 = vpop.f32.mrf.mxu0
    %v545 = vadd.f32 %v497, %v544
    %v546 = vpop.f32.mrf.mxu0
    %547 = vdwg.mxu0
    %v548 = vmax.f32 %v542, 0.0
    %v549 = vmax.f32 %v545, 0.0
    %v550 = vpack.c.bf16 %v549, %v548
    %v551 = vlaneseq
    %v552 = vshrl.u32 %v551, 7
    %v553 = vsub.s32 0, %v552
    %v554 = vrot.slane %v441, %v553
    %v563 = vunpack.c.l.b16 %v433
    %v564 = vunpack.c.l.b16 %v434
    %v565 = vunpack.c.l.b16 %v435
    %v566 = vunpack.c.l.b16 %v436
    %v567 = vunpack.c.l.b16 %v437
    %v568 = vunpack.c.l.b16 %v438
    %v569 = vunpack.c.l.b16 %v439
    %v570 = vunpack.c.l.b16 %v440
    %v571 = vpack.c.b16 %v564, %v563
    %v572 = vpack.c.b16 %v566, %v565
    %v573 = vpack.c.b16 %v568, %v567
    %v574 = vpack.c.b16 %v570, %v569
    %v580 = vsel %vm372, %v550, 0
    %582 = vmatprep.subr.bf16.mxu0 0
    %583 = vmatpush1.bf16.msra.mxu0 0
    %584 = vmatprep.subr.bf16.mxu0 0
    %585 = vmatpush1.bf16.msra.mxu0 0
    %586 = vmatprep.subr.bf16.mxu0 0
    %587 = vmatpush1.bf16.msra.mxu0 0
    %588 = vmatprep.subr.bf16.mxu0 0
    %589 = vmatpush1.bf16.msra.mxu0 0
    %590 = vmatprep.subr.bf16.mxu0 0
    %591 = vmatpush1.bf16.msra.mxu0 %v574
    %592 = vmatprep.subr.bf16.mxu0 0
    %593 = vmatpush1.bf16.msra.mxu0 %v573
    %594 = vmatprep.subr.bf16.mxu0 0
    %595 = vmatpush1.bf16.msra.mxu0 %v572
    %596 = vmatprep.subr.bf16.mxu0 0
    %597 = vmatpush1.bf16.msra.mxu0 %v571
    %598 = vmatprep.subr.bf16.mxu0 0
    %599 = vmatpush2.bf16.msra.mxu0 0
    %600 = vmatprep.subr.bf16.mxu0 0
    %601 = vmatpush2.bf16.msra.mxu0 0
    %602 = vmatprep.subr.bf16.mxu0 0
    %603 = vmatpush2.bf16.msra.mxu0 0
    %604 = vmatprep.subr.bf16.mxu0 0
    %605 = vmatpush2.bf16.msra.mxu0 0
    %606 = vmatprep.subr.bf16.mxu0 0
    %607 = vmatpush2.bf16.msra.mxu0 0
    %608 = vmatprep.subr.bf16.mxu0 0
    %609 = vmatpush2.bf16.msra.mxu0 0
    %610 = vmatprep.subr.bf16.mxu0 0
    %611 = vmatpush2.bf16.msra.mxu0 0
    %612 = vmatprep.subr.bf16.mxu0 0
    %613 = vmatpush2.bf16.msra.mxu0 0
    %614 = vmatprep.mubr.bf16.mxu0 0
    %615 = vmatmul.mubr.bf16.gmra.mxu0 %v580
    %v616 = vpop.f32.mrf.mxu0
    %v617 = vadd.f32 %v554, %v616
    %v618 = vpop.f32.mrf.mxu0
    %v619 = vpop.f32.mrf.mxu0
    %v620 = vadd.f32 %v554, %v619
    %v621 = vpop.f32.mrf.mxu0
    %622 = vdwg.mxu0
    %v623 = vmax.f32 %v617, 0.0
    %v624 = vmax.f32 %v620, 0.0
    %v625 = vld [vmem:[%s0 + $0x28] sm:$0xf]
    %v626 = vld [vmem:[%s0 + $0x2c] sm:$0x3]
    %v629 = vunpack.c.l.b16 %v625
    %v630 = vunpack.c.l.b16 %v626
    %v631 = vpack.c.b16 %v630, %v629
    %v633 = vsel %vm69, %v631, 0
    %635 = vmatprep.subr.bf16.mxu0 0
    %636 = vmatpush1.bf16.msra.mxu0 0
    %637 = vmatprep.subr.bf16.mxu0 0
    %638 = vmatpush1.bf16.msra.mxu0 0
    %639 = vmatprep.subr.bf16.mxu0 0
    %640 = vmatpush1.bf16.msra.mxu0 0
    %641 = vmatprep.subr.bf16.mxu0 0
    %642 = vmatpush1.bf16.msra.mxu0 0
    %643 = vmatprep.subr.bf16.mxu0 0
    %644 = vmatpush1.bf16.msra.mxu0 0
    %645 = vmatprep.subr.bf16.mxu0 0
    %646 = vmatpush1.bf16.msra.mxu0 0
    %647 = vmatprep.subr.bf16.mxu0 0
    %648 = vmatpush1.bf16.msra.mxu0 0
    %649 = vmatprep.subr.bf16.mxu0 0
    %650 = vmatpush1.bf16.msra.mxu0 %v78
    %651 = vmatprep.subr.bf16.mxu0 0
    %652 = vmatpush2.bf16.msra.mxu0 0
    %653 = vmatprep.subr.bf16.mxu0 0
    %654 = vmatpush2.bf16.msra.mxu0 0
    %655 = vmatprep.subr.bf16.mxu0 0
    %656 = vmatpush2.bf16.msra.mxu0 0
    %657 = vmatprep.subr.bf16.mxu0 0
    %658 = vmatpush2.bf16.msra.mxu0 0
    %659 = vmatprep.subr.bf16.mxu0 0
    %660 = vmatpush2.bf16.msra.mxu0 0
    %661 = vmatprep.subr.bf16.mxu0 0
    %662 = vmatpush2.bf16.msra.mxu0 0
    %663 = vmatprep.subr.bf16.mxu0 0
    %664 = vmatpush2.bf16.msra.mxu0 0
    %665 = vmatprep.subr.bf16.mxu0 0
    %666 = vmatpush2.bf16.msra.mxu0 0
    %667 = vmatprep.mubr.bf16.mxu0 0
    %668 = vmatmul.mubr.bf16.gmra.mxu0 %v633
    %v669 = vpop.f32.mrf.mxu0
    %v670 = vadd.f32 0.0, %v669
    %v671 = vpop.f32.mrf.mxu0
    %v672 = vpop.f32.mrf.mxu0
    %v673 = vadd.f32 0.0, %v672
    %v674 = vpop.f32.mrf.mxu0
    %675 = vdwg.mxu0
    %v676 = vpack.c.bf16 %v673, %v670
    %v678 = vsel %vm207, %v676, 0
    %680 = vmatprep.subr.bf16.mxu0 0
    %681 = vmatpush1.bf16.msra.mxu0 0
    %682 = vmatprep.subr.bf16.mxu0 0
    %683 = vmatpush1.bf16.msra.mxu0 0
    %684 = vmatprep.subr.bf16.mxu0 0
    %685 = vmatpush1.bf16.msra.mxu0 0
    %686 = vmatprep.subr.bf16.mxu0 0
    %687 = vmatpush1.bf16.msra.mxu0 0
    %688 = vmatprep.subr.bf16.mxu0 0
    %689 = vmatpush1.bf16.msra.mxu0 0
    %690 = vmatprep.subr.bf16.mxu0 0
    %691 = vmatpush1.bf16.msra.mxu0 0
    %692 = vmatprep.subr.bf16.mxu0 0
    %693 = vmatpush1.bf16.msra.mxu0 0
    %694 = vmatprep.subr.bf16.mxu0 0
    %695 = vmatpush1.bf16.msra.mxu0 %v502
    %696 = vmatprep.subr.bf16.mxu0 0
    %697 = vmatpush2.bf16.msra.mxu0 0
    %698 = vmatprep.subr.bf16.mxu0 0
    %699 = vmatpush2.bf16.msra.mxu0 0
    %700 = vmatprep.subr.bf16.mxu0 0
    %701 = vmatpush2.bf16.msra.mxu0 0
    %702 = vmatprep.subr.bf16.mxu0 0
    %703 = vmatpush2.bf16.msra.mxu0 0
    %704 = vmatprep.subr.bf16.mxu0 0
    %705 = vmatpush2.bf16.msra.mxu0 0
    %706 = vmatprep.subr.bf16.mxu0 0
    %707 = vmatpush2.bf16.msra.mxu0 0
    %708 = vmatprep.subr.bf16.mxu0 0
    %709 = vmatpush2.bf16.msra.mxu0 0
    %710 = vmatprep.subr.bf16.mxu0 0
    %711 = vmatpush2.bf16.msra.mxu0 0
    %712 = vmatprep.mubr.bf16.mxu0 0
    %713 = vmatmul.mubr.bf16.gmra.mxu0 %v678
    %v714 = vpop.f32.mrf.mxu0
    %v715 = vadd.f32 %v497, %v714
    %v716 = vpop.f32.mrf.mxu0
    %v717 = vpop.f32.mrf.mxu0
    %v718 = vadd.f32 %v497, %v717
    %v719 = vpop.f32.mrf.mxu0
    %720 = vdwg.mxu0
    %v721 = vmax.f32 %v715, 0.0
    %v722 = vmax.f32 %v718, 0.0
    %v723 = vpack.c.bf16 %v722, %v721
    %v725 = vsel %vm372, %v723, 0
    %727 = vmatprep.subr.bf16.mxu0 0
    %728 = vmatpush1.bf16.msra.mxu0 0
    %729 = vmatprep.subr.bf16.mxu0 0
    %730 = vmatpush1.bf16.msra.mxu0 0
    %731 = vmatprep.subr.bf16.mxu0 0
    %732 = vmatpush1.bf16.msra.mxu0 0
    %733 = vmatprep.subr.bf16.mxu0 0
    %734 = vmatpush1.bf16.msra.mxu0 0
    %735 = vmatprep.subr.bf16.mxu0 0
    %736 = vmatpush1.bf16.msra.mxu0 %v574
    %737 = vmatprep.subr.bf16.mxu0 0
    %738 = vmatpush1.bf16.msra.mxu0 %v573
    %739 = vmatprep.subr.bf16.mxu0 0
    %740 = vmatpush1.bf16.msra.mxu0 %v572
    %741 = vmatprep.subr.bf16.mxu0 0
    %742 = vmatpush1.bf16.msra.mxu0 %v571
    %743 = vmatprep.subr.bf16.mxu0 0
    %744 = vmatpush2.bf16.msra.mxu0 0
    %745 = vmatprep.subr.bf16.mxu0 0
    %746 = vmatpush2.bf16.msra.mxu0 0
    %747 = vmatprep.subr.bf16.mxu0 0
    %748 = vmatpush2.bf16.msra.mxu0 0
    %749 = vmatprep.subr.bf16.mxu0 0
    %750 = vmatpush2.bf16.msra.mxu0 0
    %751 = vmatprep.subr.bf16.mxu0 0
    %752 = vmatpush2.bf16.msra.mxu0 0
    %753 = vmatprep.subr.bf16.mxu0 0
    %754 = vmatpush2.bf16.msra.mxu0 0
    %755 = vmatprep.subr.bf16.mxu0 0
    %756 = vmatpush2.bf16.msra.mxu0 0
    %757 = vmatprep.subr.bf16.mxu0 0
    %758 = vmatpush2.bf16.msra.mxu0 0
    %759 = vmatprep.mubr.bf16.mxu0 0
    %760 = vmatmul.mubr.bf16.gmra.mxu0 %v725
    %v761 = vpop.f32.mrf.mxu0
    %v762 = vadd.f32 %v554, %v761
    %v763 = vpop.f32.mrf.mxu0
    %v764 = vpop.f32.mrf.mxu0
    %v765 = vadd.f32 %v554, %v764
    %v766 = vpop.f32.mrf.mxu0
    %767 = vdwg.mxu0
    %v768 = vmax.f32 %v762, 0.0
    %v769 = vmax.f32 %v765, 0.0
    %v770 = vld [vmem:[%s0 + $0x30] sm:$0xf]
    %v771 = vld [vmem:[%s0 + $0x34] sm:$0xf]
    %v772 = vld [vmem:[%s0 + $0x38] sm:$0xf]
    %v773 = vld [vmem:[%s0 + $0x40] sm:$0xf]
    %v774 = vld [vmem:[%s0 + $0x44] sm:$0xf]
    %v775 = vld [vmem:[%s0 + $0x48] sm:$0xf]
    %v776 = vld [vmem:[%s0 + $0x50] sm:$0xf]
    %v777 = vld [vmem:[%s0 + $0x54] sm:$0xf]
    %v778 = vld [vmem:[%s0 + $0x58] sm:$0xf]
    %v779 = vld [vmem:[%s0 + $0x60] sm:$0xf]
    %v780 = vld [vmem:[%s0 + $0x64] sm:$0xf]
    %v781 = vld [vmem:[%s0 + $0x68] sm:$0xf]
    %v782 = vld [vmem:[%s0 + $0x70] sm:$0xf]
    %v783 = vld [vmem:[%s0 + $0x74] sm:$0x1]
    %v784 = vld [vmem:[%s0 + $0x78] sm:$0xf]
    %v785 = vld [vmem:[%s0 + $0x7c] sm:$0x1]
    %v786 = vld [vmem:[%s0 + $0x80] sm:$0xf]
    %v787 = vld [vmem:[%s0 + $0x84] sm:$0x1]
    %v788 = vld [vmem:[%s0 + $0x88] sm:$0xf]
    %v789 = vld [vmem:[%s0 + $0x8c] sm:$0x1]
    %v790 = vld [vmem:[%s0 + $0x90] sm:$0xf]
    %v791 = vld [vmem:[%s0 + $0x94] sm:$0x3]
    %v792 = vld [vmem:[%s0 + $0x98] sm:$0xf]
    %v793 = vld [vmem:[%s0 + $0x9c] sm:$0x3]
    %v794 = vld [vmem:[%s0 + $0xa0] sm:$0xf]
    %v795 = vld [vmem:[%s0 + $0xa4] sm:$0x3]
    %v796 = vld [vmem:[%s0 + $0xa8] sm:$0xf]
    %v797 = vld [vmem:[%s0 + $0xac] sm:$0x3]
    %v798 = vld [vmem:[%s0 + $0xb0] sm:$0xf]
    %v799 = vld [vmem:[%s0 + $0xb4] sm:$0xf]
    %v800 = vld [vmem:[%s0 + $0xb8] sm:$0xf]
    %v801 = vld [vmem:[%s0 + $0xd0] sm:$0xf]
    %v802 = vld [vmem:[%s0 + $0xd4] sm:$0xf]
    %v803 = vld [vmem:[%s0 + $0xd8] sm:$0xf]
    %v804 = vld [vmem:[%s0 + $0xc0] sm:$0xf]
    %v805 = vld [vmem:[%s0 + $0xc4] sm:$0xf]
    %v806 = vld [vmem:[%s0 + $0xc8] sm:$0xf]
    %v807 = vld [vmem:[%s0 + $0xe0] sm:$0xf]
    %v808 = vld [vmem:[%s0 + $0xe4] sm:$0xf]
    %v809 = vld [vmem:[%s0 + $0xe8] sm:$0xf]
    %v810 = vld [vmem:[#allocation2 + $0x58] sm:$0xf]
    %v811 = vld [vmem:[#allocation2 + $0x5c] sm:$0xf]
    %v812 = vld [vmem:[#allocation2 + $0x60] sm:$0xf]
    %v813 = vld [vmem:[#allocation2 + $0x64] sm:$0xf]
    %v814 = vpack.c.bf16 %v428, %v427
    %v815 = vpack.c.bf16 %v429, %v429
    %v820 = vunpack.c.l.b16 %v810
    %v821 = vunpack.c.l.b16 %v811
    %v822 = vunpack.c.l.b16 %v812
    %v823 = vunpack.c.l.b16 %v813
    %v824 = vpack.c.b16 %v821, %v820
    %v825 = vpack.c.b16 %v823, %v822
    %vm828 = vcmask 261120
    %v830 = vsel %vm828, %v814, 0
    %v833 = vsel %vm828, %v815, 0
    %835 = vmatprep.subr.bf16.mxu0 0
    %836 = vmatpush1.bf16.msra.mxu0 0
    %837 = vmatprep.subr.bf16.mxu0 0
    %838 = vmatpush1.bf16.msra.mxu0 0
    %839 = vmatprep.subr.bf16.mxu0 0
    %840 = vmatpush1.bf16.msra.mxu0 0
    %841 = vmatprep.subr.bf16.mxu0 0
    %842 = vmatpush1.bf16.msra.mxu0 0
    %843 = vmatprep.subr.bf16.mxu0 0
    %844 = vmatpush1.bf16.msra.mxu0 0
    %845 = vmatprep.subr.bf16.mxu0 0
    %846 = vmatpush1.bf16.msra.mxu0 0
    %847 = vmatprep.subr.bf16.mxu0 0
    %848 = vmatpush1.bf16.msra.mxu0 %v825
    %849 = vmatprep.subr.bf16.mxu0 0
    %850 = vmatpush1.bf16.msra.mxu0 %v824
    %851 = vmatprep.subr.bf16.mxu0 0
    %852 = vmatpush2.bf16.msra.mxu0 0
    %853 = vmatprep.subr.bf16.mxu0 0
    %854 = vmatpush2.bf16.msra.mxu0 0
    %855 = vmatprep.subr.bf16.mxu0 0
    %856 = vmatpush2.bf16.msra.mxu0 0
    %857 = vmatprep.subr.bf16.mxu0 0
    %858 = vmatpush2.bf16.msra.mxu0 0
    %859 = vmatprep.subr.bf16.mxu0 0
    %860 = vmatpush2.bf16.msra.mxu0 0
    %861 = vmatprep.subr.bf16.mxu0 0
    %862 = vmatpush2.bf16.msra.mxu0 0
    %863 = vmatprep.subr.bf16.mxu0 0
    %864 = vmatpush2.bf16.msra.mxu0 0
    %865 = vmatprep.subr.bf16.mxu0 0
    %866 = vmatpush2.bf16.msra.mxu0 0
    %867 = vmatprep.mubr.bf16.mxu0 0
    %868 = vmatmul.mubr.bf16.gmra.mxu0 %v830
    %v869 = vpop.f32.mrf.mxu0
    %v870 = vadd.f32 0.0, %v869
    %v871 = vpop.f32.mrf.mxu0
    %v872 = vpop.f32.mrf.mxu0
    %v873 = vadd.f32 0.0, %v872
    %v874 = vpop.f32.mrf.mxu0
    %875 = vmatprep.mubr.bf16.mxu0 0
    %876 = vmatmul.mubr.bf16.gmra.mxu0 %v833
    %v877 = vpop.f32.mrf.mxu0
    %v878 = vadd.f32 0.0, %v877
    %v879 = vpop.f32.mrf.mxu0
    %v880 = vpop.f32.mrf.mxu0
    %v881 = vpop.f32.mrf.mxu0
    %882 = vdwg.mxu0
    %v883 = vld [vmem:[#allocation4 + $0x20] sm:$0x1]
    %v884 = vpack.c.bf16 %v873, %v870
    %v885 = vpack.c.bf16 %v878, %v878
    %v889 = vunpack.c.l.b16 %v770
    %v890 = vunpack.c.l.b16 %v771
    %v891 = vunpack.c.l.b16 %v772
    %v892 = vpack.c.b16 %v890, %v889
    %v893 = vpack.c.b16 %v891, %v891
    %vm894 = vcmask 195584
    %v896 = vsel %vm894, %v892, 0
    %v899 = vsel %vm894, %v893, 0
    %vm901 = vcmask 1043456
    %v903 = vsel %vm901, %v885, 0
    %905 = vmatprep.subr.bf16.mxu0 0
    %906 = vmatpush1.bf16.msra.mxu0 0
    %907 = vmatprep.subr.bf16.mxu0 0
    %908 = vmatpush1.bf16.msra.mxu0 0
    %909 = vmatprep.subr.bf16.mxu0 0
    %910 = vmatpush1.bf16.msra.mxu0 0
    %911 = vmatprep.subr.bf16.mxu0 0
    %912 = vmatpush1.bf16.msra.mxu0 0
    %913 = vmatprep.subr.bf16.mxu0 0
    %914 = vmatpush1.bf16.msra.mxu0 0
    %915 = vmatprep.subr.bf16.mxu0 0
    %916 = vmatpush1.bf16.msra.mxu0 0
    %917 = vmatprep.subr.bf16.mxu0 0
    %918 = vmatpush1.bf16.msra.mxu0 %v903
    %919 = vmatprep.subr.bf16.mxu0 0
    %920 = vmatpush1.bf16.msra.mxu0 %v884
    %921 = vmatprep.subr.bf16.mxu0 0
    %922 = vmatpush2.bf16.msra.mxu0 0
    %923 = vmatprep.subr.bf16.mxu0 0
    %924 = vmatpush2.bf16.msra.mxu0 0
    %925 = vmatprep.subr.bf16.mxu0 0
    %926 = vmatpush2.bf16.msra.mxu0 0
    %927 = vmatprep.subr.bf16.mxu0 0
    %928 = vmatpush2.bf16.msra.mxu0 0
    %929 = vmatprep.subr.bf16.mxu0 0
    %930 = vmatpush2.bf16.msra.mxu0 0
    %931 = vmatprep.subr.bf16.mxu0 0
    %932 = vmatpush2.bf16.msra.mxu0 0
    %933 = vmatprep.subr.bf16.mxu0 0
    %934 = vmatpush2.bf16.msra.mxu0 0
    %935 = vmatprep.subr.bf16.mxu0 0
    %936 = vmatpush2.bf16.msra.mxu0 0
    %937 = vmatprep.mubr.bf16.mxu0 0
    %938 = vmatmul.mubr.bf16.gmra.mxu0 %v896
    %v939 = vpop.f32.mrf.mxu0
    %v940 = vadd.f32 0.0, %v939
    %v941 = vpop.f32.mrf.mxu0
    %v942 = vpop.f32.mrf.mxu0
    %v943 = vadd.f32 0.0, %v942
    %v944 = vpop.f32.mrf.mxu0
    %945 = vmatprep.mubr.bf16.mxu0 0
    %946 = vmatmul.mubr.bf16.gmra.mxu0 %v899
    %v947 = vpop.f32.mrf.mxu0
    %v948 = vadd.f32 0.0, %v947
    %v949 = vpop.f32.mrf.mxu0
    %v950 = vpop.f32.mrf.mxu0
    %v951 = vpop.f32.mrf.mxu0
    %952 = vdwg.mxu0
    %v953 = vlaneseq
    %v954 = vshrl.u32 %v953, 7
    %v955 = vsub.s32 0, %v954
    %v956 = vrot.slane %v883, %v955
    %v957 = vadd.f32 %v956, %v940
    %v958 = vadd.f32 %v956, %v943
    %v959 = vadd.f32 %v956, %v948
    %v963 = vunpack.c.l.b16 %v773
    %v964 = vunpack.c.l.b16 %v774
    %v965 = vunpack.c.l.b16 %v775
    %v966 = vpack.c.b16 %v964, %v963
    %v967 = vpack.c.b16 %v965, %v965
    %970 = vrot.lane.b32.xlu0 %v884, 96
    %v971 = vpop.permute.xlu0 %970
    %972 = vrot.lane.b32.xlu0 %v885, 96
    %v973 = vpop.permute.xlu0 %972
    %v976 = vsel %vm894, %v966, 0
    %v979 = vsel %vm894, %v967, 0
    %v982 = vsel %vm901, %v973, 0
    %984 = vmatprep.subr.bf16.mxu0 0
    %985 = vmatpush1.bf16.msra.mxu0 0
    %986 = vmatprep.subr.bf16.mxu0 0
    %987 = vmatpush1.bf16.msra.mxu0 0
    %988 = vmatprep.subr.bf16.mxu0 0
    %989 = vmatpush1.bf16.msra.mxu0 0
    %990 = vmatprep.subr.bf16.mxu0 0
    %991 = vmatpush1.bf16.msra.mxu0 0
    %992 = vmatprep.subr.bf16.mxu0 0
    %993 = vmatpush1.bf16.msra.mxu0 0
    %994 = vmatprep.subr.bf16.mxu0 0
    %995 = vmatpush1.bf16.msra.mxu0 0
    %996 = vmatprep.subr.bf16.mxu0 0
    %997 = vmatpush1.bf16.msra.mxu0 %v982
    %998 = vmatprep.subr.bf16.mxu0 0
    %999 = vmatpush1.bf16.msra.mxu0 %v971
    %1000 = vmatprep.subr.bf16.mxu0 0
    %1001 = vmatpush2.bf16.msra.mxu0 0
    %1002 = vmatprep.subr.bf16.mxu0 0
    %1003 = vmatpush2.bf16.msra.mxu0 0
    %1004 = vmatprep.subr.bf16.mxu0 0
    %1005 = vmatpush2.bf16.msra.mxu0 0
    %1006 = vmatprep.subr.bf16.mxu0 0
    %1007 = vmatpush2.bf16.msra.mxu0 0
    %1008 = vmatprep.subr.bf16.mxu0 0
    %1009 = vmatpush2.bf16.msra.mxu0 0
    %1010 = vmatprep.subr.bf16.mxu0 0
    %1011 = vmatpush2.bf16.msra.mxu0 0
    %1012 = vmatprep.subr.bf16.mxu0 0
    %1013 = vmatpush2.bf16.msra.mxu0 0
    %1014 = vmatprep.subr.bf16.mxu0 0
    %1015 = vmatpush2.bf16.msra.mxu0 0
    %1016 = vmatprep.mubr.bf16.mxu0 0
    %1017 = vmatmul.mubr.bf16.gmra.mxu0 %v976
    %v1018 = vpop.f32.mrf.mxu0
    %v1019 = vadd.f32 0.0, %v1018
    %v1020 = vpop.f32.mrf.mxu0
    %v1021 = vpop.f32.mrf.mxu0
    %v1022 = vadd.f32 0.0, %v1021
    %v1023 = vpop.f32.mrf.mxu0
    %1024 = vmatprep.mubr.bf16.mxu0 0
    %1025 = vmatmul.mubr.bf16.gmra.mxu0 %v979
    %v1026 = vpop.f32.mrf.mxu0
    %v1027 = vadd.f32 0.0, %v1026
    %v1028 = vpop.f32.mrf.mxu0
    %v1029 = vpop.f32.mrf.mxu0
    %v1030 = vpop.f32.mrf.mxu0
    %1031 = vdwg.mxu0
    %v1032 = vadd.f32 %v957, %v1019
    %v1033 = vadd.f32 %v958, %v1022
    %v1034 = vadd.f32 %v959, %v1027
    %v1038 = vunpack.c.l.b16 %v776
    %v1039 = vunpack.c.l.b16 %v777
    %v1040 = vunpack.c.l.b16 %v778
    %v1041 = vpack.c.b16 %v1039, %v1038
    %v1042 = vpack.c.b16 %v1040, %v1040
    %1043 = vrot.lane.b32.xlu0 %v884, 64
    %v1044 = vpop.permute.xlu0 %1043
    %1045 = vrot.lane.b32.xlu0 %v885, 64
    %v1046 = vpop.permute.xlu0 %1045
    %v1049 = vsel %vm894, %v1041, 0
    %v1052 = vsel %vm894, %v1042, 0
    %v1055 = vsel %vm901, %v1046, 0
    %1057 = vmatprep.subr.bf16.mxu0 0
    %1058 = vmatpush1.bf16.msra.mxu0 0
    %1059 = vmatprep.subr.bf16.mxu0 0
    %1060 = vmatpush1.bf16.msra.mxu0 0
    %1061 = vmatprep.subr.bf16.mxu0 0
    %1062 = vmatpush1.bf16.msra.mxu0 0
    %1063 = vmatprep.subr.bf16.mxu0 0
    %1064 = vmatpush1.bf16.msra.mxu0 0
    %1065 = vmatprep.subr.bf16.mxu0 0
    %1066 = vmatpush1.bf16.msra.mxu0 0
    %1067 = vmatprep.subr.bf16.mxu0 0
    %1068 = vmatpush1.bf16.msra.mxu0 0
    %1069 = vmatprep.subr.bf16.mxu0 0
    %1070 = vmatpush1.bf16.msra.mxu0 %v1055
    %1071 = vmatprep.subr.bf16.mxu0 0
    %1072 = vmatpush1.bf16.msra.mxu0 %v1044
    %1073 = vmatprep.subr.bf16.mxu0 0
    %1074 = vmatpush2.bf16.msra.mxu0 0
    %1075 = vmatprep.subr.bf16.mxu0 0
    %1076 = vmatpush2.bf16.msra.mxu0 0
    %1077 = vmatprep.subr.bf16.mxu0 0
    %1078 = vmatpush2.bf16.msra.mxu0 0
    %1079 = vmatprep.subr.bf16.mxu0 0
    %1080 = vmatpush2.bf16.msra.mxu0 0
    %1081 = vmatprep.subr.bf16.mxu0 0
    %1082 = vmatpush2.bf16.msra.mxu0 0
    %1083 = vmatprep.subr.bf16.mxu0 0
    %1084 = vmatpush2.bf16.msra.mxu0 0
    %1085 = vmatprep.subr.bf16.mxu0 0
    %1086 = vmatpush2.bf16.msra.mxu0 0
    %1087 = vmatprep.subr.bf16.mxu0 0
    %1088 = vmatpush2.bf16.msra.mxu0 0
    %1089 = vmatprep.mubr.bf16.mxu0 0
    %1090 = vmatmul.mubr.bf16.gmra.mxu0 %v1049
    %v1091 = vpop.f32.mrf.mxu0
    %v1092 = vadd.f32 0.0, %v1091
    %v1093 = vpop.f32.mrf.mxu0
    %v1094 = vpop.f32.mrf.mxu0
    %v1095 = vadd.f32 0.0, %v1094
    %v1096 = vpop.f32.mrf.mxu0
    %1097 = vmatprep.mubr.bf16.mxu0 0
    %1098 = vmatmul.mubr.bf16.gmra.mxu0 %v1052
    %v1099 = vpop.f32.mrf.mxu0
    %v1100 = vadd.f32 0.0, %v1099
    %v1101 = vpop.f32.mrf.mxu0
    %v1102 = vpop.f32.mrf.mxu0
    %v1103 = vpop.f32.mrf.mxu0
    %1104 = vdwg.mxu0
    %v1105 = vadd.f32 %v1032, %v1092
    %v1106 = vadd.f32 %v1033, %v1095
    %v1107 = vadd.f32 %v1034, %v1100
    %v1111 = vunpack.c.l.b16 %v779
    %v1112 = vunpack.c.l.b16 %v780
    %v1113 = vunpack.c.l.b16 %v781
    %v1114 = vpack.c.b16 %v1112, %v1111
    %v1115 = vpack.c.b16 %v1113, %v1113
    %1116 = vrot.lane.b32.xlu0 %v884, 32
    %v1117 = vpop.permute.xlu0 %1116
    %1118 = vrot.lane.b32.xlu0 %v885, 32
    %v1119 = vpop.permute.xlu0 %1118
    %v1122 = vsel %vm894, %v1114, 0
    %v1125 = vsel %vm894, %v1115, 0
    %v1128 = vsel %vm901, %v1119, 0
    %1130 = vmatprep.subr.bf16.mxu0 0
    %1131 = vmatpush1.bf16.msra.mxu0 0
    %1132 = vmatprep.subr.bf16.mxu0 0
    %1133 = vmatpush1.bf16.msra.mxu0 0
    %1134 = vmatprep.subr.bf16.mxu0 0
    %1135 = vmatpush1.bf16.msra.mxu0 0
    %1136 = vmatprep.subr.bf16.mxu0 0
    %1137 = vmatpush1.bf16.msra.mxu0 0
    %1138 = vmatprep.subr.bf16.mxu0 0
    %1139 = vmatpush1.bf16.msra.mxu0 0
    %1140 = vmatprep.subr.bf16.mxu0 0
    %1141 = vmatpush1.bf16.msra.mxu0 0
    %1142 = vmatprep.subr.bf16.mxu0 0
    %1143 = vmatpush1.bf16.msra.mxu0 %v1128
    %1144 = vmatprep.subr.bf16.mxu0 0
    %1145 = vmatpush1.bf16.msra.mxu0 %v1117
    %1146 = vmatprep.subr.bf16.mxu0 0
    %1147 = vmatpush2.bf16.msra.mxu0 0
    %1148 = vmatprep.subr.bf16.mxu0 0
    %1149 = vmatpush2.bf16.msra.mxu0 0
    %1150 = vmatprep.subr.bf16.mxu0 0
    %1151 = vmatpush2.bf16.msra.mxu0 0
    %1152 = vmatprep.subr.bf16.mxu0 0
    %1153 = vmatpush2.bf16.msra.mxu0 0
    %1154 = vmatprep.subr.bf16.mxu0 0
    %1155 = vmatpush2.bf16.msra.mxu0 0
    %1156 = vmatprep.subr.bf16.mxu0 0
    %1157 = vmatpush2.bf16.msra.mxu0 0
    %1158 = vmatprep.subr.bf16.mxu0 0
    %1159 = vmatpush2.bf16.msra.mxu0 0
    %1160 = vmatprep.subr.bf16.mxu0 0
    %1161 = vmatpush2.bf16.msra.mxu0 0
    %1162 = vmatprep.mubr.bf16.mxu0 0
    %1163 = vmatmul.mubr.bf16.gmra.mxu0 %v1122
    %v1164 = vpop.f32.mrf.mxu0
    %v1165 = vadd.f32 0.0, %v1164
    %v1166 = vpop.f32.mrf.mxu0
    %v1167 = vpop.f32.mrf.mxu0
    %v1168 = vadd.f32 0.0, %v1167
    %v1169 = vpop.f32.mrf.mxu0
    %1170 = vmatprep.mubr.bf16.mxu0 0
    %1171 = vmatmul.mubr.bf16.gmra.mxu0 %v1125
    %v1172 = vpop.f32.mrf.mxu0
    %v1173 = vadd.f32 0.0, %v1172
    %v1174 = vpop.f32.mrf.mxu0
    %v1175 = vpop.f32.mrf.mxu0
    %v1176 = vpop.f32.mrf.mxu0
    %1177 = vdwg.mxu0
    %v1178 = vadd.f32 %v1105, %v1165
    %v1179 = vadd.f32 %v1106, %v1168
    %v1180 = vadd.f32 %v1107, %v1173
    %v1181 = vmul.f32 %v427, 1.1
    %v1182 = vmul.f32 %v428, 1.1
    %v1183 = vmul.f32 %v429, 1.1
    %v1184 = vadd.f32 %v1178, %v1181
    %v1185 = vadd.f32 %v1179, %v1182
    %v1186 = vadd.f32 %v1180, %v1183
    %v1187 = vld [vmem:[#allocation2 + $0x68] sm:$0xf]
    %v1188 = vld [vmem:[#allocation2 + $0x6c] sm:$0xf]
    %v1189 = vld [vmem:[#allocation2 + $0x70] sm:$0xf]
    %v1190 = vld [vmem:[#allocation2 + $0x74] sm:$0xf]
    %v1191 = vld [vmem:[#allocation2 + $0x78] sm:$0xf]
    %v1192 = vld [vmem:[#allocation2 + $0x7c] sm:$0xf]
    %v1193 = vld [vmem:[#allocation2 + $0x80] sm:$0xf]
    %v1194 = vld [vmem:[#allocation2 + $0x84] sm:$0xf]
    %v1195 = vld [vmem:[#allocation2 + $0x88] sm:$0xf]
    %v1196 = vld [vmem:[#allocation2 + $0x8c] sm:$0xf]
    %v1197 = vld [vmem:[#allocation2 + $0x90] sm:$0xf]
    %v1198 = vld [vmem:[#allocation2 + $0x94] sm:$0xf]
    %v1199 = vpack.c.bf16 %v1185, %v1184
    %v1200 = vpack.c.bf16 %v1186, %v1186
    %v1205 = vunpack.c.l.b16 %v1187
    %v1206 = vunpack.c.l.b16 %v1188
    %v1207 = vunpack.c.l.b16 %v1189
    %v1208 = vunpack.c.l.b16 %v1190
    %v1209 = vpack.c.b16 %v1206, %v1205
    %v1210 = vpack.c.b16 %v1208, %v1207
    %v1214 = vsel %vm828, %v1199, 0
    %v1217 = vsel %vm828, %v1200, 0
    %1219 = vmatprep.subr.bf16.mxu0 0
    %1220 = vmatpush1.bf16.msra.mxu0 0
    %1221 = vmatprep.subr.bf16.mxu0 0
    %1222 = vmatpush1.bf16.msra.mxu0 0
    %1223 = vmatprep.subr.bf16.mxu0 0
    %1224 = vmatpush1.bf16.msra.mxu0 0
    %1225 = vmatprep.subr.bf16.mxu0 0
    %1226 = vmatpush1.bf16.msra.mxu0 0
    %1227 = vmatprep.subr.bf16.mxu0 0
    %1228 = vmatpush1.bf16.msra.mxu0 0
    %1229 = vmatprep.subr.bf16.mxu0 0
    %1230 = vmatpush1.bf16.msra.mxu0 0
    %1231 = vmatprep.subr.bf16.mxu0 0
    %1232 = vmatpush1.bf16.msra.mxu0 %v1210
    %1233 = vmatprep.subr.bf16.mxu0 0
    %1234 = vmatpush1.bf16.msra.mxu0 %v1209
    %1235 = vmatprep.subr.bf16.mxu0 0
    %1236 = vmatpush2.bf16.msra.mxu0 0
    %1237 = vmatprep.subr.bf16.mxu0 0
    %1238 = vmatpush2.bf16.msra.mxu0 0
    %1239 = vmatprep.subr.bf16.mxu0 0
    %1240 = vmatpush2.bf16.msra.mxu0 0
    %1241 = vmatprep.subr.bf16.mxu0 0
    %1242 = vmatpush2.bf16.msra.mxu0 0
    %1243 = vmatprep.subr.bf16.mxu0 0
    %1244 = vmatpush2.bf16.msra.mxu0 0
    %1245 = vmatprep.subr.bf16.mxu0 0
    %1246 = vmatpush2.bf16.msra.mxu0 0
    %1247 = vmatprep.subr.bf16.mxu0 0
    %1248 = vmatpush2.bf16.msra.mxu0 0
    %1249 = vmatprep.subr.bf16.mxu0 0
    %1250 = vmatpush2.bf16.msra.mxu0 0
    %1251 = vmatprep.mubr.bf16.mxu0 0
    %1252 = vmatmul.mubr.bf16.gmra.mxu0 %v1214
    %v1253 = vpop.f32.mrf.mxu0
    %v1254 = vadd.f32 0.0, %v1253
    %v1255 = vpop.f32.mrf.mxu0
    %v1256 = vpop.f32.mrf.mxu0
    %v1257 = vadd.f32 0.0, %v1256
    %v1258 = vpop.f32.mrf.mxu0
    %1259 = vmatprep.mubr.bf16.mxu0 0
    %1260 = vmatmul.mubr.bf16.gmra.mxu0 %v1217
    %v1261 = vpop.f32.mrf.mxu0
    %v1262 = vadd.f32 0.0, %v1261
    %v1263 = vpop.f32.mrf.mxu0
    %v1264 = vpop.f32.mrf.mxu0
    %v1265 = vpop.f32.mrf.mxu0
    %1266 = vdwg.mxu0
    %v1267 = vsel %vm372, %v1254, 0.0
    %v1268 = vsel %vm372, %v1257, 0.0
    %v1269 = vadd.f32 %v1267, %v1268
    %v1270 = vsel %vm372, %v1262, 0.0
    %v1271 = vadd.f32 %v1269, %v1270
    %v1272 = vrot.slane %v1271, 4
    %v1273 = vadd.f32 %v1271, %v1272
    %v1274 = vrot.slane %v1273, 2
    %v1275 = vadd.f32 %v1273, %v1274
    %v1276 = vrot.slane %v1275, 1
    %v1277 = vadd.f32 %v1275, %v1276
    %v1278 = vmul.f32 %v1254, %v1254
    %v1279 = vmul.f32 %v1257, %v1257
    %v1280 = vmul.f32 %v1262, %v1262
    %v1281 = vsel %vm372, %v1278, 0.0
    %v1282 = vsel %vm372, %v1279, 0.0
    %v1283 = vadd.f32 %v1281, %v1282
    %v1284 = vsel %vm372, %v1280, 0.0
    %v1285 = vadd.f32 %v1283, %v1284
    %v1286 = vrot.slane %v1285, 4
    %v1287 = vadd.f32 %v1285, %v1286
    %v1288 = vrot.slane %v1287, 2
    %v1289 = vadd.f32 %v1287, %v1288
    %v1290 = vrot.slane %v1289, 1
    %v1291 = vadd.f32 %v1289, %v1290
    %v1292 = vmul.f32 %v1277, 0.041666668
    %v1293 = vmul.f32 %v1291, 0.041666668
    %v1294 = vmul.f32 %v1292, %v1292
    %v1295 = vsub.f32 %v1293, %v1294
    %v1296 = vsub.f32 %v1254, %v1292
    %v1297 = vsub.f32 %v1257, %v1292
    %v1298 = vsub.f32 %v1262, %v1292
    %v1299 = vadd.f32 %v1295, 1e-05
    %v1300 = vrsqrt.pop %v1299
    %v1301 = vmul.f32 %v1296, %v1300
    %v1302 = vmul.f32 %v1297, %v1300
    %v1303 = vmul.f32 %v1298, %v1300
    %v1304 = vmax.f32 %v1301, 0.0
    %v1305 = vmax.f32 %v1302, 0.0
    %v1306 = vmax.f32 %v1303, 0.0
    %v1307 = vpack.c.bf16 %v1305, %v1304
    %v1308 = vpack.c.bf16 %v1306, %v1306
    %v1317 = vunpack.c.l.b16 %v1191
    %v1318 = vunpack.c.l.b16 %v1192
    %v1319 = vunpack.c.l.b16 %v1193
    %v1320 = vunpack.c.l.b16 %v1194
    %v1321 = vunpack.c.l.b16 %v1195
    %v1322 = vunpack.c.l.b16 %v1196
    %v1323 = vunpack.c.l.b16 %v1197
    %v1324 = vunpack.c.l.b16 %v1198
    %v1325 = vpack.c.b16 %v1318, %v1317
    %v1326 = vpack.c.b16 %v1320, %v1319
    %v1327 = vpack.c.b16 %v1322, %v1321
    %v1328 = vpack.c.b16 %v1324, %v1323
    %v1334 = vsel %vm372, %v1307, 0
    %v1337 = vsel %vm372, %v1308, 0
    %1339 = vmatprep.subr.bf16.mxu0 0
    %1340 = vmatpush1.bf16.msra.mxu0 0
    %1341 = vmatprep.subr.bf16.mxu0 0
    %1342 = vmatpush1.bf16.msra.mxu0 0
    %1343 = vmatprep.subr.bf16.mxu0 0
    %1344 = vmatpush1.bf16.msra.mxu0 0
    %1345 = vmatprep.subr.bf16.mxu0 0
    %1346 = vmatpush1.bf16.msra.mxu0 0
    %1347 = vmatprep.subr.bf16.mxu0 0
    %1348 = vmatpush1.bf16.msra.mxu0 %v1328
    %1349 = vmatprep.subr.bf16.mxu0 0
    %1350 = vmatpush1.bf16.msra.mxu0 %v1327
    %1351 = vmatprep.subr.bf16.mxu0 0
    %1352 = vmatpush1.bf16.msra.mxu0 %v1326
    %1353 = vmatprep.subr.bf16.mxu0 0
    %1354 = vmatpush1.bf16.msra.mxu0 %v1325
    %1355 = vmatprep.subr.bf16.mxu0 0
    %1356 = vmatpush2.bf16.msra.mxu0 0
    %1357 = vmatprep.subr.bf16.mxu0 0
    %1358 = vmatpush2.bf16.msra.mxu0 0
    %1359 = vmatprep.subr.bf16.mxu0 0
    %1360 = vmatpush2.bf16.msra.mxu0 0
    %1361 = vmatprep.subr.bf16.mxu0 0
    %1362 = vmatpush2.bf16.msra.mxu0 0
    %1363 = vmatprep.subr.bf16.mxu0 0
    %1364 = vmatpush2.bf16.msra.mxu0 0
    %1365 = vmatprep.subr.bf16.mxu0 0
    %1366 = vmatpush2.bf16.msra.mxu0 0
    %1367 = vmatprep.subr.bf16.mxu0 0
    %1368 = vmatpush2.bf16.msra.mxu0 0
    %1369 = vmatprep.subr.bf16.mxu0 0
    %1370 = vmatpush2.bf16.msra.mxu0 0
    %1371 = vmatprep.mubr.bf16.mxu0 0
    %1372 = vmatmul.mubr.bf16.gmra.mxu0 %v1334
    %v1373 = vpop.f32.mrf.mxu0
    %v1374 = vadd.f32 0.0, %v1373
    %v1375 = vpop.f32.mrf.mxu0
    %v1376 = vpop.f32.mrf.mxu0
    %v1377 = vadd.f32 0.0, %v1376
    %v1378 = vpop.f32.mrf.mxu0
    %1379 = vmatprep.mubr.bf16.mxu0 0
    %1380 = vmatmul.mubr.bf16.gmra.mxu0 %v1337
    %v1381 = vpop.f32.mrf.mxu0
    %v1382 = vadd.f32 0.0, %v1381
    %v1383 = vpop.f32.mrf.mxu0
    %v1384 = vpop.f32.mrf.mxu0
    %v1385 = vpop.f32.mrf.mxu0
    %1386 = vdwg.mxu0
    %v1387 = vsel %vm828, %v1374, 0.0
    %v1388 = vsel %vm828, %v1377, 0.0
    %v1389 = vadd.f32 %v1387, %v1388
    %v1390 = vsel %vm828, %v1382, 0.0
    %v1391 = vadd.f32 %v1389, %v1390
    %v1392 = vrot.slane %v1391, 4
    %v1393 = vadd.f32 %v1391, %v1392
    %v1394 = vrot.slane %v1393, 2
    %v1395 = vadd.f32 %v1393, %v1394
    %v1396 = vrot.slane %v1395, 1
    %v1397 = vadd.f32 %v1395, %v1396
    %v1398 = vmul.f32 %v1374, %v1374
    %v1399 = vmul.f32 %v1377, %v1377
    %v1400 = vmul.f32 %v1382, %v1382
    %v1401 = vsel %vm828, %v1398, 0.0
    %v1402 = vsel %vm828, %v1399, 0.0
    %v1403 = vadd.f32 %v1401, %v1402
    %v1404 = vsel %vm828, %v1400, 0.0
    %v1405 = vadd.f32 %v1403, %v1404
    %v1406 = vrot.slane %v1405, 4
    %v1407 = vadd.f32 %v1405, %v1406
    %v1408 = vrot.slane %v1407, 2
    %v1409 = vadd.f32 %v1407, %v1408
    %v1410 = vrot.slane %v1409, 1
    %v1411 = vadd.f32 %v1409, %v1410
    %v1412 = vmul.f32 %v1397, 0.041666668
    %v1413 = vmul.f32 %v1411, 0.041666668
    %v1414 = vmul.f32 %v1412, %v1412
    %v1415 = vsub.f32 %v1413, %v1414
    %v1416 = vsub.f32 %v1374, %v1412
    %v1417 = vsub.f32 %v1377, %v1412
    %v1418 = vsub.f32 %v1382, %v1412
    %v1419 = vadd.f32 %v1415, 1e-05
    %v1420 = vrsqrt.pop %v1419
    %v1421 = vmul.f32 %v1416, %v1420
    %v1422 = vmul.f32 %v1417, %v1420
    %v1423 = vmul.f32 %v1418, %v1420
    %v1424 = vmax.f32 %v1421, 0.0
    %v1425 = vmax.f32 %v1422, 0.0
    %v1426 = vmax.f32 %v1423, 0.0
    %v1427 = vld [vmem:[#allocation2 + $0x98] sm:$0xf]
    %v1428 = vld [vmem:[#allocation2 + $0x9c] sm:$0xf]
    %v1429 = vld [vmem:[#allocation2 + $0xa0] sm:$0xf]
    %v1430 = vld [vmem:[#allocation2 + $0xa4] sm:$0xf]
    %v1435 = vunpack.c.l.b16 %v1427
    %v1436 = vunpack.c.l.b16 %v1428
    %v1437 = vunpack.c.l.b16 %v1429
    %v1438 = vunpack.c.l.b16 %v1430
    %v1439 = vpack.c.b16 %v1436, %v1435
    %v1440 = vpack.c.b16 %v1438, %v1437
    %1443 = vmatprep.subr.bf16.mxu0 0
    %1444 = vmatpush1.bf16.msra.mxu0 0
    %1445 = vmatprep.subr.bf16.mxu0 0
    %1446 = vmatpush1.bf16.msra.mxu0 0
    %1447 = vmatprep.subr.bf16.mxu0 0
    %1448 = vmatpush1.bf16.msra.mxu0 0
    %1449 = vmatprep.subr.bf16.mxu0 0
    %1450 = vmatpush1.bf16.msra.mxu0 0
    %1451 = vmatprep.subr.bf16.mxu0 0
    %1452 = vmatpush1.bf16.msra.mxu0 0
    %1453 = vmatprep.subr.bf16.mxu0 0
    %1454 = vmatpush1.bf16.msra.mxu0 0
    %1455 = vmatprep.subr.bf16.mxu0 0
    %1456 = vmatpush1.bf16.msra.mxu0 %v1440
    %1457 = vmatprep.subr.bf16.mxu0 0
    %1458 = vmatpush1.bf16.msra.mxu0 %v1439
    %1459 = vmatprep.subr.bf16.mxu0 0
    %1460 = vmatpush2.bf16.msra.mxu0 0
    %1461 = vmatprep.subr.bf16.mxu0 0
    %1462 = vmatpush2.bf16.msra.mxu0 0
    %1463 = vmatprep.subr.bf16.mxu0 0
    %1464 = vmatpush2.bf16.msra.mxu0 0
    %1465 = vmatprep.subr.bf16.mxu0 0
    %1466 = vmatpush2.bf16.msra.mxu0 0
    %1467 = vmatprep.subr.bf16.mxu0 0
    %1468 = vmatpush2.bf16.msra.mxu0 0
    %1469 = vmatprep.subr.bf16.mxu0 0
    %1470 = vmatpush2.bf16.msra.mxu0 0
    %1471 = vmatprep.subr.bf16.mxu0 0
    %1472 = vmatpush2.bf16.msra.mxu0 0
    %1473 = vmatprep.subr.bf16.mxu0 0
    %1474 = vmatpush2.bf16.msra.mxu0 0
    %1475 = vmatprep.mubr.bf16.mxu0 0
    %1476 = vmatmul.mubr.bf16.gmra.mxu0 %v830
    %v1477 = vpop.f32.mrf.mxu0
    %v1478 = vadd.f32 0.0, %v1477
    %v1479 = vpop.f32.mrf.mxu0
    %v1480 = vpop.f32.mrf.mxu0
    %v1481 = vadd.f32 0.0, %v1480
    %v1482 = vpop.f32.mrf.mxu0
    %1483 = vmatprep.mubr.bf16.mxu0 0
    %1484 = vmatmul.mubr.bf16.gmra.mxu0 %v833
    %v1485 = vpop.f32.mrf.mxu0
    %v1486 = vadd.f32 0.0, %v1485
    %v1487 = vpop.f32.mrf.mxu0
    %v1488 = vpop.f32.mrf.mxu0
    %v1489 = vpop.f32.mrf.mxu0
    %1490 = vdwg.mxu0
    %v1491 = vld [vmem:[#allocation4 + $0x28] sm:$0x1]
    %v1492 = vpack.c.bf16 %v1481, %v1478
    %v1493 = vpack.c.bf16 %v1486, %v1486
    %v1496 = vunpack.c.l.b16 %v782
    %v1497 = vunpack.c.l.b16 %v783
    %v1498 = vpack.c.b16 %v1497, %v1496
    %v1500 = vsel %vm894, %v1498, 0
    %v1503 = vsel %vm901, %v1493, 0
    %1505 = vmatprep.subr.bf16.mxu0 0
    %1506 = vmatpush1.bf16.msra.mxu0 0
    %1507 = vmatprep.subr.bf16.mxu0 0
    %1508 = vmatpush1.bf16.msra.mxu0 0
    %1509 = vmatprep.subr.bf16.mxu0 0
    %1510 = vmatpush1.bf16.msra.mxu0 0
    %1511 = vmatprep.subr.bf16.mxu0 0
    %1512 = vmatpush1.bf16.msra.mxu0 0
    %1513 = vmatprep.subr.bf16.mxu0 0
    %1514 = vmatpush1.bf16.msra.mxu0 0
    %1515 = vmatprep.subr.bf16.mxu0 0
    %1516 = vmatpush1.bf16.msra.mxu0 0
    %1517 = vmatprep.subr.bf16.mxu0 0
    %1518 = vmatpush1.bf16.msra.mxu0 %v1503
    %1519 = vmatprep.subr.bf16.mxu0 0
    %1520 = vmatpush1.bf16.msra.mxu0 %v1492
    %1521 = vmatprep.subr.bf16.mxu0 0
    %1522 = vmatpush2.bf16.msra.mxu0 0
    %1523 = vmatprep.subr.bf16.mxu0 0
    %1524 = vmatpush2.bf16.msra.mxu0 0
    %1525 = vmatprep.subr.bf16.mxu0 0
    %1526 = vmatpush2.bf16.msra.mxu0 0
    %1527 = vmatprep.subr.bf16.mxu0 0
    %1528 = vmatpush2.bf16.msra.mxu0 0
    %1529 = vmatprep.subr.bf16.mxu0 0
    %1530 = vmatpush2.bf16.msra.mxu0 0
    %1531 = vmatprep.subr.bf16.mxu0 0
    %1532 = vmatpush2.bf16.msra.mxu0 0
    %1533 = vmatprep.subr.bf16.mxu0 0
    %1534 = vmatpush2.bf16.msra.mxu0 0
    %1535 = vmatprep.subr.bf16.mxu0 0
    %1536 = vmatpush2.bf16.msra.mxu0 0
    %1537 = vmatprep.mubr.bf16.mxu0 0
    %1538 = vmatmul.mubr.bf16.gmra.mxu0 %v1500
    %v1539 = vpop.f32.mrf.mxu0
    %v1540 = vadd.f32 0.0, %v1539
    %v1541 = vpop.f32.mrf.mxu0
    %v1542 = vpop.f32.mrf.mxu0
    %v1543 = vadd.f32 0.0, %v1542
    %v1544 = vpop.f32.mrf.mxu0
    %1545 = vdwg.mxu0
    %v1546 = vlaneseq
    %v1547 = vshrl.u32 %v1546, 7
    %v1548 = vsub.s32 0, %v1547
    %v1549 = vrot.slane %v1491, %v1548
    %v1550 = vadd.f32 %v1549, %v1540
    %v1551 = vadd.f32 %v1549, %v1543
    %v1554 = vunpack.c.l.b16 %v784
    %v1555 = vunpack.c.l.b16 %v785
    %v1556 = vpack.c.b16 %v1555, %v1554
    %1559 = vrot.lane.b32.xlu0 %v1492, 96
    %v1560 = vpop.permute.xlu0 %1559
    %1561 = vrot.lane.b32.xlu0 %v1493, 96
    %v1562 = vpop.permute.xlu0 %1561
    %v1565 = vsel %vm894, %v1556, 0
    %v1568 = vsel %vm901, %v1562, 0
    %1570 = vmatprep.subr.bf16.mxu0 0
    %1571 = vmatpush1.bf16.msra.mxu0 0
    %1572 = vmatprep.subr.bf16.mxu0 0
    %1573 = vmatpush1.bf16.msra.mxu0 0
    %1574 = vmatprep.subr.bf16.mxu0 0
    %1575 = vmatpush1.bf16.msra.mxu0 0
    %1576 = vmatprep.subr.bf16.mxu0 0
    %1577 = vmatpush1.bf16.msra.mxu0 0
    %1578 = vmatprep.subr.bf16.mxu0 0
    %1579 = vmatpush1.bf16.msra.mxu0 0
    %1580 = vmatprep.subr.bf16.mxu0 0
    %1581 = vmatpush1.bf16.msra.mxu0 0
    %1582 = vmatprep.subr.bf16.mxu0 0
    %1583 = vmatpush1.bf16.msra.mxu0 %v1568
    %1584 = vmatprep.subr.bf16.mxu0 0
    %1585 = vmatpush1.bf16.msra.mxu0 %v1560
    %1586 = vmatprep.subr.bf16.mxu0 0
    %1587 = vmatpush2.bf16.msra.mxu0 0
    %1588 = vmatprep.subr.bf16.mxu0 0
    %1589 = vmatpush2.bf16.msra.mxu0 0
    %1590 = vmatprep.subr.bf16.mxu0 0
    %1591 = vmatpush2.bf16.msra.mxu0 0
    %1592 = vmatprep.subr.bf16.mxu0 0
    %1593 = vmatpush2.bf16.msra.mxu0 0
    %1594 = vmatprep.subr.bf16.mxu0 0
    %1595 = vmatpush2.bf16.msra.mxu0 0
    %1596 = vmatprep.subr.bf16.mxu0 0
    %1597 = vmatpush2.bf16.msra.mxu0 0
    %1598 = vmatprep.subr.bf16.mxu0 0
    %1599 = vmatpush2.bf16.msra.mxu0 0
    %1600 = vmatprep.subr.bf16.mxu0 0
    %1601 = vmatpush2.bf16.msra.mxu0 0
    %1602 = vmatprep.mubr.bf16.mxu0 0
    %1603 = vmatmul.mubr.bf16.gmra.mxu0 %v1565
    %v1604 = vpop.f32.mrf.mxu0
    %v1605 = vadd.f32 0.0, %v1604
    %v1606 = vpop.f32.mrf.mxu0
    %v1607 = vpop.f32.mrf.mxu0
    %v1608 = vadd.f32 0.0, %v1607
    %v1609 = vpop.f32.mrf.mxu0
    %1610 = vdwg.mxu0
    %v1611 = vadd.f32 %v1550, %v1605
    %v1612 = vadd.f32 %v1551, %v1608
    %v1615 = vunpack.c.l.b16 %v786
    %v1616 = vunpack.c.l.b16 %v787
    %v1617 = vpack.c.b16 %v1616, %v1615
    %1618 = vrot.lane.b32.xlu0 %v1492, 64
    %v1619 = vpop.permute.xlu0 %1618
    %1620 = vrot.lane.b32.xlu0 %v1493, 64
    %v1621 = vpop.permute.xlu0 %1620
    %v1624 = vsel %vm894, %v1617, 0
    %v1627 = vsel %vm901, %v1621, 0
    %1629 = vmatprep.subr.bf16.mxu0 0
    %1630 = vmatpush1.bf16.msra.mxu0 0
    %1631 = vmatprep.subr.bf16.mxu0 0
    %1632 = vmatpush1.bf16.msra.mxu0 0
    %1633 = vmatprep.subr.bf16.mxu0 0
    %1634 = vmatpush1.bf16.msra.mxu0 0
    %1635 = vmatprep.subr.bf16.mxu0 0
    %1636 = vmatpush1.bf16.msra.mxu0 0
    %1637 = vmatprep.subr.bf16.mxu0 0
    %1638 = vmatpush1.bf16.msra.mxu0 0
    %1639 = vmatprep.subr.bf16.mxu0 0
    %1640 = vmatpush1.bf16.msra.mxu0 0
    %1641 = vmatprep.subr.bf16.mxu0 0
    %1642 = vmatpush1.bf16.msra.mxu0 %v1627
    %1643 = vmatprep.subr.bf16.mxu0 0
    %1644 = vmatpush1.bf16.msra.mxu0 %v1619
    %1645 = vmatprep.subr.bf16.mxu0 0
    %1646 = vmatpush2.bf16.msra.mxu0 0
    %1647 = vmatprep.subr.bf16.mxu0 0
    %1648 = vmatpush2.bf16.msra.mxu0 0
    %1649 = vmatprep.subr.bf16.mxu0 0
    %1650 = vmatpush2.bf16.msra.mxu0 0
    %1651 = vmatprep.subr.bf16.mxu0 0
    %1652 = vmatpush2.bf16.msra.mxu0 0
    %1653 = vmatprep.subr.bf16.mxu0 0
    %1654 = vmatpush2.bf16.msra.mxu0 0
    %1655 = vmatprep.subr.bf16.mxu0 0
    %1656 = vmatpush2.bf16.msra.mxu0 0
    %1657 = vmatprep.subr.bf16.mxu0 0
    %1658 = vmatpush2.bf16.msra.mxu0 0
    %1659 = vmatprep.subr.bf16.mxu0 0
    %1660 = vmatpush2.bf16.msra.mxu0 0
    %1661 = vmatprep.mubr.bf16.mxu0 0
    %1662 = vmatmul.mubr.bf16.gmra.mxu0 %v1624
    %v1663 = vpop.f32.mrf.mxu0
    %v1664 = vadd.f32 0.0, %v1663
    %v1665 = vpop.f32.mrf.mxu0
    %v1666 = vpop.f32.mrf.mxu0
    %v1667 = vadd.f32 0.0, %v1666
    %v1668 = vpop.f32.mrf.mxu0
    %1669 = vdwg.mxu0
    %v1670 = vadd.f32 %v1611, %v1664
    %v1671 = vadd.f32 %v1612, %v1667
    %v1674 = vunpack.c.l.b16 %v788
    %v1675 = vunpack.c.l.b16 %v789
    %v1676 = vpack.c.b16 %v1675, %v1674
    %1677 = vrot.lane.b32.xlu0 %v1492, 32
    %v1678 = vpop.permute.xlu0 %1677
    %1679 = vrot.lane.b32.xlu0 %v1493, 32
    %v1680 = vpop.permute.xlu0 %1679
    %v1683 = vsel %vm894, %v1676, 0
    %v1686 = vsel %vm901, %v1680, 0
    %1688 = vmatprep.subr.bf16.mxu0 0
    %1689 = vmatpush1.bf16.msra.mxu0 0
    %1690 = vmatprep.subr.bf16.mxu0 0
    %1691 = vmatpush1.bf16.msra.mxu0 0
    %1692 = vmatprep.subr.bf16.mxu0 0
    %1693 = vmatpush1.bf16.msra.mxu0 0
    %1694 = vmatprep.subr.bf16.mxu0 0
    %1695 = vmatpush1.bf16.msra.mxu0 0
    %1696 = vmatprep.subr.bf16.mxu0 0
    %1697 = vmatpush1.bf16.msra.mxu0 0
    %1698 = vmatprep.subr.bf16.mxu0 0
    %1699 = vmatpush1.bf16.msra.mxu0 0
    %1700 = vmatprep.subr.bf16.mxu0 0
    %1701 = vmatpush1.bf16.msra.mxu0 %v1686
    %1702 = vmatprep.subr.bf16.mxu0 0
    %1703 = vmatpush1.bf16.msra.mxu0 %v1678
    %1704 = vmatprep.subr.bf16.mxu0 0
    %1705 = vmatpush2.bf16.msra.mxu0 0
    %1706 = vmatprep.subr.bf16.mxu0 0
    %1707 = vmatpush2.bf16.msra.mxu0 0
    %1708 = vmatprep.subr.bf16.mxu0 0
    %1709 = vmatpush2.bf16.msra.mxu0 0
    %1710 = vmatprep.subr.bf16.mxu0 0
    %1711 = vmatpush2.bf16.msra.mxu0 0
    %1712 = vmatprep.subr.bf16.mxu0 0
    %1713 = vmatpush2.bf16.msra.mxu0 0
    %1714 = vmatprep.subr.bf16.mxu0 0
    %1715 = vmatpush2.bf16.msra.mxu0 0
    %1716 = vmatprep.subr.bf16.mxu0 0
    %1717 = vmatpush2.bf16.msra.mxu0 0
    %1718 = vmatprep.subr.bf16.mxu0 0
    %1719 = vmatpush2.bf16.msra.mxu0 0
    %1720 = vmatprep.mubr.bf16.mxu0 0
    %1721 = vmatmul.mubr.bf16.gmra.mxu0 %v1683
    %v1722 = vpop.f32.mrf.mxu0
    %v1723 = vadd.f32 0.0, %v1722
    %v1724 = vpop.f32.mrf.mxu0
    %v1725 = vpop.f32.mrf.mxu0
    %v1726 = vadd.f32 0.0, %v1725
    %v1727 = vpop.f32.mrf.mxu0
    %1728 = vdwg.mxu0
    %v1729 = vadd.f32 %v1670, %v1723
    %v1730 = vadd.f32 %v1671, %v1726
    %v1731 = vld [vmem:[#allocation2 + $0xa8] sm:$0xf]
    %v1732 = vld [vmem:[#allocation2 + $0xac] sm:$0xf]
    %v1733 = vld [vmem:[#allocation2 + $0xb0] sm:$0xf]
    %v1734 = vld [vmem:[#allocation2 + $0xb4] sm:$0xf]
    %v1739 = vunpack.c.l.b16 %v1731
    %v1740 = vunpack.c.l.b16 %v1732
    %v1741 = vunpack.c.l.b16 %v1733
    %v1742 = vunpack.c.l.b16 %v1734
    %v1743 = vpack.c.b16 %v1740, %v1739
    %v1744 = vpack.c.b16 %v1742, %v1741
    %1747 = vmatprep.subr.bf16.mxu0 0
    %1748 = vmatpush1.bf16.msra.mxu0 0
    %1749 = vmatprep.subr.bf16.mxu0 0
    %1750 = vmatpush1.bf16.msra.mxu0 0
    %1751 = vmatprep.subr.bf16.mxu0 0
    %1752 = vmatpush1.bf16.msra.mxu0 0
    %1753 = vmatprep.subr.bf16.mxu0 0
    %1754 = vmatpush1.bf16.msra.mxu0 0
    %1755 = vmatprep.subr.bf16.mxu0 0
    %1756 = vmatpush1.bf16.msra.mxu0 0
    %1757 = vmatprep.subr.bf16.mxu0 0
    %1758 = vmatpush1.bf16.msra.mxu0 0
    %1759 = vmatprep.subr.bf16.mxu0 0
    %1760 = vmatpush1.bf16.msra.mxu0 %v1744
    %1761 = vmatprep.subr.bf16.mxu0 0
    %1762 = vmatpush1.bf16.msra.mxu0 %v1743
    %1763 = vmatprep.subr.bf16.mxu0 0
    %1764 = vmatpush2.bf16.msra.mxu0 0
    %1765 = vmatprep.subr.bf16.mxu0 0
    %1766 = vmatpush2.bf16.msra.mxu0 0
    %1767 = vmatprep.subr.bf16.mxu0 0
    %1768 = vmatpush2.bf16.msra.mxu0 0
    %1769 = vmatprep.subr.bf16.mxu0 0
    %1770 = vmatpush2.bf16.msra.mxu0 0
    %1771 = vmatprep.subr.bf16.mxu0 0
    %1772 = vmatpush2.bf16.msra.mxu0 0
    %1773 = vmatprep.subr.bf16.mxu0 0
    %1774 = vmatpush2.bf16.msra.mxu0 0
    %1775 = vmatprep.subr.bf16.mxu0 0
    %1776 = vmatpush2.bf16.msra.mxu0 0
    %1777 = vmatprep.subr.bf16.mxu0 0
    %1778 = vmatpush2.bf16.msra.mxu0 0
    %1779 = vmatprep.mubr.bf16.mxu0 0
    %1780 = vmatmul.mubr.bf16.gmra.mxu0 %v830
    %v1781 = vpop.f32.mrf.mxu0
    %v1782 = vadd.f32 0.0, %v1781
    %v1783 = vpop.f32.mrf.mxu0
    %v1784 = vpop.f32.mrf.mxu0
    %v1785 = vadd.f32 0.0, %v1784
    %v1786 = vpop.f32.mrf.mxu0
    %1787 = vmatprep.mubr.bf16.mxu0 0
    %1788 = vmatmul.mubr.bf16.gmra.mxu0 %v833
    %v1789 = vpop.f32.mrf.mxu0
    %v1790 = vadd.f32 0.0, %v1789
    %v1791 = vpop.f32.mrf.mxu0
    %v1792 = vpop.f32.mrf.mxu0
    %v1793 = vpop.f32.mrf.mxu0
    %1794 = vdwg.mxu0
    %v1795 = vld [vmem:[#allocation4 + $0x30] sm:$0x1]
    %v1796 = vpack.c.bf16 %v1785, %v1782
    %v1797 = vpack.c.bf16 %v1790, %v1790
    %v1800 = vunpack.c.l.b16 %v790
    %v1801 = vunpack.c.l.b16 %v791
    %v1802 = vpack.c.b16 %v1801, %v1800
    %v1804 = vsel %vm894, %v1802, 0
    %v1807 = vsel %vm901, %v1797, 0
    %1809 = vmatprep.subr.bf16.mxu0 0
    %1810 = vmatpush1.bf16.msra.mxu0 0
    %1811 = vmatprep.subr.bf16.mxu0 0
    %1812 = vmatpush1.bf16.msra.mxu0 0
    %1813 = vmatprep.subr.bf16.mxu0 0
    %1814 = vmatpush1.bf16.msra.mxu0 0
    %1815 = vmatprep.subr.bf16.mxu0 0
    %1816 = vmatpush1.bf16.msra.mxu0 0
    %1817 = vmatprep.subr.bf16.mxu0 0
    %1818 = vmatpush1.bf16.msra.mxu0 0
    %1819 = vmatprep.subr.bf16.mxu0 0
    %1820 = vmatpush1.bf16.msra.mxu0 0
    %1821 = vmatprep.subr.bf16.mxu0 0
    %1822 = vmatpush1.bf16.msra.mxu0 %v1807
    %1823 = vmatprep.subr.bf16.mxu0 0
    %1824 = vmatpush1.bf16.msra.mxu0 %v1796
    %1825 = vmatprep.subr.bf16.mxu0 0
    %1826 = vmatpush2.bf16.msra.mxu0 0
    %1827 = vmatprep.subr.bf16.mxu0 0
    %1828 = vmatpush2.bf16.msra.mxu0 0
    %1829 = vmatprep.subr.bf16.mxu0 0
    %1830 = vmatpush2.bf16.msra.mxu0 0
    %1831 = vmatprep.subr.bf16.mxu0 0
    %1832 = vmatpush2.bf16.msra.mxu0 0
    %1833 = vmatprep.subr.bf16.mxu0 0
    %1834 = vmatpush2.bf16.msra.mxu0 0
    %1835 = vmatprep.subr.bf16.mxu0 0
    %1836 = vmatpush2.bf16.msra.mxu0 0
    %1837 = vmatprep.subr.bf16.mxu0 0
    %1838 = vmatpush2.bf16.msra.mxu0 0
    %1839 = vmatprep.subr.bf16.mxu0 0
    %1840 = vmatpush2.bf16.msra.mxu0 0
    %1841 = vmatprep.mubr.bf16.mxu0 0
    %1842 = vmatmul.mubr.bf16.gmra.mxu0 %v1804
    %v1843 = vpop.f32.mrf.mxu0
    %v1844 = vadd.f32 0.0, %v1843
    %v1845 = vpop.f32.mrf.mxu0
    %v1846 = vpop.f32.mrf.mxu0
    %v1847 = vadd.f32 0.0, %v1846
    %v1848 = vpop.f32.mrf.mxu0
    %1849 = vdwg.mxu0
    %v1850 = vlaneseq
    %v1851 = vshrl.u32 %v1850, 7
    %v1852 = vsub.s32 0, %v1851
    %v1853 = vrot.slane %v1795, %v1852
    %v1854 = vadd.f32 %v1853, %v1844
    %v1855 = vadd.f32 %v1853, %v1847
    %v1858 = vunpack.c.l.b16 %v792
    %v1859 = vunpack.c.l.b16 %v793
    %v1860 = vpack.c.b16 %v1859, %v1858
    %1863 = vrot.lane.b32.xlu0 %v1796, 96
    %v1864 = vpop.permute.xlu0 %1863
    %1865 = vrot.lane.b32.xlu0 %v1797, 96
    %v1866 = vpop.permute.xlu0 %1865
    %v1869 = vsel %vm894, %v1860, 0
    %v1872 = vsel %vm901, %v1866, 0
    %1874 = vmatprep.subr.bf16.mxu0 0
    %1875 = vmatpush1.bf16.msra.mxu0 0
    %1876 = vmatprep.subr.bf16.mxu0 0
    %1877 = vmatpush1.bf16.msra.mxu0 0
    %1878 = vmatprep.subr.bf16.mxu0 0
    %1879 = vmatpush1.bf16.msra.mxu0 0
    %1880 = vmatprep.subr.bf16.mxu0 0
    %1881 = vmatpush1.bf16.msra.mxu0 0
    %1882 = vmatprep.subr.bf16.mxu0 0
    %1883 = vmatpush1.bf16.msra.mxu0 0
    %1884 = vmatprep.subr.bf16.mxu0 0
    %1885 = vmatpush1.bf16.msra.mxu0 0
    %1886 = vmatprep.subr.bf16.mxu0 0
    %1887 = vmatpush1.bf16.msra.mxu0 %v1872
    %1888 = vmatprep.subr.bf16.mxu0 0
    %1889 = vmatpush1.bf16.msra.mxu0 %v1864
    %1890 = vmatprep.subr.bf16.mxu0 0
    %1891 = vmatpush2.bf16.msra.mxu0 0
    %1892 = vmatprep.subr.bf16.mxu0 0
    %1893 = vmatpush2.bf16.msra.mxu0 0
    %1894 = vmatprep.subr.bf16.mxu0 0
    %1895 = vmatpush2.bf16.msra.mxu0 0
    %1896 = vmatprep.subr.bf16.mxu0 0
    %1897 = vmatpush2.bf16.msra.mxu0 0
    %1898 = vmatprep.subr.bf16.mxu0 0
    %1899 = vmatpush2.bf16.msra.mxu0 0
    %1900 = vmatprep.subr.bf16.mxu0 0
    %1901 = vmatpush2.bf16.msra.mxu0 0
    %1902 = vmatprep.subr.bf16.mxu0 0
    %1903 = vmatpush2.bf16.msra.mxu0 0
    %1904 = vmatprep.subr.bf16.mxu0 0
    %1905 = vmatpush2.bf16.msra.mxu0 0
    %1906 = vmatprep.mubr.bf16.mxu0 0
    %1907 = vmatmul.mubr.bf16.gmra.mxu0 %v1869
    %v1908 = vpop.f32.mrf.mxu0
    %v1909 = vadd.f32 0.0, %v1908
    %v1910 = vpop.f32.mrf.mxu0
    %v1911 = vpop.f32.mrf.mxu0
    %v1912 = vadd.f32 0.0, %v1911
    %v1913 = vpop.f32.mrf.mxu0
    %1914 = vdwg.mxu0
    %v1915 = vadd.f32 %v1854, %v1909
    %v1916 = vadd.f32 %v1855, %v1912
    %v1919 = vunpack.c.l.b16 %v794
    %v1920 = vunpack.c.l.b16 %v795
    %v1921 = vpack.c.b16 %v1920, %v1919
    %1922 = vrot.lane.b32.xlu0 %v1796, 64
    %v1923 = vpop.permute.xlu0 %1922
    %1924 = vrot.lane.b32.xlu0 %v1797, 64
    %v1925 = vpop.permute.xlu0 %1924
    %v1928 = vsel %vm894, %v1921, 0
    %v1931 = vsel %vm901, %v1925, 0
    %1933 = vmatprep.subr.bf16.mxu0 0
    %1934 = vmatpush1.bf16.msra.mxu0 0
    %1935 = vmatprep.subr.bf16.mxu0 0
    %1936 = vmatpush1.bf16.msra.mxu0 0
    %1937 = vmatprep.subr.bf16.mxu0 0
    %1938 = vmatpush1.bf16.msra.mxu0 0
    %1939 = vmatprep.subr.bf16.mxu0 0
    %1940 = vmatpush1.bf16.msra.mxu0 0
    %1941 = vmatprep.subr.bf16.mxu0 0
    %1942 = vmatpush1.bf16.msra.mxu0 0
    %1943 = vmatprep.subr.bf16.mxu0 0
    %1944 = vmatpush1.bf16.msra.mxu0 0
    %1945 = vmatprep.subr.bf16.mxu0 0
    %1946 = vmatpush1.bf16.msra.mxu0 %v1931
    %1947 = vmatprep.subr.bf16.mxu0 0
    %1948 = vmatpush1.bf16.msra.mxu0 %v1923
    %1949 = vmatprep.subr.bf16.mxu0 0
    %1950 = vmatpush2.bf16.msra.mxu0 0
    %1951 = vmatprep.subr.bf16.mxu0 0
    %1952 = vmatpush2.bf16.msra.mxu0 0
    %1953 = vmatprep.subr.bf16.mxu0 0
    %1954 = vmatpush2.bf16.msra.mxu0 0
    %1955 = vmatprep.subr.bf16.mxu0 0
    %1956 = vmatpush2.bf16.msra.mxu0 0
    %1957 = vmatprep.subr.bf16.mxu0 0
    %1958 = vmatpush2.bf16.msra.mxu0 0
    %1959 = vmatprep.subr.bf16.mxu0 0
    %1960 = vmatpush2.bf16.msra.mxu0 0
    %1961 = vmatprep.subr.bf16.mxu0 0
    %1962 = vmatpush2.bf16.msra.mxu0 0
    %1963 = vmatprep.subr.bf16.mxu0 0
    %1964 = vmatpush2.bf16.msra.mxu0 0
    %1965 = vmatprep.mubr.bf16.mxu0 0
    %1966 = vmatmul.mubr.bf16.gmra.mxu0 %v1928
    %v1967 = vpop.f32.mrf.mxu0
    %v1968 = vadd.f32 0.0, %v1967
    %v1969 = vpop.f32.mrf.mxu0
    %v1970 = vpop.f32.mrf.mxu0
    %v1971 = vadd.f32 0.0, %v1970
    %v1972 = vpop.f32.mrf.mxu0
    %1973 = vdwg.mxu0
    %v1974 = vadd.f32 %v1915, %v1968
    %v1975 = vadd.f32 %v1916, %v1971
    %v1978 = vunpack.c.l.b16 %v796
    %v1979 = vunpack.c.l.b16 %v797
    %v1980 = vpack.c.b16 %v1979, %v1978
    %1981 = vrot.lane.b32.xlu0 %v1796, 32
    %v1982 = vpop.permute.xlu0 %1981
    %1983 = vrot.lane.b32.xlu0 %v1797, 32
    %v1984 = vpop.permute.xlu0 %1983
    %v1987 = vsel %vm894, %v1980, 0
    %v1990 = vsel %vm901, %v1984, 0
    %1992 = vmatprep.subr.bf16.mxu0 0
    %1993 = vmatpush1.bf16.msra.mxu0 0
    %1994 = vmatprep.subr.bf16.mxu0 0
    %1995 = vmatpush1.bf16.msra.mxu0 0
    %1996 = vmatprep.subr.bf16.mxu0 0
    %1997 = vmatpush1.bf16.msra.mxu0 0
    %1998 = vmatprep.subr.bf16.mxu0 0
    %1999 = vmatpush1.bf16.msra.mxu0 0
    %2000 = vmatprep.subr.bf16.mxu0 0
    %2001 = vmatpush1.bf16.msra.mxu0 0
    %2002 = vmatprep.subr.bf16.mxu0 0
    %2003 = vmatpush1.bf16.msra.mxu0 0
    %2004 = vmatprep.subr.bf16.mxu0 0
    %2005 = vmatpush1.bf16.msra.mxu0 %v1990
    %2006 = vmatprep.subr.bf16.mxu0 0
    %2007 = vmatpush1.bf16.msra.mxu0 %v1982
    %2008 = vmatprep.subr.bf16.mxu0 0
    %2009 = vmatpush2.bf16.msra.mxu0 0
    %2010 = vmatprep.subr.bf16.mxu0 0
    %2011 = vmatpush2.bf16.msra.mxu0 0
    %2012 = vmatprep.subr.bf16.mxu0 0
    %2013 = vmatpush2.bf16.msra.mxu0 0
    %2014 = vmatprep.subr.bf16.mxu0 0
    %2015 = vmatpush2.bf16.msra.mxu0 0
    %2016 = vmatprep.subr.bf16.mxu0 0
    %2017 = vmatpush2.bf16.msra.mxu0 0
    %2018 = vmatprep.subr.bf16.mxu0 0
    %2019 = vmatpush2.bf16.msra.mxu0 0
    %2020 = vmatprep.subr.bf16.mxu0 0
    %2021 = vmatpush2.bf16.msra.mxu0 0
    %2022 = vmatprep.subr.bf16.mxu0 0
    %2023 = vmatpush2.bf16.msra.mxu0 0
    %2024 = vmatprep.mubr.bf16.mxu0 0
    %2025 = vmatmul.mubr.bf16.gmra.mxu0 %v1987
    %v2026 = vpop.f32.mrf.mxu0
    %v2027 = vadd.f32 0.0, %v2026
    %v2028 = vpop.f32.mrf.mxu0
    %v2029 = vpop.f32.mrf.mxu0
    %v2030 = vadd.f32 0.0, %v2029
    %v2031 = vpop.f32.mrf.mxu0
    %2032 = vdwg.mxu0
    %v2033 = vadd.f32 %v1974, %v2027
    %v2034 = vadd.f32 %v1975, %v2030
    %v2035 = vld [vmem:[#allocation2 + $0xb8] sm:$0xf]
    %v2036 = vld [vmem:[#allocation2 + $0xbc] sm:$0xf]
    %v2037 = vld [vmem:[#allocation2 + $0xc0] sm:$0xf]
    %v2038 = vld [vmem:[#allocation2 + $0xc4] sm:$0xf]
    %v2039 = vld [vmem:[#allocation2 + $0xc8] sm:$0xf]
    %v2040 = vld [vmem:[#allocation2 + $0xcc] sm:$0xf]
    %v2041 = vld [vmem:[#allocation2 + $0xd0] sm:$0xf]
    %v2042 = vld [vmem:[#allocation2 + $0xd4] sm:$0xf]
    %v2043 = vld [vmem:[#allocation4 + $0x38] sm:$0x1]
    %v2044 = vpack.c.bf16 %v1730, %v1729
    %v2045 = vpack.c.bf16 %v624, %v623
    %v2050 = vunpack.c.l.b16 %v2039
    %v2051 = vunpack.c.l.b16 %v2040
    %v2052 = vunpack.c.l.b16 %v2041
    %v2053 = vunpack.c.l.b16 %v2042
    %v2054 = vpack.c.b16 %v2051, %v2050
    %v2055 = vpack.c.b16 %v2053, %v2052
    %v2059 = vsel %vm828, %v2045, 0
    %2061 = vmatprep.subr.bf16.mxu0 0
    %2062 = vmatpush1.bf16.msra.mxu0 0
    %2063 = vmatprep.subr.bf16.mxu0 0
    %2064 = vmatpush1.bf16.msra.mxu0 0
    %2065 = vmatprep.subr.bf16.mxu0 0
    %2066 = vmatpush1.bf16.msra.mxu0 0
    %2067 = vmatprep.subr.bf16.mxu0 0
    %2068 = vmatpush1.bf16.msra.mxu0 0
    %2069 = vmatprep.subr.bf16.mxu0 0
    %2070 = vmatpush1.bf16.msra.mxu0 0
    %2071 = vmatprep.subr.bf16.mxu0 0
    %2072 = vmatpush1.bf16.msra.mxu0 0
    %2073 = vmatprep.subr.bf16.mxu0 0
    %2074 = vmatpush1.bf16.msra.mxu0 %v2055
    %2075 = vmatprep.subr.bf16.mxu0 0
    %2076 = vmatpush1.bf16.msra.mxu0 %v2054
    %2077 = vmatprep.subr.bf16.mxu0 0
    %2078 = vmatpush2.bf16.msra.mxu0 0
    %2079 = vmatprep.subr.bf16.mxu0 0
    %2080 = vmatpush2.bf16.msra.mxu0 0
    %2081 = vmatprep.subr.bf16.mxu0 0
    %2082 = vmatpush2.bf16.msra.mxu0 0
    %2083 = vmatprep.subr.bf16.mxu0 0
    %2084 = vmatpush2.bf16.msra.mxu0 0
    %2085 = vmatprep.subr.bf16.mxu0 0
    %2086 = vmatpush2.bf16.msra.mxu0 0
    %2087 = vmatprep.subr.bf16.mxu0 0
    %2088 = vmatpush2.bf16.msra.mxu0 0
    %2089 = vmatprep.subr.bf16.mxu0 0
    %2090 = vmatpush2.bf16.msra.mxu0 0
    %2091 = vmatprep.subr.bf16.mxu0 0
    %2092 = vmatpush2.bf16.msra.mxu0 0
    %2093 = vmatprep.mubr.bf16.mxu0 0
    %2094 = vmatmul.mubr.bf16.gmra.mxu0 %v2059
    %v2095 = vpop.f32.mrf.mxu0
    %v2096 = vadd.f32 0.0, %v2095
    %v2097 = vpop.f32.mrf.mxu0
    %v2098 = vpop.f32.mrf.mxu0
    %v2099 = vadd.f32 0.0, %v2098
    %v2100 = vpop.f32.mrf.mxu0
    %2101 = vdwg.mxu0
    %v2106 = vunpack.c.l.b16 %v2035
    %v2107 = vunpack.c.l.b16 %v2036
    %v2108 = vunpack.c.l.b16 %v2037
    %v2109 = vunpack.c.l.b16 %v2038
    %v2110 = vpack.c.b16 %v2107, %v2106
    %v2111 = vpack.c.b16 %v2109, %v2108
    %v2115 = vsel %vm828, %v2044, 0
    %2117 = vmatprep.subr.bf16.mxu0 0
    %2118 = vmatpush1.bf16.msra.mxu0 0
    %2119 = vmatprep.subr.bf16.mxu0 0
    %2120 = vmatpush1.bf16.msra.mxu0 0
    %2121 = vmatprep.subr.bf16.mxu0 0
    %2122 = vmatpush1.bf16.msra.mxu0 0
    %2123 = vmatprep.subr.bf16.mxu0 0
    %2124 = vmatpush1.bf16.msra.mxu0 0
    %2125 = vmatprep.subr.bf16.mxu0 0
    %2126 = vmatpush1.bf16.msra.mxu0 0
    %2127 = vmatprep.subr.bf16.mxu0 0
    %2128 = vmatpush1.bf16.msra.mxu0 0
    %2129 = vmatprep.subr.bf16.mxu0 0
    %2130 = vmatpush1.bf16.msra.mxu0 %v2111
    %2131 = vmatprep.subr.bf16.mxu0 0
    %2132 = vmatpush1.bf16.msra.mxu0 %v2110
    %2133 = vmatprep.subr.bf16.mxu0 0
    %2134 = vmatpush2.bf16.msra.mxu0 0
    %2135 = vmatprep.subr.bf16.mxu0 0
    %2136 = vmatpush2.bf16.msra.mxu0 0
    %2137 = vmatprep.subr.bf16.mxu0 0
    %2138 = vmatpush2.bf16.msra.mxu0 0
    %2139 = vmatprep.subr.bf16.mxu0 0
    %2140 = vmatpush2.bf16.msra.mxu0 0
    %2141 = vmatprep.subr.bf16.mxu0 0
    %2142 = vmatpush2.bf16.msra.mxu0 0
    %2143 = vmatprep.subr.bf16.mxu0 0
    %2144 = vmatpush2.bf16.msra.mxu0 0
    %2145 = vmatprep.subr.bf16.mxu0 0
    %2146 = vmatpush2.bf16.msra.mxu0 0
    %2147 = vmatprep.subr.bf16.mxu0 0
    %2148 = vmatpush2.bf16.msra.mxu0 0
    %2149 = vmatprep.mubr.bf16.mxu0 0
    %2150 = vmatmul.mubr.bf16.gmra.mxu0 %v2115
    %v2151 = vpop.f32.mrf.mxu0
    %v2152 = vadd.f32 %v2096, %v2151
    %v2153 = vpop.f32.mrf.mxu0
    %v2154 = vpop.f32.mrf.mxu0
    %v2155 = vadd.f32 %v2099, %v2154
    %v2156 = vpop.f32.mrf.mxu0
    %2157 = vdwg.mxu0
    %v2158 = vpack.c.bf16 %v2155, %v2152
    %v2162 = vunpack.c.l.b16 %v798
    %v2163 = vunpack.c.l.b16 %v799
    %v2164 = vunpack.c.l.b16 %v800
    %v2165 = vpack.c.b16 %v2163, %v2162
    %v2166 = vpack.c.b16 %v2164, %v2164
    %vm2167 = vcmask 80896
    %v2169 = vsel %vm2167, %v2165, 0
    %v2172 = vsel %vm2167, %v2166, 0
    %vm2174 = vcmask 1044480
    %v2176 = vsel %vm2174, %v2158, 0
    %2178 = vmatprep.subr.bf16.mxu0 0
    %2179 = vmatpush1.bf16.msra.mxu0 0
    %2180 = vmatprep.subr.bf16.mxu0 0
    %2181 = vmatpush1.bf16.msra.mxu0 0
    %2182 = vmatprep.subr.bf16.mxu0 0
    %2183 = vmatpush1.bf16.msra.mxu0 0
    %2184 = vmatprep.subr.bf16.mxu0 0
    %2185 = vmatpush1.bf16.msra.mxu0 0
    %2186 = vmatprep.subr.bf16.mxu0 0
    %2187 = vmatpush1.bf16.msra.mxu0 0
    %2188 = vmatprep.subr.bf16.mxu0 0
    %2189 = vmatpush1.bf16.msra.mxu0 0
    %2190 = vmatprep.subr.bf16.mxu0 0
    %2191 = vmatpush1.bf16.msra.mxu0 0
    %2192 = vmatprep.subr.bf16.mxu0 0
    %2193 = vmatpush1.bf16.msra.mxu0 %v2176
    %2194 = vmatprep.subr.bf16.mxu0 0
    %2195 = vmatpush2.bf16.msra.mxu0 0
    %2196 = vmatprep.subr.bf16.mxu0 0
    %2197 = vmatpush2.bf16.msra.mxu0 0
    %2198 = vmatprep.subr.bf16.mxu0 0
    %2199 = vmatpush2.bf16.msra.mxu0 0
    %2200 = vmatprep.subr.bf16.mxu0 0
    %2201 = vmatpush2.bf16.msra.mxu0 0
    %2202 = vmatprep.subr.bf16.mxu0 0
    %2203 = vmatpush2.bf16.msra.mxu0 0
    %2204 = vmatprep.subr.bf16.mxu0 0
    %2205 = vmatpush2.bf16.msra.mxu0 0
    %2206 = vmatprep.subr.bf16.mxu0 0
    %2207 = vmatpush2.bf16.msra.mxu0 0
    %2208 = vmatprep.subr.bf16.mxu0 0
    %2209 = vmatpush2.bf16.msra.mxu0 0
    %2210 = vmatprep.mubr.bf16.mxu0 0
    %2211 = vmatmul.mubr.bf16.gmra.mxu0 %v2169
    %v2212 = vpop.f32.mrf.mxu0
    %v2213 = vadd.f32 0.0, %v2212
    %v2214 = vpop.f32.mrf.mxu0
    %v2215 = vpop.f32.mrf.mxu0
    %v2216 = vadd.f32 0.0, %v2215
    %v2217 = vpop.f32.mrf.mxu0
    %2218 = vmatprep.mubr.bf16.mxu0 0
    %2219 = vmatmul.mubr.bf16.gmra.mxu0 %v2172
    %v2220 = vpop.f32.mrf.mxu0
    %v2221 = vadd.f32 0.0, %v2220
    %v2222 = vpop.f32.mrf.mxu0
    %v2223 = vpop.f32.mrf.mxu0
    %v2224 = vpop.f32.mrf.mxu0
    %2225 = vdwg.mxu0
    %v2226 = vlaneseq
    %v2227 = vshrl.u32 %v2226, 7
    %v2228 = vsub.s32 0, %v2227
    %v2229 = vrot.slane %v2043, %v2228
    %v2230 = vadd.f32 %v2229, %v2213
    %v2231 = vadd.f32 %v2229, %v2216
    %v2232 = vadd.f32 %v2229, %v2221
    %v2236 = vunpack.c.l.b16 %v804
    %v2237 = vunpack.c.l.b16 %v805
    %v2238 = vunpack.c.l.b16 %v806
    %v2239 = vpack.c.b16 %v2237, %v2236
    %v2240 = vpack.c.b16 %v2238, %v2238
    %2242 = vrot.lane.b32.xlu0 %v2158, 96
    %v2243 = vpop.permute.xlu0 %2242
    %v2245 = vsel %vm2167, %v2239, 0
    %v2248 = vsel %vm2167, %v2240, 0
    %v2251 = vsel %vm2174, %v2243, 0
    %2253 = vmatprep.subr.bf16.mxu0 0
    %2254 = vmatpush1.bf16.msra.mxu0 0
    %2255 = vmatprep.subr.bf16.mxu0 0
    %2256 = vmatpush1.bf16.msra.mxu0 0
    %2257 = vmatprep.subr.bf16.mxu0 0
    %2258 = vmatpush1.bf16.msra.mxu0 0
    %2259 = vmatprep.subr.bf16.mxu0 0
    %2260 = vmatpush1.bf16.msra.mxu0 0
    %2261 = vmatprep.subr.bf16.mxu0 0
    %2262 = vmatpush1.bf16.msra.mxu0 0
    %2263 = vmatprep.subr.bf16.mxu0 0
    %2264 = vmatpush1.bf16.msra.mxu0 0
    %2265 = vmatprep.subr.bf16.mxu0 0
    %2266 = vmatpush1.bf16.msra.mxu0 0
    %2267 = vmatprep.subr.bf16.mxu0 0
    %2268 = vmatpush1.bf16.msra.mxu0 %v2251
    %2269 = vmatprep.subr.bf16.mxu0 0
    %2270 = vmatpush2.bf16.msra.mxu0 0
    %2271 = vmatprep.subr.bf16.mxu0 0
    %2272 = vmatpush2.bf16.msra.mxu0 0
    %2273 = vmatprep.subr.bf16.mxu0 0
    %2274 = vmatpush2.bf16.msra.mxu0 0
    %2275 = vmatprep.subr.bf16.mxu0 0
    %2276 = vmatpush2.bf16.msra.mxu0 0
    %2277 = vmatprep.subr.bf16.mxu0 0
    %2278 = vmatpush2.bf16.msra.mxu0 0
    %2279 = vmatprep.subr.bf16.mxu0 0
    %2280 = vmatpush2.bf16.msra.mxu0 0
    %2281 = vmatprep.subr.bf16.mxu0 0
    %2282 = vmatpush2.bf16.msra.mxu0 0
    %2283 = vmatprep.subr.bf16.mxu0 0
    %2284 = vmatpush2.bf16.msra.mxu0 0
    %2285 = vmatprep.mubr.bf16.mxu0 0
    %2286 = vmatmul.mubr.bf16.gmra.mxu0 %v2245
    %v2287 = vpop.f32.mrf.mxu0
    %v2288 = vadd.f32 0.0, %v2287
    %v2289 = vpop.f32.mrf.mxu0
    %v2290 = vpop.f32.mrf.mxu0
    %v2291 = vadd.f32 0.0, %v2290
    %v2292 = vpop.f32.mrf.mxu0
    %2293 = vmatprep.mubr.bf16.mxu0 0
    %2294 = vmatmul.mubr.bf16.gmra.mxu0 %v2248
    %v2295 = vpop.f32.mrf.mxu0
    %v2296 = vadd.f32 0.0, %v2295
    %v2297 = vpop.f32.mrf.mxu0
    %v2298 = vpop.f32.mrf.mxu0
    %v2299 = vpop.f32.mrf.mxu0
    %2300 = vdwg.mxu0
    %v2301 = vadd.f32 %v2230, %v2288
    %v2302 = vadd.f32 %v2231, %v2291
    %v2303 = vadd.f32 %v2232, %v2296
    %v2304 = vpack.c.bf16 %v2034, %v2033
    %v2305 = vpack.c.bf16 %v769, %v768
    %v2307 = vsel %vm828, %v2305, 0
    %2309 = vmatprep.subr.bf16.mxu0 0
    %2310 = vmatpush1.bf16.msra.mxu0 0
    %2311 = vmatprep.subr.bf16.mxu0 0
    %2312 = vmatpush1.bf16.msra.mxu0 0
    %2313 = vmatprep.subr.bf16.mxu0 0
    %2314 = vmatpush1.bf16.msra.mxu0 0
    %2315 = vmatprep.subr.bf16.mxu0 0
    %2316 = vmatpush1.bf16.msra.mxu0 0
    %2317 = vmatprep.subr.bf16.mxu0 0
    %2318 = vmatpush1.bf16.msra.mxu0 0
    %2319 = vmatprep.subr.bf16.mxu0 0
    %2320 = vmatpush1.bf16.msra.mxu0 0
    %2321 = vmatprep.subr.bf16.mxu0 0
    %2322 = vmatpush1.bf16.msra.mxu0 %v2055
    %2323 = vmatprep.subr.bf16.mxu0 0
    %2324 = vmatpush1.bf16.msra.mxu0 %v2054
    %2325 = vmatprep.subr.bf16.mxu0 0
    %2326 = vmatpush2.bf16.msra.mxu0 0
    %2327 = vmatprep.subr.bf16.mxu0 0
    %2328 = vmatpush2.bf16.msra.mxu0 0
    %2329 = vmatprep.subr.bf16.mxu0 0
    %2330 = vmatpush2.bf16.msra.mxu0 0
    %2331 = vmatprep.subr.bf16.mxu0 0
    %2332 = vmatpush2.bf16.msra.mxu0 0
    %2333 = vmatprep.subr.bf16.mxu0 0
    %2334 = vmatpush2.bf16.msra.mxu0 0
    %2335 = vmatprep.subr.bf16.mxu0 0
    %2336 = vmatpush2.bf16.msra.mxu0 0
    %2337 = vmatprep.subr.bf16.mxu0 0
    %2338 = vmatpush2.bf16.msra.mxu0 0
    %2339 = vmatprep.subr.bf16.mxu0 0
    %2340 = vmatpush2.bf16.msra.mxu0 0
    %2341 = vmatprep.mubr.bf16.mxu0 0
    %2342 = vmatmul.mubr.bf16.gmra.mxu0 %v2307
    %v2343 = vpop.f32.mrf.mxu0
    %v2344 = vadd.f32 0.0, %v2343
    %v2345 = vpop.f32.mrf.mxu0
    %v2346 = vpop.f32.mrf.mxu0
    %v2347 = vadd.f32 0.0, %v2346
    %v2348 = vpop.f32.mrf.mxu0
    %2349 = vdwg.mxu0
    %v2351 = vsel %vm828, %v2304, 0
    %2353 = vmatprep.subr.bf16.mxu0 0
    %2354 = vmatpush1.bf16.msra.mxu0 0
    %2355 = vmatprep.subr.bf16.mxu0 0
    %2356 = vmatpush1.bf16.msra.mxu0 0
    %2357 = vmatprep.subr.bf16.mxu0 0
    %2358 = vmatpush1.bf16.msra.mxu0 0
    %2359 = vmatprep.subr.bf16.mxu0 0
    %2360 = vmatpush1.bf16.msra.mxu0 0
    %2361 = vmatprep.subr.bf16.mxu0 0
    %2362 = vmatpush1.bf16.msra.mxu0 0
    %2363 = vmatprep.subr.bf16.mxu0 0
    %2364 = vmatpush1.bf16.msra.mxu0 0
    %2365 = vmatprep.subr.bf16.mxu0 0
    %2366 = vmatpush1.bf16.msra.mxu0 %v2111
    %2367 = vmatprep.subr.bf16.mxu0 0
    %2368 = vmatpush1.bf16.msra.mxu0 %v2110
    %2369 = vmatprep.subr.bf16.mxu0 0
    %2370 = vmatpush2.bf16.msra.mxu0 0
    %2371 = vmatprep.subr.bf16.mxu0 0
    %2372 = vmatpush2.bf16.msra.mxu0 0
    %2373 = vmatprep.subr.bf16.mxu0 0
    %2374 = vmatpush2.bf16.msra.mxu0 0
    %2375 = vmatprep.subr.bf16.mxu0 0
    %2376 = vmatpush2.bf16.msra.mxu0 0
    %2377 = vmatprep.subr.bf16.mxu0 0
    %2378 = vmatpush2.bf16.msra.mxu0 0
    %2379 = vmatprep.subr.bf16.mxu0 0
    %2380 = vmatpush2.bf16.msra.mxu0 0
    %2381 = vmatprep.subr.bf16.mxu0 0
    %2382 = vmatpush2.bf16.msra.mxu0 0
    %2383 = vmatprep.subr.bf16.mxu0 0
    %2384 = vmatpush2.bf16.msra.mxu0 0
    %2385 = vmatprep.mubr.bf16.mxu0 0
    %2386 = vmatmul.mubr.bf16.gmra.mxu0 %v2351
    %v2387 = vpop.f32.mrf.mxu0
    %v2388 = vadd.f32 %v2344, %v2387
    %v2389 = vpop.f32.mrf.mxu0
    %v2390 = vpop.f32.mrf.mxu0
    %v2391 = vadd.f32 %v2347, %v2390
    %v2392 = vpop.f32.mrf.mxu0
    %2393 = vdwg.mxu0
    %v2394 = vpack.c.bf16 %v2391, %v2388
    %v2398 = vunpack.c.l.b16 %v801
    %v2399 = vunpack.c.l.b16 %v802
    %v2400 = vunpack.c.l.b16 %v803
    %v2401 = vpack.c.b16 %v2399, %v2398
    %v2402 = vpack.c.b16 %v2400, %v2400
    %v2404 = vsel %vm69, %v2401, 0
    %v2407 = vsel %vm69, %v2402, 0
    %v2410 = vsel %vm76, %v2394, 0
    %2412 = vmatprep.subr.bf16.mxu0 0
    %2413 = vmatpush1.bf16.msra.mxu0 0
    %2414 = vmatprep.subr.bf16.mxu0 0
    %2415 = vmatpush1.bf16.msra.mxu0 0
    %2416 = vmatprep.subr.bf16.mxu0 0
    %2417 = vmatpush1.bf16.msra.mxu0 0
    %2418 = vmatprep.subr.bf16.mxu0 0
    %2419 = vmatpush1.bf16.msra.mxu0 0
    %2420 = vmatprep.subr.bf16.mxu0 0
    %2421 = vmatpush1.bf16.msra.mxu0 0
    %2422 = vmatprep.subr.bf16.mxu0 0
    %2423 = vmatpush1.bf16.msra.mxu0 0
    %2424 = vmatprep.subr.bf16.mxu0 0
    %2425 = vmatpush1.bf16.msra.mxu0 0
    %2426 = vmatprep.subr.bf16.mxu0 0
    %2427 = vmatpush1.bf16.msra.mxu0 %v2410
    %2428 = vmatprep.subr.bf16.mxu0 0
    %2429 = vmatpush2.bf16.msra.mxu0 0
    %2430 = vmatprep.subr.bf16.mxu0 0
    %2431 = vmatpush2.bf16.msra.mxu0 0
    %2432 = vmatprep.subr.bf16.mxu0 0
    %2433 = vmatpush2.bf16.msra.mxu0 0
    %2434 = vmatprep.subr.bf16.mxu0 0
    %2435 = vmatpush2.bf16.msra.mxu0 0
    %2436 = vmatprep.subr.bf16.mxu0 0
    %2437 = vmatpush2.bf16.msra.mxu0 0
    %2438 = vmatprep.subr.bf16.mxu0 0
    %2439 = vmatpush2.bf16.msra.mxu0 0
    %2440 = vmatprep.subr.bf16.mxu0 0
    %2441 = vmatpush2.bf16.msra.mxu0 0
    %2442 = vmatprep.subr.bf16.mxu0 0
    %2443 = vmatpush2.bf16.msra.mxu0 0
    %2444 = vmatprep.mubr.bf16.mxu0 0
    %2445 = vmatmul.mubr.bf16.gmra.mxu0 %v2404
    %v2446 = vpop.f32.mrf.mxu0
    %v2447 = vadd.f32 0.0, %v2446
    %v2448 = vpop.f32.mrf.mxu0
    %v2449 = vpop.f32.mrf.mxu0
    %v2450 = vadd.f32 0.0, %v2449
    %v2451 = vpop.f32.mrf.mxu0
    %2452 = vmatprep.mubr.bf16.mxu0 0
    %2453 = vmatmul.mubr.bf16.gmra.mxu0 %v2407
    %v2454 = vpop.f32.mrf.mxu0
    %v2455 = vadd.f32 0.0, %v2454
    %v2456 = vpop.f32.mrf.mxu0
    %v2457 = vpop.f32.mrf.mxu0
    %v2458 = vpop.f32.mrf.mxu0
    %2459 = vdwg.mxu0
    %v2460 = vadd.f32 %v2301, %v2447
    %v2461 = vadd.f32 %v2302, %v2450
    %v2462 = vadd.f32 %v2303, %v2455
    %v2466 = vunpack.c.l.b16 %v807
    %v2467 = vunpack.c.l.b16 %v808
    %v2468 = vunpack.c.l.b16 %v809
    %v2469 = vpack.c.b16 %v2467, %v2466
    %v2470 = vpack.c.b16 %v2468, %v2468
    %2472 = vrot.lane.b32.xlu0 %v2394, 96
    %v2473 = vpop.permute.xlu0 %2472
    %v2475 = vsel %vm69, %v2469, 0
    %v2478 = vsel %vm69, %v2470, 0
    %v2481 = vsel %vm76, %v2473, 0
    %2483 = vmatprep.subr.bf16.mxu0 0
    %2484 = vmatpush1.bf16.msra.mxu0 0
    %2485 = vmatprep.subr.bf16.mxu0 0
    %2486 = vmatpush1.bf16.msra.mxu0 0
    %2487 = vmatprep.subr.bf16.mxu0 0
    %2488 = vmatpush1.bf16.msra.mxu0 0
    %2489 = vmatprep.subr.bf16.mxu0 0
    %2490 = vmatpush1.bf16.msra.mxu0 0
    %2491 = vmatprep.subr.bf16.mxu0 0
    %2492 = vmatpush1.bf16.msra.mxu0 0
    %2493 = vmatprep.subr.bf16.mxu0 0
    %2494 = vmatpush1.bf16.msra.mxu0 0
    %2495 = vmatprep.subr.bf16.mxu0 0
    %2496 = vmatpush1.bf16.msra.mxu0 0
    %2497 = vmatprep.subr.bf16.mxu0 0
    %2498 = vmatpush1.bf16.msra.mxu0 %v2481
    %2499 = vmatprep.subr.bf16.mxu0 0
    %2500 = vmatpush2.bf16.msra.mxu0 0
    %2501 = vmatprep.subr.bf16.mxu0 0
    %2502 = vmatpush2.bf16.msra.mxu0 0
    %2503 = vmatprep.subr.bf16.mxu0 0
    %2504 = vmatpush2.bf16.msra.mxu0 0
    %2505 = vmatprep.subr.bf16.mxu0 0
    %2506 = vmatpush2.bf16.msra.mxu0 0
    %2507 = vmatprep.subr.bf16.mxu0 0
    %2508 = vmatpush2.bf16.msra.mxu0 0
    %2509 = vmatprep.subr.bf16.mxu0 0
    %2510 = vmatpush2.bf16.msra.mxu0 0
    %2511 = vmatprep.subr.bf16.mxu0 0
    %2512 = vmatpush2.bf16.msra.mxu0 0
    %2513 = vmatprep.subr.bf16.mxu0 0
    %2514 = vmatpush2.bf16.msra.mxu0 0
    %2515 = vmatprep.mubr.bf16.mxu0 0
    %2516 = vmatmul.mubr.bf16.gmra.mxu0 %v2475
    %v2517 = vpop.f32.mrf.mxu0
    %v2518 = vadd.f32 0.0, %v2517
    %v2519 = vpop.f32.mrf.mxu0
    %v2520 = vpop.f32.mrf.mxu0
    %v2521 = vadd.f32 0.0, %v2520
    %v2522 = vpop.f32.mrf.mxu0
    %2523 = vmatprep.mubr.bf16.mxu0 0
    %2524 = vmatmul.mubr.bf16.gmra.mxu0 %v2478
    %v2525 = vpop.f32.mrf.mxu0
    %v2526 = vadd.f32 0.0, %v2525
    %v2527 = vpop.f32.mrf.mxu0
    %v2528 = vpop.f32.mrf.mxu0
    %v2529 = vpop.f32.mrf.mxu0
    %2530 = vdwg.mxu0
    %v2531 = vadd.f32 %v2460, %v2518
    %v2532 = vadd.f32 %v2461, %v2521
    %v2533 = vadd.f32 %v2462, %v2526
    %v2534 = vadd.f32 %v2531, %v1181
    %v2535 = vadd.f32 %v2532, %v1182
    %v2536 = vadd.f32 %v2533, %v1183
    %v2537 = vld [vmem:[#allocation2 + $0xd8] sm:$0xf]
    %v2538 = vld [vmem:[#allocation2 + $0xdc] sm:$0xf]
    %v2539 = vld [vmem:[#allocation2 + $0xe0] sm:$0xf]
    %v2540 = vld [vmem:[#allocation2 + $0xe4] sm:$0xf]
    %v2541 = vld [vmem:[#allocation2 + $0xe8] sm:$0xf]
    %v2542 = vld [vmem:[#allocation2 + $0xec] sm:$0xf]
    %v2543 = vld [vmem:[#allocation2 + $0xf0] sm:$0xf]
    %v2544 = vld [vmem:[#allocation2 + $0xf4] sm:$0xf]
    %v2545 = vld [vmem:[#allocation2 + $0xf8] sm:$0xf]
    %v2546 = vld [vmem:[#allocation2 + $0xfc] sm:$0xf]
    %v2547 = vld [vmem:[#allocation2 + $0x100] sm:$0xf]
    %v2548 = vld [vmem:[#allocation2 + $0x104] sm:$0xf]
    %v2549 = vpack.c.bf16 %v2535, %v2534
    %v2550 = vpack.c.bf16 %v2536, %v2536
    %v2555 = vunpack.c.l.b16 %v2537
    %v2556 = vunpack.c.l.b16 %v2538
    %v2557 = vunpack.c.l.b16 %v2539
    %v2558 = vunpack.c.l.b16 %v2540
    %v2559 = vpack.c.b16 %v2556, %v2555
    %v2560 = vpack.c.b16 %v2558, %v2557
    %v2564 = vsel %vm828, %v2549, 0
    %v2567 = vsel %vm828, %v2550, 0
    %2569 = vmatprep.subr.bf16.mxu0 0
    %2570 = vmatpush1.bf16.msra.mxu0 0
    %2571 = vmatprep.subr.bf16.mxu0 0
    %2572 = vmatpush1.bf16.msra.mxu0 0
    %2573 = vmatprep.subr.bf16.mxu0 0
    %2574 = vmatpush1.bf16.msra.mxu0 0
    %2575 = vmatprep.subr.bf16.mxu0 0
    %2576 = vmatpush1.bf16.msra.mxu0 0
    %2577 = vmatprep.subr.bf16.mxu0 0
    %2578 = vmatpush1.bf16.msra.mxu0 0
    %2579 = vmatprep.subr.bf16.mxu0 0
    %2580 = vmatpush1.bf16.msra.mxu0 0
    %2581 = vmatprep.subr.bf16.mxu0 0
    %2582 = vmatpush1.bf16.msra.mxu0 %v2560
    %2583 = vmatprep.subr.bf16.mxu0 0
    %2584 = vmatpush1.bf16.msra.mxu0 %v2559
    %2585 = vmatprep.subr.bf16.mxu0 0
    %2586 = vmatpush2.bf16.msra.mxu0 0
    %2587 = vmatprep.subr.bf16.mxu0 0
    %2588 = vmatpush2.bf16.msra.mxu0 0
    %2589 = vmatprep.subr.bf16.mxu0 0
    %2590 = vmatpush2.bf16.msra.mxu0 0
    %2591 = vmatprep.subr.bf16.mxu0 0
    %2592 = vmatpush2.bf16.msra.mxu0 0
    %2593 = vmatprep.subr.bf16.mxu0 0
    %2594 = vmatpush2.bf16.msra.mxu0 0
    %2595 = vmatprep.subr.bf16.mxu0 0
    %2596 = vmatpush2.bf16.msra.mxu0 0
    %2597 = vmatprep.subr.bf16.mxu0 0
    %2598 = vmatpush2.bf16.msra.mxu0 0
    %2599 = vmatprep.subr.bf16.mxu0 0
    %2600 = vmatpush2.bf16.msra.mxu0 0
    %2601 = vmatprep.mubr.bf16.mxu0 0
    %2602 = vmatmul.mubr.bf16.gmra.mxu0 %v2564
    %v2603 = vpop.f32.mrf.mxu0
    %v2604 = vadd.f32 0.0, %v2603
    %v2605 = vpop.f32.mrf.mxu0
    %v2606 = vpop.f32.mrf.mxu0
    %v2607 = vadd.f32 0.0, %v2606
    %v2608 = vpop.f32.mrf.mxu0
    %2609 = vmatprep.mubr.bf16.mxu0 0
    %2610 = vmatmul.mubr.bf16.gmra.mxu0 %v2567
    %v2611 = vpop.f32.mrf.mxu0
    %v2612 = vadd.f32 0.0, %v2611
    %v2613 = vpop.f32.mrf.mxu0
    %v2614 = vpop.f32.mrf.mxu0
    %v2615 = vpop.f32.mrf.mxu0
    %2616 = vdwg.mxu0
    %v2617 = vsel %vm372, %v2604, 0.0
    %v2618 = vsel %vm372, %v2607, 0.0
    %v2619 = vadd.f32 %v2617, %v2618
    %v2620 = vsel %vm372, %v2612, 0.0
    %v2621 = vadd.f32 %v2619, %v2620
    %v2622 = vrot.slane %v2621, 4
    %v2623 = vadd.f32 %v2621, %v2622
    %v2624 = vrot.slane %v2623, 2
    %v2625 = vadd.f32 %v2623, %v2624
    %v2626 = vrot.slane %v2625, 1
    %v2627 = vadd.f32 %v2625, %v2626
    %v2628 = vmul.f32 %v2604, %v2604
    %v2629 = vmul.f32 %v2607, %v2607
    %v2630 = vmul.f32 %v2612, %v2612
    %v2631 = vsel %vm372, %v2628, 0.0
    %v2632 = vsel %vm372, %v2629, 0.0
    %v2633 = vadd.f32 %v2631, %v2632
    %v2634 = vsel %vm372, %v2630, 0.0
    %v2635 = vadd.f32 %v2633, %v2634
    %v2636 = vrot.slane %v2635, 4
    %v2637 = vadd.f32 %v2635, %v2636
    %v2638 = vrot.slane %v2637, 2
    %v2639 = vadd.f32 %v2637, %v2638
    %v2640 = vrot.slane %v2639, 1
    %v2641 = vadd.f32 %v2639, %v2640
    %v2642 = vmul.f32 %v2627, 0.041666668
    %v2643 = vmul.f32 %v2641, 0.041666668
    %v2644 = vmul.f32 %v2642, %v2642
    %v2645 = vsub.f32 %v2643, %v2644
    %v2646 = vsub.f32 %v2604, %v2642
    %v2647 = vsub.f32 %v2607, %v2642
    %v2648 = vsub.f32 %v2612, %v2642
    %v2649 = vadd.f32 %v2645, 1e-05
    %v2650 = vrsqrt.pop %v2649
    %v2651 = vmul.f32 %v2646, %v2650
    %v2652 = vmul.f32 %v2647, %v2650
    %v2653 = vmul.f32 %v2648, %v2650
    %v2654 = vmax.f32 %v2651, 0.0
    %v2655 = vmax.f32 %v2652, 0.0
    %v2656 = vmax.f32 %v2653, 0.0
    %v2657 = vpack.c.bf16 %v2655, %v2654
    %v2658 = vpack.c.bf16 %v2656, %v2656
    %v2667 = vunpack.c.l.b16 %v2541
    %v2668 = vunpack.c.l.b16 %v2542
    %v2669 = vunpack.c.l.b16 %v2543
    %v2670 = vunpack.c.l.b16 %v2544
    %v2671 = vunpack.c.l.b16 %v2545
    %v2672 = vunpack.c.l.b16 %v2546
    %v2673 = vunpack.c.l.b16 %v2547
    %v2674 = vunpack.c.l.b16 %v2548
    %v2675 = vpack.c.b16 %v2668, %v2667
    %v2676 = vpack.c.b16 %v2670, %v2669
    %v2677 = vpack.c.b16 %v2672, %v2671
    %v2678 = vpack.c.b16 %v2674, %v2673
    %v2684 = vsel %vm372, %v2657, 0
    %v2687 = vsel %vm372, %v2658, 0
    %2689 = vmatprep.subr.bf16.mxu0 0
    %2690 = vmatpush1.bf16.msra.mxu0 0
    %2691 = vmatprep.subr.bf16.mxu0 0
    %2692 = vmatpush1.bf16.msra.mxu0 0
    %2693 = vmatprep.subr.bf16.mxu0 0
    %2694 = vmatpush1.bf16.msra.mxu0 0
    %2695 = vmatprep.subr.bf16.mxu0 0
    %2696 = vmatpush1.bf16.msra.mxu0 0
    %2697 = vmatprep.subr.bf16.mxu0 0
    %2698 = vmatpush1.bf16.msra.mxu0 %v2678
    %2699 = vmatprep.subr.bf16.mxu0 0
    %2700 = vmatpush1.bf16.msra.mxu0 %v2677
    %2701 = vmatprep.subr.bf16.mxu0 0
    %2702 = vmatpush1.bf16.msra.mxu0 %v2676
    %2703 = vmatprep.subr.bf16.mxu0 0
    %2704 = vmatpush1.bf16.msra.mxu0 %v2675
    %2705 = vmatprep.subr.bf16.mxu0 0
    %2706 = vmatpush2.bf16.msra.mxu0 0
    %2707 = vmatprep.subr.bf16.mxu0 0
    %2708 = vmatpush2.bf16.msra.mxu0 0
    %2709 = vmatprep.subr.bf16.mxu0 0
    %2710 = vmatpush2.bf16.msra.mxu0 0
    %2711 = vmatprep.subr.bf16.mxu0 0
    %2712 = vmatpush2.bf16.msra.mxu0 0
    %2713 = vmatprep.subr.bf16.mxu0 0
    %2714 = vmatpush2.bf16.msra.mxu0 0
    %2715 = vmatprep.subr.bf16.mxu0 0
    %2716 = vmatpush2.bf16.msra.mxu0 0
    %2717 = vmatprep.subr.bf16.mxu0 0
    %2718 = vmatpush2.bf16.msra.mxu0 0
    %2719 = vmatprep.subr.bf16.mxu0 0
    %2720 = vmatpush2.bf16.msra.mxu0 0
    %2721 = vmatprep.mubr.bf16.mxu0 0
    %2722 = vmatmul.mubr.bf16.gmra.mxu0 %v2684
    %v2723 = vpop.f32.mrf.mxu0
    %v2724 = vadd.f32 0.0, %v2723
    %v2725 = vpop.f32.mrf.mxu0
    %v2726 = vpop.f32.mrf.mxu0
    %v2727 = vadd.f32 0.0, %v2726
    %v2728 = vpop.f32.mrf.mxu0
    %2729 = vmatprep.mubr.bf16.mxu0 0
    %2730 = vmatmul.mubr.bf16.gmra.mxu0 %v2687
    %v2731 = vpop.f32.mrf.mxu0
    %v2732 = vadd.f32 0.0, %v2731
    %v2733 = vpop.f32.mrf.mxu0
    %v2734 = vpop.f32.mrf.mxu0
    %v2735 = vpop.f32.mrf.mxu0
    %2736 = vdwg.mxu0
    %v2737 = vsel %vm828, %v2724, 0.0
    %v2738 = vsel %vm828, %v2727, 0.0
    %v2739 = vadd.f32 %v2737, %v2738
    %v2740 = vsel %vm828, %v2732, 0.0
    %v2741 = vadd.f32 %v2739, %v2740
    %v2742 = vrot.slane %v2741, 4
    %v2743 = vadd.f32 %v2741, %v2742
    %v2744 = vrot.slane %v2743, 2
    %v2745 = vadd.f32 %v2743, %v2744
    %v2746 = vrot.slane %v2745, 1
    %v2747 = vadd.f32 %v2745, %v2746
    %v2748 = vmul.f32 %v2724, %v2724
    %v2749 = vmul.f32 %v2727, %v2727
    %v2750 = vmul.f32 %v2732, %v2732
    %v2751 = vsel %vm828, %v2748, 0.0
    %v2752 = vsel %vm828, %v2749, 0.0
    %v2753 = vadd.f32 %v2751, %v2752
    %v2754 = vsel %vm828, %v2750, 0.0
    %v2755 = vadd.f32 %v2753, %v2754
    %v2756 = vrot.slane %v2755, 4
    %v2757 = vadd.f32 %v2755, %v2756
    %v2758 = vrot.slane %v2757, 2
    %v2759 = vadd.f32 %v2757, %v2758
    %v2760 = vrot.slane %v2759, 1
    %v2761 = vadd.f32 %v2759, %v2760
    %v2762 = vmul.f32 %v2747, 0.041666668
    %v2763 = vmul.f32 %v2761, 0.041666668
    %v2764 = vmul.f32 %v2762, %v2762
    %v2765 = vsub.f32 %v2763, %v2764
    %v2766 = vsub.f32 %v2724, %v2762
    %v2767 = vsub.f32 %v2727, %v2762
    %v2768 = vsub.f32 %v2732, %v2762
    %v2769 = vadd.f32 %v2765, 1e-05
    %v2770 = vrsqrt.pop %v2769
    %v2771 = vmul.f32 %v2766, %v2770
    %v2772 = vmul.f32 %v2767, %v2770
    %v2773 = vmul.f32 %v2768, %v2770
    %v2774 = vmax.f32 %v2771, 0.0
    %v2775 = vmax.f32 %v2772, 0.0
    %v2776 = vmax.f32 %v2773, 0.0
    %v2777 = vld [vmem:[#allocation2 + $0x108] sm:$0xf]
    %v2778 = vld [vmem:[#allocation2 + $0x10c] sm:$0xf]
    %v2779 = vld [vmem:[#allocation2 + $0x110] sm:$0xf]
    %v2780 = vld [vmem:[#allocation2 + $0x114] sm:$0xf]
    %v2781 = vld [vmem:[#allocation2 + $0x118] sm:$0xf]
    %v2782 = vld [vmem:[#allocation2 + $0x11c] sm:$0xf]
    %v2783 = vld [vmem:[#allocation2 + $0x120] sm:$0xf]
    %v2784 = vld [vmem:[#allocation2 + $0x124] sm:$0xf]
    %v2785 = vld [vmem:[#allocation2 + $0x128] sm:$0xf]
    %v2786 = vld [vmem:[#allocation2 + $0x12c] sm:$0xf]
    %v2787 = vld [vmem:[#allocation2 + $0x130] sm:$0xf]
    %v2788 = vld [vmem:[#allocation2 + $0x134] sm:$0xf]
    %v2789 = vmul.f32 %v623, 1.1
    %v2790 = vmul.f32 %v624, 1.1
    %v2791 = vadd.f32 %v1729, %v2789
    %v2792 = vadd.f32 %v1730, %v2790
    %v2793 = vpack.c.bf16 %v2792, %v2791
    %v2798 = vunpack.c.l.b16 %v2777
    %v2799 = vunpack.c.l.b16 %v2778
    %v2800 = vunpack.c.l.b16 %v2779
    %v2801 = vunpack.c.l.b16 %v2780
    %v2802 = vpack.c.b16 %v2799, %v2798
    %v2803 = vpack.c.b16 %v2801, %v2800
    %v2807 = vsel %vm828, %v2793, 0
    %2809 = vmatprep.subr.bf16.mxu0 0
    %2810 = vmatpush1.bf16.msra.mxu0 0
    %2811 = vmatprep.subr.bf16.mxu0 0
    %2812 = vmatpush1.bf16.msra.mxu0 0
    %2813 = vmatprep.subr.bf16.mxu0 0
    %2814 = vmatpush1.bf16.msra.mxu0 0
    %2815 = vmatprep.subr.bf16.mxu0 0
    %2816 = vmatpush1.bf16.msra.mxu0 0
    %2817 = vmatprep.subr.bf16.mxu0 0
    %2818 = vmatpush1.bf16.msra.mxu0 0
    %2819 = vmatprep.subr.bf16.mxu0 0
    %2820 = vmatpush1.bf16.msra.mxu0 0
    %2821 = vmatprep.subr.bf16.mxu0 0
    %2822 = vmatpush1.bf16.msra.mxu0 %v2803
    %2823 = vmatprep.subr.bf16.mxu0 0
    %2824 = vmatpush1.bf16.msra.mxu0 %v2802
    %2825 = vmatprep.subr.bf16.mxu0 0
    %2826 = vmatpush2.bf16.msra.mxu0 0
    %2827 = vmatprep.subr.bf16.mxu0 0
    %2828 = vmatpush2.bf16.msra.mxu0 0
    %2829 = vmatprep.subr.bf16.mxu0 0
    %2830 = vmatpush2.bf16.msra.mxu0 0
    %2831 = vmatprep.subr.bf16.mxu0 0
    %2832 = vmatpush2.bf16.msra.mxu0 0
    %2833 = vmatprep.subr.bf16.mxu0 0
    %2834 = vmatpush2.bf16.msra.mxu0 0
    %2835 = vmatprep.subr.bf16.mxu0 0
    %2836 = vmatpush2.bf16.msra.mxu0 0
    %2837 = vmatprep.subr.bf16.mxu0 0
    %2838 = vmatpush2.bf16.msra.mxu0 0
    %2839 = vmatprep.subr.bf16.mxu0 0
    %2840 = vmatpush2.bf16.msra.mxu0 0
    %2841 = vmatprep.mubr.bf16.mxu0 0
    %2842 = vmatmul.mubr.bf16.gmra.mxu0 %v2807
    %v2843 = vpop.f32.mrf.mxu0
    %v2844 = vadd.f32 0.0, %v2843
    %v2845 = vpop.f32.mrf.mxu0
    %v2846 = vpop.f32.mrf.mxu0
    %v2847 = vadd.f32 0.0, %v2846
    %v2848 = vpop.f32.mrf.mxu0
    %2849 = vdwg.mxu0
    %v2850 = vsel %vm372, %v2844, 0.0
    %vm2851 = vcmask 517120
    %v2852 = vsel %vm2851, %v2847, 0.0
    %v2853 = vadd.f32 %v2850, %v2852
    %v2854 = vrot.slane %v2853, 4
    %v2855 = vadd.f32 %v2853, %v2854
    %v2856 = vrot.slane %v2855, 2
    %v2857 = vadd.f32 %v2855, %v2856
    %v2858 = vrot.slane %v2857, 1
    %v2859 = vadd.f32 %v2857, %v2858
    %v2860 = vmul.f32 %v2844, %v2844
    %v2861 = vmul.f32 %v2847, %v2847
    %v2862 = vsel %vm372, %v2860, 0.0
    %v2863 = vsel %vm2851, %v2861, 0.0
    %v2864 = vadd.f32 %v2862, %v2863
    %v2865 = vrot.slane %v2864, 4
    %v2866 = vadd.f32 %v2864, %v2865
    %v2867 = vrot.slane %v2866, 2
    %v2868 = vadd.f32 %v2866, %v2867
    %v2869 = vrot.slane %v2868, 1
    %v2870 = vadd.f32 %v2868, %v2869
    %v2871 = vmul.f32 %v2859, 0.1
    %v2872 = vmul.f32 %v2870, 0.1
    %v2873 = vmul.f32 %v2871, %v2871
    %v2874 = vsub.f32 %v2872, %v2873
    %v2875 = vsub.f32 %v2844, %v2871
    %v2876 = vsub.f32 %v2847, %v2871
    %v2877 = vadd.f32 %v2874, 1e-05
    %v2878 = vrsqrt.pop %v2877
    %v2879 = vmul.f32 %v2875, %v2878
    %v2880 = vmul.f32 %v2876, %v2878
    %v2881 = vmax.f32 %v2879, 0.0
    %v2882 = vmax.f32 %v2880, 0.0
    %v2883 = vpack.c.bf16 %v2882, %v2881
    %v2892 = vunpack.c.l.b16 %v2781
    %v2893 = vunpack.c.l.b16 %v2782
    %v2894 = vunpack.c.l.b16 %v2783
    %v2895 = vunpack.c.l.b16 %v2784
    %v2896 = vunpack.c.l.b16 %v2785
    %v2897 = vunpack.c.l.b16 %v2786
    %v2898 = vunpack.c.l.b16 %v2787
    %v2899 = vunpack.c.l.b16 %v2788
    %v2900 = vpack.c.b16 %v2893, %v2892
    %v2901 = vpack.c.b16 %v2895, %v2894
    %v2902 = vpack.c.b16 %v2897, %v2896
    %v2903 = vpack.c.b16 %v2899, %v2898
    %v2909 = vsel %vm372, %v2883, 0
    %2911 = vmatprep.subr.bf16.mxu0 0
    %2912 = vmatpush1.bf16.msra.mxu0 0
    %2913 = vmatprep.subr.bf16.mxu0 0
    %2914 = vmatpush1.bf16.msra.mxu0 0
    %2915 = vmatprep.subr.bf16.mxu0 0
    %2916 = vmatpush1.bf16.msra.mxu0 0
    %2917 = vmatprep.subr.bf16.mxu0 0
    %2918 = vmatpush1.bf16.msra.mxu0 0
    %2919 = vmatprep.subr.bf16.mxu0 0
    %2920 = vmatpush1.bf16.msra.mxu0 %v2903
    %2921 = vmatprep.subr.bf16.mxu0 0
    %2922 = vmatpush1.bf16.msra.mxu0 %v2902
    %2923 = vmatprep.subr.bf16.mxu0 0
    %2924 = vmatpush1.bf16.msra.mxu0 %v2901
    %2925 = vmatprep.subr.bf16.mxu0 0
    %2926 = vmatpush1.bf16.msra.mxu0 %v2900
    %2927 = vmatprep.subr.bf16.mxu0 0
    %2928 = vmatpush2.bf16.msra.mxu0 0
    %2929 = vmatprep.subr.bf16.mxu0 0
    %2930 = vmatpush2.bf16.msra.mxu0 0
    %2931 = vmatprep.subr.bf16.mxu0 0
    %2932 = vmatpush2.bf16.msra.mxu0 0
    %2933 = vmatprep.subr.bf16.mxu0 0
    %2934 = vmatpush2.bf16.msra.mxu0 0
    %2935 = vmatprep.subr.bf16.mxu0 0
    %2936 = vmatpush2.bf16.msra.mxu0 0
    %2937 = vmatprep.subr.bf16.mxu0 0
    %2938 = vmatpush2.bf16.msra.mxu0 0
    %2939 = vmatprep.subr.bf16.mxu0 0
    %2940 = vmatpush2.bf16.msra.mxu0 0
    %2941 = vmatprep.subr.bf16.mxu0 0
    %2942 = vmatpush2.bf16.msra.mxu0 0
    %2943 = vmatprep.mubr.bf16.mxu0 0
    %2944 = vmatmul.mubr.bf16.gmra.mxu0 %v2909
    %v2945 = vpop.f32.mrf.mxu0
    %v2946 = vadd.f32 0.0, %v2945
    %v2947 = vpop.f32.mrf.mxu0
    %v2948 = vpop.f32.mrf.mxu0
    %v2949 = vadd.f32 0.0, %v2948
    %v2950 = vpop.f32.mrf.mxu0
    %2951 = vdwg.mxu0
    %v2952 = vsel %vm828, %v2946, 0.0
    %vm2953 = vcmask 254976
    %v2954 = vsel %vm2953, %v2949, 0.0
    %v2955 = vadd.f32 %v2952, %v2954
    %v2956 = vrot.slane %v2955, 4
    %v2957 = vadd.f32 %v2955, %v2956
    %v2958 = vrot.slane %v2957, 2
    %v2959 = vadd.f32 %v2957, %v2958
    %v2960 = vrot.slane %v2959, 1
    %v2961 = vadd.f32 %v2959, %v2960
    %v2962 = vmul.f32 %v2946, %v2946
    %v2963 = vmul.f32 %v2949, %v2949
    %v2964 = vsel %vm828, %v2962, 0.0
    %v2965 = vsel %vm2953, %v2963, 0.0
    %v2966 = vadd.f32 %v2964, %v2965
    %v2967 = vrot.slane %v2966, 4
    %v2968 = vadd.f32 %v2966, %v2967
    %v2969 = vrot.slane %v2968, 2
    %v2970 = vadd.f32 %v2968, %v2969
    %v2971 = vrot.slane %v2970, 1
    %v2972 = vadd.f32 %v2970, %v2971
    %v2973 = vmul.f32 %v2961, 0.1
    %v2974 = vmul.f32 %v2972, 0.1
    %v2975 = vmul.f32 %v2973, %v2973
    %v2976 = vsub.f32 %v2974, %v2975
    %v2977 = vsub.f32 %v2946, %v2973
    %v2978 = vsub.f32 %v2949, %v2973
    %v2979 = vadd.f32 %v2976, 1e-05
    %v2980 = vrsqrt.pop %v2979
    %v2981 = vmul.f32 %v2977, %v2980
    %v2982 = vmul.f32 %v2978, %v2980
    %v2983 = vmax.f32 %v2981, 0.0
    %v2984 = vmax.f32 %v2982, 0.0
    %v2985 = vmul.f32 %v768, 1.1
    %v2986 = vmul.f32 %v769, 1.1
    %v2987 = vadd.f32 %v2033, %v2985
    %v2988 = vadd.f32 %v2034, %v2986
    %v2989 = vpack.c.bf16 %v2988, %v2987
    %v2991 = vsel %vm828, %v2989, 0
    %2993 = vmatprep.subr.bf16.mxu0 0
    %2994 = vmatpush1.bf16.msra.mxu0 0
    %2995 = vmatprep.subr.bf16.mxu0 0
    %2996 = vmatpush1.bf16.msra.mxu0 0
    %2997 = vmatprep.subr.bf16.mxu0 0
    %2998 = vmatpush1.bf16.msra.mxu0 0
    %2999 = vmatprep.subr.bf16.mxu0 0
    %3000 = vmatpush1.bf16.msra.mxu0 0
    %3001 = vmatprep.subr.bf16.mxu0 0
    %3002 = vmatpush1.bf16.msra.mxu0 0
    %3003 = vmatprep.subr.bf16.mxu0 0
    %3004 = vmatpush1.bf16.msra.mxu0 0
    %3005 = vmatprep.subr.bf16.mxu0 0
    %3006 = vmatpush1.bf16.msra.mxu0 %v2803
    %3007 = vmatprep.subr.bf16.mxu0 0
    %3008 = vmatpush1.bf16.msra.mxu0 %v2802
    %3009 = vmatprep.subr.bf16.mxu0 0
    %3010 = vmatpush2.bf16.msra.mxu0 0
    %3011 = vmatprep.subr.bf16.mxu0 0
    %3012 = vmatpush2.bf16.msra.mxu0 0
    %3013 = vmatprep.subr.bf16.mxu0 0
    %3014 = vmatpush2.bf16.msra.mxu0 0
    %3015 = vmatprep.subr.bf16.mxu0 0
    %3016 = vmatpush2.bf16.msra.mxu0 0
    %3017 = vmatprep.subr.bf16.mxu0 0
    %3018 = vmatpush2.bf16.msra.mxu0 0
    %3019 = vmatprep.subr.bf16.mxu0 0
    %3020 = vmatpush2.bf16.msra.mxu0 0
    %3021 = vmatprep.subr.bf16.mxu0 0
    %3022 = vmatpush2.bf16.msra.mxu0 0
    %3023 = vmatprep.subr.bf16.mxu0 0
    %3024 = vmatpush2.bf16.msra.mxu0 0
    %3025 = vmatprep.mubr.bf16.mxu0 0
    %3026 = vmatmul.mubr.bf16.gmra.mxu0 %v2991
    %v3027 = vpop.f32.mrf.mxu0
    %v3028 = vadd.f32 0.0, %v3027
    %v3029 = vpop.f32.mrf.mxu0
    %v3030 = vpop.f32.mrf.mxu0
    %v3031 = vadd.f32 0.0, %v3030
    %v3032 = vpop.f32.mrf.mxu0
    %3033 = vdwg.mxu0
    %v3034 = vsel %vm372, %v3028, 0.0
    %vm3035 = vcmask 519168
    %v3036 = vsel %vm3035, %v3031, 0.0
    %v3037 = vadd.f32 %v3034, %v3036
    %v3038 = vrot.slane %v3037, 4
    %v3039 = vadd.f32 %v3037, %v3038
    %v3040 = vrot.slane %v3039, 2
    %v3041 = vadd.f32 %v3039, %v3040
    %v3042 = vrot.slane %v3041, 1
    %v3043 = vadd.f32 %v3041, %v3042
    %v3044 = vmul.f32 %v3028, %v3028
    %v3045 = vmul.f32 %v3031, %v3031
    %v3046 = vsel %vm372, %v3044, 0.0
    %v3047 = vsel %vm3035, %v3045, 0.0
    %v3048 = vadd.f32 %v3046, %v3047
    %v3049 = vrot.slane %v3048, 4
    %v3050 = vadd.f32 %v3048, %v3049
    %v3051 = vrot.slane %v3050, 2
    %v3052 = vadd.f32 %v3050, %v3051
    %v3053 = vrot.slane %v3052, 1
    %v3054 = vadd.f32 %v3052, %v3053
    %v3055 = vmul.f32 %v3043, 0.083333336
    %v3056 = vmul.f32 %v3054, 0.083333336
    %v3057 = vmul.f32 %v3055, %v3055
    %v3058 = vsub.f32 %v3056, %v3057
    %v3059 = vsub.f32 %v3028, %v3055
    %v3060 = vsub.f32 %v3031, %v3055
    %v3061 = vadd.f32 %v3058, 1e-05
    %v3062 = vrsqrt.pop %v3061
    %v3063 = vmul.f32 %v3059, %v3062
    %v3064 = vmul.f32 %v3060, %v3062
    %v3065 = vmax.f32 %v3063, 0.0
    %v3066 = vmax.f32 %v3064, 0.0
    %v3067 = vpack.c.bf16 %v3066, %v3065
    %v3069 = vsel %vm372, %v3067, 0
    %3071 = vmatprep.subr.bf16.mxu0 0
    %3072 = vmatpush1.bf16.msra.mxu0 0
    %3073 = vmatprep.subr.bf16.mxu0 0
    %3074 = vmatpush1.bf16.msra.mxu0 0
    %3075 = vmatprep.subr.bf16.mxu0 0
    %3076 = vmatpush1.bf16.msra.mxu0 0
    %3077 = vmatprep.subr.bf16.mxu0 0
    %3078 = vmatpush1.bf16.msra.mxu0 0
    %3079 = vmatprep.subr.bf16.mxu0 0
    %3080 = vmatpush1.bf16.msra.mxu0 %v2903
    %3081 = vmatprep.subr.bf16.mxu0 0
    %3082 = vmatpush1.bf16.msra.mxu0 %v2902
    %3083 = vmatprep.subr.bf16.mxu0 0
    %3084 = vmatpush1.bf16.msra.mxu0 %v2901
    %3085 = vmatprep.subr.bf16.mxu0 0
    %3086 = vmatpush1.bf16.msra.mxu0 %v2900
    %3087 = vmatprep.subr.bf16.mxu0 0
    %3088 = vmatpush2.bf16.msra.mxu0 0
    %3089 = vmatprep.subr.bf16.mxu0 0
    %3090 = vmatpush2.bf16.msra.mxu0 0
    %3091 = vmatprep.subr.bf16.mxu0 0
    %3092 = vmatpush2.bf16.msra.mxu0 0
    %3093 = vmatprep.subr.bf16.mxu0 0
    %3094 = vmatpush2.bf16.msra.mxu0 0
    %3095 = vmatprep.subr.bf16.mxu0 0
    %3096 = vmatpush2.bf16.msra.mxu0 0
    %3097 = vmatprep.subr.bf16.mxu0 0
    %3098 = vmatpush2.bf16.msra.mxu0 0
    %3099 = vmatprep.subr.bf16.mxu0 0
    %3100 = vmatpush2.bf16.msra.mxu0 0
    %3101 = vmatprep.subr.bf16.mxu0 0
    %3102 = vmatpush2.bf16.msra.mxu0 0
    %3103 = vmatprep.mubr.bf16.mxu0 0
    %3104 = vmatmul.mubr.bf16.gmra.mxu0 %v3069
    %v3105 = vpop.f32.mrf.mxu0
    %v3106 = vadd.f32 0.0, %v3105
    %v3107 = vpop.f32.mrf.mxu0
    %v3108 = vpop.f32.mrf.mxu0
    %v3109 = vadd.f32 0.0, %v3108
    %v3110 = vpop.f32.mrf.mxu0
    %3111 = vdwg.mxu0
    %v3112 = vsel %vm828, %v3106, 0.0
    %vm3113 = vcmask 257024
    %v3114 = vsel %vm3113, %v3109, 0.0
    %v3115 = vadd.f32 %v3112, %v3114
    %v3116 = vrot.slane %v3115, 4
    %v3117 = vadd.f32 %v3115, %v3116
    %v3118 = vrot.slane %v3117, 2
    %v3119 = vadd.f32 %v3117, %v3118
    %v3120 = vrot.slane %v3119, 1
    %v3121 = vadd.f32 %v3119, %v3120
    %v3122 = vmul.f32 %v3106, %v3106
    %v3123 = vmul.f32 %v3109, %v3109
    %v3124 = vsel %vm828, %v3122, 0.0
    %v3125 = vsel %vm3113, %v3123, 0.0
    %v3126 = vadd.f32 %v3124, %v3125
    %v3127 = vrot.slane %v3126, 4
    %v3128 = vadd.f32 %v3126, %v3127
    %v3129 = vrot.slane %v3128, 2
    %v3130 = vadd.f32 %v3128, %v3129
    %v3131 = vrot.slane %v3130, 1
    %v3132 = vadd.f32 %v3130, %v3131
    %v3133 = vmul.f32 %v3121, 0.083333336
    %v3134 = vmul.f32 %v3132, 0.083333336
    %v3135 = vmul.f32 %v3133, %v3133
    %v3136 = vsub.f32 %v3134, %v3135
    %v3137 = vsub.f32 %v3106, %v3133
    %v3138 = vsub.f32 %v3109, %v3133
    %v3139 = vadd.f32 %v3136, 1e-05
    %v3140 = vrsqrt.pop %v3139
    %v3141 = vmul.f32 %v3137, %v3140
    %v3142 = vmul.f32 %v3138, %v3140
    %v3143 = vmax.f32 %v3141, 0.0
    %v3144 = vmax.f32 %v3142, 0.0
    %v3145 = vld [vmem:[#allocation2 + $0x138] sm:$0xf]
    %v3146 = vld [vmem:[#allocation2 + $0x13c] sm:$0xf]
    %v3147 = vld [vmem:[#allocation2 + $0x140] sm:$0xf]
    %v3148 = vld [vmem:[#allocation2 + $0x144] sm:$0xf]
    %v3149 = vld [vmem:[#allocation2 + $0x148] sm:$0xf]
    %v3150 = vld [vmem:[#allocation2 + $0x14c] sm:$0xf]
    %v3151 = vld [vmem:[#allocation2 + $0x150] sm:$0xf]
    %v3152 = vld [vmem:[#allocation2 + $0x154] sm:$0xf]
    %v3153 = vpack.c.bf16 %v1425, %v1424
    %v3154 = vpack.c.bf16 %v1426, %v1426
    %v3155 = vpack.c.bf16 %v2775, %v2774
    %v3156 = vpack.c.bf16 %v2776, %v2776
    %v3161 = vunpack.c.l.b16 %v3149
    %v3162 = vunpack.c.l.b16 %v3150
    %v3163 = vunpack.c.l.b16 %v3151
    %v3164 = vunpack.c.l.b16 %v3152
    %v3165 = vpack.c.b16 %v3162, %v3161
    %v3166 = vpack.c.b16 %v3164, %v3163
    %v3170 = vsel %vm828, %v3155, 0
    %v3173 = vsel %vm828, %v3156, 0
    %3175 = vmatprep.subr.bf16.mxu0 0
    %3176 = vmatpush1.bf16.msra.mxu0 0
    %3177 = vmatprep.subr.bf16.mxu0 0
    %3178 = vmatpush1.bf16.msra.mxu0 0
    %3179 = vmatprep.subr.bf16.mxu0 0
    %3180 = vmatpush1.bf16.msra.mxu0 0
    %3181 = vmatprep.subr.bf16.mxu0 0
    %3182 = vmatpush1.bf16.msra.mxu0 0
    %3183 = vmatprep.subr.bf16.mxu0 0
    %3184 = vmatpush1.bf16.msra.mxu0 0
    %3185 = vmatprep.subr.bf16.mxu0 0
    %3186 = vmatpush1.bf16.msra.mxu0 0
    %3187 = vmatprep.subr.bf16.mxu0 0
    %3188 = vmatpush1.bf16.msra.mxu0 %v3166
    %3189 = vmatprep.subr.bf16.mxu0 0
    %3190 = vmatpush1.bf16.msra.mxu0 %v3165
    %3191 = vmatprep.subr.bf16.mxu0 0
    %3192 = vmatpush2.bf16.msra.mxu0 0
    %3193 = vmatprep.subr.bf16.mxu0 0
    %3194 = vmatpush2.bf16.msra.mxu0 0
    %3195 = vmatprep.subr.bf16.mxu0 0
    %3196 = vmatpush2.bf16.msra.mxu0 0
    %3197 = vmatprep.subr.bf16.mxu0 0
    %3198 = vmatpush2.bf16.msra.mxu0 0
    %3199 = vmatprep.subr.bf16.mxu0 0
    %3200 = vmatpush2.bf16.msra.mxu0 0
    %3201 = vmatprep.subr.bf16.mxu0 0
    %3202 = vmatpush2.bf16.msra.mxu0 0
    %3203 = vmatprep.subr.bf16.mxu0 0
    %3204 = vmatpush2.bf16.msra.mxu0 0
    %3205 = vmatprep.subr.bf16.mxu0 0
    %3206 = vmatpush2.bf16.msra.mxu0 0
    %3207 = vmatprep.mubr.bf16.mxu0 0
    %3208 = vmatmul.mubr.bf16.gmra.mxu0 %v3170
    %v3209 = vpop.f32.mrf.mxu0
    %v3210 = vadd.f32 0.0, %v3209
    %v3211 = vpop.f32.mrf.mxu0
    %v3212 = vpop.f32.mrf.mxu0
    %v3213 = vadd.f32 0.0, %v3212
    %v3214 = vpop.f32.mrf.mxu0
    %3215 = vmatprep.mubr.bf16.mxu0 0
    %3216 = vmatmul.mubr.bf16.gmra.mxu0 %v3173
    %v3217 = vpop.f32.mrf.mxu0
    %v3218 = vadd.f32 0.0, %v3217
    %v3219 = vpop.f32.mrf.mxu0
    %v3220 = vpop.f32.mrf.mxu0
    %v3221 = vpop.f32.mrf.mxu0
    %3222 = vdwg.mxu0
    %v3227 = vunpack.c.l.b16 %v3145
    %v3228 = vunpack.c.l.b16 %v3146
    %v3229 = vunpack.c.l.b16 %v3147
    %v3230 = vunpack.c.l.b16 %v3148
    %v3231 = vpack.c.b16 %v3228, %v3227
    %v3232 = vpack.c.b16 %v3230, %v3229
    %v3236 = vsel %vm828, %v3153, 0
    %v3239 = vsel %vm828, %v3154, 0
    %3241 = vmatprep.subr.bf16.mxu0 0
    %3242 = vmatpush1.bf16.msra.mxu0 0
    %3243 = vmatprep.subr.bf16.mxu0 0
    %3244 = vmatpush1.bf16.msra.mxu0 0
    %3245 = vmatprep.subr.bf16.mxu0 0
    %3246 = vmatpush1.bf16.msra.mxu0 0
    %3247 = vmatprep.subr.bf16.mxu0 0
    %3248 = vmatpush1.bf16.msra.mxu0 0
    %3249 = vmatprep.subr.bf16.mxu0 0
    %3250 = vmatpush1.bf16.msra.mxu0 0
    %3251 = vmatprep.subr.bf16.mxu0 0
    %3252 = vmatpush1.bf16.msra.mxu0 0
    %3253 = vmatprep.subr.bf16.mxu0 0
    %3254 = vmatpush1.bf16.msra.mxu0 %v3232
    %3255 = vmatprep.subr.bf16.mxu0 0
    %3256 = vmatpush1.bf16.msra.mxu0 %v3231
    %3257 = vmatprep.subr.bf16.mxu0 0
    %3258 = vmatpush2.bf16.msra.mxu0 0
    %3259 = vmatprep.subr.bf16.mxu0 0
    %3260 = vmatpush2.bf16.msra.mxu0 0
    %3261 = vmatprep.subr.bf16.mxu0 0
    %3262 = vmatpush2.bf16.msra.mxu0 0
    %3263 = vmatprep.subr.bf16.mxu0 0
    %3264 = vmatpush2.bf16.msra.mxu0 0
    %3265 = vmatprep.subr.bf16.mxu0 0
    %3266 = vmatpush2.bf16.msra.mxu0 0
    %3267 = vmatprep.subr.bf16.mxu0 0
    %3268 = vmatpush2.bf16.msra.mxu0 0
    %3269 = vmatprep.subr.bf16.mxu0 0
    %3270 = vmatpush2.bf16.msra.mxu0 0
    %3271 = vmatprep.subr.bf16.mxu0 0
    %3272 = vmatpush2.bf16.msra.mxu0 0
    %3273 = vmatprep.mubr.bf16.mxu0 0
    %3274 = vmatmul.mubr.bf16.gmra.mxu0 %v3236
    %v3275 = vpop.f32.mrf.mxu0
    %v3276 = vadd.f32 %v3210, %v3275
    %v3277 = vpop.f32.mrf.mxu0
    %v3278 = vpop.f32.mrf.mxu0
    %v3279 = vadd.f32 %v3213, %v3278
    %v3280 = vpop.f32.mrf.mxu0
    %3281 = vmatprep.mubr.bf16.mxu0 0
    %3282 = vmatmul.mubr.bf16.gmra.mxu0 %v3239
    %v3283 = vpop.f32.mrf.mxu0
    %v3284 = vadd.f32 %v3218, %v3283
    %v3285 = vpop.f32.mrf.mxu0
    %v3286 = vpop.f32.mrf.mxu0
    %v3287 = vpop.f32.mrf.mxu0
    %3288 = vdwg.mxu0
    %v3289 = vsel %vm828, %v3276, 0.0
    %v3290 = vsel %vm828, %v3279, 0.0
    %v3291 = vadd.f32 %v3289, %v3290
    %v3292 = vsel %vm828, %v3284, 0.0
    %v3293 = vadd.f32 %v3291, %v3292
    %v3294 = vrot.slane %v3293, 4
    %v3295 = vadd.f32 %v3293, %v3294
    %v3296 = vrot.slane %v3295, 2
    %v3297 = vadd.f32 %v3295, %v3296
    %v3298 = vrot.slane %v3297, 1
    %v3299 = vadd.f32 %v3297, %v3298
    %v3300 = vmul.f32 %v3276, %v3276
    %v3301 = vmul.f32 %v3279, %v3279
    %v3302 = vmul.f32 %v3284, %v3284
    %v3303 = vsel %vm828, %v3300, 0.0
    %v3304 = vsel %vm828, %v3301, 0.0
    %v3305 = vadd.f32 %v3303, %v3304
    %v3306 = vsel %vm828, %v3302, 0.0
    %v3307 = vadd.f32 %v3305, %v3306
    %v3308 = vrot.slane %v3307, 4
    %v3309 = vadd.f32 %v3307, %v3308
    %v3310 = vrot.slane %v3309, 2
    %v3311 = vadd.f32 %v3309, %v3310
    %v3312 = vrot.slane %v3311, 1
    %v3313 = vadd.f32 %v3311, %v3312
    %v3314 = vmul.f32 %v3299, 0.041666668
    %v3315 = vmul.f32 %v3313, 0.041666668
    %v3316 = vmul.f32 %v3314, %v3314
    %v3317 = vsub.f32 %v3315, %v3316
    %v3318 = vsub.f32 %v3276, %v3314
    %v3319 = vsub.f32 %v3279, %v3314
    %v3320 = vsub.f32 %v3284, %v3314
    %v3321 = vadd.f32 %v3317, 1e-05
    %v3322 = vrsqrt.pop %v3321
    %v3323 = vmul.f32 %v3318, %v3322
    %v3324 = vmul.f32 %v3319, %v3322
    %v3325 = vmul.f32 %v3320, %v3322
    %v3326 = vmax.f32 %v3323, 0.0
    %v3327 = vmax.f32 %v3324, 0.0
    %v3328 = vmax.f32 %v3325, 0.0
    %v3329 = vadd.f32 %v427, %v3326
    %v3330 = vadd.f32 %v428, %v3327
    %v3331 = vadd.f32 %v429, %v3328
    %v3332 = vadd.f32 %v623, %v2983
    %v3333 = vadd.f32 %v624, %v2984
    %v3334 = vadd.f32 %v768, %v3143
    %v3335 = vadd.f32 %v769, %v3144
    %v3336 = vld [vmem:[#allocation2 + $0x158] sm:$0xf]
    %v3337 = vld [vmem:[#allocation2 + $0x15c] sm:$0xf]
    %v3338 = vld [vmem:[#allocation2 + $0x160] sm:$0xf]
    %v3339 = vld [vmem:[#allocation2 + $0x164] sm:$0xf]
    %v3340 = vpack.c.bf16 %v3330, %v3329
    %v3341 = vpack.c.bf16 %v3331, %v3331
    %v3346 = vunpack.c.l.b16 %v3336
    %v3347 = vunpack.c.l.b16 %v3337
    %v3348 = vunpack.c.l.b16 %v3338
    %v3349 = vunpack.c.l.b16 %v3339
    %v3350 = vpack.c.b16 %v3347, %v3346
    %v3351 = vpack.c.b16 %v3349, %v3348
    %v3355 = vsel %vm828, %v3340, 0
    %v3358 = vsel %vm828, %v3341, 0
    %3360 = vmatprep.subr.bf16.mxu0 0
    %3361 = vmatpush1.bf16.msra.mxu0 0
    %3362 = vmatprep.subr.bf16.mxu0 0
    %3363 = vmatpush1.bf16.msra.mxu0 0
    %3364 = vmatprep.subr.bf16.mxu0 0
    %3365 = vmatpush1.bf16.msra.mxu0 0
    %3366 = vmatprep.subr.bf16.mxu0 0
    %3367 = vmatpush1.bf16.msra.mxu0 0
    %3368 = vmatprep.subr.bf16.mxu0 0
    %3369 = vmatpush1.bf16.msra.mxu0 0
    %3370 = vmatprep.subr.bf16.mxu0 0
    %3371 = vmatpush1.bf16.msra.mxu0 0
    %3372 = vmatprep.subr.bf16.mxu0 0
    %3373 = vmatpush1.bf16.msra.mxu0 %v3351
    %3374 = vmatprep.subr.bf16.mxu0 0
    %3375 = vmatpush1.bf16.msra.mxu0 %v3350
    %3376 = vmatprep.subr.bf16.mxu0 0
    %3377 = vmatpush2.bf16.msra.mxu0 0
    %3378 = vmatprep.subr.bf16.mxu0 0
    %3379 = vmatpush2.bf16.msra.mxu0 0
    %3380 = vmatprep.subr.bf16.mxu0 0
    %3381 = vmatpush2.bf16.msra.mxu0 0
    %3382 = vmatprep.subr.bf16.mxu0 0
    %3383 = vmatpush2.bf16.msra.mxu0 0
    %3384 = vmatprep.subr.bf16.mxu0 0
    %3385 = vmatpush2.bf16.msra.mxu0 0
    %3386 = vmatprep.subr.bf16.mxu0 0
    %3387 = vmatpush2.bf16.msra.mxu0 0
    %3388 = vmatprep.subr.bf16.mxu0 0
    %3389 = vmatpush2.bf16.msra.mxu0 0
    %3390 = vmatprep.subr.bf16.mxu0 0
    %3391 = vmatpush2.bf16.msra.mxu0 0
    %3392 = vmatprep.mubr.bf16.mxu0 0
    %3393 = vmatmul.mubr.bf16.gmra.mxu0 %v3355
    %v3394 = vpop.f32.mrf.mxu0
    %v3395 = vadd.f32 0.0, %v3394
    %v3396 = vpop.f32.mrf.mxu0
    %v3397 = vpop.f32.mrf.mxu0
    %v3398 = vadd.f32 0.0, %v3397
    %v3399 = vpop.f32.mrf.mxu0
    %3400 = vmatprep.mubr.bf16.mxu0 0
    %3401 = vmatmul.mubr.bf16.gmra.mxu0 %v3358
    %v3402 = vpop.f32.mrf.mxu0
    %v3403 = vadd.f32 0.0, %v3402
    %v3404 = vpop.f32.mrf.mxu0
    %v3405 = vpop.f32.mrf.mxu0
    %v3406 = vpop.f32.mrf.mxu0
    %3407 = vdwg.mxu0
    %v3408 = vld [vmem:[#allocation4 + $0x40] sm:$0x1]
    %v3409 = vpack.c.bf16 %v3398, %v3395
    %v3410 = vpack.c.bf16 %v3403, %v3403
    %v3412 = vsel %vm901, %v3410, 0
    %3414 = vmatprep.subr.bf16.mxu0 0
    %3415 = vmatpush1.bf16.msra.mxu0 0
    %3416 = vmatprep.subr.bf16.mxu0 0
    %3417 = vmatpush1.bf16.msra.mxu0 0
    %3418 = vmatprep.subr.bf16.mxu0 0
    %3419 = vmatpush1.bf16.msra.mxu0 0
    %3420 = vmatprep.subr.bf16.mxu0 0
    %3421 = vmatpush1.bf16.msra.mxu0 0
    %3422 = vmatprep.subr.bf16.mxu0 0
    %3423 = vmatpush1.bf16.msra.mxu0 0
    %3424 = vmatprep.subr.bf16.mxu0 0
    %3425 = vmatpush1.bf16.msra.mxu0 0
    %3426 = vmatprep.subr.bf16.mxu0 0
    %3427 = vmatpush1.bf16.msra.mxu0 %v3412
    %3428 = vmatprep.subr.bf16.mxu0 0
    %3429 = vmatpush1.bf16.msra.mxu0 %v3409
    %3430 = vmatprep.subr.bf16.mxu0 0
    %3431 = vmatpush2.bf16.msra.mxu0 0
    %3432 = vmatprep.subr.bf16.mxu0 0
    %3433 = vmatpush2.bf16.msra.mxu0 0
    %3434 = vmatprep.subr.bf16.mxu0 0
    %3435 = vmatpush2.bf16.msra.mxu0 0
    %3436 = vmatprep.subr.bf16.mxu0 0
    %3437 = vmatpush2.bf16.msra.mxu0 0
    %3438 = vmatprep.subr.bf16.mxu0 0
    %3439 = vmatpush2.bf16.msra.mxu0 0
    %3440 = vmatprep.subr.bf16.mxu0 0
    %3441 = vmatpush2.bf16.msra.mxu0 0
    %3442 = vmatprep.subr.bf16.mxu0 0
    %3443 = vmatpush2.bf16.msra.mxu0 0
    %3444 = vmatprep.subr.bf16.mxu0 0
    %3445 = vmatpush2.bf16.msra.mxu0 0
    %3446 = vmatprep.mubr.bf16.mxu0 0
    %3447 = vmatmul.mubr.bf16.gmra.mxu0 %v896
    %v3448 = vpop.f32.mrf.mxu0
    %v3449 = vadd.f32 0.0, %v3448
    %v3450 = vpop.f32.mrf.mxu0
    %v3451 = vpop.f32.mrf.mxu0
    %v3452 = vadd.f32 0.0, %v3451
    %v3453 = vpop.f32.mrf.mxu0
    %3454 = vmatprep.mubr.bf16.mxu0 0
    %3455 = vmatmul.mubr.bf16.gmra.mxu0 %v899
    %v3456 = vpop.f32.mrf.mxu0
    %v3457 = vadd.f32 0.0, %v3456
    %v3458 = vpop.f32.mrf.mxu0
    %v3459 = vpop.f32.mrf.mxu0
    %v3460 = vpop.f32.mrf.mxu0
    %3461 = vdwg.mxu0
    %v3462 = vlaneseq
    %v3463 = vshrl.u32 %v3462, 7
    %v3464 = vsub.s32 0, %v3463
    %v3465 = vrot.slane %v3408, %v3464
    %v3466 = vadd.f32 %v3465, %v3449
    %v3467 = vadd.f32 %v3465, %v3452
    %v3468 = vadd.f32 %v3465, %v3457
    %3471 = vrot.lane.b32.xlu0 %v3409, 96
    %v3472 = vpop.permute.xlu0 %3471
    %3473 = vrot.lane.b32.xlu0 %v3410, 96
    %v3474 = vpop.permute.xlu0 %3473
    %v3477 = vsel %vm901, %v3474, 0
    %3479 = vmatprep.subr.bf16.mxu0 0
    %3480 = vmatpush1.bf16.msra.mxu0 0
    %3481 = vmatprep.subr.bf16.mxu0 0
    %3482 = vmatpush1.bf16.msra.mxu0 0
    %3483 = vmatprep.subr.bf16.mxu0 0
    %3484 = vmatpush1.bf16.msra.mxu0 0
    %3485 = vmatprep.subr.bf16.mxu0 0
    %3486 = vmatpush1.bf16.msra.mxu0 0
    %3487 = vmatprep.subr.bf16.mxu0 0
    %3488 = vmatpush1.bf16.msra.mxu0 0
    %3489 = vmatprep.subr.bf16.mxu0 0
    %3490 = vmatpush1.bf16.msra.mxu0 0
    %3491 = vmatprep.subr.bf16.mxu0 0
    %3492 = vmatpush1.bf16.msra.mxu0 %v3477
    %3493 = vmatprep.subr.bf16.mxu0 0
    %3494 = vmatpush1.bf16.msra.mxu0 %v3472
    %3495 = vmatprep.subr.bf16.mxu0 0
    %3496 = vmatpush2.bf16.msra.mxu0 0
    %3497 = vmatprep.subr.bf16.mxu0 0
    %3498 = vmatpush2.bf16.msra.mxu0 0
    %3499 = vmatprep.subr.bf16.mxu0 0
    %3500 = vmatpush2.bf16.msra.mxu0 0
    %3501 = vmatprep.subr.bf16.mxu0 0
    %3502 = vmatpush2.bf16.msra.mxu0 0
    %3503 = vmatprep.subr.bf16.mxu0 0
    %3504 = vmatpush2.bf16.msra.mxu0 0
    %3505 = vmatprep.subr.bf16.mxu0 0
    %3506 = vmatpush2.bf16.msra.mxu0 0
    %3507 = vmatprep.subr.bf16.mxu0 0
    %3508 = vmatpush2.bf16.msra.mxu0 0
    %3509 = vmatprep.subr.bf16.mxu0 0
    %3510 = vmatpush2.bf16.msra.mxu0 0
    %3511 = vmatprep.mubr.bf16.mxu0 0
    %3512 = vmatmul.mubr.bf16.gmra.mxu0 %v976
    %v3513 = vpop.f32.mrf.mxu0
    %v3514 = vadd.f32 0.0, %v3513
    %v3515 = vpop.f32.mrf.mxu0
    %v3516 = vpop.f32.mrf.mxu0
    %v3517 = vadd.f32 0.0, %v3516
    %v3518 = vpop.f32.mrf.mxu0
    %3519 = vmatprep.mubr.bf16.mxu0 0
    %3520 = vmatmul.mubr.bf16.gmra.mxu0 %v979
    %v3521 = vpop.f32.mrf.mxu0
    %v3522 = vadd.f32 0.0, %v3521
    %v3523 = vpop.f32.mrf.mxu0
    %v3524 = vpop.f32.mrf.mxu0
    %v3525 = vpop.f32.mrf.mxu0
    %3526 = vdwg.mxu0
    %v3527 = vadd.f32 %v3466, %v3514
    %v3528 = vadd.f32 %v3467, %v3517
    %v3529 = vadd.f32 %v3468, %v3522
    %3530 = vrot.lane.b32.xlu0 %v3409, 64
    %v3531 = vpop.permute.xlu0 %3530
    %3532 = vrot.lane.b32.xlu0 %v3410, 64
    %v3533 = vpop.permute.xlu0 %3532
    %v3536 = vsel %vm901, %v3533, 0
    %3538 = vmatprep.subr.bf16.mxu0 0
    %3539 = vmatpush1.bf16.msra.mxu0 0
    %3540 = vmatprep.subr.bf16.mxu0 0
    %3541 = vmatpush1.bf16.msra.mxu0 0
    %3542 = vmatprep.subr.bf16.mxu0 0
    %3543 = vmatpush1.bf16.msra.mxu0 0
    %3544 = vmatprep.subr.bf16.mxu0 0
    %3545 = vmatpush1.bf16.msra.mxu0 0
    %3546 = vmatprep.subr.bf16.mxu0 0
    %3547 = vmatpush1.bf16.msra.mxu0 0
    %3548 = vmatprep.subr.bf16.mxu0 0
    %3549 = vmatpush1.bf16.msra.mxu0 0
    %3550 = vmatprep.subr.bf16.mxu0 0
    %3551 = vmatpush1.bf16.msra.mxu0 %v3536
    %3552 = vmatprep.subr.bf16.mxu0 0
    %3553 = vmatpush1.bf16.msra.mxu0 %v3531
    %3554 = vmatprep.subr.bf16.mxu0 0
    %3555 = vmatpush2.bf16.msra.mxu0 0
    %3556 = vmatprep.subr.bf16.mxu0 0
    %3557 = vmatpush2.bf16.msra.mxu0 0
    %3558 = vmatprep.subr.bf16.mxu0 0
    %3559 = vmatpush2.bf16.msra.mxu0 0
    %3560 = vmatprep.subr.bf16.mxu0 0
    %3561 = vmatpush2.bf16.msra.mxu0 0
    %3562 = vmatprep.subr.bf16.mxu0 0
    %3563 = vmatpush2.bf16.msra.mxu0 0
    %3564 = vmatprep.subr.bf16.mxu0 0
    %3565 = vmatpush2.bf16.msra.mxu0 0
    %3566 = vmatprep.subr.bf16.mxu0 0
    %3567 = vmatpush2.bf16.msra.mxu0 0
    %3568 = vmatprep.subr.bf16.mxu0 0
    %3569 = vmatpush2.bf16.msra.mxu0 0
    %3570 = vmatprep.mubr.bf16.mxu0 0
    %3571 = vmatmul.mubr.bf16.gmra.mxu0 %v1049
    %v3572 = vpop.f32.mrf.mxu0
    %v3573 = vadd.f32 0.0, %v3572
    %v3574 = vpop.f32.mrf.mxu0
    %v3575 = vpop.f32.mrf.mxu0
    %v3576 = vadd.f32 0.0, %v3575
    %v3577 = vpop.f32.mrf.mxu0
    %3578 = vmatprep.mubr.bf16.mxu0 0
    %3579 = vmatmul.mubr.bf16.gmra.mxu0 %v1052
    %v3580 = vpop.f32.mrf.mxu0
    %v3581 = vadd.f32 0.0, %v3580
    %v3582 = vpop.f32.mrf.mxu0
    %v3583 = vpop.f32.mrf.mxu0
    %v3584 = vpop.f32.mrf.mxu0
    %3585 = vdwg.mxu0
    %v3586 = vadd.f32 %v3527, %v3573
    %v3587 = vadd.f32 %v3528, %v3576
    %v3588 = vadd.f32 %v3529, %v3581
    %3589 = vrot.lane.b32.xlu0 %v3409, 32
    %v3590 = vpop.permute.xlu0 %3589
    %3591 = vrot.lane.b32.xlu0 %v3410, 32
    %v3592 = vpop.permute.xlu0 %3591
    %v3595 = vsel %vm901, %v3592, 0
    %3597 = vmatprep.subr.bf16.mxu0 0
    %3598 = vmatpush1.bf16.msra.mxu0 0
    %3599 = vmatprep.subr.bf16.mxu0 0
    %3600 = vmatpush1.bf16.msra.mxu0 0
    %3601 = vmatprep.subr.bf16.mxu0 0
    %3602 = vmatpush1.bf16.msra.mxu0 0
    %3603 = vmatprep.subr.bf16.mxu0 0
    %3604 = vmatpush1.bf16.msra.mxu0 0
    %3605 = vmatprep.subr.bf16.mxu0 0
    %3606 = vmatpush1.bf16.msra.mxu0 0
    %3607 = vmatprep.subr.bf16.mxu0 0
    %3608 = vmatpush1.bf16.msra.mxu0 0
    %3609 = vmatprep.subr.bf16.mxu0 0
    %3610 = vmatpush1.bf16.msra.mxu0 %v3595
    %3611 = vmatprep.subr.bf16.mxu0 0
    %3612 = vmatpush1.bf16.msra.mxu0 %v3590
    %3613 = vmatprep.subr.bf16.mxu0 0
    %3614 = vmatpush2.bf16.msra.mxu0 0
    %3615 = vmatprep.subr.bf16.mxu0 0
    %3616 = vmatpush2.bf16.msra.mxu0 0
    %3617 = vmatprep.subr.bf16.mxu0 0
    %3618 = vmatpush2.bf16.msra.mxu0 0
    %3619 = vmatprep.subr.bf16.mxu0 0
    %3620 = vmatpush2.bf16.msra.mxu0 0
    %3621 = vmatprep.subr.bf16.mxu0 0
    %3622 = vmatpush2.bf16.msra.mxu0 0
    %3623 = vmatprep.subr.bf16.mxu0 0
    %3624 = vmatpush2.bf16.msra.mxu0 0
    %3625 = vmatprep.subr.bf16.mxu0 0
    %3626 = vmatpush2.bf16.msra.mxu0 0
    %3627 = vmatprep.subr.bf16.mxu0 0
    %3628 = vmatpush2.bf16.msra.mxu0 0
    %3629 = vmatprep.mubr.bf16.mxu0 0
    %3630 = vmatmul.mubr.bf16.gmra.mxu0 %v1122
    %v3631 = vpop.f32.mrf.mxu0
    %v3632 = vadd.f32 0.0, %v3631
    %v3633 = vpop.f32.mrf.mxu0
    %v3634 = vpop.f32.mrf.mxu0
    %v3635 = vadd.f32 0.0, %v3634
    %v3636 = vpop.f32.mrf.mxu0
    %3637 = vmatprep.mubr.bf16.mxu0 0
    %3638 = vmatmul.mubr.bf16.gmra.mxu0 %v1125
    %v3639 = vpop.f32.mrf.mxu0
    %v3640 = vadd.f32 0.0, %v3639
    %v3641 = vpop.f32.mrf.mxu0
    %v3642 = vpop.f32.mrf.mxu0
    %v3643 = vpop.f32.mrf.mxu0
    %3644 = vdwg.mxu0
    %v3645 = vadd.f32 %v3586, %v3632
    %v3646 = vadd.f32 %v3587, %v3635
    %v3647 = vadd.f32 %v3588, %v3640
    %v3648 = vmul.f32 %v3329, 1.1
    %v3649 = vmul.f32 %v3330, 1.1
    %v3650 = vmul.f32 %v3331, 1.1
    %v3651 = vadd.f32 %v3645, %v3648
    %v3652 = vadd.f32 %v3646, %v3649
    %v3653 = vadd.f32 %v3647, %v3650
    %v3654 = vld [vmem:[#allocation2 + $0x168] sm:$0xf]
    %v3655 = vld [vmem:[#allocation2 + $0x16c] sm:$0xf]
    %v3656 = vld [vmem:[#allocation2 + $0x170] sm:$0xf]
    %v3657 = vld [vmem:[#allocation2 + $0x174] sm:$0xf]
    %v3658 = vld [vmem:[#allocation2 + $0x178] sm:$0xf]
    %v3659 = vld [vmem:[#allocation2 + $0x17c] sm:$0xf]
    %v3660 = vld [vmem:[#allocation2 + $0x180] sm:$0xf]
    %v3661 = vld [vmem:[#allocation2 + $0x184] sm:$0xf]
    %v3662 = vld [vmem:[#allocation2 + $0x188] sm:$0xf]
    %v3663 = vld [vmem:[#allocation2 + $0x18c] sm:$0xf]
    %v3664 = vld [vmem:[#allocation2 + $0x190] sm:$0xf]
    %v3665 = vld [vmem:[#allocation2 + $0x194] sm:$0xf]
    %v3666 = vpack.c.bf16 %v3652, %v3651
    %v3667 = vpack.c.bf16 %v3653, %v3653
    %v3672 = vunpack.c.l.b16 %v3654
    %v3673 = vunpack.c.l.b16 %v3655
    %v3674 = vunpack.c.l.b16 %v3656
    %v3675 = vunpack.c.l.b16 %v3657
    %v3676 = vpack.c.b16 %v3673, %v3672
    %v3677 = vpack.c.b16 %v3675, %v3674
    %v3681 = vsel %vm828, %v3666, 0
    %v3684 = vsel %vm828, %v3667, 0
    %3686 = vmatprep.subr.bf16.mxu0 0
    %3687 = vmatpush1.bf16.msra.mxu0 0
    %3688 = vmatprep.subr.bf16.mxu0 0
    %3689 = vmatpush1.bf16.msra.mxu0 0
    %3690 = vmatprep.subr.bf16.mxu0 0
    %3691 = vmatpush1.bf16.msra.mxu0 0
    %3692 = vmatprep.subr.bf16.mxu0 0
    %3693 = vmatpush1.bf16.msra.mxu0 0
    %3694 = vmatprep.subr.bf16.mxu0 0
    %3695 = vmatpush1.bf16.msra.mxu0 0
    %3696 = vmatprep.subr.bf16.mxu0 0
    %3697 = vmatpush1.bf16.msra.mxu0 0
    %3698 = vmatprep.subr.bf16.mxu0 0
    %3699 = vmatpush1.bf16.msra.mxu0 %v3677
    %3700 = vmatprep.subr.bf16.mxu0 0
    %3701 = vmatpush1.bf16.msra.mxu0 %v3676
    %3702 = vmatprep.subr.bf16.mxu0 0
    %3703 = vmatpush2.bf16.msra.mxu0 0
    %3704 = vmatprep.subr.bf16.mxu0 0
    %3705 = vmatpush2.bf16.msra.mxu0 0
    %3706 = vmatprep.subr.bf16.mxu0 0
    %3707 = vmatpush2.bf16.msra.mxu0 0
    %3708 = vmatprep.subr.bf16.mxu0 0
    %3709 = vmatpush2.bf16.msra.mxu0 0
    %3710 = vmatprep.subr.bf16.mxu0 0
    %3711 = vmatpush2.bf16.msra.mxu0 0
    %3712 = vmatprep.subr.bf16.mxu0 0
    %3713 = vmatpush2.bf16.msra.mxu0 0
    %3714 = vmatprep.subr.bf16.mxu0 0
    %3715 = vmatpush2.bf16.msra.mxu0 0
    %3716 = vmatprep.subr.bf16.mxu0 0
    %3717 = vmatpush2.bf16.msra.mxu0 0
    %3718 = vmatprep.mubr.bf16.mxu0 0
    %3719 = vmatmul.mubr.bf16.gmra.mxu0 %v3681
    %v3720 = vpop.f32.mrf.mxu0
    %v3721 = vadd.f32 0.0, %v3720
    %v3722 = vpop.f32.mrf.mxu0
    %v3723 = vpop.f32.mrf.mxu0
    %v3724 = vadd.f32 0.0, %v3723
    %v3725 = vpop.f32.mrf.mxu0
    %3726 = vmatprep.mubr.bf16.mxu0 0
    %3727 = vmatmul.mubr.bf16.gmra.mxu0 %v3684
    %v3728 = vpop.f32.mrf.mxu0
    %v3729 = vadd.f32 0.0, %v3728
    %v3730 = vpop.f32.mrf.mxu0
    %v3731 = vpop.f32.mrf.mxu0
    %v3732 = vpop.f32.mrf.mxu0
    %3733 = vdwg.mxu0
    %v3734 = vsel %vm372, %v3721, 0.0
    %v3735 = vsel %vm372, %v3724, 0.0
    %v3736 = vadd.f32 %v3734, %v3735
    %v3737 = vsel %vm372, %v3729, 0.0
    %v3738 = vadd.f32 %v3736, %v3737
    %v3739 = vrot.slane %v3738, 4
    %v3740 = vadd.f32 %v3738, %v3739
    %v3741 = vrot.slane %v3740, 2
    %v3742 = vadd.f32 %v3740, %v3741
    %v3743 = vrot.slane %v3742, 1
    %v3744 = vadd.f32 %v3742, %v3743
    %v3745 = vmul.f32 %v3721, %v3721
    %v3746 = vmul.f32 %v3724, %v3724
    %v3747 = vmul.f32 %v3729, %v3729
    %v3748 = vsel %vm372, %v3745, 0.0
    %v3749 = vsel %vm372, %v3746, 0.0
    %v3750 = vadd.f32 %v3748, %v3749
    %v3751 = vsel %vm372, %v3747, 0.0
    %v3752 = vadd.f32 %v3750, %v3751
    %v3753 = vrot.slane %v3752, 4
    %v3754 = vadd.f32 %v3752, %v3753
    %v3755 = vrot.slane %v3754, 2
    %v3756 = vadd.f32 %v3754, %v3755
    %v3757 = vrot.slane %v3756, 1
    %v3758 = vadd.f32 %v3756, %v3757
    %v3759 = vmul.f32 %v3744, 0.041666668
    %v3760 = vmul.f32 %v3758, 0.041666668
    %v3761 = vmul.f32 %v3759, %v3759
    %v3762 = vsub.f32 %v3760, %v3761
    %v3763 = vsub.f32 %v3721, %v3759
    %v3764 = vsub.f32 %v3724, %v3759
    %v3765 = vsub.f32 %v3729, %v3759
    %v3766 = vadd.f32 %v3762, 1e-05
    %v3767 = vrsqrt.pop %v3766
    %v3768 = vmul.f32 %v3763, %v3767
    %v3769 = vmul.f32 %v3764, %v3767
    %v3770 = vmul.f32 %v3765, %v3767
    %v3771 = vmax.f32 %v3768, 0.0
    %v3772 = vmax.f32 %v3769, 0.0
    %v3773 = vmax.f32 %v3770, 0.0
    %v3774 = vpack.c.bf16 %v3772, %v3771
    %v3775 = vpack.c.bf16 %v3773, %v3773
    %v3784 = vunpack.c.l.b16 %v3658
    %v3785 = vunpack.c.l.b16 %v3659
    %v3786 = vunpack.c.l.b16 %v3660
    %v3787 = vunpack.c.l.b16 %v3661
    %v3788 = vunpack.c.l.b16 %v3662
    %v3789 = vunpack.c.l.b16 %v3663
    %v3790 = vunpack.c.l.b16 %v3664
    %v3791 = vunpack.c.l.b16 %v3665
    %v3792 = vpack.c.b16 %v3785, %v3784
    %v3793 = vpack.c.b16 %v3787, %v3786
    %v3794 = vpack.c.b16 %v3789, %v3788
    %v3795 = vpack.c.b16 %v3791, %v3790
    %v3801 = vsel %vm372, %v3774, 0
    %v3804 = vsel %vm372, %v3775, 0
    %3806 = vmatprep.subr.bf16.mxu0 0
    %3807 = vmatpush1.bf16.msra.mxu0 0
    %3808 = vmatprep.subr.bf16.mxu0 0
    %3809 = vmatpush1.bf16.msra.mxu0 0
    %3810 = vmatprep.subr.bf16.mxu0 0
    %3811 = vmatpush1.bf16.msra.mxu0 0
    %3812 = vmatprep.subr.bf16.mxu0 0
    %3813 = vmatpush1.bf16.msra.mxu0 0
    %3814 = vmatprep.subr.bf16.mxu0 0
    %3815 = vmatpush1.bf16.msra.mxu0 %v3795
    %3816 = vmatprep.subr.bf16.mxu0 0
    %3817 = vmatpush1.bf16.msra.mxu0 %v3794
    %3818 = vmatprep.subr.bf16.mxu0 0
    %3819 = vmatpush1.bf16.msra.mxu0 %v3793
    %3820 = vmatprep.subr.bf16.mxu0 0
    %3821 = vmatpush1.bf16.msra.mxu0 %v3792
    %3822 = vmatprep.subr.bf16.mxu0 0
    %3823 = vmatpush2.bf16.msra.mxu0 0
    %3824 = vmatprep.subr.bf16.mxu0 0
    %3825 = vmatpush2.bf16.msra.mxu0 0
    %3826 = vmatprep.subr.bf16.mxu0 0
    %3827 = vmatpush2.bf16.msra.mxu0 0
    %3828 = vmatprep.subr.bf16.mxu0 0
    %3829 = vmatpush2.bf16.msra.mxu0 0
    %3830 = vmatprep.subr.bf16.mxu0 0
    %3831 = vmatpush2.bf16.msra.mxu0 0
    %3832 = vmatprep.subr.bf16.mxu0 0
    %3833 = vmatpush2.bf16.msra.mxu0 0
    %3834 = vmatprep.subr.bf16.mxu0 0
    %3835 = vmatpush2.bf16.msra.mxu0 0
    %3836 = vmatprep.subr.bf16.mxu0 0
    %3837 = vmatpush2.bf16.msra.mxu0 0
    %3838 = vmatprep.mubr.bf16.mxu0 0
    %3839 = vmatmul.mubr.bf16.gmra.mxu0 %v3801
    %v3840 = vpop.f32.mrf.mxu0
    %v3841 = vadd.f32 0.0, %v3840
    %v3842 = vpop.f32.mrf.mxu0
    %v3843 = vpop.f32.mrf.mxu0
    %v3844 = vadd.f32 0.0, %v3843
    %v3845 = vpop.f32.mrf.mxu0
    %3846 = vmatprep.mubr.bf16.mxu0 0
    %3847 = vmatmul.mubr.bf16.gmra.mxu0 %v3804
    %v3848 = vpop.f32.mrf.mxu0
    %v3849 = vadd.f32 0.0, %v3848
    %v3850 = vpop.f32.mrf.mxu0
    %v3851 = vpop.f32.mrf.mxu0
    %v3852 = vpop.f32.mrf.mxu0
    %3853 = vdwg.mxu0
    %v3854 = vsel %vm828, %v3841, 0.0
    %v3855 = vsel %vm828, %v3844, 0.0
    %v3856 = vadd.f32 %v3854, %v3855
    %v3857 = vsel %vm828, %v3849, 0.0
    %v3858 = vadd.f32 %v3856, %v3857
    %v3859 = vrot.slane %v3858, 4
    %v3860 = vadd.f32 %v3858, %v3859
    %v3861 = vrot.slane %v3860, 2
    %v3862 = vadd.f32 %v3860, %v3861
    %v3863 = vrot.slane %v3862, 1
    %v3864 = vadd.f32 %v3862, %v3863
    %v3865 = vmul.f32 %v3841, %v3841
    %v3866 = vmul.f32 %v3844, %v3844
    %v3867 = vmul.f32 %v3849, %v3849
    %v3868 = vsel %vm828, %v3865, 0.0
    %v3869 = vsel %vm828, %v3866, 0.0
    %v3870 = vadd.f32 %v3868, %v3869
    %v3871 = vsel %vm828, %v3867, 0.0
    %v3872 = vadd.f32 %v3870, %v3871
    %v3873 = vrot.slane %v3872, 4
    %v3874 = vadd.f32 %v3872, %v3873
    %v3875 = vrot.slane %v3874, 2
    %v3876 = vadd.f32 %v3874, %v3875
    %v3877 = vrot.slane %v3876, 1
    %v3878 = vadd.f32 %v3876, %v3877
    %v3879 = vmul.f32 %v3864, 0.041666668
    %v3880 = vmul.f32 %v3878, 0.041666668
    %v3881 = vmul.f32 %v3879, %v3879
    %v3882 = vsub.f32 %v3880, %v3881
    %v3883 = vsub.f32 %v3841, %v3879
    %v3884 = vsub.f32 %v3844, %v3879
    %v3885 = vsub.f32 %v3849, %v3879
    %v3886 = vadd.f32 %v3882, 1e-05
    %v3887 = vrsqrt.pop %v3886
    %v3888 = vmul.f32 %v3883, %v3887
    %v3889 = vmul.f32 %v3884, %v3887
    %v3890 = vmul.f32 %v3885, %v3887
    %v3891 = vmax.f32 %v3888, 0.0
    %v3892 = vmax.f32 %v3889, 0.0
    %v3893 = vmax.f32 %v3890, 0.0
    %v3894 = vld [vmem:[#allocation2 + $0x198] sm:$0xf]
    %v3895 = vld [vmem:[#allocation2 + $0x19c] sm:$0xf]
    %v3896 = vld [vmem:[#allocation2 + $0x1a0] sm:$0xf]
    %v3897 = vld [vmem:[#allocation2 + $0x1a4] sm:$0xf]
    %v3902 = vunpack.c.l.b16 %v3894
    %v3903 = vunpack.c.l.b16 %v3895
    %v3904 = vunpack.c.l.b16 %v3896
    %v3905 = vunpack.c.l.b16 %v3897
    %v3906 = vpack.c.b16 %v3903, %v3902
    %v3907 = vpack.c.b16 %v3905, %v3904
    %3910 = vmatprep.subr.bf16.mxu0 0
    %3911 = vmatpush1.bf16.msra.mxu0 0
    %3912 = vmatprep.subr.bf16.mxu0 0
    %3913 = vmatpush1.bf16.msra.mxu0 0
    %3914 = vmatprep.subr.bf16.mxu0 0
    %3915 = vmatpush1.bf16.msra.mxu0 0
    %3916 = vmatprep.subr.bf16.mxu0 0
    %3917 = vmatpush1.bf16.msra.mxu0 0
    %3918 = vmatprep.subr.bf16.mxu0 0
    %3919 = vmatpush1.bf16.msra.mxu0 0
    %3920 = vmatprep.subr.bf16.mxu0 0
    %3921 = vmatpush1.bf16.msra.mxu0 0
    %3922 = vmatprep.subr.bf16.mxu0 0
    %3923 = vmatpush1.bf16.msra.mxu0 %v3907
    %3924 = vmatprep.subr.bf16.mxu0 0
    %3925 = vmatpush1.bf16.msra.mxu0 %v3906
    %3926 = vmatprep.subr.bf16.mxu0 0
    %3927 = vmatpush2.bf16.msra.mxu0 0
    %3928 = vmatprep.subr.bf16.mxu0 0
    %3929 = vmatpush2.bf16.msra.mxu0 0
    %3930 = vmatprep.subr.bf16.mxu0 0
    %3931 = vmatpush2.bf16.msra.mxu0 0
    %3932 = vmatprep.subr.bf16.mxu0 0
    %3933 = vmatpush2.bf16.msra.mxu0 0
    %3934 = vmatprep.subr.bf16.mxu0 0
    %3935 = vmatpush2.bf16.msra.mxu0 0
    %3936 = vmatprep.subr.bf16.mxu0 0
    %3937 = vmatpush2.bf16.msra.mxu0 0
    %3938 = vmatprep.subr.bf16.mxu0 0
    %3939 = vmatpush2.bf16.msra.mxu0 0
    %3940 = vmatprep.subr.bf16.mxu0 0
    %3941 = vmatpush2.bf16.msra.mxu0 0
    %3942 = vmatprep.mubr.bf16.mxu0 0
    %3943 = vmatmul.mubr.bf16.gmra.mxu0 %v3355
    %v3944 = vpop.f32.mrf.mxu0
    %v3945 = vadd.f32 0.0, %v3944
    %v3946 = vpop.f32.mrf.mxu0
    %v3947 = vpop.f32.mrf.mxu0
    %v3948 = vadd.f32 0.0, %v3947
    %v3949 = vpop.f32.mrf.mxu0
    %3950 = vmatprep.mubr.bf16.mxu0 0
    %3951 = vmatmul.mubr.bf16.gmra.mxu0 %v3358
    %v3952 = vpop.f32.mrf.mxu0
    %v3953 = vadd.f32 0.0, %v3952
    %v3954 = vpop.f32.mrf.mxu0
    %v3955 = vpop.f32.mrf.mxu0
    %v3956 = vpop.f32.mrf.mxu0
    %3957 = vdwg.mxu0
    %v3958 = vld [vmem:[#allocation4 + $0x48] sm:$0x1]
    %v3959 = vpack.c.bf16 %v3948, %v3945
    %v3960 = vpack.c.bf16 %v3953, %v3953
    %v3962 = vsel %vm901, %v3960, 0
    %3964 = vmatprep.subr.bf16.mxu0 0
    %3965 = vmatpush1.bf16.msra.mxu0 0
    %3966 = vmatprep.subr.bf16.mxu0 0
    %3967 = vmatpush1.bf16.msra.mxu0 0
    %3968 = vmatprep.subr.bf16.mxu0 0
    %3969 = vmatpush1.bf16.msra.mxu0 0
    %3970 = vmatprep.subr.bf16.mxu0 0
    %3971 = vmatpush1.bf16.msra.mxu0 0
    %3972 = vmatprep.subr.bf16.mxu0 0
    %3973 = vmatpush1.bf16.msra.mxu0 0
    %3974 = vmatprep.subr.bf16.mxu0 0
    %3975 = vmatpush1.bf16.msra.mxu0 0
    %3976 = vmatprep.subr.bf16.mxu0 0
    %3977 = vmatpush1.bf16.msra.mxu0 %v3962
    %3978 = vmatprep.subr.bf16.mxu0 0
    %3979 = vmatpush1.bf16.msra.mxu0 %v3959
    %3980 = vmatprep.subr.bf16.mxu0 0
    %3981 = vmatpush2.bf16.msra.mxu0 0
    %3982 = vmatprep.subr.bf16.mxu0 0
    %3983 = vmatpush2.bf16.msra.mxu0 0
    %3984 = vmatprep.subr.bf16.mxu0 0
    %3985 = vmatpush2.bf16.msra.mxu0 0
    %3986 = vmatprep.subr.bf16.mxu0 0
    %3987 = vmatpush2.bf16.msra.mxu0 0
    %3988 = vmatprep.subr.bf16.mxu0 0
    %3989 = vmatpush2.bf16.msra.mxu0 0
    %3990 = vmatprep.subr.bf16.mxu0 0
    %3991 = vmatpush2.bf16.msra.mxu0 0
    %3992 = vmatprep.subr.bf16.mxu0 0
    %3993 = vmatpush2.bf16.msra.mxu0 0
    %3994 = vmatprep.subr.bf16.mxu0 0
    %3995 = vmatpush2.bf16.msra.mxu0 0
    %3996 = vmatprep.mubr.bf16.mxu0 0
    %3997 = vmatmul.mubr.bf16.gmra.mxu0 %v1500
    %v3998 = vpop.f32.mrf.mxu0
    %v3999 = vadd.f32 0.0, %v3998
    %v4000 = vpop.f32.mrf.mxu0
    %v4001 = vpop.f32.mrf.mxu0
    %v4002 = vadd.f32 0.0, %v4001
    %v4003 = vpop.f32.mrf.mxu0
    %4004 = vdwg.mxu0
    %v4005 = vlaneseq
    %v4006 = vshrl.u32 %v4005, 7
    %v4007 = vsub.s32 0, %v4006
    %v4008 = vrot.slane %v3958, %v4007
    %v4009 = vadd.f32 %v4008, %v3999
    %v4010 = vadd.f32 %v4008, %v4002
    %4013 = vrot.lane.b32.xlu0 %v3959, 96
    %v4014 = vpop.permute.xlu0 %4013
    %4015 = vrot.lane.b32.xlu0 %v3960, 96
    %v4016 = vpop.permute.xlu0 %4015
    %v4019 = vsel %vm901, %v4016, 0
    %4021 = vmatprep.subr.bf16.mxu0 0
    %4022 = vmatpush1.bf16.msra.mxu0 0
    %4023 = vmatprep.subr.bf16.mxu0 0
    %4024 = vmatpush1.bf16.msra.mxu0 0
    %4025 = vmatprep.subr.bf16.mxu0 0
    %4026 = vmatpush1.bf16.msra.mxu0 0
    %4027 = vmatprep.subr.bf16.mxu0 0
    %4028 = vmatpush1.bf16.msra.mxu0 0
    %4029 = vmatprep.subr.bf16.mxu0 0
    %4030 = vmatpush1.bf16.msra.mxu0 0
    %4031 = vmatprep.subr.bf16.mxu0 0
    %4032 = vmatpush1.bf16.msra.mxu0 0
    %4033 = vmatprep.subr.bf16.mxu0 0
    %4034 = vmatpush1.bf16.msra.mxu0 %v4019
    %4035 = vmatprep.subr.bf16.mxu0 0
    %4036 = vmatpush1.bf16.msra.mxu0 %v4014
    %4037 = vmatprep.subr.bf16.mxu0 0
    %4038 = vmatpush2.bf16.msra.mxu0 0
    %4039 = vmatprep.subr.bf16.mxu0 0
    %4040 = vmatpush2.bf16.msra.mxu0 0
    %4041 = vmatprep.subr.bf16.mxu0 0
    %4042 = vmatpush2.bf16.msra.mxu0 0
    %4043 = vmatprep.subr.bf16.mxu0 0
    %4044 = vmatpush2.bf16.msra.mxu0 0
    %4045 = vmatprep.subr.bf16.mxu0 0
    %4046 = vmatpush2.bf16.msra.mxu0 0
    %4047 = vmatprep.subr.bf16.mxu0 0
    %4048 = vmatpush2.bf16.msra.mxu0 0
    %4049 = vmatprep.subr.bf16.mxu0 0
    %4050 = vmatpush2.bf16.msra.mxu0 0
    %4051 = vmatprep.subr.bf16.mxu0 0
    %4052 = vmatpush2.bf16.msra.mxu0 0
    %4053 = vmatprep.mubr.bf16.mxu0 0
    %4054 = vmatmul.mubr.bf16.gmra.mxu0 %v1565
    %v4055 = vpop.f32.mrf.mxu0
    %v4056 = vadd.f32 0.0, %v4055
    %v4057 = vpop.f32.mrf.mxu0
    %v4058 = vpop.f32.mrf.mxu0
    %v4059 = vadd.f32 0.0, %v4058
    %v4060 = vpop.f32.mrf.mxu0
    %4061 = vdwg.mxu0
    %v4062 = vadd.f32 %v4009, %v4056
    %v4063 = vadd.f32 %v4010, %v4059
    %4064 = vrot.lane.b32.xlu0 %v3959, 64
    %v4065 = vpop.permute.xlu0 %4064
    %4066 = vrot.lane.b32.xlu0 %v3960, 64
    %v4067 = vpop.permute.xlu0 %4066
    %v4070 = vsel %vm901, %v4067, 0
    %4072 = vmatprep.subr.bf16.mxu0 0
    %4073 = vmatpush1.bf16.msra.mxu0 0
    %4074 = vmatprep.subr.bf16.mxu0 0
    %4075 = vmatpush1.bf16.msra.mxu0 0
    %4076 = vmatprep.subr.bf16.mxu0 0
    %4077 = vmatpush1.bf16.msra.mxu0 0
    %4078 = vmatprep.subr.bf16.mxu0 0
    %4079 = vmatpush1.bf16.msra.mxu0 0
    %4080 = vmatprep.subr.bf16.mxu0 0
    %4081 = vmatpush1.bf16.msra.mxu0 0
    %4082 = vmatprep.subr.bf16.mxu0 0
    %4083 = vmatpush1.bf16.msra.mxu0 0
    %4084 = vmatprep.subr.bf16.mxu0 0
    %4085 = vmatpush1.bf16.msra.mxu0 %v4070
    %4086 = vmatprep.subr.bf16.mxu0 0
    %4087 = vmatpush1.bf16.msra.mxu0 %v4065
    %4088 = vmatprep.subr.bf16.mxu0 0
    %4089 = vmatpush2.bf16.msra.mxu0 0
    %4090 = vmatprep.subr.bf16.mxu0 0
    %4091 = vmatpush2.bf16.msra.mxu0 0
    %4092 = vmatprep.subr.bf16.mxu0 0
    %4093 = vmatpush2.bf16.msra.mxu0 0
    %4094 = vmatprep.subr.bf16.mxu0 0
    %4095 = vmatpush2.bf16.msra.mxu0 0
    %4096 = vmatprep.subr.bf16.mxu0 0
    %4097 = vmatpush2.bf16.msra.mxu0 0
    %4098 = vmatprep.subr.bf16.mxu0 0
    %4099 = vmatpush2.bf16.msra.mxu0 0
    %4100 = vmatprep.subr.bf16.mxu0 0
    %4101 = vmatpush2.bf16.msra.mxu0 0
    %4102 = vmatprep.subr.bf16.mxu0 0
    %4103 = vmatpush2.bf16.msra.mxu0 0
    %4104 = vmatprep.mubr.bf16.mxu0 0
    %4105 = vmatmul.mubr.bf16.gmra.mxu0 %v1624
    %v4106 = vpop.f32.mrf.mxu0
    %v4107 = vadd.f32 0.0, %v4106
    %v4108 = vpop.f32.mrf.mxu0
    %v4109 = vpop.f32.mrf.mxu0
    %v4110 = vadd.f32 0.0, %v4109
    %v4111 = vpop.f32.mrf.mxu0
    %4112 = vdwg.mxu0
    %v4113 = vadd.f32 %v4062, %v4107
    %v4114 = vadd.f32 %v4063, %v4110
    %4115 = vrot.lane.b32.xlu0 %v3959, 32
    %v4116 = vpop.permute.xlu0 %4115
    %4117 = vrot.lane.b32.xlu0 %v3960, 32
    %v4118 = vpop.permute.xlu0 %4117
    %v4121 = vsel %vm901, %v4118, 0
    %4123 = vmatprep.subr.bf16.mxu0 0
    %4124 = vmatpush1.bf16.msra.mxu0 0
    %4125 = vmatprep.subr.bf16.mxu0 0
    %4126 = vmatpush1.bf16.msra.mxu0 0
    %4127 = vmatprep.subr.bf16.mxu0 0
    %4128 = vmatpush1.bf16.msra.mxu0 0
    %4129 = vmatprep.subr.bf16.mxu0 0
    %4130 = vmatpush1.bf16.msra.mxu0 0
    %4131 = vmatprep.subr.bf16.mxu0 0
    %4132 = vmatpush1.bf16.msra.mxu0 0
    %4133 = vmatprep.subr.bf16.mxu0 0
    %4134 = vmatpush1.bf16.msra.mxu0 0
    %4135 = vmatprep.subr.bf16.mxu0 0
    %4136 = vmatpush1.bf16.msra.mxu0 %v4121
    %4137 = vmatprep.subr.bf16.mxu0 0
    %4138 = vmatpush1.bf16.msra.mxu0 %v4116
    %4139 = vmatprep.subr.bf16.mxu0 0
    %4140 = vmatpush2.bf16.msra.mxu0 0
    %4141 = vmatprep.subr.bf16.mxu0 0
    %4142 = vmatpush2.bf16.msra.mxu0 0
    %4143 = vmatprep.subr.bf16.mxu0 0
    %4144 = vmatpush2.bf16.msra.mxu0 0
    %4145 = vmatprep.subr.bf16.mxu0 0
    %4146 = vmatpush2.bf16.msra.mxu0 0
    %4147 = vmatprep.subr.bf16.mxu0 0
    %4148 = vmatpush2.bf16.msra.mxu0 0
    %4149 = vmatprep.subr.bf16.mxu0 0
    %4150 = vmatpush2.bf16.msra.mxu0 0
    %4151 = vmatprep.subr.bf16.mxu0 0
    %4152 = vmatpush2.bf16.msra.mxu0 0
    %4153 = vmatprep.subr.bf16.mxu0 0
    %4154 = vmatpush2.bf16.msra.mxu0 0
    %4155 = vmatprep.mubr.bf16.mxu0 0
    %4156 = vmatmul.mubr.bf16.gmra.mxu0 %v1683
    %v4157 = vpop.f32.mrf.mxu0
    %v4158 = vadd.f32 0.0, %v4157
    %v4159 = vpop.f32.mrf.mxu0
    %v4160 = vpop.f32.mrf.mxu0
    %v4161 = vadd.f32 0.0, %v4160
    %v4162 = vpop.f32.mrf.mxu0
    %4163 = vdwg.mxu0
    %v4164 = vadd.f32 %v4113, %v4158
    %v4165 = vadd.f32 %v4114, %v4161
    %v4166 = vld [vmem:[#allocation2 + $0x1a8] sm:$0xf]
    %v4167 = vld [vmem:[#allocation2 + $0x1ac] sm:$0xf]
    %v4168 = vld [vmem:[#allocation2 + $0x1b0] sm:$0xf]
    %v4169 = vld [vmem:[#allocation2 + $0x1b4] sm:$0xf]
    %v4174 = vunpack.c.l.b16 %v4166
    %v4175 = vunpack.c.l.b16 %v4167
    %v4176 = vunpack.c.l.b16 %v4168
    %v4177 = vunpack.c.l.b16 %v4169
    %v4178 = vpack.c.b16 %v4175, %v4174
    %v4179 = vpack.c.b16 %v4177, %v4176
    %4182 = vmatprep.subr.bf16.mxu0 0
    %4183 = vmatpush1.bf16.msra.mxu0 0
    %4184 = vmatprep.subr.bf16.mxu0 0
    %4185 = vmatpush1.bf16.msra.mxu0 0
    %4186 = vmatprep.subr.bf16.mxu0 0
    %4187 = vmatpush1.bf16.msra.mxu0 0
    %4188 = vmatprep.subr.bf16.mxu0 0
    %4189 = vmatpush1.bf16.msra.mxu0 0
    %4190 = vmatprep.subr.bf16.mxu0 0
    %4191 = vmatpush1.bf16.msra.mxu0 0
    %4192 = vmatprep.subr.bf16.mxu0 0
    %4193 = vmatpush1.bf16.msra.mxu0 0
    %4194 = vmatprep.subr.bf16.mxu0 0
    %4195 = vmatpush1.bf16.msra.mxu0 %v4179
    %4196 = vmatprep.subr.bf16.mxu0 0
    %4197 = vmatpush1.bf16.msra.mxu0 %v4178
    %4198 = vmatprep.subr.bf16.mxu0 0
    %4199 = vmatpush2.bf16.msra.mxu0 0
    %4200 = vmatprep.subr.bf16.mxu0 0
    %4201 = vmatpush2.bf16.msra.mxu0 0
    %4202 = vmatprep.subr.bf16.mxu0 0
    %4203 = vmatpush2.bf16.msra.mxu0 0
    %4204 = vmatprep.subr.bf16.mxu0 0
    %4205 = vmatpush2.bf16.msra.mxu0 0
    %4206 = vmatprep.subr.bf16.mxu0 0
    %4207 = vmatpush2.bf16.msra.mxu0 0
    %4208 = vmatprep.subr.bf16.mxu0 0
    %4209 = vmatpush2.bf16.msra.mxu0 0
    %4210 = vmatprep.subr.bf16.mxu0 0
    %4211 = vmatpush2.bf16.msra.mxu0 0
    %4212 = vmatprep.subr.bf16.mxu0 0
    %4213 = vmatpush2.bf16.msra.mxu0 0
    %4214 = vmatprep.mubr.bf16.mxu0 0
    %4215 = vmatmul.mubr.bf16.gmra.mxu0 %v3355
    %v4216 = vpop.f32.mrf.mxu0
    %v4217 = vadd.f32 0.0, %v4216
    %v4218 = vpop.f32.mrf.mxu0
    %v4219 = vpop.f32.mrf.mxu0
    %v4220 = vadd.f32 0.0, %v4219
    %v4221 = vpop.f32.mrf.mxu0
    %4222 = vmatprep.mubr.bf16.mxu0 0
    %4223 = vmatmul.mubr.bf16.gmra.mxu0 %v3358
    %v4224 = vpop.f32.mrf.mxu0
    %v4225 = vadd.f32 0.0, %v4224
    %v4226 = vpop.f32.mrf.mxu0
    %v4227 = vpop.f32.mrf.mxu0
    %v4228 = vpop.f32.mrf.mxu0
    %4229 = vdwg.mxu0
    %v4230 = vld [vmem:[#allocation4 + $0x50] sm:$0x1]
    %v4231 = vpack.c.bf16 %v4220, %v4217
    %v4232 = vpack.c.bf16 %v4225, %v4225
    %v4234 = vsel %vm901, %v4232, 0
    %4236 = vmatprep.subr.bf16.mxu0 0
    %4237 = vmatpush1.bf16.msra.mxu0 0
    %4238 = vmatprep.subr.bf16.mxu0 0
    %4239 = vmatpush1.bf16.msra.mxu0 0
    %4240 = vmatprep.subr.bf16.mxu0 0
    %4241 = vmatpush1.bf16.msra.mxu0 0
    %4242 = vmatprep.subr.bf16.mxu0 0
    %4243 = vmatpush1.bf16.msra.mxu0 0
    %4244 = vmatprep.subr.bf16.mxu0 0
    %4245 = vmatpush1.bf16.msra.mxu0 0
    %4246 = vmatprep.subr.bf16.mxu0 0
    %4247 = vmatpush1.bf16.msra.mxu0 0
    %4248 = vmatprep.subr.bf16.mxu0 0
    %4249 = vmatpush1.bf16.msra.mxu0 %v4234
    %4250 = vmatprep.subr.bf16.mxu0 0
    %4251 = vmatpush1.bf16.msra.mxu0 %v4231
    %4252 = vmatprep.subr.bf16.mxu0 0
    %4253 = vmatpush2.bf16.msra.mxu0 0
    %4254 = vmatprep.subr.bf16.mxu0 0
    %4255 = vmatpush2.bf16.msra.mxu0 0
    %4256 = vmatprep.subr.bf16.mxu0 0
    %4257 = vmatpush2.bf16.msra.mxu0 0
    %4258 = vmatprep.subr.bf16.mxu0 0
    %4259 = vmatpush2.bf16.msra.mxu0 0
    %4260 = vmatprep.subr.bf16.mxu0 0
    %4261 = vmatpush2.bf16.msra.mxu0 0
    %4262 = vmatprep.subr.bf16.mxu0 0
    %4263 = vmatpush2.bf16.msra.mxu0 0
    %4264 = vmatprep.subr.bf16.mxu0 0
    %4265 = vmatpush2.bf16.msra.mxu0 0
    %4266 = vmatprep.subr.bf16.mxu0 0
    %4267 = vmatpush2.bf16.msra.mxu0 0
    %4268 = vmatprep.mubr.bf16.mxu0 0
    %4269 = vmatmul.mubr.bf16.gmra.mxu0 %v1804
    %v4270 = vpop.f32.mrf.mxu0
    %v4271 = vadd.f32 0.0, %v4270
    %v4272 = vpop.f32.mrf.mxu0
    %v4273 = vpop.f32.mrf.mxu0
    %v4274 = vadd.f32 0.0, %v4273
    %v4275 = vpop.f32.mrf.mxu0
    %4276 = vdwg.mxu0
    %v4277 = vlaneseq
    %v4278 = vshrl.u32 %v4277, 7
    %v4279 = vsub.s32 0, %v4278
    %v4280 = vrot.slane %v4230, %v4279
    %v4281 = vadd.f32 %v4280, %v4271
    %v4282 = vadd.f32 %v4280, %v4274
    %4285 = vrot.lane.b32.xlu0 %v4231, 96
    %v4286 = vpop.permute.xlu0 %4285
    %4287 = vrot.lane.b32.xlu0 %v4232, 96
    %v4288 = vpop.permute.xlu0 %4287
    %v4291 = vsel %vm901, %v4288, 0
    %4293 = vmatprep.subr.bf16.mxu0 0
    %4294 = vmatpush1.bf16.msra.mxu0 0
    %4295 = vmatprep.subr.bf16.mxu0 0
    %4296 = vmatpush1.bf16.msra.mxu0 0
    %4297 = vmatprep.subr.bf16.mxu0 0
    %4298 = vmatpush1.bf16.msra.mxu0 0
    %4299 = vmatprep.subr.bf16.mxu0 0
    %4300 = vmatpush1.bf16.msra.mxu0 0
    %4301 = vmatprep.subr.bf16.mxu0 0
    %4302 = vmatpush1.bf16.msra.mxu0 0
    %4303 = vmatprep.subr.bf16.mxu0 0
    %4304 = vmatpush1.bf16.msra.mxu0 0
    %4305 = vmatprep.subr.bf16.mxu0 0
    %4306 = vmatpush1.bf16.msra.mxu0 %v4291
    %4307 = vmatprep.subr.bf16.mxu0 0
    %4308 = vmatpush1.bf16.msra.mxu0 %v4286
    %4309 = vmatprep.subr.bf16.mxu0 0
    %4310 = vmatpush2.bf16.msra.mxu0 0
    %4311 = vmatprep.subr.bf16.mxu0 0
    %4312 = vmatpush2.bf16.msra.mxu0 0
    %4313 = vmatprep.subr.bf16.mxu0 0
    %4314 = vmatpush2.bf16.msra.mxu0 0
    %4315 = vmatprep.subr.bf16.mxu0 0
    %4316 = vmatpush2.bf16.msra.mxu0 0
    %4317 = vmatprep.subr.bf16.mxu0 0
    %4318 = vmatpush2.bf16.msra.mxu0 0
    %4319 = vmatprep.subr.bf16.mxu0 0
    %4320 = vmatpush2.bf16.msra.mxu0 0
    %4321 = vmatprep.subr.bf16.mxu0 0
    %4322 = vmatpush2.bf16.msra.mxu0 0
    %4323 = vmatprep.subr.bf16.mxu0 0
    %4324 = vmatpush2.bf16.msra.mxu0 0
    %4325 = vmatprep.mubr.bf16.mxu0 0
    %4326 = vmatmul.mubr.bf16.gmra.mxu0 %v1869
    %v4327 = vpop.f32.mrf.mxu0
    %v4328 = vadd.f32 0.0, %v4327
    %v4329 = vpop.f32.mrf.mxu0
    %v4330 = vpop.f32.mrf.mxu0
    %v4331 = vadd.f32 0.0, %v4330
    %v4332 = vpop.f32.mrf.mxu0
    %4333 = vdwg.mxu0
    %v4334 = vadd.f32 %v4281, %v4328
    %v4335 = vadd.f32 %v4282, %v4331
    %4336 = vrot.lane.b32.xlu0 %v4231, 64
    %v4337 = vpop.permute.xlu0 %4336
    %4338 = vrot.lane.b32.xlu0 %v4232, 64
    %v4339 = vpop.permute.xlu0 %4338
    %v4342 = vsel %vm901, %v4339, 0
    %4344 = vmatprep.subr.bf16.mxu0 0
    %4345 = vmatpush1.bf16.msra.mxu0 0
    %4346 = vmatprep.subr.bf16.mxu0 0
    %4347 = vmatpush1.bf16.msra.mxu0 0
    %4348 = vmatprep.subr.bf16.mxu0 0
    %4349 = vmatpush1.bf16.msra.mxu0 0
    %4350 = vmatprep.subr.bf16.mxu0 0
    %4351 = vmatpush1.bf16.msra.mxu0 0
    %4352 = vmatprep.subr.bf16.mxu0 0
    %4353 = vmatpush1.bf16.msra.mxu0 0
    %4354 = vmatprep.subr.bf16.mxu0 0
    %4355 = vmatpush1.bf16.msra.mxu0 0
    %4356 = vmatprep.subr.bf16.mxu0 0
    %4357 = vmatpush1.bf16.msra.mxu0 %v4342
    %4358 = vmatprep.subr.bf16.mxu0 0
    %4359 = vmatpush1.bf16.msra.mxu0 %v4337
    %4360 = vmatprep.subr.bf16.mxu0 0
    %4361 = vmatpush2.bf16.msra.mxu0 0
    %4362 = vmatprep.subr.bf16.mxu0 0
    %4363 = vmatpush2.bf16.msra.mxu0 0
    %4364 = vmatprep.subr.bf16.mxu0 0
    %4365 = vmatpush2.bf16.msra.mxu0 0
    %4366 = vmatprep.subr.bf16.mxu0 0
    %4367 = vmatpush2.bf16.msra.mxu0 0
    %4368 = vmatprep.subr.bf16.mxu0 0
    %4369 = vmatpush2.bf16.msra.mxu0 0
    %4370 = vmatprep.subr.bf16.mxu0 0
    %4371 = vmatpush2.bf16.msra.mxu0 0
    %4372 = vmatprep.subr.bf16.mxu0 0
    %4373 = vmatpush2.bf16.msra.mxu0 0
    %4374 = vmatprep.subr.bf16.mxu0 0
    %4375 = vmatpush2.bf16.msra.mxu0 0
    %4376 = vmatprep.mubr.bf16.mxu0 0
    %4377 = vmatmul.mubr.bf16.gmra.mxu0 %v1928
    %v4378 = vpop.f32.mrf.mxu0
    %v4379 = vadd.f32 0.0, %v4378
    %v4380 = vpop.f32.mrf.mxu0
    %v4381 = vpop.f32.mrf.mxu0
    %v4382 = vadd.f32 0.0, %v4381
    %v4383 = vpop.f32.mrf.mxu0
    %4384 = vdwg.mxu0
    %v4385 = vadd.f32 %v4334, %v4379
    %v4386 = vadd.f32 %v4335, %v4382
    %4387 = vrot.lane.b32.xlu0 %v4231, 32
    %v4388 = vpop.permute.xlu0 %4387
    %4389 = vrot.lane.b32.xlu0 %v4232, 32
    %v4390 = vpop.permute.xlu0 %4389
    %v4393 = vsel %vm901, %v4390, 0
    %4395 = vmatprep.subr.bf16.mxu0 0
    %4396 = vmatpush1.bf16.msra.mxu0 0
    %4397 = vmatprep.subr.bf16.mxu0 0
    %4398 = vmatpush1.bf16.msra.mxu0 0
    %4399 = vmatprep.subr.bf16.mxu0 0
    %4400 = vmatpush1.bf16.msra.mxu0 0
    %4401 = vmatprep.subr.bf16.mxu0 0
    %4402 = vmatpush1.bf16.msra.mxu0 0
    %4403 = vmatprep.subr.bf16.mxu0 0
    %4404 = vmatpush1.bf16.msra.mxu0 0
    %4405 = vmatprep.subr.bf16.mxu0 0
    %4406 = vmatpush1.bf16.msra.mxu0 0
    %4407 = vmatprep.subr.bf16.mxu0 0
    %4408 = vmatpush1.bf16.msra.mxu0 %v4393
    %4409 = vmatprep.subr.bf16.mxu0 0
    %4410 = vmatpush1.bf16.msra.mxu0 %v4388
    %4411 = vmatprep.subr.bf16.mxu0 0
    %4412 = vmatpush2.bf16.msra.mxu0 0
    %4413 = vmatprep.subr.bf16.mxu0 0
    %4414 = vmatpush2.bf16.msra.mxu0 0
    %4415 = vmatprep.subr.bf16.mxu0 0
    %4416 = vmatpush2.bf16.msra.mxu0 0
    %4417 = vmatprep.subr.bf16.mxu0 0
    %4418 = vmatpush2.bf16.msra.mxu0 0
    %4419 = vmatprep.subr.bf16.mxu0 0
    %4420 = vmatpush2.bf16.msra.mxu0 0
    %4421 = vmatprep.subr.bf16.mxu0 0
    %4422 = vmatpush2.bf16.msra.mxu0 0
    %4423 = vmatprep.subr.bf16.mxu0 0
    %4424 = vmatpush2.bf16.msra.mxu0 0
    %4425 = vmatprep.subr.bf16.mxu0 0
    %4426 = vmatpush2.bf16.msra.mxu0 0
    %4427 = vmatprep.mubr.bf16.mxu0 0
    %4428 = vmatmul.mubr.bf16.gmra.mxu0 %v1987
    %v4429 = vpop.f32.mrf.mxu0
    %v4430 = vadd.f32 0.0, %v4429
    %v4431 = vpop.f32.mrf.mxu0
    %v4432 = vpop.f32.mrf.mxu0
    %v4433 = vadd.f32 0.0, %v4432
    %v4434 = vpop.f32.mrf.mxu0
    %4435 = vdwg.mxu0
    %v4436 = vadd.f32 %v4385, %v4430
    %v4437 = vadd.f32 %v4386, %v4433
    %v4438 = vld [vmem:[#allocation2 + $0x1b8] sm:$0xf]
    %v4439 = vld [vmem:[#allocation2 + $0x1bc] sm:$0xf]
    %v4440 = vld [vmem:[#allocation2 + $0x1c0] sm:$0xf]
    %v4441 = vld [vmem:[#allocation2 + $0x1c4] sm:$0xf]
    %v4442 = vld [vmem:[#allocation2 + $0x1c8] sm:$0xf]
    %v4443 = vld [vmem:[#allocation2 + $0x1cc] sm:$0xf]
    %v4444 = vld [vmem:[#allocation2 + $0x1d0] sm:$0xf]
    %v4445 = vld [vmem:[#allocation2 + $0x1d4] sm:$0xf]
    %v4446 = vld [vmem:[#allocation4 + $0x58] sm:$0x1]
    %v4447 = vpack.c.bf16 %v4165, %v4164
    %v4448 = vpack.c.bf16 %v3333, %v3332
    %v4453 = vunpack.c.l.b16 %v4442
    %v4454 = vunpack.c.l.b16 %v4443
    %v4455 = vunpack.c.l.b16 %v4444
    %v4456 = vunpack.c.l.b16 %v4445
    %v4457 = vpack.c.b16 %v4454, %v4453
    %v4458 = vpack.c.b16 %v4456, %v4455
    %v4462 = vsel %vm828, %v4448, 0
    %4464 = vmatprep.subr.bf16.mxu0 0
    %4465 = vmatpush1.bf16.msra.mxu0 0
    %4466 = vmatprep.subr.bf16.mxu0 0
    %4467 = vmatpush1.bf16.msra.mxu0 0
    %4468 = vmatprep.subr.bf16.mxu0 0
    %4469 = vmatpush1.bf16.msra.mxu0 0
    %4470 = vmatprep.subr.bf16.mxu0 0
    %4471 = vmatpush1.bf16.msra.mxu0 0
    %4472 = vmatprep.subr.bf16.mxu0 0
    %4473 = vmatpush1.bf16.msra.mxu0 0
    %4474 = vmatprep.subr.bf16.mxu0 0
    %4475 = vmatpush1.bf16.msra.mxu0 0
    %4476 = vmatprep.subr.bf16.mxu0 0
    %4477 = vmatpush1.bf16.msra.mxu0 %v4458
    %4478 = vmatprep.subr.bf16.mxu0 0
    %4479 = vmatpush1.bf16.msra.mxu0 %v4457
    %4480 = vmatprep.subr.bf16.mxu0 0
    %4481 = vmatpush2.bf16.msra.mxu0 0
    %4482 = vmatprep.subr.bf16.mxu0 0
    %4483 = vmatpush2.bf16.msra.mxu0 0
    %4484 = vmatprep.subr.bf16.mxu0 0
    %4485 = vmatpush2.bf16.msra.mxu0 0
    %4486 = vmatprep.subr.bf16.mxu0 0
    %4487 = vmatpush2.bf16.msra.mxu0 0
    %4488 = vmatprep.subr.bf16.mxu0 0
    %4489 = vmatpush2.bf16.msra.mxu0 0
    %4490 = vmatprep.subr.bf16.mxu0 0
    %4491 = vmatpush2.bf16.msra.mxu0 0
    %4492 = vmatprep.subr.bf16.mxu0 0
    %4493 = vmatpush2.bf16.msra.mxu0 0
    %4494 = vmatprep.subr.bf16.mxu0 0
    %4495 = vmatpush2.bf16.msra.mxu0 0
    %4496 = vmatprep.mubr.bf16.mxu0 0
    %4497 = vmatmul.mubr.bf16.gmra.mxu0 %v4462
    %v4498 = vpop.f32.mrf.mxu0
    %v4499 = vadd.f32 0.0, %v4498
    %v4500 = vpop.f32.mrf.mxu0
    %v4501 = vpop.f32.mrf.mxu0
    %v4502 = vadd.f32 0.0, %v4501
    %v4503 = vpop.f32.mrf.mxu0
    %4504 = vdwg.mxu0
    %v4509 = vunpack.c.l.b16 %v4438
    %v4510 = vunpack.c.l.b16 %v4439
    %v4511 = vunpack.c.l.b16 %v4440
    %v4512 = vunpack.c.l.b16 %v4441
    %v4513 = vpack.c.b16 %v4510, %v4509
    %v4514 = vpack.c.b16 %v4512, %v4511
    %v4518 = vsel %vm828, %v4447, 0
    %4520 = vmatprep.subr.bf16.mxu0 0
    %4521 = vmatpush1.bf16.msra.mxu0 0
    %4522 = vmatprep.subr.bf16.mxu0 0
    %4523 = vmatpush1.bf16.msra.mxu0 0
    %4524 = vmatprep.subr.bf16.mxu0 0
    %4525 = vmatpush1.bf16.msra.mxu0 0
    %4526 = vmatprep.subr.bf16.mxu0 0
    %4527 = vmatpush1.bf16.msra.mxu0 0
    %4528 = vmatprep.subr.bf16.mxu0 0
    %4529 = vmatpush1.bf16.msra.mxu0 0
    %4530 = vmatprep.subr.bf16.mxu0 0
    %4531 = vmatpush1.bf16.msra.mxu0 0
    %4532 = vmatprep.subr.bf16.mxu0 0
    %4533 = vmatpush1.bf16.msra.mxu0 %v4514
    %4534 = vmatprep.subr.bf16.mxu0 0
    %4535 = vmatpush1.bf16.msra.mxu0 %v4513
    %4536 = vmatprep.subr.bf16.mxu0 0
    %4537 = vmatpush2.bf16.msra.mxu0 0
    %4538 = vmatprep.subr.bf16.mxu0 0
    %4539 = vmatpush2.bf16.msra.mxu0 0
    %4540 = vmatprep.subr.bf16.mxu0 0
    %4541 = vmatpush2.bf16.msra.mxu0 0
    %4542 = vmatprep.subr.bf16.mxu0 0
    %4543 = vmatpush2.bf16.msra.mxu0 0
    %4544 = vmatprep.subr.bf16.mxu0 0
    %4545 = vmatpush2.bf16.msra.mxu0 0
    %4546 = vmatprep.subr.bf16.mxu0 0
    %4547 = vmatpush2.bf16.msra.mxu0 0
    %4548 = vmatprep.subr.bf16.mxu0 0
    %4549 = vmatpush2.bf16.msra.mxu0 0
    %4550 = vmatprep.subr.bf16.mxu0 0
    %4551 = vmatpush2.bf16.msra.mxu0 0
    %4552 = vmatprep.mubr.bf16.mxu0 0
    %4553 = vmatmul.mubr.bf16.gmra.mxu0 %v4518
    %v4554 = vpop.f32.mrf.mxu0
    %v4555 = vadd.f32 %v4499, %v4554
    %v4556 = vpop.f32.mrf.mxu0
    %v4557 = vpop.f32.mrf.mxu0
    %v4558 = vadd.f32 %v4502, %v4557
    %v4559 = vpop.f32.mrf.mxu0
    %4560 = vdwg.mxu0
    %v4561 = vpack.c.bf16 %v4558, %v4555
    %v4563 = vsel %vm2174, %v4561, 0
    %4565 = vmatprep.subr.bf16.mxu0 0
    %4566 = vmatpush1.bf16.msra.mxu0 0
    %4567 = vmatprep.subr.bf16.mxu0 0
    %4568 = vmatpush1.bf16.msra.mxu0 0
    %4569 = vmatprep.subr.bf16.mxu0 0
    %4570 = vmatpush1.bf16.msra.mxu0 0
    %4571 = vmatprep.subr.bf16.mxu0 0
    %4572 = vmatpush1.bf16.msra.mxu0 0
    %4573 = vmatprep.subr.bf16.mxu0 0
    %4574 = vmatpush1.bf16.msra.mxu0 0
    %4575 = vmatprep.subr.bf16.mxu0 0
    %4576 = vmatpush1.bf16.msra.mxu0 0
    %4577 = vmatprep.subr.bf16.mxu0 0
    %4578 = vmatpush1.bf16.msra.mxu0 0
    %4579 = vmatprep.subr.bf16.mxu0 0
    %4580 = vmatpush1.bf16.msra.mxu0 %v4563
    %4581 = vmatprep.subr.bf16.mxu0 0
    %4582 = vmatpush2.bf16.msra.mxu0 0
    %4583 = vmatprep.subr.bf16.mxu0 0
    %4584 = vmatpush2.bf16.msra.mxu0 0
    %4585 = vmatprep.subr.bf16.mxu0 0
    %4586 = vmatpush2.bf16.msra.mxu0 0
    %4587 = vmatprep.subr.bf16.mxu0 0
    %4588 = vmatpush2.bf16.msra.mxu0 0
    %4589 = vmatprep.subr.bf16.mxu0 0
    %4590 = vmatpush2.bf16.msra.mxu0 0
    %4591 = vmatprep.subr.bf16.mxu0 0
    %4592 = vmatpush2.bf16.msra.mxu0 0
    %4593 = vmatprep.subr.bf16.mxu0 0
    %4594 = vmatpush2.bf16.msra.mxu0 0
    %4595 = vmatprep.subr.bf16.mxu0 0
    %4596 = vmatpush2.bf16.msra.mxu0 0
    %4597 = vmatprep.mubr.bf16.mxu0 0
    %4598 = vmatmul.mubr.bf16.gmra.mxu0 %v2169
    %v4599 = vpop.f32.mrf.mxu0
    %v4600 = vadd.f32 0.0, %v4599
    %v4601 = vpop.f32.mrf.mxu0
    %v4602 = vpop.f32.mrf.mxu0
    %v4603 = vadd.f32 0.0, %v4602
    %v4604 = vpop.f32.mrf.mxu0
    %4605 = vmatprep.mubr.bf16.mxu0 0
    %4606 = vmatmul.mubr.bf16.gmra.mxu0 %v2172
    %v4607 = vpop.f32.mrf.mxu0
    %v4608 = vadd.f32 0.0, %v4607
    %v4609 = vpop.f32.mrf.mxu0
    %v4610 = vpop.f32.mrf.mxu0
    %v4611 = vpop.f32.mrf.mxu0
    %4612 = vdwg.mxu0
    %v4613 = vlaneseq
    %v4614 = vshrl.u32 %v4613, 7
    %v4615 = vsub.s32 0, %v4614
    %v4616 = vrot.slane %v4446, %v4615
    %v4617 = vadd.f32 %v4616, %v4600
    %v4618 = vadd.f32 %v4616, %v4603
    %v4619 = vadd.f32 %v4616, %v4608
    %4621 = vrot.lane.b32.xlu0 %v4561, 96
    %v4622 = vpop.permute.xlu0 %4621
    %v4624 = vsel %vm2174, %v4622, 0
    %4626 = vmatprep.subr.bf16.mxu0 0
    %4627 = vmatpush1.bf16.msra.mxu0 0
    %4628 = vmatprep.subr.bf16.mxu0 0
    %4629 = vmatpush1.bf16.msra.mxu0 0
    %4630 = vmatprep.subr.bf16.mxu0 0
    %4631 = vmatpush1.bf16.msra.mxu0 0
    %4632 = vmatprep.subr.bf16.mxu0 0
    %4633 = vmatpush1.bf16.msra.mxu0 0
    %4634 = vmatprep.subr.bf16.mxu0 0
    %4635 = vmatpush1.bf16.msra.mxu0 0
    %4636 = vmatprep.subr.bf16.mxu0 0
    %4637 = vmatpush1.bf16.msra.mxu0 0
    %4638 = vmatprep.subr.bf16.mxu0 0
    %4639 = vmatpush1.bf16.msra.mxu0 0
    %4640 = vmatprep.subr.bf16.mxu0 0
    %4641 = vmatpush1.bf16.msra.mxu0 %v4624
    %4642 = vmatprep.subr.bf16.mxu0 0
    %4643 = vmatpush2.bf16.msra.mxu0 0
    %4644 = vmatprep.subr.bf16.mxu0 0
    %4645 = vmatpush2.bf16.msra.mxu0 0
    %4646 = vmatprep.subr.bf16.mxu0 0
    %4647 = vmatpush2.bf16.msra.mxu0 0
    %4648 = vmatprep.subr.bf16.mxu0 0
    %4649 = vmatpush2.bf16.msra.mxu0 0
    %4650 = vmatprep.subr.bf16.mxu0 0
    %4651 = vmatpush2.bf16.msra.mxu0 0
    %4652 = vmatprep.subr.bf16.mxu0 0
    %4653 = vmatpush2.bf16.msra.mxu0 0
    %4654 = vmatprep.subr.bf16.mxu0 0
    %4655 = vmatpush2.bf16.msra.mxu0 0
    %4656 = vmatprep.subr.bf16.mxu0 0
    %4657 = vmatpush2.bf16.msra.mxu0 0
    %4658 = vmatprep.mubr.bf16.mxu0 0
    %4659 = vmatmul.mubr.bf16.gmra.mxu0 %v2245
    %v4660 = vpop.f32.mrf.mxu0
    %v4661 = vadd.f32 0.0, %v4660
    %v4662 = vpop.f32.mrf.mxu0
    %v4663 = vpop.f32.mrf.mxu0
    %v4664 = vadd.f32 0.0, %v4663
    %v4665 = vpop.f32.mrf.mxu0
    %4666 = vmatprep.mubr.bf16.mxu0 0
    %4667 = vmatmul.mubr.bf16.gmra.mxu0 %v2248
    %v4668 = vpop.f32.mrf.mxu0
    %v4669 = vadd.f32 0.0, %v4668
    %v4670 = vpop.f32.mrf.mxu0
    %v4671 = vpop.f32.mrf.mxu0
    %v4672 = vpop.f32.mrf.mxu0
    %4673 = vdwg.mxu0
    %v4674 = vadd.f32 %v4617, %v4661
    %v4675 = vadd.f32 %v4618, %v4664
    %v4676 = vadd.f32 %v4619, %v4669
    %v4677 = vpack.c.bf16 %v4437, %v4436
    %v4678 = vpack.c.bf16 %v3335, %v3334
    %v4680 = vsel %vm828, %v4678, 0
    %4682 = vmatprep.subr.bf16.mxu0 0
    %4683 = vmatpush1.bf16.msra.mxu0 0
    %4684 = vmatprep.subr.bf16.mxu0 0
    %4685 = vmatpush1.bf16.msra.mxu0 0
    %4686 = vmatprep.subr.bf16.mxu0 0
    %4687 = vmatpush1.bf16.msra.mxu0 0
    %4688 = vmatprep.subr.bf16.mxu0 0
    %4689 = vmatpush1.bf16.msra.mxu0 0
    %4690 = vmatprep.subr.bf16.mxu0 0
    %4691 = vmatpush1.bf16.msra.mxu0 0
    %4692 = vmatprep.subr.bf16.mxu0 0
    %4693 = vmatpush1.bf16.msra.mxu0 0
    %4694 = vmatprep.subr.bf16.mxu0 0
    %4695 = vmatpush1.bf16.msra.mxu0 %v4458
    %4696 = vmatprep.subr.bf16.mxu0 0
    %4697 = vmatpush1.bf16.msra.mxu0 %v4457
    %4698 = vmatprep.subr.bf16.mxu0 0
    %4699 = vmatpush2.bf16.msra.mxu0 0
    %4700 = vmatprep.subr.bf16.mxu0 0
    %4701 = vmatpush2.bf16.msra.mxu0 0
    %4702 = vmatprep.subr.bf16.mxu0 0
    %4703 = vmatpush2.bf16.msra.mxu0 0
    %4704 = vmatprep.subr.bf16.mxu0 0
    %4705 = vmatpush2.bf16.msra.mxu0 0
    %4706 = vmatprep.subr.bf16.mxu0 0
    %4707 = vmatpush2.bf16.msra.mxu0 0
    %4708 = vmatprep.subr.bf16.mxu0 0
    %4709 = vmatpush2.bf16.msra.mxu0 0
    %4710 = vmatprep.subr.bf16.mxu0 0
    %4711 = vmatpush2.bf16.msra.mxu0 0
    %4712 = vmatprep.subr.bf16.mxu0 0
    %4713 = vmatpush2.bf16.msra.mxu0 0
    %4714 = vmatprep.mubr.bf16.mxu0 0
    %4715 = vmatmul.mubr.bf16.gmra.mxu0 %v4680
    %v4716 = vpop.f32.mrf.mxu0
    %v4717 = vadd.f32 0.0, %v4716
    %v4718 = vpop.f32.mrf.mxu0
    %v4719 = vpop.f32.mrf.mxu0
    %v4720 = vadd.f32 0.0, %v4719
    %v4721 = vpop.f32.mrf.mxu0
    %4722 = vdwg.mxu0
    %v4724 = vsel %vm828, %v4677, 0
    %4726 = vmatprep.subr.bf16.mxu0 0
    %4727 = vmatpush1.bf16.msra.mxu0 0
    %4728 = vmatprep.subr.bf16.mxu0 0
    %4729 = vmatpush1.bf16.msra.mxu0 0
    %4730 = vmatprep.subr.bf16.mxu0 0
    %4731 = vmatpush1.bf16.msra.mxu0 0
    %4732 = vmatprep.subr.bf16.mxu0 0
    %4733 = vmatpush1.bf16.msra.mxu0 0
    %4734 = vmatprep.subr.bf16.mxu0 0
    %4735 = vmatpush1.bf16.msra.mxu0 0
    %4736 = vmatprep.subr.bf16.mxu0 0
    %4737 = vmatpush1.bf16.msra.mxu0 0
    %4738 = vmatprep.subr.bf16.mxu0 0
    %4739 = vmatpush1.bf16.msra.mxu0 %v4514
    %4740 = vmatprep.subr.bf16.mxu0 0
    %4741 = vmatpush1.bf16.msra.mxu0 %v4513
    %4742 = vmatprep.subr.bf16.mxu0 0
    %4743 = vmatpush2.bf16.msra.mxu0 0
    %4744 = vmatprep.subr.bf16.mxu0 0
    %4745 = vmatpush2.bf16.msra.mxu0 0
    %4746 = vmatprep.subr.bf16.mxu0 0
    %4747 = vmatpush2.bf16.msra.mxu0 0
    %4748 = vmatprep.subr.bf16.mxu0 0
    %4749 = vmatpush2.bf16.msra.mxu0 0
    %4750 = vmatprep.subr.bf16.mxu0 0
    %4751 = vmatpush2.bf16.msra.mxu0 0
    %4752 = vmatprep.subr.bf16.mxu0 0
    %4753 = vmatpush2.bf16.msra.mxu0 0
    %4754 = vmatprep.subr.bf16.mxu0 0
    %4755 = vmatpush2.bf16.msra.mxu0 0
    %4756 = vmatprep.subr.bf16.mxu0 0
    %4757 = vmatpush2.bf16.msra.mxu0 0
    %4758 = vmatprep.mubr.bf16.mxu0 0
    %4759 = vmatmul.mubr.bf16.gmra.mxu0 %v4724
    %v4760 = vpop.f32.mrf.mxu0
    %v4761 = vadd.f32 %v4717, %v4760
    %v4762 = vpop.f32.mrf.mxu0
    %v4763 = vpop.f32.mrf.mxu0
    %v4764 = vadd.f32 %v4720, %v4763
    %v4765 = vpop.f32.mrf.mxu0
    %4766 = vdwg.mxu0
    %v4767 = vpack.c.bf16 %v4764, %v4761
    %v4769 = vsel %vm76, %v4767, 0
    %4771 = vmatprep.subr.bf16.mxu0 0
    %4772 = vmatpush1.bf16.msra.mxu0 0
    %4773 = vmatprep.subr.bf16.mxu0 0
    %4774 = vmatpush1.bf16.msra.mxu0 0
    %4775 = vmatprep.subr.bf16.mxu0 0
    %4776 = vmatpush1.bf16.msra.mxu0 0
    %4777 = vmatprep.subr.bf16.mxu0 0
    %4778 = vmatpush1.bf16.msra.mxu0 0
    %4779 = vmatprep.subr.bf16.mxu0 0
    %4780 = vmatpush1.bf16.msra.mxu0 0
    %4781 = vmatprep.subr.bf16.mxu0 0
    %4782 = vmatpush1.bf16.msra.mxu0 0
    %4783 = vmatprep.subr.bf16.mxu0 0
    %4784 = vmatpush1.bf16.msra.mxu0 0
    %4785 = vmatprep.subr.bf16.mxu0 0
    %4786 = vmatpush1.bf16.msra.mxu0 %v4769
    %4787 = vmatprep.subr.bf16.mxu0 0
    %4788 = vmatpush2.bf16.msra.mxu0 0
    %4789 = vmatprep.subr.bf16.mxu0 0
    %4790 = vmatpush2.bf16.msra.mxu0 0
    %4791 = vmatprep.subr.bf16.mxu0 0
    %4792 = vmatpush2.bf16.msra.mxu0 0
    %4793 = vmatprep.subr.bf16.mxu0 0
    %4794 = vmatpush2.bf16.msra.mxu0 0
    %4795 = vmatprep.subr.bf16.mxu0 0
    %4796 = vmatpush2.bf16.msra.mxu0 0
    %4797 = vmatprep.subr.bf16.mxu0 0
    %4798 = vmatpush2.bf16.msra.mxu0 0
    %4799 = vmatprep.subr.bf16.mxu0 0
    %4800 = vmatpush2.bf16.msra.mxu0 0
    %4801 = vmatprep.subr.bf16.mxu0 0
    %4802 = vmatpush2.bf16.msra.mxu0 0
    %4803 = vmatprep.mubr.bf16.mxu0 0
    %4804 = vmatmul.mubr.bf16.gmra.mxu0 %v2404
    %v4805 = vpop.f32.mrf.mxu0
    %v4806 = vadd.f32 0.0, %v4805
    %v4807 = vpop.f32.mrf.mxu0
    %v4808 = vpop.f32.mrf.mxu0
    %v4809 = vadd.f32 0.0, %v4808
    %v4810 = vpop.f32.mrf.mxu0
    %4811 = vmatprep.mubr.bf16.mxu0 0
    %4812 = vmatmul.mubr.bf16.gmra.mxu0 %v2407
    %v4813 = vpop.f32.mrf.mxu0
    %v4814 = vadd.f32 0.0, %v4813
    %v4815 = vpop.f32.mrf.mxu0
    %v4816 = vpop.f32.mrf.mxu0
    %v4817 = vpop.f32.mrf.mxu0
    %4818 = vdwg.mxu0
    %v4819 = vadd.f32 %v4674, %v4806
    %v4820 = vadd.f32 %v4675, %v4809
    %v4821 = vadd.f32 %v4676, %v4814
    %4823 = vrot.lane.b32.xlu0 %v4767, 96
    %v4824 = vpop.permute.xlu0 %4823
    %v4826 = vsel %vm76, %v4824, 0
    %4828 = vmatprep.subr.bf16.mxu0 0
    %4829 = vmatpush1.bf16.msra.mxu0 0
    %4830 = vmatprep.subr.bf16.mxu0 0
    %4831 = vmatpush1.bf16.msra.mxu0 0
    %4832 = vmatprep.subr.bf16.mxu0 0
    %4833 = vmatpush1.bf16.msra.mxu0 0
    %4834 = vmatprep.subr.bf16.mxu0 0
    %4835 = vmatpush1.bf16.msra.mxu0 0
    %4836 = vmatprep.subr.bf16.mxu0 0
    %4837 = vmatpush1.bf16.msra.mxu0 0
    %4838 = vmatprep.subr.bf16.mxu0 0
    %4839 = vmatpush1.bf16.msra.mxu0 0
    %4840 = vmatprep.subr.bf16.mxu0 0
    %4841 = vmatpush1.bf16.msra.mxu0 0
    %4842 = vmatprep.subr.bf16.mxu0 0
    %4843 = vmatpush1.bf16.msra.mxu0 %v4826
    %4844 = vmatprep.subr.bf16.mxu0 0
    %4845 = vmatpush2.bf16.msra.mxu0 0
    %4846 = vmatprep.subr.bf16.mxu0 0
    %4847 = vmatpush2.bf16.msra.mxu0 0
    %4848 = vmatprep.subr.bf16.mxu0 0
    %4849 = vmatpush2.bf16.msra.mxu0 0
    %4850 = vmatprep.subr.bf16.mxu0 0
    %4851 = vmatpush2.bf16.msra.mxu0 0
    %4852 = vmatprep.subr.bf16.mxu0 0
    %4853 = vmatpush2.bf16.msra.mxu0 0
    %4854 = vmatprep.subr.bf16.mxu0 0
    %4855 = vmatpush2.bf16.msra.mxu0 0
    %4856 = vmatprep.subr.bf16.mxu0 0
    %4857 = vmatpush2.bf16.msra.mxu0 0
    %4858 = vmatprep.subr.bf16.mxu0 0
    %4859 = vmatpush2.bf16.msra.mxu0 0
    %4860 = vmatprep.mubr.bf16.mxu0 0
    %4861 = vmatmul.mubr.bf16.gmra.mxu0 %v2475
    %v4862 = vpop.f32.mrf.mxu0
    %v4863 = vadd.f32 0.0, %v4862
    %v4864 = vpop.f32.mrf.mxu0
    %v4865 = vpop.f32.mrf.mxu0
    %v4866 = vadd.f32 0.0, %v4865
    %v4867 = vpop.f32.mrf.mxu0
    %4868 = vmatprep.mubr.bf16.mxu0 0
    %4869 = vmatmul.mubr.bf16.gmra.mxu0 %v2478
    %v4870 = vpop.f32.mrf.mxu0
    %v4871 = vadd.f32 0.0, %v4870
    %v4872 = vpop.f32.mrf.mxu0
    %v4873 = vpop.f32.mrf.mxu0
    %v4874 = vpop.f32.mrf.mxu0
    %4875 = vdwg.mxu0
    %v4876 = vadd.f32 %v4819, %v4863
    %v4877 = vadd.f32 %v4820, %v4866
    %v4878 = vadd.f32 %v4821, %v4871
    %v4879 = vadd.f32 %v4876, %v3648
    %v4880 = vadd.f32 %v4877, %v3649
    %v4881 = vadd.f32 %v4878, %v3650
    %v4882 = vld [vmem:[#allocation2 + $0x1d8] sm:$0xf]
    %v4883 = vld [vmem:[#allocation2 + $0x1dc] sm:$0xf]
    %v4884 = vld [vmem:[#allocation2 + $0x1e0] sm:$0xf]
    %v4885 = vld [vmem:[#allocation2 + $0x1e4] sm:$0xf]
    %v4886 = vld [vmem:[#allocation2 + $0x1e8] sm:$0xf]
    %v4887 = vld [vmem:[#allocation2 + $0x1ec] sm:$0xf]
    %v4888 = vld [vmem:[#allocation2 + $0x1f0] sm:$0xf]
    %v4889 = vld [vmem:[#allocation2 + $0x1f4] sm:$0xf]
    %v4890 = vld [vmem:[#allocation2 + $0x1f8] sm:$0xf]
    %v4891 = vld [vmem:[#allocation2 + $0x1fc] sm:$0xf]
    %v4892 = vld [vmem:[#allocation2 + $0x200] sm:$0xf]
    %v4893 = vld [vmem:[#allocation2 + $0x204] sm:$0xf]
    %v4894 = vpack.c.bf16 %v4880, %v4879
    %v4895 = vpack.c.bf16 %v4881, %v4881
    %v4900 = vunpack.c.l.b16 %v4882
    %v4901 = vunpack.c.l.b16 %v4883
    %v4902 = vunpack.c.l.b16 %v4884
    %v4903 = vunpack.c.l.b16 %v4885
    %v4904 = vpack.c.b16 %v4901, %v4900
    %v4905 = vpack.c.b16 %v4903, %v4902
    %v4909 = vsel %vm828, %v4894, 0
    %v4912 = vsel %vm828, %v4895, 0
    %4914 = vmatprep.subr.bf16.mxu0 0
    %4915 = vmatpush1.bf16.msra.mxu0 0
    %4916 = vmatprep.subr.bf16.mxu0 0
    %4917 = vmatpush1.bf16.msra.mxu0 0
    %4918 = vmatprep.subr.bf16.mxu0 0
    %4919 = vmatpush1.bf16.msra.mxu0 0
    %4920 = vmatprep.subr.bf16.mxu0 0
    %4921 = vmatpush1.bf16.msra.mxu0 0
    %4922 = vmatprep.subr.bf16.mxu0 0
    %4923 = vmatpush1.bf16.msra.mxu0 0
    %4924 = vmatprep.subr.bf16.mxu0 0
    %4925 = vmatpush1.bf16.msra.mxu0 0
    %4926 = vmatprep.subr.bf16.mxu0 0
    %4927 = vmatpush1.bf16.msra.mxu0 %v4905
    %4928 = vmatprep.subr.bf16.mxu0 0
    %4929 = vmatpush1.bf16.msra.mxu0 %v4904
    %4930 = vmatprep.subr.bf16.mxu0 0
    %4931 = vmatpush2.bf16.msra.mxu0 0
    %4932 = vmatprep.subr.bf16.mxu0 0
    %4933 = vmatpush2.bf16.msra.mxu0 0
    %4934 = vmatprep.subr.bf16.mxu0 0
    %4935 = vmatpush2.bf16.msra.mxu0 0
    %4936 = vmatprep.subr.bf16.mxu0 0
    %4937 = vmatpush2.bf16.msra.mxu0 0
    %4938 = vmatprep.subr.bf16.mxu0 0
    %4939 = vmatpush2.bf16.msra.mxu0 0
    %4940 = vmatprep.subr.bf16.mxu0 0
    %4941 = vmatpush2.bf16.msra.mxu0 0
    %4942 = vmatprep.subr.bf16.mxu0 0
    %4943 = vmatpush2.bf16.msra.mxu0 0
    %4944 = vmatprep.subr.bf16.mxu0 0
    %4945 = vmatpush2.bf16.msra.mxu0 0
    %4946 = vmatprep.mubr.bf16.mxu0 0
    %4947 = vmatmul.mubr.bf16.gmra.mxu0 %v4909
    %v4948 = vpop.f32.mrf.mxu0
    %v4949 = vadd.f32 0.0, %v4948
    %v4950 = vpop.f32.mrf.mxu0
    %v4951 = vpop.f32.mrf.mxu0
    %v4952 = vadd.f32 0.0, %v4951
    %v4953 = vpop.f32.mrf.mxu0
    %4954 = vmatprep.mubr.bf16.mxu0 0
    %4955 = vmatmul.mubr.bf16.gmra.mxu0 %v4912
    %v4956 = vpop.f32.mrf.mxu0
    %v4957 = vadd.f32 0.0, %v4956
    %v4958 = vpop.f32.mrf.mxu0
    %v4959 = vpop.f32.mrf.mxu0
    %v4960 = vpop.f32.mrf.mxu0
    %4961 = vdwg.mxu0
    %v4962 = vsel %vm372, %v4949, 0.0
    %v4963 = vsel %vm372, %v4952, 0.0
    %v4964 = vadd.f32 %v4962, %v4963
    %v4965 = vsel %vm372, %v4957, 0.0
    %v4966 = vadd.f32 %v4964, %v4965
    %v4967 = vrot.slane %v4966, 4
    %v4968 = vadd.f32 %v4966, %v4967
    %v4969 = vrot.slane %v4968, 2
    %v4970 = vadd.f32 %v4968, %v4969
    %v4971 = vrot.slane %v4970, 1
    %v4972 = vadd.f32 %v4970, %v4971
    %v4973 = vmul.f32 %v4949, %v4949
    %v4974 = vmul.f32 %v4952, %v4952
    %v4975 = vmul.f32 %v4957, %v4957
    %v4976 = vsel %vm372, %v4973, 0.0
    %v4977 = vsel %vm372, %v4974, 0.0
    %v4978 = vadd.f32 %v4976, %v4977
    %v4979 = vsel %vm372, %v4975, 0.0
    %v4980 = vadd.f32 %v4978, %v4979
    %v4981 = vrot.slane %v4980, 4
    %v4982 = vadd.f32 %v4980, %v4981
    %v4983 = vrot.slane %v4982, 2
    %v4984 = vadd.f32 %v4982, %v4983
    %v4985 = vrot.slane %v4984, 1
    %v4986 = vadd.f32 %v4984, %v4985
    %v4987 = vmul.f32 %v4972, 0.041666668
    %v4988 = vmul.f32 %v4986, 0.041666668
    %v4989 = vmul.f32 %v4987, %v4987
    %v4990 = vsub.f32 %v4988, %v4989
    %v4991 = vsub.f32 %v4949, %v4987
    %v4992 = vsub.f32 %v4952, %v4987
    %v4993 = vsub.f32 %v4957, %v4987
    %v4994 = vadd.f32 %v4990, 1e-05
    %v4995 = vrsqrt.pop %v4994
    %v4996 = vmul.f32 %v4991, %v4995
    %v4997 = vmul.f32 %v4992, %v4995
    %v4998 = vmul.f32 %v4993, %v4995
    %v4999 = vmax.f32 %v4996, 0.0
    %v5000 = vmax.f32 %v4997, 0.0
    %v5001 = vmax.f32 %v4998, 0.0
    %v5002 = vpack.c.bf16 %v5000, %v4999
    %v5003 = vpack.c.bf16 %v5001, %v5001
    %v5012 = vunpack.c.l.b16 %v4886
    %v5013 = vunpack.c.l.b16 %v4887
    %v5014 = vunpack.c.l.b16 %v4888
    %v5015 = vunpack.c.l.b16 %v4889
    %v5016 = vunpack.c.l.b16 %v4890
    %v5017 = vunpack.c.l.b16 %v4891
    %v5018 = vunpack.c.l.b16 %v4892
    %v5019 = vunpack.c.l.b16 %v4893
    %v5020 = vpack.c.b16 %v5013, %v5012
    %v5021 = vpack.c.b16 %v5015, %v5014
    %v5022 = vpack.c.b16 %v5017, %v5016
    %v5023 = vpack.c.b16 %v5019, %v5018
    %v5029 = vsel %vm372, %v5002, 0
    %v5032 = vsel %vm372, %v5003, 0
    %5034 = vmatprep.subr.bf16.mxu0 0
    %5035 = vmatpush1.bf16.msra.mxu0 0
    %5036 = vmatprep.subr.bf16.mxu0 0
    %5037 = vmatpush1.bf16.msra.mxu0 0
    %5038 = vmatprep.subr.bf16.mxu0 0
    %5039 = vmatpush1.bf16.msra.mxu0 0
    %5040 = vmatprep.subr.bf16.mxu0 0
    %5041 = vmatpush1.bf16.msra.mxu0 0
    %5042 = vmatprep.subr.bf16.mxu0 0
    %5043 = vmatpush1.bf16.msra.mxu0 %v5023
    %5044 = vmatprep.subr.bf16.mxu0 0
    %5045 = vmatpush1.bf16.msra.mxu0 %v5022
    %5046 = vmatprep.subr.bf16.mxu0 0
    %5047 = vmatpush1.bf16.msra.mxu0 %v5021
    %5048 = vmatprep.subr.bf16.mxu0 0
    %5049 = vmatpush1.bf16.msra.mxu0 %v5020
    %5050 = vmatprep.subr.bf16.mxu0 0
    %5051 = vmatpush2.bf16.msra.mxu0 0
    %5052 = vmatprep.subr.bf16.mxu0 0
    %5053 = vmatpush2.bf16.msra.mxu0 0
    %5054 = vmatprep.subr.bf16.mxu0 0
    %5055 = vmatpush2.bf16.msra.mxu0 0
    %5056 = vmatprep.subr.bf16.mxu0 0
    %5057 = vmatpush2.bf16.msra.mxu0 0
    %5058 = vmatprep.subr.bf16.mxu0 0
    %5059 = vmatpush2.bf16.msra.mxu0 0
    %5060 = vmatprep.subr.bf16.mxu0 0
    %5061 = vmatpush2.bf16.msra.mxu0 0
    %5062 = vmatprep.subr.bf16.mxu0 0
    %5063 = vmatpush2.bf16.msra.mxu0 0
    %5064 = vmatprep.subr.bf16.mxu0 0
    %5065 = vmatpush2.bf16.msra.mxu0 0
    %5066 = vmatprep.mubr.bf16.mxu0 0
    %5067 = vmatmul.mubr.bf16.gmra.mxu0 %v5029
    %v5068 = vpop.f32.mrf.mxu0
    %v5069 = vadd.f32 0.0, %v5068
    %v5070 = vpop.f32.mrf.mxu0
    %v5071 = vpop.f32.mrf.mxu0
    %v5072 = vadd.f32 0.0, %v5071
    %v5073 = vpop.f32.mrf.mxu0
    %5074 = vmatprep.mubr.bf16.mxu0 0
    %5075 = vmatmul.mubr.bf16.gmra.mxu0 %v5032
    %v5076 = vpop.f32.mrf.mxu0
    %v5077 = vadd.f32 0.0, %v5076
    %v5078 = vpop.f32.mrf.mxu0
    %v5079 = vpop.f32.mrf.mxu0
    %v5080 = vpop.f32.mrf.mxu0
    %5081 = vdwg.mxu0
    %v5082 = vsel %vm828, %v5069, 0.0
    %v5083 = vsel %vm828, %v5072, 0.0
    %v5084 = vadd.f32 %v5082, %v5083
    %v5085 = vsel %vm828, %v5077, 0.0
    %v5086 = vadd.f32 %v5084, %v5085
    %v5087 = vrot.slane %v5086, 4
    %v5088 = vadd.f32 %v5086, %v5087
    %v5089 = vrot.slane %v5088, 2
    %v5090 = vadd.f32 %v5088, %v5089
    %v5091 = vrot.slane %v5090, 1
    %v5092 = vadd.f32 %v5090, %v5091
    %v5093 = vmul.f32 %v5069, %v5069
    %v5094 = vmul.f32 %v5072, %v5072
    %v5095 = vmul.f32 %v5077, %v5077
    %v5096 = vsel %vm828, %v5093, 0.0
    %v5097 = vsel %vm828, %v5094, 0.0
    %v5098 = vadd.f32 %v5096, %v5097
    %v5099 = vsel %vm828, %v5095, 0.0
    %v5100 = vadd.f32 %v5098, %v5099
    %v5101 = vrot.slane %v5100, 4
    %v5102 = vadd.f32 %v5100, %v5101
    %v5103 = vrot.slane %v5102, 2
    %v5104 = vadd.f32 %v5102, %v5103
    %v5105 = vrot.slane %v5104, 1
    %v5106 = vadd.f32 %v5104, %v5105
    %v5107 = vmul.f32 %v5092, 0.041666668
    %v5108 = vmul.f32 %v5106, 0.041666668
    %v5109 = vmul.f32 %v5107, %v5107
    %v5110 = vsub.f32 %v5108, %v5109
    %v5111 = vsub.f32 %v5069, %v5107
    %v5112 = vsub.f32 %v5072, %v5107
    %v5113 = vsub.f32 %v5077, %v5107
    %v5114 = vadd.f32 %v5110, 1e-05
    %v5115 = vrsqrt.pop %v5114
    %v5116 = vmul.f32 %v5111, %v5115
    %v5117 = vmul.f32 %v5112, %v5115
    %v5118 = vmul.f32 %v5113, %v5115
    %v5119 = vmax.f32 %v5116, 0.0
    %v5120 = vmax.f32 %v5117, 0.0
    %v5121 = vmax.f32 %v5118, 0.0
    %v5122 = vld [vmem:[#allocation2 + $0x208] sm:$0xf]
    %v5123 = vld [vmem:[#allocation2 + $0x20c] sm:$0xf]
    %v5124 = vld [vmem:[#allocation2 + $0x210] sm:$0xf]
    %v5125 = vld [vmem:[#allocation2 + $0x214] sm:$0xf]
    %v5126 = vld [vmem:[#allocation2 + $0x218] sm:$0xf]
    %v5127 = vld [vmem:[#allocation2 + $0x21c] sm:$0xf]
    %v5128 = vld [vmem:[#allocation2 + $0x220] sm:$0xf]
    %v5129 = vld [vmem:[#allocation2 + $0x224] sm:$0xf]
    %v5130 = vld [vmem:[#allocation2 + $0x228] sm:$0xf]
    %v5131 = vld [vmem:[#allocation2 + $0x22c] sm:$0xf]
    %v5132 = vld [vmem:[#allocation2 + $0x230] sm:$0xf]
    %v5133 = vld [vmem:[#allocation2 + $0x234] sm:$0xf]
    %v5134 = vmul.f32 %v3332, 1.1
    %v5135 = vmul.f32 %v3333, 1.1
    %v5136 = vadd.f32 %v4164, %v5134
    %v5137 = vadd.f32 %v4165, %v5135
    %v5138 = vpack.c.bf16 %v5137, %v5136
    %v5143 = vunpack.c.l.b16 %v5122
    %v5144 = vunpack.c.l.b16 %v5123
    %v5145 = vunpack.c.l.b16 %v5124
    %v5146 = vunpack.c.l.b16 %v5125
    %v5147 = vpack.c.b16 %v5144, %v5143
    %v5148 = vpack.c.b16 %v5146, %v5145
    %v5152 = vsel %vm828, %v5138, 0
    %5154 = vmatprep.subr.bf16.mxu0 0
    %5155 = vmatpush1.bf16.msra.mxu0 0
    %5156 = vmatprep.subr.bf16.mxu0 0
    %5157 = vmatpush1.bf16.msra.mxu0 0
    %5158 = vmatprep.subr.bf16.mxu0 0
    %5159 = vmatpush1.bf16.msra.mxu0 0
    %5160 = vmatprep.subr.bf16.mxu0 0
    %5161 = vmatpush1.bf16.msra.mxu0 0
    %5162 = vmatprep.subr.bf16.mxu0 0
    %5163 = vmatpush1.bf16.msra.mxu0 0
    %5164 = vmatprep.subr.bf16.mxu0 0
    %5165 = vmatpush1.bf16.msra.mxu0 0
    %5166 = vmatprep.subr.bf16.mxu0 0
    %5167 = vmatpush1.bf16.msra.mxu0 %v5148
    %5168 = vmatprep.subr.bf16.mxu0 0
    %5169 = vmatpush1.bf16.msra.mxu0 %v5147
    %5170 = vmatprep.subr.bf16.mxu0 0
    %5171 = vmatpush2.bf16.msra.mxu0 0
    %5172 = vmatprep.subr.bf16.mxu0 0
    %5173 = vmatpush2.bf16.msra.mxu0 0
    %5174 = vmatprep.subr.bf16.mxu0 0
    %5175 = vmatpush2.bf16.msra.mxu0 0
    %5176 = vmatprep.subr.bf16.mxu0 0
    %5177 = vmatpush2.bf16.msra.mxu0 0
    %5178 = vmatprep.subr.bf16.mxu0 0
    %5179 = vmatpush2.bf16.msra.mxu0 0
    %5180 = vmatprep.subr.bf16.mxu0 0
    %5181 = vmatpush2.bf16.msra.mxu0 0
    %5182 = vmatprep.subr.bf16.mxu0 0
    %5183 = vmatpush2.bf16.msra.mxu0 0
    %5184 = vmatprep.subr.bf16.mxu0 0
    %5185 = vmatpush2.bf16.msra.mxu0 0
    %5186 = vmatprep.mubr.bf16.mxu0 0
    %5187 = vmatmul.mubr.bf16.gmra.mxu0 %v5152
    %v5188 = vpop.f32.mrf.mxu0
    %v5189 = vadd.f32 0.0, %v5188
    %v5190 = vpop.f32.mrf.mxu0
    %v5191 = vpop.f32.mrf.mxu0
    %v5192 = vadd.f32 0.0, %v5191
    %v5193 = vpop.f32.mrf.mxu0
    %5194 = vdwg.mxu0
    %v5195 = vsel %vm372, %v5189, 0.0
    %v5196 = vsel %vm2851, %v5192, 0.0
    %v5197 = vadd.f32 %v5195, %v5196
    %v5198 = vrot.slane %v5197, 4
    %v5199 = vadd.f32 %v5197, %v5198
    %v5200 = vrot.slane %v5199, 2
    %v5201 = vadd.f32 %v5199, %v5200
    %v5202 = vrot.slane %v5201, 1
    %v5203 = vadd.f32 %v5201, %v5202
    %v5204 = vmul.f32 %v5189, %v5189
    %v5205 = vmul.f32 %v5192, %v5192
    %v5206 = vsel %vm372, %v5204, 0.0
    %v5207 = vsel %vm2851, %v5205, 0.0
    %v5208 = vadd.f32 %v5206, %v5207
    %v5209 = vrot.slane %v5208, 4
    %v5210 = vadd.f32 %v5208, %v5209
    %v5211 = vrot.slane %v5210, 2
    %v5212 = vadd.f32 %v5210, %v5211
    %v5213 = vrot.slane %v5212, 1
    %v5214 = vadd.f32 %v5212, %v5213
    %v5215 = vmul.f32 %v5203, 0.1
    %v5216 = vmul.f32 %v5214, 0.1
    %v5217 = vmul.f32 %v5215, %v5215
    %v5218 = vsub.f32 %v5216, %v5217
    %v5219 = vsub.f32 %v5189, %v5215
    %v5220 = vsub.f32 %v5192, %v5215
    %v5221 = vadd.f32 %v5218, 1e-05
    %v5222 = vrsqrt.pop %v5221
    %v5223 = vmul.f32 %v5219, %v5222
    %v5224 = vmul.f32 %v5220, %v5222
    %v5225 = vmax.f32 %v5223, 0.0
    %v5226 = vmax.f32 %v5224, 0.0
    %v5227 = vpack.c.bf16 %v5226, %v5225
    %v5236 = vunpack.c.l.b16 %v5126
    %v5237 = vunpack.c.l.b16 %v5127
    %v5238 = vunpack.c.l.b16 %v5128
    %v5239 = vunpack.c.l.b16 %v5129
    %v5240 = vunpack.c.l.b16 %v5130
    %v5241 = vunpack.c.l.b16 %v5131
    %v5242 = vunpack.c.l.b16 %v5132
    %v5243 = vunpack.c.l.b16 %v5133
    %v5244 = vpack.c.b16 %v5237, %v5236
    %v5245 = vpack.c.b16 %v5239, %v5238
    %v5246 = vpack.c.b16 %v5241, %v5240
    %v5247 = vpack.c.b16 %v5243, %v5242
    %v5253 = vsel %vm372, %v5227, 0
    %5255 = vmatprep.subr.bf16.mxu0 0
    %5256 = vmatpush1.bf16.msra.mxu0 0
    %5257 = vmatprep.subr.bf16.mxu0 0
    %5258 = vmatpush1.bf16.msra.mxu0 0
    %5259 = vmatprep.subr.bf16.mxu0 0
    %5260 = vmatpush1.bf16.msra.mxu0 0
    %5261 = vmatprep.subr.bf16.mxu0 0
    %5262 = vmatpush1.bf16.msra.mxu0 0
    %5263 = vmatprep.subr.bf16.mxu0 0
    %5264 = vmatpush1.bf16.msra.mxu0 %v5247
    %5265 = vmatprep.subr.bf16.mxu0 0
    %5266 = vmatpush1.bf16.msra.mxu0 %v5246
    %5267 = vmatprep.subr.bf16.mxu0 0
    %5268 = vmatpush1.bf16.msra.mxu0 %v5245
    %5269 = vmatprep.subr.bf16.mxu0 0
    %5270 = vmatpush1.bf16.msra.mxu0 %v5244
    %5271 = vmatprep.subr.bf16.mxu0 0
    %5272 = vmatpush2.bf16.msra.mxu0 0
    %5273 = vmatprep.subr.bf16.mxu0 0
    %5274 = vmatpush2.bf16.msra.mxu0 0
    %5275 = vmatprep.subr.bf16.mxu0 0
    %5276 = vmatpush2.bf16.msra.mxu0 0
    %5277 = vmatprep.subr.bf16.mxu0 0
    %5278 = vmatpush2.bf16.msra.mxu0 0
    %5279 = vmatprep.subr.bf16.mxu0 0
    %5280 = vmatpush2.bf16.msra.mxu0 0
    %5281 = vmatprep.subr.bf16.mxu0 0
    %5282 = vmatpush2.bf16.msra.mxu0 0
    %5283 = vmatprep.subr.bf16.mxu0 0
    %5284 = vmatpush2.bf16.msra.mxu0 0
    %5285 = vmatprep.subr.bf16.mxu0 0
    %5286 = vmatpush2.bf16.msra.mxu0 0
    %5287 = vmatprep.mubr.bf16.mxu0 0
    %5288 = vmatmul.mubr.bf16.gmra.mxu0 %v5253
    %v5289 = vpop.f32.mrf.mxu0
    %v5290 = vadd.f32 0.0, %v5289
    %v5291 = vpop.f32.mrf.mxu0
    %v5292 = vpop.f32.mrf.mxu0
    %v5293 = vadd.f32 0.0, %v5292
    %v5294 = vpop.f32.mrf.mxu0
    %5295 = vdwg.mxu0
    %v5296 = vsel %vm828, %v5290, 0.0
    %v5297 = vsel %vm2953, %v5293, 0.0
    %v5298 = vadd.f32 %v5296, %v5297
    %v5299 = vrot.slane %v5298, 4
    %v5300 = vadd.f32 %v5298, %v5299
    %v5301 = vrot.slane %v5300, 2
    %v5302 = vadd.f32 %v5300, %v5301
    %v5303 = vrot.slane %v5302, 1
    %v5304 = vadd.f32 %v5302, %v5303
    %v5305 = vmul.f32 %v5290, %v5290
    %v5306 = vmul.f32 %v5293, %v5293
    %v5307 = vsel %vm828, %v5305, 0.0
    %v5308 = vsel %vm2953, %v5306, 0.0
    %v5309 = vadd.f32 %v5307, %v5308
    %v5310 = vrot.slane %v5309, 4
    %v5311 = vadd.f32 %v5309, %v5310
    %v5312 = vrot.slane %v5311, 2
    %v5313 = vadd.f32 %v5311, %v5312
    %v5314 = vrot.slane %v5313, 1
    %v5315 = vadd.f32 %v5313, %v5314
    %v5316 = vmul.f32 %v5304, 0.1
    %v5317 = vmul.f32 %v5315, 0.1
    %v5318 = vmul.f32 %v5316, %v5316
    %v5319 = vsub.f32 %v5317, %v5318
    %v5320 = vsub.f32 %v5290, %v5316
    %v5321 = vsub.f32 %v5293, %v5316
    %v5322 = vadd.f32 %v5319, 1e-05
    %v5323 = vrsqrt.pop %v5322
    %v5324 = vmul.f32 %v5320, %v5323
    %v5325 = vmul.f32 %v5321, %v5323
    %v5326 = vmax.f32 %v5324, 0.0
    %v5327 = vmax.f32 %v5325, 0.0
    %v5328 = vmul.f32 %v3334, 1.1
    %v5329 = vmul.f32 %v3335, 1.1
    %v5330 = vadd.f32 %v4436, %v5328
    %v5331 = vadd.f32 %v4437, %v5329
    %v5332 = vpack.c.bf16 %v5331, %v5330
    %v5334 = vsel %vm828, %v5332, 0
    %5336 = vmatprep.subr.bf16.mxu0 0
    %5337 = vmatpush1.bf16.msra.mxu0 0
    %5338 = vmatprep.subr.bf16.mxu0 0
    %5339 = vmatpush1.bf16.msra.mxu0 0
    %5340 = vmatprep.subr.bf16.mxu0 0
    %5341 = vmatpush1.bf16.msra.mxu0 0
    %5342 = vmatprep.subr.bf16.mxu0 0
    %5343 = vmatpush1.bf16.msra.mxu0 0
    %5344 = vmatprep.subr.bf16.mxu0 0
    %5345 = vmatpush1.bf16.msra.mxu0 0
    %5346 = vmatprep.subr.bf16.mxu0 0
    %5347 = vmatpush1.bf16.msra.mxu0 0
    %5348 = vmatprep.subr.bf16.mxu0 0
    %5349 = vmatpush1.bf16.msra.mxu0 %v5148
    %5350 = vmatprep.subr.bf16.mxu0 0
    %5351 = vmatpush1.bf16.msra.mxu0 %v5147
    %5352 = vmatprep.subr.bf16.mxu0 0
    %5353 = vmatpush2.bf16.msra.mxu0 0
    %5354 = vmatprep.subr.bf16.mxu0 0
    %5355 = vmatpush2.bf16.msra.mxu0 0
    %5356 = vmatprep.subr.bf16.mxu0 0
    %5357 = vmatpush2.bf16.msra.mxu0 0
    %5358 = vmatprep.subr.bf16.mxu0 0
    %5359 = vmatpush2.bf16.msra.mxu0 0
    %5360 = vmatprep.subr.bf16.mxu0 0
    %5361 = vmatpush2.bf16.msra.mxu0 0
    %5362 = vmatprep.subr.bf16.mxu0 0
    %5363 = vmatpush2.bf16.msra.mxu0 0
    %5364 = vmatprep.subr.bf16.mxu0 0
    %5365 = vmatpush2.bf16.msra.mxu0 0
    %5366 = vmatprep.subr.bf16.mxu0 0
    %5367 = vmatpush2.bf16.msra.mxu0 0
    %5368 = vmatprep.mubr.bf16.mxu0 0
    %5369 = vmatmul.mubr.bf16.gmra.mxu0 %v5334
    %v5370 = vpop.f32.mrf.mxu0
    %v5371 = vadd.f32 0.0, %v5370
    %v5372 = vpop.f32.mrf.mxu0
    %v5373 = vpop.f32.mrf.mxu0
    %v5374 = vadd.f32 0.0, %v5373
    %v5375 = vpop.f32.mrf.mxu0
    %5376 = vdwg.mxu0
    %v5377 = vsel %vm372, %v5371, 0.0
    %v5378 = vsel %vm3035, %v5374, 0.0
    %v5379 = vadd.f32 %v5377, %v5378
    %v5380 = vrot.slane %v5379, 4
    %v5381 = vadd.f32 %v5379, %v5380
    %v5382 = vrot.slane %v5381, 2
    %v5383 = vadd.f32 %v5381, %v5382
    %v5384 = vrot.slane %v5383, 1
    %v5385 = vadd.f32 %v5383, %v5384
    %v5386 = vmul.f32 %v5371, %v5371
    %v5387 = vmul.f32 %v5374, %v5374
    %v5388 = vsel %vm372, %v5386, 0.0
    %v5389 = vsel %vm3035, %v5387, 0.0
    %v5390 = vadd.f32 %v5388, %v5389
    %v5391 = vrot.slane %v5390, 4
    %v5392 = vadd.f32 %v5390, %v5391
    %v5393 = vrot.slane %v5392, 2
    %v5394 = vadd.f32 %v5392, %v5393
    %v5395 = vrot.slane %v5394, 1
    %v5396 = vadd.f32 %v5394, %v5395
    %v5397 = vmul.f32 %v5385, 0.083333336
    %v5398 = vmul.f32 %v5396, 0.083333336
    %v5399 = vmul.f32 %v5397, %v5397
    %v5400 = vsub.f32 %v5398, %v5399
    %v5401 = vsub.f32 %v5371, %v5397
    %v5402 = vsub.f32 %v5374, %v5397
    %v5403 = vadd.f32 %v5400, 1e-05
    %v5404 = vrsqrt.pop %v5403
    %v5405 = vmul.f32 %v5401, %v5404
    %v5406 = vmul.f32 %v5402, %v5404
    %v5407 = vmax.f32 %v5405, 0.0
    %v5408 = vmax.f32 %v5406, 0.0
    %v5409 = vpack.c.bf16 %v5408, %v5407
    %v5411 = vsel %vm372, %v5409, 0
    %5413 = vmatprep.subr.bf16.mxu0 0
    %5414 = vmatpush1.bf16.msra.mxu0 0
    %5415 = vmatprep.subr.bf16.mxu0 0
    %5416 = vmatpush1.bf16.msra.mxu0 0
    %5417 = vmatprep.subr.bf16.mxu0 0
    %5418 = vmatpush1.bf16.msra.mxu0 0
    %5419 = vmatprep.subr.bf16.mxu0 0
    %5420 = vmatpush1.bf16.msra.mxu0 0
    %5421 = vmatprep.subr.bf16.mxu0 0
    %5422 = vmatpush1.bf16.msra.mxu0 %v5247
    %5423 = vmatprep.subr.bf16.mxu0 0
    %5424 = vmatpush1.bf16.msra.mxu0 %v5246
    %5425 = vmatprep.subr.bf16.mxu0 0
    %5426 = vmatpush1.bf16.msra.mxu0 %v5245
    %5427 = vmatprep.subr.bf16.mxu0 0
    %5428 = vmatpush1.bf16.msra.mxu0 %v5244
    %5429 = vmatprep.subr.bf16.mxu0 0
    %5430 = vmatpush2.bf16.msra.mxu0 0
    %5431 = vmatprep.subr.bf16.mxu0 0
    %5432 = vmatpush2.bf16.msra.mxu0 0
    %5433 = vmatprep.subr.bf16.mxu0 0
    %5434 = vmatpush2.bf16.msra.mxu0 0
    %5435 = vmatprep.subr.bf16.mxu0 0
    %5436 = vmatpush2.bf16.msra.mxu0 0
    %5437 = vmatprep.subr.bf16.mxu0 0
    %5438 = vmatpush2.bf16.msra.mxu0 0
    %5439 = vmatprep.subr.bf16.mxu0 0
    %5440 = vmatpush2.bf16.msra.mxu0 0
    %5441 = vmatprep.subr.bf16.mxu0 0
    %5442 = vmatpush2.bf16.msra.mxu0 0
    %5443 = vmatprep.subr.bf16.mxu0 0
    %5444 = vmatpush2.bf16.msra.mxu0 0
    %5445 = vmatprep.mubr.bf16.mxu0 0
    %5446 = vmatmul.mubr.bf16.gmra.mxu0 %v5411
    %v5447 = vpop.f32.mrf.mxu0
    %v5448 = vadd.f32 0.0, %v5447
    %v5449 = vpop.f32.mrf.mxu0
    %v5450 = vpop.f32.mrf.mxu0
    %v5451 = vadd.f32 0.0, %v5450
    %v5452 = vpop.f32.mrf.mxu0
    %5453 = vdwg.mxu0
    %v5454 = vsel %vm828, %v5448, 0.0
    %v5455 = vsel %vm3113, %v5451, 0.0
    %v5456 = vadd.f32 %v5454, %v5455
    %v5457 = vrot.slane %v5456, 4
    %v5458 = vadd.f32 %v5456, %v5457
    %v5459 = vrot.slane %v5458, 2
    %v5460 = vadd.f32 %v5458, %v5459
    %v5461 = vrot.slane %v5460, 1
    %v5462 = vadd.f32 %v5460, %v5461
    %v5463 = vmul.f32 %v5448, %v5448
    %v5464 = vmul.f32 %v5451, %v5451
    %v5465 = vsel %vm828, %v5463, 0.0
    %v5466 = vsel %vm3113, %v5464, 0.0
    %v5467 = vadd.f32 %v5465, %v5466
    %v5468 = vrot.slane %v5467, 4
    %v5469 = vadd.f32 %v5467, %v5468
    %v5470 = vrot.slane %v5469, 2
    %v5471 = vadd.f32 %v5469, %v5470
    %v5472 = vrot.slane %v5471, 1
    %v5473 = vadd.f32 %v5471, %v5472
    %v5474 = vmul.f32 %v5462, 0.083333336
    %v5475 = vmul.f32 %v5473, 0.083333336
    %v5476 = vmul.f32 %v5474, %v5474
    %v5477 = vsub.f32 %v5475, %v5476
    %v5478 = vsub.f32 %v5448, %v5474
    %v5479 = vsub.f32 %v5451, %v5474
    %v5480 = vadd.f32 %v5477, 1e-05
    %v5481 = vrsqrt.pop %v5480
    %v5482 = vmul.f32 %v5478, %v5481
    %v5483 = vmul.f32 %v5479, %v5481
    %v5484 = vmax.f32 %v5482, 0.0
    %v5485 = vmax.f32 %v5483, 0.0
    %v5486 = vld [vmem:[#allocation2 + $0x238] sm:$0xf]
    %v5487 = vld [vmem:[#allocation2 + $0x23c] sm:$0xf]
    %v5488 = vld [vmem:[#allocation2 + $0x240] sm:$0xf]
    %v5489 = vld [vmem:[#allocation2 + $0x244] sm:$0xf]
    %v5490 = vld [vmem:[#allocation2 + $0x248] sm:$0xf]
    %v5491 = vld [vmem:[#allocation2 + $0x24c] sm:$0xf]
    %v5492 = vld [vmem:[#allocation2 + $0x250] sm:$0xf]
    %v5493 = vld [vmem:[#allocation2 + $0x254] sm:$0xf]
    %v5494 = vpack.c.bf16 %v3892, %v3891
    %v5495 = vpack.c.bf16 %v3893, %v3893
    %v5496 = vpack.c.bf16 %v5120, %v5119
    %v5497 = vpack.c.bf16 %v5121, %v5121
    %v5502 = vunpack.c.l.b16 %v5490
    %v5503 = vunpack.c.l.b16 %v5491
    %v5504 = vunpack.c.l.b16 %v5492
    %v5505 = vunpack.c.l.b16 %v5493
    %v5506 = vpack.c.b16 %v5503, %v5502
    %v5507 = vpack.c.b16 %v5505, %v5504
    %v5511 = vsel %vm828, %v5496, 0
    %v5514 = vsel %vm828, %v5497, 0
    %5516 = vmatprep.subr.bf16.mxu0 0
    %5517 = vmatpush1.bf16.msra.mxu0 0
    %5518 = vmatprep.subr.bf16.mxu0 0
    %5519 = vmatpush1.bf16.msra.mxu0 0
    %5520 = vmatprep.subr.bf16.mxu0 0
    %5521 = vmatpush1.bf16.msra.mxu0 0
    %5522 = vmatprep.subr.bf16.mxu0 0
    %5523 = vmatpush1.bf16.msra.mxu0 0
    %5524 = vmatprep.subr.bf16.mxu0 0
    %5525 = vmatpush1.bf16.msra.mxu0 0
    %5526 = vmatprep.subr.bf16.mxu0 0
    %5527 = vmatpush1.bf16.msra.mxu0 0
    %5528 = vmatprep.subr.bf16.mxu0 0
    %5529 = vmatpush1.bf16.msra.mxu0 %v5507
    %5530 = vmatprep.subr.bf16.mxu0 0
    %5531 = vmatpush1.bf16.msra.mxu0 %v5506
    %5532 = vmatprep.subr.bf16.mxu0 0
    %5533 = vmatpush2.bf16.msra.mxu0 0
    %5534 = vmatprep.subr.bf16.mxu0 0
    %5535 = vmatpush2.bf16.msra.mxu0 0
    %5536 = vmatprep.subr.bf16.mxu0 0
    %5537 = vmatpush2.bf16.msra.mxu0 0
    %5538 = vmatprep.subr.bf16.mxu0 0
    %5539 = vmatpush2.bf16.msra.mxu0 0
    %5540 = vmatprep.subr.bf16.mxu0 0
    %5541 = vmatpush2.bf16.msra.mxu0 0
    %5542 = vmatprep.subr.bf16.mxu0 0
    %5543 = vmatpush2.bf16.msra.mxu0 0
    %5544 = vmatprep.subr.bf16.mxu0 0
    %5545 = vmatpush2.bf16.msra.mxu0 0
    %5546 = vmatprep.subr.bf16.mxu0 0
    %5547 = vmatpush2.bf16.msra.mxu0 0
    %5548 = vmatprep.mubr.bf16.mxu0 0
    %5549 = vmatmul.mubr.bf16.gmra.mxu0 %v5511
    %v5550 = vpop.f32.mrf.mxu0
    %v5551 = vadd.f32 0.0, %v5550
    %v5552 = vpop.f32.mrf.mxu0
    %v5553 = vpop.f32.mrf.mxu0
    %v5554 = vadd.f32 0.0, %v5553
    %v5555 = vpop.f32.mrf.mxu0
    %5556 = vmatprep.mubr.bf16.mxu0 0
    %5557 = vmatmul.mubr.bf16.gmra.mxu0 %v5514
    %v5558 = vpop.f32.mrf.mxu0
    %v5559 = vadd.f32 0.0, %v5558
    %v5560 = vpop.f32.mrf.mxu0
    %v5561 = vpop.f32.mrf.mxu0
    %v5562 = vpop.f32.mrf.mxu0
    %5563 = vdwg.mxu0
    %v5568 = vunpack.c.l.b16 %v5486
    %v5569 = vunpack.c.l.b16 %v5487
    %v5570 = vunpack.c.l.b16 %v5488
    %v5571 = vunpack.c.l.b16 %v5489
    %v5572 = vpack.c.b16 %v5569, %v5568
    %v5573 = vpack.c.b16 %v5571, %v5570
    %v5577 = vsel %vm828, %v5494, 0
    %v5580 = vsel %vm828, %v5495, 0
    %5582 = vmatprep.subr.bf16.mxu0 0
    %5583 = vmatpush1.bf16.msra.mxu0 0
    %5584 = vmatprep.subr.bf16.mxu0 0
    %5585 = vmatpush1.bf16.msra.mxu0 0
    %5586 = vmatprep.subr.bf16.mxu0 0
    %5587 = vmatpush1.bf16.msra.mxu0 0
    %5588 = vmatprep.subr.bf16.mxu0 0
    %5589 = vmatpush1.bf16.msra.mxu0 0
    %5590 = vmatprep.subr.bf16.mxu0 0
    %5591 = vmatpush1.bf16.msra.mxu0 0
    %5592 = vmatprep.subr.bf16.mxu0 0
    %5593 = vmatpush1.bf16.msra.mxu0 0
    %5594 = vmatprep.subr.bf16.mxu0 0
    %5595 = vmatpush1.bf16.msra.mxu0 %v5573
    %5596 = vmatprep.subr.bf16.mxu0 0
    %5597 = vmatpush1.bf16.msra.mxu0 %v5572
    %5598 = vmatprep.subr.bf16.mxu0 0
    %5599 = vmatpush2.bf16.msra.mxu0 0
    %5600 = vmatprep.subr.bf16.mxu0 0
    %5601 = vmatpush2.bf16.msra.mxu0 0
    %5602 = vmatprep.subr.bf16.mxu0 0
    %5603 = vmatpush2.bf16.msra.mxu0 0
    %5604 = vmatprep.subr.bf16.mxu0 0
    %5605 = vmatpush2.bf16.msra.mxu0 0
    %5606 = vmatprep.subr.bf16.mxu0 0
    %5607 = vmatpush2.bf16.msra.mxu0 0
    %5608 = vmatprep.subr.bf16.mxu0 0
    %5609 = vmatpush2.bf16.msra.mxu0 0
    %5610 = vmatprep.subr.bf16.mxu0 0
    %5611 = vmatpush2.bf16.msra.mxu0 0
    %5612 = vmatprep.subr.bf16.mxu0 0
    %5613 = vmatpush2.bf16.msra.mxu0 0
    %5614 = vmatprep.mubr.bf16.mxu0 0
    %5615 = vmatmul.mubr.bf16.gmra.mxu0 %v5577
    %v5616 = vpop.f32.mrf.mxu0
    %v5617 = vadd.f32 %v5551, %v5616
    %v5618 = vpop.f32.mrf.mxu0
    %v5619 = vpop.f32.mrf.mxu0
    %v5620 = vadd.f32 %v5554, %v5619
    %v5621 = vpop.f32.mrf.mxu0
    %5622 = vmatprep.mubr.bf16.mxu0 0
    %5623 = vmatmul.mubr.bf16.gmra.mxu0 %v5580
    %v5624 = vpop.f32.mrf.mxu0
    %v5625 = vadd.f32 %v5559, %v5624
    %v5626 = vpop.f32.mrf.mxu0
    %v5627 = vpop.f32.mrf.mxu0
    %v5628 = vpop.f32.mrf.mxu0
    %5629 = vdwg.mxu0
    %v5630 = vsel %vm828, %v5617, 0.0
    %v5631 = vsel %vm828, %v5620, 0.0
    %v5632 = vadd.f32 %v5630, %v5631
    %v5633 = vsel %vm828, %v5625, 0.0
    %v5634 = vadd.f32 %v5632, %v5633
    %v5635 = vrot.slane %v5634, 4
    %v5636 = vadd.f32 %v5634, %v5635
    %v5637 = vrot.slane %v5636, 2
    %v5638 = vadd.f32 %v5636, %v5637
    %v5639 = vrot.slane %v5638, 1
    %v5640 = vadd.f32 %v5638, %v5639
    %v5641 = vmul.f32 %v5617, %v5617
    %v5642 = vmul.f32 %v5620, %v5620
    %v5643 = vmul.f32 %v5625, %v5625
    %v5644 = vsel %vm828, %v5641, 0.0
    %v5645 = vsel %vm828, %v5642, 0.0
    %v5646 = vadd.f32 %v5644, %v5645
    %v5647 = vsel %vm828, %v5643, 0.0
    %v5648 = vadd.f32 %v5646, %v5647
    %v5649 = vrot.slane %v5648, 4
    %v5650 = vadd.f32 %v5648, %v5649
    %v5651 = vrot.slane %v5650, 2
    %v5652 = vadd.f32 %v5650, %v5651
    %v5653 = vrot.slane %v5652, 1
    %v5654 = vadd.f32 %v5652, %v5653
    %v5655 = vmul.f32 %v5640, 0.041666668
    %v5656 = vmul.f32 %v5654, 0.041666668
    %v5657 = vmul.f32 %v5655, %v5655
    %v5658 = vsub.f32 %v5656, %v5657
    %v5659 = vsub.f32 %v5617, %v5655
    %v5660 = vsub.f32 %v5620, %v5655
    %v5661 = vsub.f32 %v5625, %v5655
    %v5662 = vadd.f32 %v5658, 1e-05
    %v5663 = vrsqrt.pop %v5662
    %v5664 = vmul.f32 %v5659, %v5663
    %v5665 = vmul.f32 %v5660, %v5663
    %v5666 = vmul.f32 %v5661, %v5663
    %v5667 = vmax.f32 %v5664, 0.0
    %v5668 = vmax.f32 %v5665, 0.0
    %v5669 = vmax.f32 %v5666, 0.0
    %v5670 = vadd.f32 %v3329, %v5667
    %v5671 = vadd.f32 %v3330, %v5668
    %v5672 = vadd.f32 %v3331, %v5669
    %v5673 = vadd.f32 %v3332, %v5326
    %v5674 = vadd.f32 %v3333, %v5327
    %v5675 = vadd.f32 %v3334, %v5484
    %v5676 = vadd.f32 %v3335, %v5485
    %v5677 = vld [vmem:[%s0 + $0xf0] sm:$0x1]
    %v5678 = vpack.c.bf16 %v5674, %v5673
    %v5680 = vsel %vm2167, %v5677, 0
    %v5683 = vsel %vm2174, %v5678, 0
    %5685 = vmatprep.subr.bf16.mxu0 0
    %5686 = vmatpush1.bf16.msra.mxu0 0
    %5687 = vmatprep.subr.bf16.mxu0 0
    %5688 = vmatpush1.bf16.msra.mxu0 0
    %5689 = vmatprep.subr.bf16.mxu0 0
    %5690 = vmatpush1.bf16.msra.mxu0 0
    %5691 = vmatprep.subr.bf16.mxu0 0
    %5692 = vmatpush1.bf16.msra.mxu0 0
    %5693 = vmatprep.subr.bf16.mxu0 0
    %5694 = vmatpush1.bf16.msra.mxu0 0
    %5695 = vmatprep.subr.bf16.mxu0 0
    %5696 = vmatpush1.bf16.msra.mxu0 0
    %5697 = vmatprep.subr.bf16.mxu0 0
    %5698 = vmatpush1.bf16.msra.mxu0 0
    %5699 = vmatprep.subr.bf16.mxu0 0
    %5700 = vmatpush1.bf16.msra.mxu0 %v5683
    %5701 = vmatprep.subr.bf16.mxu0 0
    %5702 = vmatpush2.bf16.msra.mxu0 0
    %5703 = vmatprep.subr.bf16.mxu0 0
    %5704 = vmatpush2.bf16.msra.mxu0 0
    %5705 = vmatprep.subr.bf16.mxu0 0
    %5706 = vmatpush2.bf16.msra.mxu0 0
    %5707 = vmatprep.subr.bf16.mxu0 0
    %5708 = vmatpush2.bf16.msra.mxu0 0
    %5709 = vmatprep.subr.bf16.mxu0 0
    %5710 = vmatpush2.bf16.msra.mxu0 0
    %5711 = vmatprep.subr.bf16.mxu0 0
    %5712 = vmatpush2.bf16.msra.mxu0 0
    %5713 = vmatprep.subr.bf16.mxu0 0
    %5714 = vmatpush2.bf16.msra.mxu0 0
    %5715 = vmatprep.subr.bf16.mxu0 0
    %5716 = vmatpush2.bf16.msra.mxu0 0
    %5717 = vmatprep.mubr.bf16.mxu0 0
    %5718 = vmatmul.mubr.bf16.gmra.mxu0 %v5680
    %v5719 = vpop.f32.mrf.mxu0
    %v5720 = vadd.f32 0.0, %v5719
    %v5721 = vpop.f32.mrf.mxu0
    %v5722 = vpop.f32.mrf.mxu0
    %v5723 = vpop.f32.mrf.mxu0
    %5724 = vdwg.mxu0
    %v5725 = vld [vmem:[%s0 + $0xf8] sm:$0x1]
    %v5726 = vpack.c.bf16 %v5676, %v5675
    %v5728 = vsel %vm69, %v5725, 0
    %v5731 = vsel %vm76, %v5726, 0
    %5733 = vmatprep.subr.bf16.mxu0 0
    %5734 = vmatpush1.bf16.msra.mxu0 0
    %5735 = vmatprep.subr.bf16.mxu0 0
    %5736 = vmatpush1.bf16.msra.mxu0 0
    %5737 = vmatprep.subr.bf16.mxu0 0
    %5738 = vmatpush1.bf16.msra.mxu0 0
    %5739 = vmatprep.subr.bf16.mxu0 0
    %5740 = vmatpush1.bf16.msra.mxu0 0
    %5741 = vmatprep.subr.bf16.mxu0 0
    %5742 = vmatpush1.bf16.msra.mxu0 0
    %5743 = vmatprep.subr.bf16.mxu0 0
    %5744 = vmatpush1.bf16.msra.mxu0 0
    %5745 = vmatprep.subr.bf16.mxu0 0
    %5746 = vmatpush1.bf16.msra.mxu0 0
    %5747 = vmatprep.subr.bf16.mxu0 0
    %5748 = vmatpush1.bf16.msra.mxu0 %v5731
    %5749 = vmatprep.subr.bf16.mxu0 0
    %5750 = vmatpush2.bf16.msra.mxu0 0
    %5751 = vmatprep.subr.bf16.mxu0 0
    %5752 = vmatpush2.bf16.msra.mxu0 0
    %5753 = vmatprep.subr.bf16.mxu0 0
    %5754 = vmatpush2.bf16.msra.mxu0 0
    %5755 = vmatprep.subr.bf16.mxu0 0
    %5756 = vmatpush2.bf16.msra.mxu0 0
    %5757 = vmatprep.subr.bf16.mxu0 0
    %5758 = vmatpush2.bf16.msra.mxu0 0
    %5759 = vmatprep.subr.bf16.mxu0 0
    %5760 = vmatpush2.bf16.msra.mxu0 0
    %5761 = vmatprep.subr.bf16.mxu0 0
    %5762 = vmatpush2.bf16.msra.mxu0 0
    %5763 = vmatprep.subr.bf16.mxu0 0
    %5764 = vmatpush2.bf16.msra.mxu0 0
    %5765 = vmatprep.mubr.bf16.mxu0 0
    %5766 = vmatmul.mubr.bf16.gmra.mxu0 %v5728
    %v5767 = vpop.f32.mrf.mxu0
    %v5768 = vadd.f32 0.0, %v5767
    %v5769 = vpop.f32.mrf.mxu0
    %v5770 = vpop.f32.mrf.mxu0
    %v5771 = vpop.f32.mrf.mxu0
    %5772 = vdwg.mxu0
    %v5773 = vld [vmem:[%s0 + $0x100] sm:$0x1]
    %v5774 = vpack.c.bf16 %v5671, %v5670
    %v5775 = vpack.c.bf16 %v5672, %v5672
    %v5777 = vsel %vm894, %v5773, 0
    %v5780 = vsel %vm901, %v5775, 0
    %5782 = vmatprep.subr.bf16.mxu0 0
    %5783 = vmatpush1.bf16.msra.mxu0 0
    %5784 = vmatprep.subr.bf16.mxu0 0
    %5785 = vmatpush1.bf16.msra.mxu0 0
    %5786 = vmatprep.subr.bf16.mxu0 0
    %5787 = vmatpush1.bf16.msra.mxu0 0
    %5788 = vmatprep.subr.bf16.mxu0 0
    %5789 = vmatpush1.bf16.msra.mxu0 0
    %5790 = vmatprep.subr.bf16.mxu0 0
    %5791 = vmatpush1.bf16.msra.mxu0 0
    %5792 = vmatprep.subr.bf16.mxu0 0
    %5793 = vmatpush1.bf16.msra.mxu0 0
    %5794 = vmatprep.subr.bf16.mxu0 0
    %5795 = vmatpush1.bf16.msra.mxu0 %v5780
    %5796 = vmatprep.subr.bf16.mxu0 0
    %5797 = vmatpush1.bf16.msra.mxu0 %v5774
    %5798 = vmatprep.subr.bf16.mxu0 0
    %5799 = vmatpush2.bf16.msra.mxu0 0
    %5800 = vmatprep.subr.bf16.mxu0 0
    %5801 = vmatpush2.bf16.msra.mxu0 0
    %5802 = vmatprep.subr.bf16.mxu0 0
    %5803 = vmatpush2.bf16.msra.mxu0 0
    %5804 = vmatprep.subr.bf16.mxu0 0
    %5805 = vmatpush2.bf16.msra.mxu0 0
    %5806 = vmatprep.subr.bf16.mxu0 0
    %5807 = vmatpush2.bf16.msra.mxu0 0
    %5808 = vmatprep.subr.bf16.mxu0 0
    %5809 = vmatpush2.bf16.msra.mxu0 0
    %5810 = vmatprep.subr.bf16.mxu0 0
    %5811 = vmatpush2.bf16.msra.mxu0 0
    %5812 = vmatprep.subr.bf16.mxu0 0
    %5813 = vmatpush2.bf16.msra.mxu0 0
    %5814 = vmatprep.mubr.bf16.mxu0 0
    %5815 = vmatmul.mubr.bf16.gmra.mxu0 %v5777
    %v5816 = vpop.f32.mrf.mxu0
    %v5817 = vadd.f32 0.0, %v5816
    %v5818 = vpop.f32.mrf.mxu0
    %v5819 = vpop.f32.mrf.mxu0
    %v5820 = vpop.f32.mrf.mxu0
    %5821 = vdwg.mxu0
    %v5822 = vld [vmem:[#allocation2 + $0x258] sm:$0xf]
    %v5823 = vld [vmem:[#allocation2 + $0x25c] sm:$0xf]
    %v5824 = vld [vmem:[#allocation2 + $0x260] sm:$0xf]
    %v5825 = vld [vmem:[#allocation2 + $0x264] sm:$0xf]
    %v5826 = vld [vmem:[#allocation2 + $0x268] sm:$0xf]
    %v5827 = vld [vmem:[#allocation2 + $0x26c] sm:$0xf]
    %v5828 = vld [vmem:[#allocation2 + $0x270] sm:$0xf]
    %v5829 = vld [vmem:[#allocation2 + $0x274] sm:$0xf]
    %v5830 = vld [vmem:[#allocation2 + $0x278] sm:$0xf]
    %v5831 = vld [vmem:[#allocation2 + $0x27c] sm:$0xf]
    %v5832 = vld [vmem:[#allocation2 + $0x280] sm:$0xf]
    %v5833 = vld [vmem:[#allocation2 + $0x284] sm:$0xf]
    %v5834 = vpack.c.bf16 %v5720, %v5720
    %v5835 = vpack.c.bf16 %v5768, %v5768
    %v5840 = vunpack.c.l.b16 %v5826
    %v5841 = vunpack.c.l.b16 %v5827
    %v5842 = vunpack.c.l.b16 %v5828
    %v5843 = vunpack.c.l.b16 %v5829
    %v5844 = vpack.c.b16 %v5841, %v5840
    %v5845 = vpack.c.b16 %v5843, %v5842
    %v5849 = vsel %vm828, %v5835, 0
    %5851 = vmatprep.subr.bf16.mxu0 0
    %5852 = vmatpush1.bf16.msra.mxu0 0
    %5853 = vmatprep.subr.bf16.mxu0 0
    %5854 = vmatpush1.bf16.msra.mxu0 0
    %5855 = vmatprep.subr.bf16.mxu0 0
    %5856 = vmatpush1.bf16.msra.mxu0 0
    %5857 = vmatprep.subr.bf16.mxu0 0
    %5858 = vmatpush1.bf16.msra.mxu0 0
    %5859 = vmatprep.subr.bf16.mxu0 0
    %5860 = vmatpush1.bf16.msra.mxu0 0
    %5861 = vmatprep.subr.bf16.mxu0 0
    %5862 = vmatpush1.bf16.msra.mxu0 0
    %5863 = vmatprep.subr.bf16.mxu0 0
    %5864 = vmatpush1.bf16.msra.mxu0 %v5845
    %5865 = vmatprep.subr.bf16.mxu0 0
    %5866 = vmatpush1.bf16.msra.mxu0 %v5844
    %5867 = vmatprep.subr.bf16.mxu0 0
    %5868 = vmatpush2.bf16.msra.mxu0 0
    %5869 = vmatprep.subr.bf16.mxu0 0
    %5870 = vmatpush2.bf16.msra.mxu0 0
    %5871 = vmatprep.subr.bf16.mxu0 0
    %5872 = vmatpush2.bf16.msra.mxu0 0
    %5873 = vmatprep.subr.bf16.mxu0 0
    %5874 = vmatpush2.bf16.msra.mxu0 0
    %5875 = vmatprep.subr.bf16.mxu0 0
    %5876 = vmatpush2.bf16.msra.mxu0 0
    %5877 = vmatprep.subr.bf16.mxu0 0
    %5878 = vmatpush2.bf16.msra.mxu0 0
    %5879 = vmatprep.subr.bf16.mxu0 0
    %5880 = vmatpush2.bf16.msra.mxu0 0
    %5881 = vmatprep.subr.bf16.mxu0 0
    %5882 = vmatpush2.bf16.msra.mxu0 0
    %5883 = vmatprep.mubr.bf16.mxu0 0
    %5884 = vmatmul.mubr.bf16.gmra.mxu0 %v5849
    %v5885 = vpop.f32.mrf.mxu0
    %v5886 = vadd.f32 0.0, %v5885
    %v5887 = vpop.f32.mrf.mxu0
    %v5888 = vpop.f32.mrf.mxu0
    %v5889 = vpop.f32.mrf.mxu0
    %5890 = vdwg.mxu0
    %v5895 = vunpack.c.l.b16 %v5822
    %v5896 = vunpack.c.l.b16 %v5823
    %v5897 = vunpack.c.l.b16 %v5824
    %v5898 = vunpack.c.l.b16 %v5825
    %v5899 = vpack.c.b16 %v5896, %v5895
    %v5900 = vpack.c.b16 %v5898, %v5897
    %v5904 = vsel %vm828, %v5834, 0
    %5906 = vmatprep.subr.bf16.mxu0 0
    %5907 = vmatpush1.bf16.msra.mxu0 0
    %5908 = vmatprep.subr.bf16.mxu0 0
    %5909 = vmatpush1.bf16.msra.mxu0 0
    %5910 = vmatprep.subr.bf16.mxu0 0
    %5911 = vmatpush1.bf16.msra.mxu0 0
    %5912 = vmatprep.subr.bf16.mxu0 0
    %5913 = vmatpush1.bf16.msra.mxu0 0
    %5914 = vmatprep.subr.bf16.mxu0 0
    %5915 = vmatpush1.bf16.msra.mxu0 0
    %5916 = vmatprep.subr.bf16.mxu0 0
    %5917 = vmatpush1.bf16.msra.mxu0 0
    %5918 = vmatprep.subr.bf16.mxu0 0
    %5919 = vmatpush1.bf16.msra.mxu0 %v5900
    %5920 = vmatprep.subr.bf16.mxu0 0
    %5921 = vmatpush1.bf16.msra.mxu0 %v5899
    %5922 = vmatprep.subr.bf16.mxu0 0
    %5923 = vmatpush2.bf16.msra.mxu0 0
    %5924 = vmatprep.subr.bf16.mxu0 0
    %5925 = vmatpush2.bf16.msra.mxu0 0
    %5926 = vmatprep.subr.bf16.mxu0 0
    %5927 = vmatpush2.bf16.msra.mxu0 0
    %5928 = vmatprep.subr.bf16.mxu0 0
    %5929 = vmatpush2.bf16.msra.mxu0 0
    %5930 = vmatprep.subr.bf16.mxu0 0
    %5931 = vmatpush2.bf16.msra.mxu0 0
    %5932 = vmatprep.subr.bf16.mxu0 0
    %5933 = vmatpush2.bf16.msra.mxu0 0
    %5934 = vmatprep.subr.bf16.mxu0 0
    %5935 = vmatpush2.bf16.msra.mxu0 0
    %5936 = vmatprep.subr.bf16.mxu0 0
    %5937 = vmatpush2.bf16.msra.mxu0 0
    %5938 = vmatprep.mubr.bf16.mxu0 0
    %5939 = vmatmul.mubr.bf16.gmra.mxu0 %v5904
    %v5940 = vpop.f32.mrf.mxu0
    %v5941 = vadd.f32 %v5886, %v5940
    %v5942 = vpop.f32.mrf.mxu0
    %v5943 = vpop.f32.mrf.mxu0
    %v5944 = vpop.f32.mrf.mxu0
    %5945 = vdwg.mxu0
    %v5946 = vpack.c.bf16 %v5817, %v5817
    %v5951 = vunpack.c.l.b16 %v5830
    %v5952 = vunpack.c.l.b16 %v5831
    %v5953 = vunpack.c.l.b16 %v5832
    %v5954 = vunpack.c.l.b16 %v5833
    %v5955 = vpack.c.b16 %v5952, %v5951
    %v5956 = vpack.c.b16 %v5954, %v5953
    %v5960 = vsel %vm828, %v5946, 0
    %5962 = vmatprep.subr.bf16.mxu0 0
    %5963 = vmatpush1.bf16.msra.mxu0 0
    %5964 = vmatprep.subr.bf16.mxu0 0
    %5965 = vmatpush1.bf16.msra.mxu0 0
    %5966 = vmatprep.subr.bf16.mxu0 0
    %5967 = vmatpush1.bf16.msra.mxu0 0
    %5968 = vmatprep.subr.bf16.mxu0 0
    %5969 = vmatpush1.bf16.msra.mxu0 0
    %5970 = vmatprep.subr.bf16.mxu0 0
    %5971 = vmatpush1.bf16.msra.mxu0 0
    %5972 = vmatprep.subr.bf16.mxu0 0
    %5973 = vmatpush1.bf16.msra.mxu0 0
    %5974 = vmatprep.subr.bf16.mxu0 0
    %5975 = vmatpush1.bf16.msra.mxu0 %v5956
    %5976 = vmatprep.subr.bf16.mxu0 0
    %5977 = vmatpush1.bf16.msra.mxu0 %v5955
    %5978 = vmatprep.subr.bf16.mxu0 0
    %5979 = vmatpush2.bf16.msra.mxu0 0
    %5980 = vmatprep.subr.bf16.mxu0 0
    %5981 = vmatpush2.bf16.msra.mxu0 0
    %5982 = vmatprep.subr.bf16.mxu0 0
    %5983 = vmatpush2.bf16.msra.mxu0 0
    %5984 = vmatprep.subr.bf16.mxu0 0
    %5985 = vmatpush2.bf16.msra.mxu0 0
    %5986 = vmatprep.subr.bf16.mxu0 0
    %5987 = vmatpush2.bf16.msra.mxu0 0
    %5988 = vmatprep.subr.bf16.mxu0 0
    %5989 = vmatpush2.bf16.msra.mxu0 0
    %5990 = vmatprep.subr.bf16.mxu0 0
    %5991 = vmatpush2.bf16.msra.mxu0 0
    %5992 = vmatprep.subr.bf16.mxu0 0
    %5993 = vmatpush2.bf16.msra.mxu0 0
    %5994 = vmatprep.mubr.bf16.mxu0 0
    %5995 = vmatmul.mubr.bf16.gmra.mxu0 %v5960
    %v5996 = vpop.f32.mrf.mxu0
    %v5997 = vadd.f32 0.0, %v5996
    %v5998 = vpop.f32.mrf.mxu0
    %v5999 = vpop.f32.mrf.mxu0
    %v6000 = vpop.f32.mrf.mxu0
    %6001 = vdwg.mxu0
    %v6002 = vadd.f32 %v5941, %v5997
    %v6003 = vld [vmem:[#allocation4 + $0x60] sm:$0x1]
    %v6004 = vlaneseq
    %v6005 = vshrl.u32 %v6004, 7
    %v6006 = vsub.s32 0, %v6005
    %v6007 = vrot.slane %v6003, %v6006
    %v6008 = vadd.f32 %v6002, %v6007
    %v6009 = vsel %vm2953, %v6008, 0.0
    %v6010 = vrot.slane %v6009, 4
    %v6011 = vadd.f32 %v6009, %v6010
    %v6012 = vrot.slane %v6011, 2
    %v6013 = vadd.f32 %v6011, %v6012
    %v6014 = vrot.slane %v6013, 1
    %v6015 = vadd.f32 %v6013, %v6014
    %v6016 = vmul.f32 %v6008, %v6008
    %v6017 = vsel %vm2953, %v6016, 0.0
    %v6018 = vrot.slane %v6017, 4
    %v6019 = vadd.f32 %v6017, %v6018
    %v6020 = vrot.slane %v6019, 2
    %v6021 = vadd.f32 %v6019, %v6020
    %v6022 = vrot.slane %v6021, 1
    %v6023 = vadd.f32 %v6021, %v6022
    %v6024 = vmul.f32 %v6015, 0.5
    %v6025 = vmul.f32 %v6023, 0.5
    %v6026 = vmul.f32 %v6024, %v6024
    %v6027 = vsub.f32 %v6025, %v6026
    %v6028 = vsub.f32 %v6008, %v6024
    %v6029 = vadd.f32 %v6027, 1e-05
    %v6030 = vrsqrt.pop %v6029
    %v6031 = vmul.f32 %v6028, %v6030
    %v6032 = vmax.f32 %v6031, 0.0
    %v6033 = vld [vmem:[#allocation2 + $0x288] sm:$0xf]
    %v6034 = vld [vmem:[#allocation2 + $0x28c] sm:$0xf]
    %v6035 = vld [vmem:[#allocation2 + $0x290] sm:$0xf]
    %v6036 = vld [vmem:[#allocation2 + $0x294] sm:$0xf]
    %v6037 = vpack.c.bf16 %v6032, %v6032
    %v6038 = vld [vmem:[#allocation4 + $0x68] sm:$0x1]
    %v6039 = vlaneseq
    %v6040 = vshrl.u32 %v6039, 7
    %v6041 = vsub.s32 0, %v6040
    %v6042 = vrot.slane %v6038, %v6041
    %v6047 = vunpack.c.l.b16 %v6033
    %v6048 = vunpack.c.l.b16 %v6034
    %v6049 = vunpack.c.l.b16 %v6035
    %v6050 = vunpack.c.l.b16 %v6036
    %v6051 = vpack.c.b16 %v6048, %v6047
    %v6052 = vpack.c.b16 %v6050, %v6049
    %v6056 = vsel %vm828, %v6037, 0
    %6058 = vmatprep.subr.bf16.mxu0 0
    %6059 = vmatpush1.bf16.msra.mxu0 0
    %6060 = vmatprep.subr.bf16.mxu0 0
    %6061 = vmatpush1.bf16.msra.mxu0 0
    %6062 = vmatprep.subr.bf16.mxu0 0
    %6063 = vmatpush1.bf16.msra.mxu0 0
    %6064 = vmatprep.subr.bf16.mxu0 0
    %6065 = vmatpush1.bf16.msra.mxu0 0
    %6066 = vmatprep.subr.bf16.mxu0 0
    %6067 = vmatpush1.bf16.msra.mxu0 0
    %6068 = vmatprep.subr.bf16.mxu0 0
    %6069 = vmatpush1.bf16.msra.mxu0 0
    %6070 = vmatprep.subr.bf16.mxu0 0
    %6071 = vmatpush1.bf16.msra.mxu0 %v6052
    %6072 = vmatprep.subr.bf16.mxu0 0
    %6073 = vmatpush1.bf16.msra.mxu0 %v6051
    %6074 = vmatprep.subr.bf16.mxu0 0
    %6075 = vmatpush2.bf16.msra.mxu0 0
    %6076 = vmatprep.subr.bf16.mxu0 0
    %6077 = vmatpush2.bf16.msra.mxu0 0
    %6078 = vmatprep.subr.bf16.mxu0 0
    %6079 = vmatpush2.bf16.msra.mxu0 0
    %6080 = vmatprep.subr.bf16.mxu0 0
    %6081 = vmatpush2.bf16.msra.mxu0 0
    %6082 = vmatprep.subr.bf16.mxu0 0
    %6083 = vmatpush2.bf16.msra.mxu0 0
    %6084 = vmatprep.subr.bf16.mxu0 0
    %6085 = vmatpush2.bf16.msra.mxu0 0
    %6086 = vmatprep.subr.bf16.mxu0 0
    %6087 = vmatpush2.bf16.msra.mxu0 0
    %6088 = vmatprep.subr.bf16.mxu0 0
    %6089 = vmatpush2.bf16.msra.mxu0 0
    %6090 = vmatprep.mubr.bf16.mxu0 0
    %6091 = vmatmul.mubr.bf16.gmra.mxu0 %v6056
    %v6092 = vpop.f32.mrf.mxu0
    %v6093 = vadd.f32 %v6042, %v6092
    %v6094 = vpop.f32.mrf.mxu0
    %v6095 = vpop.f32.mrf.mxu0
    %v6096 = vpop.f32.mrf.mxu0
    %6097 = vdwg.mxu0
    %v6098 = vsel %vm2953, %v6093, 0.0
    %v6099 = vrot.slane %v6098, 4
    %v6100 = vadd.f32 %v6098, %v6099
    %v6101 = vrot.slane %v6100, 2
    %v6102 = vadd.f32 %v6100, %v6101
    %v6103 = vrot.slane %v6102, 1
    %v6104 = vadd.f32 %v6102, %v6103
    %v6105 = vmul.f32 %v6093, %v6093
    %v6106 = vsel %vm2953, %v6105, 0.0
    %v6107 = vrot.slane %v6106, 4
    %v6108 = vadd.f32 %v6106, %v6107
    %v6109 = vrot.slane %v6108, 2
    %v6110 = vadd.f32 %v6108, %v6109
    %v6111 = vrot.slane %v6110, 1
    %v6112 = vadd.f32 %v6110, %v6111
    %v6113 = vmul.f32 %v6104, 0.5
    %v6114 = vmul.f32 %v6112, 0.5
    %v6115 = vmul.f32 %v6113, %v6113
    %v6116 = vsub.f32 %v6114, %v6115
    %v6117 = vsub.f32 %v6093, %v6113
    %v6118 = vadd.f32 %v6116, 1e-05
    %v6119 = vrsqrt.pop %v6118
    %v6120 = vmul.f32 %v6117, %v6119
    %v6121 = vmax.f32 %v6120, 0.0
    %v6122 = vld [vmem:[#allocation2 + $0x298] sm:$0xf]
    %v6123 = vld [vmem:[#allocation2 + $0x29c] sm:$0xf]
    %v6124 = vld [vmem:[#allocation2 + $0x2a0] sm:$0xf]
    %v6125 = vld [vmem:[#allocation2 + $0x2a4] sm:$0xf]
    %v6126 = vpack.c.bf16 %v6121, %v6121
    %v6127 = vld [vmem:[#allocation4 + $0x70] sm:$0x1]
    %v6128 = vlaneseq
    %v6129 = vshrl.u32 %v6128, 7
    %v6130 = vsub.s32 0, %v6129
    %v6131 = vrot.slane %v6127, %v6130
    %v6136 = vunpack.c.l.b16 %v6122
    %v6137 = vunpack.c.l.b16 %v6123
    %v6138 = vunpack.c.l.b16 %v6124
    %v6139 = vunpack.c.l.b16 %v6125
    %v6140 = vpack.c.b16 %v6137, %v6136
    %v6141 = vpack.c.b16 %v6139, %v6138
    %v6145 = vsel %vm828, %v6126, 0
    %6147 = vmatprep.subr.bf16.mxu0 0
    %6148 = vmatpush1.bf16.msra.mxu0 0
    %6149 = vmatprep.subr.bf16.mxu0 0
    %6150 = vmatpush1.bf16.msra.mxu0 0
    %6151 = vmatprep.subr.bf16.mxu0 0
    %6152 = vmatpush1.bf16.msra.mxu0 0
    %6153 = vmatprep.subr.bf16.mxu0 0
    %6154 = vmatpush1.bf16.msra.mxu0 0
    %6155 = vmatprep.subr.bf16.mxu0 0
    %6156 = vmatpush1.bf16.msra.mxu0 0
    %6157 = vmatprep.subr.bf16.mxu0 0
    %6158 = vmatpush1.bf16.msra.mxu0 0
    %6159 = vmatprep.subr.bf16.mxu0 0
    %6160 = vmatpush1.bf16.msra.mxu0 %v6141
    %6161 = vmatprep.subr.bf16.mxu0 0
    %6162 = vmatpush1.bf16.msra.mxu0 %v6140
    %6163 = vmatprep.subr.bf16.mxu0 0
    %6164 = vmatpush2.bf16.msra.mxu0 0
    %6165 = vmatprep.subr.bf16.mxu0 0
    %6166 = vmatpush2.bf16.msra.mxu0 0
    %6167 = vmatprep.subr.bf16.mxu0 0
    %6168 = vmatpush2.bf16.msra.mxu0 0
    %6169 = vmatprep.subr.bf16.mxu0 0
    %6170 = vmatpush2.bf16.msra.mxu0 0
    %6171 = vmatprep.subr.bf16.mxu0 0
    %6172 = vmatpush2.bf16.msra.mxu0 0
    %6173 = vmatprep.subr.bf16.mxu0 0
    %6174 = vmatpush2.bf16.msra.mxu0 0
    %6175 = vmatprep.subr.bf16.mxu0 0
    %6176 = vmatpush2.bf16.msra.mxu0 0
    %6177 = vmatprep.subr.bf16.mxu0 0
    %6178 = vmatpush2.bf16.msra.mxu0 0
    %6179 = vmatprep.mubr.bf16.mxu0 0
    %6180 = vmatmul.mubr.bf16.gmra.mxu0 %v6145
    %v6181 = vpop.f32.mrf.mxu0
    %v6182 = vadd.f32 %v6131, %v6181
    %v6183 = vpop.f32.mrf.mxu0
    %v6184 = vpop.f32.mrf.mxu0
    %v6185 = vpop.f32.mrf.mxu0
    %6186 = vdwg.mxu0
    %vm6187 = vcmask 1024
    %6188 = vst.msk [vmem:[%s5] sm:$0x3] %vm6187, %v6182
    // Predicated region
    $region30: #{forward.1} parent=1 // pred_check
      _
    $region31: #{forward.1} parent=1 // pred_check_branch
      %6190 = sbr.rel (0) target = $region33
    $region32: #{forward.1} parent=1 // pred_region
      _
    $region33: #{forward.1} parent=1 // pred_fallthru
      _
    // Predicated region
    $region34: #{forward.1} parent=1 // pred_check
      _
    $region35: #{forward.1} parent=1 // pred_check_branch
      %6192 = sbr.rel (0) target = $region37
    $region36: #{forward.1} parent=1 // pred_region
      _
    $region37: #{forward.1} parent=1 // pred_fallthru
      _
    %6193 = vsyncpa [#allocation3], 1
    %6194 = vsyncpa [#allocation5], 1

</llo_original>
